<compile_context>
chip_gen: v5e
topology: v5e:2x2
jax: 0.10.0
libtpu: 0.0.40
codegen_flags: <defaults>
</compile_context>

<pallas_src>
import functools

import jax
import jax.numpy as jnp
from jax.experimental import pallas as pl
from jax.experimental.pallas import tpu as pltpu


def _round_up(x, m):
    return ((x + m - 1) // m) * m


# --------------------------------------------------------------------------
# Pallas kernel 1: fused DGCNN edge-conv chain (conv+ReLU+max for 4 layers,
# concat and final emb conv), all per-edge activations stay in VMEM.
# nbr_ref is laid out neighbour-major (k, TM, 3) so the max over neighbours is
# a plain element-wise maximum of k (TM, C) slabs (no cross-lane work).
# --------------------------------------------------------------------------
def _fused_dgcnn_kernel(nbr_ref, ctr_ref, w1n_ref, w1c_ref, w2_ref, w3_ref,
                        w4_ref, w5_ref, o_ref):
    k = nbr_ref.shape[0]
    w1n = w1n_ref[...]
    w1c = w1c_ref[...]
    w2 = w2_ref[...]
    w3 = w3_ref[...]
    w4 = w4_ref[...]
    # centre half of the split first edge-conv: computed once per point
    h1c = jnp.dot(ctr_ref[...], w1c, preferred_element_type=jnp.float32)   # (TM, 64)
    x1 = x2 = x3 = x4 = None
    for j in range(k):                       # static unroll over neighbours
        h1 = jnp.maximum(
            jnp.dot(nbr_ref[j], w1n, preferred_element_type=jnp.float32) + h1c, 0.0)
        h2 = jnp.maximum(
            jnp.dot(h1.astype(jnp.bfloat16), w2,
                    preferred_element_type=jnp.float32), 0.0)
        h3 = jnp.maximum(
            jnp.dot(h2.astype(jnp.bfloat16), w3,
                    preferred_element_type=jnp.float32), 0.0)
        h4 = jnp.maximum(
            jnp.dot(h3.astype(jnp.bfloat16), w4,
                    preferred_element_type=jnp.float32), 0.0)
        if j == 0:
            x1, x2, x3, x4 = h1, h2, h3, h4
        else:
            x1 = jnp.maximum(x1, h1)
            x2 = jnp.maximum(x2, h2)
            x3 = jnp.maximum(x3, h3)
            x4 = jnp.maximum(x4, h4)
    cat = jnp.concatenate([x1, x2, x3, x4], axis=-1).astype(jnp.bfloat16)   # (TM, 512)
    out = jnp.maximum(
        jnp.dot(cat, w5_ref[...], preferred_element_type=jnp.float32), 0.0)
    o_ref[...] = out.astype(o_ref.dtype)


def dgcnn_forward(params, x, k):
    """x: (B, 3, N) f32 -> per-point features (B, N, emb_dims) bf16."""
    B, C, N = x.shape
    # TODO(synk): knn (lax.top_k) + data-dependent neighbour gather have no clean
    #             Pallas TPU equivalent; kept as XLA glue.
    inner = -2.0 * jnp.einsum('bcn,bcm->bnm', x, x)
    xx = jnp.sum(x * x, axis=1)
    pdist = -xx[:, :, None] - inner - xx[:, None, :]
    _, idx = jax.lax.top_k(pdist, k)                         # (B, N, k)
    x_t = jnp.transpose(x, (0, 2, 1))                        # (B, N, 3)
    nbr = jax.vmap(lambda pts, ids: pts[ids])(x_t, idx)      # (B, N, k, 3)

    M = B * N
    nbr = jnp.transpose(nbr.reshape(M, k, C), (1, 0, 2))     # (k, M, 3)
    ctr = x_t.reshape(M, C)                                  # (M, 3)
    TM = min(512, _round_up(M, 8))
    Mp = _round_up(M, TM)
    if Mp != M:
        nbr = jnp.pad(nbr, ((0, 0), (0, Mp - M), (0, 0)))
        ctr = jnp.pad(ctr, ((0, Mp - M), (0, 0)))
    emb = params['w5b'].shape[1]
    out = pl.pallas_call(
        _fused_dgcnn_kernel,
        out_shape=jax.ShapeDtypeStruct((Mp, emb), jnp.bfloat16),
        grid=(Mp // TM,),
        in_specs=[
            pl.BlockSpec((k, TM, C), lambda i: (0, i, 0)),
            pl.BlockSpec((TM, C), lambda i: (i, 0)),
            pl.BlockSpec((C, 64), lambda i: (0, 0)),
            pl.BlockSpec((C, 64), lambda i: (0, 0)),
            pl.BlockSpec((64, 64), lambda i: (0, 0)),
            pl.BlockSpec((64, 128), lambda i: (0, 0)),
            pl.BlockSpec((128, 256), lambda i: (0, 0)),
            pl.BlockSpec((512, emb), lambda i: (0, 0)),
        ],
        out_specs=pl.BlockSpec((TM, emb), lambda i: (i, 0)),
        compiler_params=pltpu.CompilerParams(
            dimension_semantics=("parallel",),
            vmem_limit_bytes=48 * 1024 * 1024),
    )(nbr, ctr, params['w1n'], params['w1c'], params['w2b'],
      params['w3b'], params['w4b'], params['w5b'])
    return out[:M].reshape(B, N, emb)


# --------------------------------------------------------------------------
# Pallas kernel 2: fused projection head (Conv1d + ReLU + Conv1d), cluster
# axis padded to a lane-dense 128 (pad columns carry bias -1e9 so their
# softmax mass is exactly zero downstream).
# --------------------------------------------------------------------------
def _cluster_head_kernel(f_ref, w1_ref, b1_ref, w2_ref, b2_ref, o_ref):
    h = jnp.dot(f_ref[...], w1_ref[...],
                preferred_element_type=jnp.float32) + b1_ref[...]
    h = jnp.maximum(h, 0.0).astype(jnp.bfloat16)
    o_ref[...] = (jnp.dot(h, w2_ref[...], preferred_element_type=jnp.float32)
                  + b2_ref[...])


def cluster_head(params, feats):
    """feats: (B, N, emb) bf16 -> padded cluster logits (B, N, Jp) f32."""
    B, N, E = feats.shape
    M = B * N
    f = feats.reshape(M, E)
    TM = min(512, _round_up(M, 8))
    Mp = _round_up(M, TM)
    if Mp != M:
        f = jnp.pad(f, ((0, Mp - M), (0, 0)))
    hid = params['wc1b'].shape[1]
    Jp = params['wc2b'].shape[1]
    out = pl.pallas_call(
        _cluster_head_kernel,
        out_shape=jax.ShapeDtypeStruct((Mp, Jp), jnp.float32),
        grid=(Mp // TM,),
        in_specs=[
            pl.BlockSpec((TM, E), lambda i: (i, 0)),
            pl.BlockSpec((E, hid), lambda i: (0, 0)),
            pl.BlockSpec((1, hid), lambda i: (0, 0)),
            pl.BlockSpec((hid, Jp), lambda i: (0, 0)),
            pl.BlockSpec((1, Jp), lambda i: (0, 0)),
        ],
        out_specs=pl.BlockSpec((TM, Jp), lambda i: (i, 0)),
        compiler_params=pltpu.CompilerParams(dimension_semantics=("parallel",)),
    )(f, params['wc1b'], params['bc1'], params['wc2b'], params['bc2'])
    return out[:M].reshape(B, N, Jp)


# --------------------------------------------------------------------------
# Pallas kernel 3: per-batch softmax over clusters + GMM parameters.
# All zeroth/first/second moments come from ONE MXU contraction over N:
#   moments = [1; x; y; z; x*x; ...; z*z] (13, N)  @  gamma (N, Jp)
# outputs (cluster axis on lanes): pi (1,Jp), mu^T (3,Jp), sigma^T (9,Jp).
# --------------------------------------------------------------------------
def _gmm_params_kernel(scores_ref, pts_ref, pi_ref, mu_ref, sig_ref, *, eps):
    s = scores_ref[0]                                   # (N, Jp) cluster logits
    px = pts_ref[0]                                     # (3, N)  points, channel-major
    n = s.shape[0]
    # softmax over clusters (lane axis) == F.softmax(log_scores, dim=1) in NCHW;
    # padded clusters have logit -1e9 -> exactly zero responsibility.
    m = jnp.max(s, axis=-1, keepdims=True)
    e = jnp.exp(s - m)
    gamma = e / jnp.sum(e, axis=-1, keepdims=True)      # (N, Jp)

    xr = px[0:1, :]
    yr = px[1:2, :]
    zr = px[2:3, :]
    ones = jnp.ones((1, n), jnp.float32)
    rows = [ones, xr, yr, zr,
            xr * xr, xr * yr, xr * zr,
            yr * xr, yr * yr, yr * zr,
            zr * xr, zr * yr, zr * zr]
    pt = jnp.concatenate(rows, axis=0)                  # (13, N)
    moments = jnp.dot(pt, gamma, preferred_element_type=jnp.float32)  # (13, Jp)

    npi = moments[0:1, :]                               # (1, Jp) == pi * N
    pi_ref[0] = npi / float(n)
    # TODO(synk): tiny eps guards empty / padded clusters (reference divides by Npi).
    denom = npi + 1e-12
    mu_t = moments[1:4, :] / denom                      # (3, Jp)
    mu_ref[0] = mu_t
    e2 = moments[4:13, :] / denom                       # (9, Jp) E[x_a x_b]
    sig_rows = []
    for a in range(3):
        for b in range(3):
            row = e2[3 * a + b:3 * a + b + 1, :] - mu_t[a:a + 1, :] * mu_t[b:b + 1, :]
            if a == b:
                row = row + eps
            sig_rows.append(row)
    sig_ref[0] = jnp.concatenate(sig_rows, axis=0)      # (9, Jp)


def gmm_params_pallas(scores, pts3, n_clusters, eps=1e-3):
    """scores: (B, N, Jp) padded logits, pts3: (B, 3, N).
    Returns pi (B,J), mu (B,J,3), sigma (B,J,3,3) for the J real clusters."""
    B, N, Jp = scores.shape
    pi, mu_t, sig_t = pl.pallas_call(
        functools.partial(_gmm_params_kernel, eps=eps),
        out_shape=(jax.ShapeDtypeStruct((B, 1, Jp), jnp.float32),
                   jax.ShapeDtypeStruct((B, 3, Jp), jnp.float32),
                   jax.ShapeDtypeStruct((B, 9, Jp), jnp.float32)),
        grid=(B,),
        in_specs=[pl.BlockSpec((1, N, Jp), lambda b: (b, 0, 0)),
                  pl.BlockSpec((1, 3, N), lambda b: (b, 0, 0))],
        out_specs=(pl.BlockSpec((1, 1, Jp), lambda b: (b, 0, 0)),
                   pl.BlockSpec((1, 3, Jp), lambda b: (b, 0, 0)),
                   pl.BlockSpec((1, 9, Jp), lambda b: (b, 0, 0))),
        compiler_params=pltpu.CompilerParams(dimension_semantics=("parallel",)),
    )(scores, pts3)
    J = n_clusters
    pi = pi[:, 0, :J]
    mu = jnp.transpose(mu_t, (0, 2, 1))[:, :J, :]
    sigma = jnp.transpose(sig_t, (0, 2, 1))[:, :J, :].reshape(B, J, 3, 3)
    return pi, mu, sigma


# --------------------------------------------------------------------------
# gmm_register: tiny O(B*J*9) math -> plain JAX (a per-batch Pallas launch was
# pure overhead).  3x3 inverse / SVD / det stay in jnp.linalg.
# --------------------------------------------------------------------------
def gmm_register(pi_s, mu_s, mu_t, sigma_t):
    B = pi_s.shape[0]
    c_s = jnp.einsum('bj,bjd->bd', pi_s, mu_s)[:, None, :]       # (B, 1, 3)
    c_t = jnp.einsum('bj,bjd->bd', pi_s, mu_t)[:, None, :]
    sig_inv = jnp.linalg.inv(sigma_t)                            # (B, J, 3, 3)
    ds = mu_s - c_s                                              # (B, J, 3)
    dt = mu_t - c_t
    dt_sig = jnp.einsum('bjc,bjcd->bjd', dt, sig_inv)            # (B, J, 3)
    Ms = jnp.einsum('bj,bja,bjd->bad', pi_s, ds, dt_sig)         # (B, 3, 3)

    # matches torch.nan_to_num(Ms, nan=0) + 0.0001
    Ms = jnp.where(jnp.isnan(Ms), 0.0, Ms) + 1e-4
    U, _, Vh = jnp.linalg.svd(Ms)
    V = jnp.swapaxes(Vh, -1, -2)            # torch.svd returns V, jnp returns V^H
    Ut = jnp.swapaxes(U, -1, -2)
    S = jnp.tile(jnp.eye(3, dtype=Ms.dtype)[None], (B, 1, 1))
    S = S.at[:, 2, 2].set(jnp.linalg.det(V @ Ut))
    R = V @ S @ Ut
    t = jnp.swapaxes(c_t, 1, 2) - R @ jnp.swapaxes(c_s, 1, 2)    # (B, 3, 1)
    bot = jnp.tile(jnp.array([[[0.0, 0.0, 0.0, 1.0]]], dtype=Ms.dtype), (B, 1, 1))
    T = jnp.concatenate([jnp.concatenate([R, t], axis=2), bot], axis=1)
    return T


# --------------------------------------------------------------------------
# Full forward
# --------------------------------------------------------------------------
def deepgmr_forward(params, src, tgt, gnn_k, n_clusters):
    """src, tgt: (B, 3, N).  Returns (tsfm[:, 0:3, 0:3], tsfm[:, 3, 0:3])."""
    src_feats = dgcnn_forward(params, src, gnn_k)
    tgt_feats = dgcnn_forward(params, tgt, gnn_k)
    src_scores = cluster_head(params, src_feats)       # (B, N, Jp) padded logits
    tgt_scores = cluster_head(params, tgt_feats)
    src_pi, src_mu, _ = gmm_params_pallas(src_scores, src, n_clusters)
    tgt_pi, tgt_mu, tgt_sigma = gmm_params_pallas(tgt_scores, tgt, n_clusters)
    tsfm = gmm_register(src_pi, src_mu, tgt_mu, tgt_sigma)
    return tsfm[:, 0:3, 0:3], tsfm[:, 3, 0:3]


def init_params(key, emb_dims, n_clusters):
    dims = [(6, 64), (64, 64), (64, 128), (128, 256), (64 + 64 + 128 + 256, emb_dims)]
    keys = jax.random.split(key, len(dims) + 2)
    params = {}
    for i, (cin, cout) in enumerate(dims):
        params[f'w{i + 1}'] = (jax.random.normal(keys[i], (cin, cout), jnp.float32)
                               / jnp.sqrt(float(cin)))
    hid = emb_dims // 2
    params['wc1'] = (jax.random.normal(keys[-2], (emb_dims, hid), jnp.float32)
                     / jnp.sqrt(float(emb_dims)))
    params['bc1'] = jnp.zeros((hid,), jnp.float32)
    params['wc2'] = (jax.random.normal(keys[-1], (hid, n_clusters), jnp.float32)
                     / jnp.sqrt(float(hid)))
    params['bc2'] = jnp.zeros((n_clusters,), jnp.float32)
    return params


def prepare_params(raw, n_clusters):
    """Split w1, cast matmul weights to bf16, pad the cluster dim to 128 lanes."""
    p = {}
    w1 = raw['w1']
    p['w1n'] = w1[:3]                                   # neighbour half of edge feature
    p['w1c'] = w1[3:]                                   # centre half
    for i in (2, 3, 4, 5):
        p[f'w{i}b'] = raw[f'w{i}'].astype(jnp.bfloat16)
    p['wc1b'] = raw['wc1'].astype(jnp.bfloat16)
    p['bc1'] = raw['bc1'].reshape(1, -1)
    hid, J = raw['wc2'].shape
    Jp = max(128, _round_up(J, 128))
    wc2 = jnp.zeros((hid, Jp), jnp.float32).at[:, :J].set(raw['wc2'])
    bc2 = jnp.full((Jp,), -1e9, jnp.float32).at[:J].set(raw['bc2'])
    p['wc2b'] = wc2.astype(jnp.bfloat16)
    p['bc2'] = bc2.reshape(1, -1)
    return p


if __name__ == "__main__":
    B, N = 2, 16
    emb_dims, n_clusters, gnn_k = 32, 8, 4

    key = jax.random.PRNGKey(0)
    k_src, k_tgt, k_par = jax.random.split(key, 3)
    src = jax.random.normal(k_src, (B, 3, N), jnp.float32)
    tgt = jax.random.normal(k_tgt, (B, 3, N), jnp.float32)
    raw = init_params(k_par, emb_dims, n_clusters)
    params = prepare_params(raw, n_clusters)

    fwd = jax.jit(deepgmr_forward, static_argnums=(3, 4))
    R, t = fwd(params, src, tgt, gnn_k, n_clusters)
    (R, t) = jax.block_until_ready((R, t))

    assert R.shape == (B, 3, 3) and t.shape == (B, 3)
    assert bool(jnp.all(jnp.isfinite(R))) and bool(jnp.all(jnp.isfinite(t)))
    print("KERNEL_OK")
</pallas_src>

<mosaic_0001>
module attributes {stable_mosaic.version = 11 : i64} {
  func.func @_fused_dgcnn_kernel(%arg0: i32, %arg1: memref<4x32x3xf32, #tpu.memory_space<vmem>>, %arg2: memref<32x3xf32, #tpu.memory_space<vmem>>, %arg3: memref<3x64xf32, #tpu.memory_space<vmem>>, %arg4: memref<3x64xf32, #tpu.memory_space<vmem>>, %arg5: memref<64x64xbf16, #tpu.memory_space<vmem>>, %arg6: memref<64x128xbf16, #tpu.memory_space<vmem>>, %arg7: memref<128x256xbf16, #tpu.memory_space<vmem>>, %arg8: memref<512x32xbf16, #tpu.memory_space<vmem>>, %arg9: memref<32x32xbf16, #tpu.memory_space<vmem>>) attributes {dimension_semantics = [#tpu.dimension_semantics<parallel>], iteration_bounds = array<i64: 1>, scalar_prefetch = 0 : i64, scratch_operands = 0 : i64, tpu.core_type = #tpu.core_type<tc>, window_params = [{transform_indices = @transform_0, window_bounds = array<i64: 4, 32, 3>}, {transform_indices = @transform_1, window_bounds = array<i64: 32, 3>}, {pipeline_mode = #tpu.pipeline_mode<synchronous>, transform_indices = @transform_2, window_bounds = array<i64: 3, 64>}, {pipeline_mode = #tpu.pipeline_mode<synchronous>, transform_indices = @transform_3, window_bounds = array<i64: 3, 64>}, {pipeline_mode = #tpu.pipeline_mode<synchronous>, transform_indices = @transform_4, window_bounds = array<i64: 64, 64>}, {pipeline_mode = #tpu.pipeline_mode<synchronous>, transform_indices = @transform_5, window_bounds = array<i64: 64, 128>}, {pipeline_mode = #tpu.pipeline_mode<synchronous>, transform_indices = @transform_6, window_bounds = array<i64: 128, 256>}, {pipeline_mode = #tpu.pipeline_mode<synchronous>, transform_indices = @transform_7, window_bounds = array<i64: 512, 32>}, {transform_indices = @transform_8, window_bounds = array<i64: 32, 32>}]} {
    %c0 = arith.constant 0 : index
    %c0_0 = arith.constant 0 : index
    %0 = vector.load %arg3[%c0, %c0_0] : memref<3x64xf32, #tpu.memory_space<vmem>>, vector<3x64xf32>
    %c0_1 = arith.constant 0 : index
    %c0_2 = arith.constant 0 : index
    %1 = vector.load %arg4[%c0_1, %c0_2] : memref<3x64xf32, #tpu.memory_space<vmem>>, vector<3x64xf32>
    %c0_3 = arith.constant 0 : index
    %c0_4 = arith.constant 0 : index
    %2 = vector.load %arg5[%c0_3, %c0_4] : memref<64x64xbf16, #tpu.memory_space<vmem>>, vector<64x64xbf16>
    %c0_5 = arith.constant 0 : index
    %c0_6 = arith.constant 0 : index
    %3 = vector.load %arg6[%c0_5, %c0_6] : memref<64x128xbf16, #tpu.memory_space<vmem>>, vector<64x128xbf16>
    %c0_7 = arith.constant 0 : index
    %c0_8 = arith.constant 0 : index
    %4 = vector.load %arg7[%c0_7, %c0_8] : memref<128x256xbf16, #tpu.memory_space<vmem>>, vector<128x256xbf16>
    %c0_9 = arith.constant 0 : index
    %c0_10 = arith.constant 0 : index
    %5 = vector.load %arg2[%c0_9, %c0_10] : memref<32x3xf32, #tpu.memory_space<vmem>>, vector<32x3xf32>
    %cst = arith.constant dense<0.000000e+00> : vector<32x64xf32>
    %6 = tpu.matmul %5, %1, %cst {dimension_numbers = #tpu.dot_dimension_numbers<[1], [0], [0], [1], [0, 0, 1, 1], [], []>} : vector<32x3xf32>, vector<3x64xf32>, vector<32x64xf32> -> vector<32x64xf32>
    %c0_11 = arith.constant 0 : index
    %c0_12 = arith.constant 0 : index
    %c0_13 = arith.constant 0 : index
    %7 = vector.load %arg1[%c0_11, %c0_12, %c0_13] : memref<4x32x3xf32, #tpu.memory_space<vmem>>, vector<1x32x3xf32>
    %8 = vector.shape_cast %7 : vector<1x32x3xf32> to vector<32x3xf32>
    %cst_14 = arith.constant dense<0.000000e+00> : vector<32x64xf32>
    %9 = tpu.matmul %8, %0, %cst_14 {dimension_numbers = #tpu.dot_dimension_numbers<[1], [0], [0], [1], [0, 0, 1, 1], [], []>} : vector<32x3xf32>, vector<3x64xf32>, vector<32x64xf32> -> vector<32x64xf32>
    %10 = arith.addf %9, %6 : vector<32x64xf32>
    %cst_15 = arith.constant 0.000000e+00 : f32
    %11 = vector.broadcast %cst_15 : f32 to vector<32x64xf32>
    %12 = arith.maximumf %10, %11 : vector<32x64xf32>
    %13 = arith.truncf %12 : vector<32x64xf32> to vector<32x64xbf16>
    %cst_16 = arith.constant dense<0.000000e+00> : vector<32x64xf32>
    %14 = tpu.matmul %13, %2, %cst_16 {dimension_numbers = #tpu.dot_dimension_numbers<[1], [0], [0], [1], [0, 0, 1, 1], [], []>} : vector<32x64xbf16>, vector<64x64xbf16>, vector<32x64xf32> -> vector<32x64xf32>
    %cst_17 = arith.constant 0.000000e+00 : f32
    %15 = vector.broadcast %cst_17 : f32 to vector<32x64xf32>
    %16 = arith.maximumf %14, %15 : vector<32x64xf32>
    %17 = arith.truncf %16 : vector<32x64xf32> to vector<32x64xbf16>
    %cst_18 = arith.constant dense<0.000000e+00> : vector<32x128xf32>
    %18 = tpu.matmul %17, %3, %cst_18 {dimension_numbers = #tpu.dot_dimension_numbers<[1], [0], [0], [1], [0, 0, 1, 1], [], []>} : vector<32x64xbf16>, vector<64x128xbf16>, vector<32x128xf32> -> vector<32x128xf32>
    %cst_19 = arith.constant 0.000000e+00 : f32
    %19 = vector.broadcast %cst_19 : f32 to vector<32x128xf32>
    %20 = arith.maximumf %18, %19 : vector<32x128xf32>
    %21 = arith.truncf %20 : vector<32x128xf32> to vector<32x128xbf16>
    %cst_20 = arith.constant dense<0.000000e+00> : vector<32x256xf32>
    %22 = tpu.matmul %21, %4, %cst_20 {dimension_numbers = #tpu.dot_dimension_numbers<[1], [0], [0], [1], [0, 0, 1, 1], [], []>} : vector<32x128xbf16>, vector<128x256xbf16>, vector<32x256xf32> -> vector<32x256xf32>
    %cst_21 = arith.constant 0.000000e+00 : f32
    %23 = vector.broadcast %cst_21 : f32 to vector<32x256xf32>
    %24 = arith.maximumf %22, %23 : vector<32x256xf32>
    %c1 = arith.constant 1 : index
    %c0_22 = arith.constant 0 : index
    %c0_23 = arith.constant 0 : index
    %25 = vector.load %arg1[%c1, %c0_22, %c0_23] : memref<4x32x3xf32, #tpu.memory_space<vmem>>, vector<1x32x3xf32>
    %26 = vector.shape_cast %25 : vector<1x32x3xf32> to vector<32x3xf32>
    %cst_24 = arith.constant dense<0.000000e+00> : vector<32x64xf32>
    %27 = tpu.matmul %26, %0, %cst_24 {dimension_numbers = #tpu.dot_dimension_numbers<[1], [0], [0], [1], [0, 0, 1, 1], [], []>} : vector<32x3xf32>, vector<3x64xf32>, vector<32x64xf32> -> vector<32x64xf32>
    %28 = arith.addf %27, %6 : vector<32x64xf32>
    %cst_25 = arith.constant 0.000000e+00 : f32
    %29 = vector.broadcast %cst_25 : f32 to vector<32x64xf32>
    %30 = arith.maximumf %28, %29 : vector<32x64xf32>
    %31 = arith.truncf %30 : vector<32x64xf32> to vector<32x64xbf16>
    %cst_26 = arith.constant dense<0.000000e+00> : vector<32x64xf32>
    %32 = tpu.matmul %31, %2, %cst_26 {dimension_numbers = #tpu.dot_dimension_numbers<[1], [0], [0], [1], [0, 0, 1, 1], [], []>} : vector<32x64xbf16>, vector<64x64xbf16>, vector<32x64xf32> -> vector<32x64xf32>
    %cst_27 = arith.constant 0.000000e+00 : f32
    %33 = vector.broadcast %cst_27 : f32 to vector<32x64xf32>
    %34 = arith.maximumf %32, %33 : vector<32x64xf32>
    %35 = arith.truncf %34 : vector<32x64xf32> to vector<32x64xbf16>
    %cst_28 = arith.constant dense<0.000000e+00> : vector<32x128xf32>
    %36 = tpu.matmul %35, %3, %cst_28 {dimension_numbers = #tpu.dot_dimension_numbers<[1], [0], [0], [1], [0, 0, 1, 1], [], []>} : vector<32x64xbf16>, vector<64x128xbf16>, vector<32x128xf32> -> vector<32x128xf32>
    %cst_29 = arith.constant 0.000000e+00 : f32
    %37 = vector.broadcast %cst_29 : f32 to vector<32x128xf32>
    %38 = arith.maximumf %36, %37 : vector<32x128xf32>
    %39 = arith.truncf %38 : vector<32x128xf32> to vector<32x128xbf16>
    %cst_30 = arith.constant dense<0.000000e+00> : vector<32x256xf32>
    %40 = tpu.matmul %39, %4, %cst_30 {dimension_numbers = #tpu.dot_dimension_numbers<[1], [0], [0], [1], [0, 0, 1, 1], [], []>} : vector<32x128xbf16>, vector<128x256xbf16>, vector<32x256xf32> -> vector<32x256xf32>
    %cst_31 = arith.constant 0.000000e+00 : f32
    %41 = vector.broadcast %cst_31 : f32 to vector<32x256xf32>
    %42 = arith.maximumf %40, %41 : vector<32x256xf32>
    %43 = arith.maximumf %12, %30 : vector<32x64xf32>
    %44 = arith.maximumf %16, %34 : vector<32x64xf32>
    %45 = arith.maximumf %20, %38 : vector<32x128xf32>
    %46 = arith.maximumf %24, %42 : vector<32x256xf32>
    %c2 = arith.constant 2 : index
    %c0_32 = arith.constant 0 : index
    %c0_33 = arith.constant 0 : index
    %47 = vector.load %arg1[%c2, %c0_32, %c0_33] : memref<4x32x3xf32, #tpu.memory_space<vmem>>, vector<1x32x3xf32>
    %48 = vector.shape_cast %47 : vector<1x32x3xf32> to vector<32x3xf32>
    %cst_34 = arith.constant dense<0.000000e+00> : vector<32x64xf32>
    %49 = tpu.matmul %48, %0, %cst_34 {dimension_numbers = #tpu.dot_dimension_numbers<[1], [0], [0], [1], [0, 0, 1, 1], [], []>} : vector<32x3xf32>, vector<3x64xf32>, vector<32x64xf32> -> vector<32x64xf32>
    %50 = arith.addf %49, %6 : vector<32x64xf32>
    %cst_35 = arith.constant 0.000000e+00 : f32
    %51 = vector.broadcast %cst_35 : f32 to vector<32x64xf32>
    %52 = arith.maximumf %50, %51 : vector<32x64xf32>
    %53 = arith.truncf %52 : vector<32x64xf32> to vector<32x64xbf16>
    %cst_36 = arith.constant dense<0.000000e+00> : vector<32x64xf32>
    %54 = tpu.matmul %53, %2, %cst_36 {dimension_numbers = #tpu.dot_dimension_numbers<[1], [0], [0], [1], [0, 0, 1, 1], [], []>} : vector<32x64xbf16>, vector<64x64xbf16>, vector<32x64xf32> -> vector<32x64xf32>
    %cst_37 = arith.constant 0.000000e+00 : f32
    %55 = vector.broadcast %cst_37 : f32 to vector<32x64xf32>
    %56 = arith.maximumf %54, %55 : vector<32x64xf32>
    %57 = arith.truncf %56 : vector<32x64xf32> to vector<32x64xbf16>
    %cst_38 = arith.constant dense<0.000000e+00> : vector<32x128xf32>
    %58 = tpu.matmul %57, %3, %cst_38 {dimension_numbers = #tpu.dot_dimension_numbers<[1], [0], [0], [1], [0, 0, 1, 1], [], []>} : vector<32x64xbf16>, vector<64x128xbf16>, vector<32x128xf32> -> vector<32x128xf32>
    %cst_39 = arith.constant 0.000000e+00 : f32
    %59 = vector.broadcast %cst_39 : f32 to vector<32x128xf32>
    %60 = arith.maximumf %58, %59 : vector<32x128xf32>
    %61 = arith.truncf %60 : vector<32x128xf32> to vector<32x128xbf16>
    %cst_40 = arith.constant dense<0.000000e+00> : vector<32x256xf32>
    %62 = tpu.matmul %61, %4, %cst_40 {dimension_numbers = #tpu.dot_dimension_numbers<[1], [0], [0], [1], [0, 0, 1, 1], [], []>} : vector<32x128xbf16>, vector<128x256xbf16>, vector<32x256xf32> -> vector<32x256xf32>
    %cst_41 = arith.constant 0.000000e+00 : f32
    %63 = vector.broadcast %cst_41 : f32 to vector<32x256xf32>
    %64 = arith.maximumf %62, %63 : vector<32x256xf32>
    %65 = arith.maximumf %43, %52 : vector<32x64xf32>
    %66 = arith.maximumf %44, %56 : vector<32x64xf32>
    %67 = arith.maximumf %45, %60 : vector<32x128xf32>
    %68 = arith.maximumf %46, %64 : vector<32x256xf32>
    %c3 = arith.constant 3 : index
    %c0_42 = arith.constant 0 : index
    %c0_43 = arith.constant 0 : index
    %69 = vector.load %arg1[%c3, %c0_42, %c0_43] : memref<4x32x3xf32, #tpu.memory_space<vmem>>, vector<1x32x3xf32>
    %70 = vector.shape_cast %69 : vector<1x32x3xf32> to vector<32x3xf32>
    %cst_44 = arith.constant dense<0.000000e+00> : vector<32x64xf32>
    %71 = tpu.matmul %70, %0, %cst_44 {dimension_numbers = #tpu.dot_dimension_numbers<[1], [0], [0], [1], [0, 0, 1, 1], [], []>} : vector<32x3xf32>, vector<3x64xf32>, vector<32x64xf32> -> vector<32x64xf32>
    %72 = arith.addf %71, %6 : vector<32x64xf32>
    %cst_45 = arith.constant 0.000000e+00 : f32
    %73 = vector.broadcast %cst_45 : f32 to vector<32x64xf32>
    %74 = arith.maximumf %72, %73 : vector<32x64xf32>
    %75 = arith.truncf %74 : vector<32x64xf32> to vector<32x64xbf16>
    %cst_46 = arith.constant dense<0.000000e+00> : vector<32x64xf32>
    %76 = tpu.matmul %75, %2, %cst_46 {dimension_numbers = #tpu.dot_dimension_numbers<[1], [0], [0], [1], [0, 0, 1, 1], [], []>} : vector<32x64xbf16>, vector<64x64xbf16>, vector<32x64xf32> -> vector<32x64xf32>
    %cst_47 = arith.constant 0.000000e+00 : f32
    %77 = vector.broadcast %cst_47 : f32 to vector<32x64xf32>
    %78 = arith.maximumf %76, %77 : vector<32x64xf32>
    %79 = arith.truncf %78 : vector<32x64xf32> to vector<32x64xbf16>
    %cst_48 = arith.constant dense<0.000000e+00> : vector<32x128xf32>
    %80 = tpu.matmul %79, %3, %cst_48 {dimension_numbers = #tpu.dot_dimension_numbers<[1], [0], [0], [1], [0, 0, 1, 1], [], []>} : vector<32x64xbf16>, vector<64x128xbf16>, vector<32x128xf32> -> vector<32x128xf32>
    %cst_49 = arith.constant 0.000000e+00 : f32
    %81 = vector.broadcast %cst_49 : f32 to vector<32x128xf32>
    %82 = arith.maximumf %80, %81 : vector<32x128xf32>
    %83 = arith.truncf %82 : vector<32x128xf32> to vector<32x128xbf16>
    %cst_50 = arith.constant dense<0.000000e+00> : vector<32x256xf32>
    %84 = tpu.matmul %83, %4, %cst_50 {dimension_numbers = #tpu.dot_dimension_numbers<[1], [0], [0], [1], [0, 0, 1, 1], [], []>} : vector<32x128xbf16>, vector<128x256xbf16>, vector<32x256xf32> -> vector<32x256xf32>
    %cst_51 = arith.constant 0.000000e+00 : f32
    %85 = vector.broadcast %cst_51 : f32 to vector<32x256xf32>
    %86 = arith.maximumf %84, %85 : vector<32x256xf32>
    %87 = arith.maximumf %65, %74 : vector<32x64xf32>
    %88 = arith.maximumf %66, %78 : vector<32x64xf32>
    %89 = arith.maximumf %67, %82 : vector<32x128xf32>
    %90 = arith.maximumf %68, %86 : vector<32x256xf32>
    %91 = tpu.concatenate %87, %88, %89, %90 in 1 : vector<32x64xf32>, vector<32x64xf32>, vector<32x128xf32>, vector<32x256xf32> -> vector<32x512xf32>
    %92 = arith.truncf %91 : vector<32x512xf32> to vector<32x512xbf16>
    %c0_52 = arith.constant 0 : index
    %c0_53 = arith.constant 0 : index
    %93 = vector.load %arg8[%c0_52, %c0_53] : memref<512x32xbf16, #tpu.memory_space<vmem>>, vector<512x32xbf16>
    %cst_54 = arith.constant dense<0.000000e+00> : vector<32x32xf32>
    %94 = tpu.matmul %92, %93, %cst_54 {dimension_numbers = #tpu.dot_dimension_numbers<[1], [0], [0], [1], [0, 0, 1, 1], [], []>} : vector<32x512xbf16>, vector<512x32xbf16>, vector<32x32xf32> -> vector<32x32xf32>
    %cst_55 = arith.constant 0.000000e+00 : f32
    %95 = vector.broadcast %cst_55 : f32 to vector<32x32xf32>
    %96 = arith.maximumf %94, %95 : vector<32x32xf32>
    %97 = arith.truncf %96 : vector<32x32xf32> to vector<32x32xbf16>
    %c0_56 = arith.constant 0 : index
    %c0_57 = arith.constant 0 : index
    %98 = vector.load %arg9[%c0_56, %c0_57] : memref<32x32xbf16, #tpu.memory_space<vmem>>, vector<32x32xbf16>
    tpu.vector_store %arg9[%c0_56, %c0_57], %97 {strides = array<i32>} : memref<32x32xbf16, #tpu.memory_space<vmem>>, vector<32x32xbf16>,
    return
  }
  func.func @transform_0(%arg0: i32) -> (i32, i32, i32) {
    %c0_i32 = arith.constant 0 : i32
    %c0_i32_0 = arith.constant 0 : i32
    %c0_i32_1 = arith.constant 0 : i32
    return %c0_i32, %arg0, %c0_i32_0 : i32, i32, i32
  }
  func.func @transform_1(%arg0: i32) -> (i32, i32) {
    %c0_i32 = arith.constant 0 : i32
    %c0_i32_0 = arith.constant 0 : i32
    return %arg0, %c0_i32 : i32, i32
  }
  func.func @transform_2(%arg0: i32) -> (i32, i32) {
    %c0_i32 = arith.constant 0 : i32
    %c0_i32_0 = arith.constant 0 : i32
    %c0_i32_1 = arith.constant 0 : i32
    return %c0_i32, %c0_i32_0 : i32, i32
  }
  func.func @transform_3(%arg0: i32) -> (i32, i32) {
    %c0_i32 = arith.constant 0 : i32
    %c0_i32_0 = arith.constant 0 : i32
    %c0_i32_1 = arith.constant 0 : i32
    return %c0_i32, %c0_i32_0 : i32, i32
  }
  func.func @transform_4(%arg0: i32) -> (i32, i32) {
    %c0_i32 = arith.constant 0 : i32
    %c0_i32_0 = arith.constant 0 : i32
    %c0_i32_1 = arith.constant 0 : i32
    return %c0_i32, %c0_i32_0 : i32, i32
  }
  func.func @transform_5(%arg0: i32) -> (i32, i32) {
    %c0_i32 = arith.constant 0 : i32
    %c0_i32_0 = arith.constant 0 : i32
    %c0_i32_1 = arith.constant 0 : i32
    return %c0_i32, %c0_i32_0 : i32, i32
  }
  func.func @transform_6(%arg0: i32) -> (i32, i32) {
    %c0_i32 = arith.constant 0 : i32
    %c0_i32_0 = arith.constant 0 : i32
    %c0_i32_1 = arith.constant 0 : i32
    return %c0_i32, %c0_i32_0 : i32, i32
  }
  func.func @transform_7(%arg0: i32) -> (i32, i32) {
    %c0_i32 = arith.constant 0 : i32
    %c0_i32_0 = arith.constant 0 : i32
    %c0_i32_1 = arith.constant 0 : i32
    return %c0_i32, %c0_i32_0 : i32, i32
  }
  func.func @transform_8(%arg0: i32) -> (i32, i32) {
    %c0_i32 = arith.constant 0 : i32
    %c0_i32_0 = arith.constant 0 : i32
    return %arg0, %c0_i32 : i32, i32
  }
}

module attributes {stable_mosaic.version = 11 : i64} {
  func.func @_cluster_head_kernel(%arg0: i32, %arg1: memref<32x32xbf16, #tpu.memory_space<vmem>>, %arg2: memref<32x16xbf16, #tpu.memory_space<vmem>>, %arg3: memref<1x16xf32, #tpu.memory_space<vmem>>, %arg4: memref<16x128xbf16, #tpu.memory_space<vmem>>, %arg5: memref<1x128xf32, #tpu.memory_space<vmem>>, %arg6: memref<32x128xf32, #tpu.memory_space<vmem>>) attributes {dimension_semantics = [#tpu.dimension_semantics<parallel>], iteration_bounds = array<i64: 1>, scalar_prefetch = 0 : i64, scratch_operands = 0 : i64, tpu.core_type = #tpu.core_type<tc>, window_params = [{transform_indices = @transform_0, window_bounds = array<i64: 32, 32>}, {pipeline_mode = #tpu.pipeline_mode<synchronous>, transform_indices = @transform_1, window_bounds = array<i64: 32, 16>}, {pipeline_mode = #tpu.pipeline_mode<synchronous>, transform_indices = @transform_2, window_bounds = array<i64: 1, 16>}, {pipeline_mode = #tpu.pipeline_mode<synchronous>, transform_indices = @transform_3, window_bounds = array<i64: 16, 128>}, {pipeline_mode = #tpu.pipeline_mode<synchronous>, transform_indices = @transform_4, window_bounds = array<i64: 1, 128>}, {transform_indices = @transform_5, window_bounds = array<i64: 32, 128>}]} {
    %c0 = arith.constant 0 : index
    %c0_0 = arith.constant 0 : index
    %0 = vector.load %arg1[%c0, %c0_0] : memref<32x32xbf16, #tpu.memory_space<vmem>>, vector<32x32xbf16>
    %c0_1 = arith.constant 0 : index
    %c0_2 = arith.constant 0 : index
    %1 = vector.load %arg2[%c0_1, %c0_2] : memref<32x16xbf16, #tpu.memory_space<vmem>>, vector<32x16xbf16>
    %cst = arith.constant dense<0.000000e+00> : vector<32x16xf32>
    %2 = tpu.matmul %0, %1, %cst {dimension_numbers = #tpu.dot_dimension_numbers<[1], [0], [0], [1], [0, 0, 1, 1], [], []>} : vector<32x32xbf16>, vector<32x16xbf16>, vector<32x16xf32> -> vector<32x16xf32>
    %c0_3 = arith.constant 0 : index
    %c0_4 = arith.constant 0 : index
    %3 = vector.load %arg3[%c0_3, %c0_4] : memref<1x16xf32, #tpu.memory_space<vmem>>, vector<1x16xf32>
    %4 = vector.broadcast %3 : vector<1x16xf32> to vector<32x16xf32>
    %5 = arith.addf %2, %4 : vector<32x16xf32>
    %cst_5 = arith.constant 0.000000e+00 : f32
    %6 = vector.broadcast %cst_5 : f32 to vector<32x16xf32>
    %7 = arith.maximumf %5, %6 : vector<32x16xf32>
    %8 = arith.truncf %7 : vector<32x16xf32> to vector<32x16xbf16>
    %c0_6 = arith.constant 0 : index
    %c0_7 = arith.constant 0 : index
    %9 = vector.load %arg4[%c0_6, %c0_7] : memref<16x128xbf16, #tpu.memory_space<vmem>>, vector<16x128xbf16>
    %cst_8 = arith.constant dense<0.000000e+00> : vector<32x128xf32>
    %10 = tpu.matmul %8, %9, %cst_8 {dimension_numbers = #tpu.dot_dimension_numbers<[1], [0], [0], [1], [0, 0, 1, 1], [], []>} : vector<32x16xbf16>, vector<16x128xbf16>, vector<32x128xf32> -> vector<32x128xf32>
    %c0_9 = arith.constant 0 : index
    %c0_10 = arith.constant 0 : index
    %11 = vector.load %arg5[%c0_9, %c0_10] : memref<1x128xf32, #tpu.memory_space<vmem>>, vector<1x128xf32>
    %12 = vector.broadcast %11 : vector<1x128xf32> to vector<32x128xf32>
    %13 = arith.addf %10, %12 : vector<32x128xf32>
    %c0_11 = arith.constant 0 : index
    %c0_12 = arith.constant 0 : index
    %14 = vector.load %arg6[%c0_11, %c0_12] : memref<32x128xf32, #tpu.memory_space<vmem>>, vector<32x128xf32>
    tpu.vector_store %arg6[%c0_11, %c0_12], %13 {strides = array<i32>} : memref<32x128xf32, #tpu.memory_space<vmem>>, vector<32x128xf32>,
    return
  }
  func.func @transform_0(%arg0: i32) -> (i32, i32) {
    %c0_i32 = arith.constant 0 : i32
    %c0_i32_0 = arith.constant 0 : i32
    return %arg0, %c0_i32 : i32, i32
  }
  func.func @transform_1(%arg0: i32) -> (i32, i32) {
    %c0_i32 = arith.constant 0 : i32
    %c0_i32_0 = arith.constant 0 : i32
    %c0_i32_1 = arith.constant 0 : i32
    return %c0_i32, %c0_i32_0 : i32, i32
  }
  func.func @transform_2(%arg0: i32) -> (i32, i32) {
    %c0_i32 = arith.constant 0 : i32
    %c0_i32_0 = arith.constant 0 : i32
    %c0_i32_1 = arith.constant 0 : i32
    return %c0_i32, %c0_i32_0 : i32, i32
  }
  func.func @transform_3(%arg0: i32) -> (i32, i32) {
    %c0_i32 = arith.constant 0 : i32
    %c0_i32_0 = arith.constant 0 : i32
    %c0_i32_1 = arith.constant 0 : i32
    return %c0_i32, %c0_i32_0 : i32, i32
  }
  func.func @transform_4(%arg0: i32) -> (i32, i32) {
    %c0_i32 = arith.constant 0 : i32
    %c0_i32_0 = arith.constant 0 : i32
    %c0_i32_1 = arith.constant 0 : i32
    return %c0_i32, %c0_i32_0 : i32, i32
  }
  func.func @transform_5(%arg0: i32) -> (i32, i32) {
    %c0_i32 = arith.constant 0 : i32
    %c0_i32_0 = arith.constant 0 : i32
    return %arg0, %c0_i32 : i32, i32
  }
}

module attributes {stable_mosaic.version = 11 : i64} {
  func.func @_gmm_params_kernel(%arg0: i32, %arg1: memref<1x16x128xf32, #tpu.memory_space<vmem>>, %arg2: memref<1x3x16xf32, #tpu.memory_space<vmem>>, %arg3: memref<1x1x128xf32, #tpu.memory_space<vmem>>, %arg4: memref<1x3x128xf32, #tpu.memory_space<vmem>>, %arg5: memref<1x9x128xf32, #tpu.memory_space<vmem>>) attributes {dimension_semantics = [#tpu.dimension_semantics<parallel>], iteration_bounds = array<i64: 2>, scalar_prefetch = 0 : i64, scratch_operands = 0 : i64, tpu.core_type = #tpu.core_type<tc>, window_params = [{transform_indices = @transform_0, window_bounds = array<i64: 1, 16, 128>}, {transform_indices = @transform_1, window_bounds = array<i64: 1, 3, 16>}, {transform_indices = @transform_2, window_bounds = array<i64: 1, 1, 128>}, {transform_indices = @transform_3, window_bounds = array<i64: 1, 3, 128>}, {transform_indices = @transform_4, window_bounds = array<i64: 1, 9, 128>}]} {
    %c0 = arith.constant 0 : index
    %c0_0 = arith.constant 0 : index
    %c0_1 = arith.constant 0 : index
    %0 = vector.load %arg1[%c0, %c0_0, %c0_1] : memref<1x16x128xf32, #tpu.memory_space<vmem>>, vector<1x16x128xf32>
    %1 = vector.shape_cast %0 : vector<1x16x128xf32> to vector<16x128xf32>
    %c0_2 = arith.constant 0 : index
    %c0_3 = arith.constant 0 : index
    %c0_4 = arith.constant 0 : index
    %2 = vector.load %arg2[%c0_2, %c0_3, %c0_4] : memref<1x3x16xf32, #tpu.memory_space<vmem>>, vector<1x3x16xf32>
    %3 = vector.shape_cast %2 : vector<1x3x16xf32> to vector<3x16xf32>
    %cst = arith.constant dense<0xFF800000> : vector<16xf32>
    %4 = vector.multi_reduction <maximumf>, %1, %cst [1] : vector<16x128xf32> to vector<16xf32>
    %5 = vector.shape_cast %4 : vector<16xf32> to vector<16x1xf32>
    %6 = vector.broadcast %5 : vector<16x1xf32> to vector<16x128xf32>
    %7 = arith.subf %1, %6 : vector<16x128xf32>
    %8 = math.exp %7 : vector<16x128xf32>
    %cst_5 = arith.constant dense<0.000000e+00> : vector<16xf32>
    %9 = vector.multi_reduction <add>, %8, %cst_5 [1] : vector<16x128xf32> to vector<16xf32>
    %10 = vector.shape_cast %9 : vector<16xf32> to vector<16x1xf32>
    %11 = vector.broadcast %10 : vector<16x1xf32> to vector<16x128xf32>
    %12 = arith.divf %8, %11 : vector<16x128xf32>
    %13 = vector.extract_strided_slice %3 {offsets = [0, 0], sizes = [1, 16], strides = [1, 1]} : vector<3x16xf32> to vector<1x16xf32>
    %14 = vector.extract_strided_slice %3 {offsets = [1, 0], sizes = [1, 16], strides = [1, 1]} : vector<3x16xf32> to vector<1x16xf32>
    %15 = vector.extract_strided_slice %3 {offsets = [2, 0], sizes = [1, 16], strides = [1, 1]} : vector<3x16xf32> to vector<1x16xf32>
    %cst_6 = arith.constant 1.000000e+00 : f32
    %16 = vector.broadcast %cst_6 : f32 to vector<1x16xf32>
    %17 = arith.mulf %13, %13 : vector<1x16xf32>
    %18 = arith.mulf %13, %14 : vector<1x16xf32>
    %19 = arith.mulf %13, %15 : vector<1x16xf32>
    %20 = arith.mulf %14, %13 : vector<1x16xf32>
    %21 = arith.mulf %14, %14 : vector<1x16xf32>
    %22 = arith.mulf %14, %15 : vector<1x16xf32>
    %23 = arith.mulf %15, %13 : vector<1x16xf32>
    %24 = arith.mulf %15, %14 : vector<1x16xf32>
    %25 = arith.mulf %15, %15 : vector<1x16xf32>
    %26 = tpu.concatenate %16, %13, %14, %15, %17, %18, %19, %20, %21, %22, %23, %24, %25 in 0 : vector<1x16xf32>, vector<1x16xf32>, vector<1x16xf32>, vector<1x16xf32>, vector<1x16xf32>, vector<1x16xf32>, vector<1x16xf32>, vector<1x16xf32>, vector<1x16xf32>, vector<1x16xf32>, vector<1x16xf32>, vector<1x16xf32>, vector<1x16xf32> -> vector<13x16xf32>
    %cst_7 = arith.constant dense<0.000000e+00> : vector<13x128xf32>
    %27 = tpu.matmul %26, %12, %cst_7 {dimension_numbers = #tpu.dot_dimension_numbers<[1], [0], [0], [1], [0, 0, 1, 1], [], []>} : vector<13x16xf32>, vector<16x128xf32>, vector<13x128xf32> -> vector<13x128xf32>
    %28 = vector.extract_strided_slice %27 {offsets = [0, 0], sizes = [1, 128], strides = [1, 1]} : vector<13x128xf32> to vector<1x128xf32>
    %cst_8 = arith.constant 1.600000e+01 : f32
    %29 = vector.broadcast %cst_8 : f32 to vector<1x128xf32>
    %30 = arith.divf %28, %29 : vector<1x128xf32>
    %c0_9 = arith.constant 0 : index
    %c0_10 = arith.constant 0 : index
    %c0_11 = arith.constant 0 : index
    %31 = vector.load %arg3[%c0_9, %c0_10, %c0_11] : memref<1x1x128xf32, #tpu.memory_space<vmem>>, vector<1x1x128xf32>
    %32 = vector.shape_cast %31 : vector<1x1x128xf32> to vector<1x128xf32>
    %33 = vector.shape_cast %30 : vector<1x128xf32> to vector<1x1x128xf32>
    tpu.vector_store %arg3[%c0_9, %c0_10, %c0_11], %33 {strides = array<i32>} : memref<1x1x128xf32, #tpu.memory_space<vmem>>, vector<1x1x128xf32>,
    %cst_12 = arith.constant 9.99999996E-13 : f32
    %34 = vector.broadcast %cst_12 : f32 to vector<1x128xf32>
    %35 = arith.addf %28, %34 : vector<1x128xf32>
    %36 = vector.extract_strided_slice %27 {offsets = [1, 0], sizes = [3, 128], strides = [1, 1]} : vector<13x128xf32> to vector<3x128xf32>
    %37 = vector.broadcast %35 : vector<1x128xf32> to vector<3x128xf32>
    %38 = arith.divf %36, %37 : vector<3x128xf32>
    %c0_13 = arith.constant 0 : index
    %c0_14 = arith.constant 0 : index
    %c0_15 = arith.constant 0 : index
    %39 = vector.load %arg4[%c0_13, %c0_14, %c0_15] : memref<1x3x128xf32, #tpu.memory_space<vmem>>, vector<1x3x128xf32>
    %40 = vector.shape_cast %39 : vector<1x3x128xf32> to vector<3x128xf32>
    %41 = vector.shape_cast %38 : vector<3x128xf32> to vector<1x3x128xf32>
    tpu.vector_store %arg4[%c0_13, %c0_14, %c0_15], %41 {strides = array<i32>} : memref<1x3x128xf32, #tpu.memory_space<vmem>>, vector<1x3x128xf32>,
    %42 = vector.extract_strided_slice %27 {offsets = [4, 0], sizes = [9, 128], strides = [1, 1]} : vector<13x128xf32> to vector<9x128xf32>
    %43 = vector.broadcast %35 : vector<1x128xf32> to vector<9x128xf32>
    %44 = arith.divf %42, %43 : vector<9x128xf32>
    %45 = vector.extract_strided_slice %44 {offsets = [0, 0], sizes = [1, 128], strides = [1, 1]} : vector<9x128xf32> to vector<1x128xf32>
    %46 = vector.extract_strided_slice %38 {offsets = [0, 0], sizes = [1, 128], strides = [1, 1]} : vector<3x128xf32> to vector<1x128xf32>
    %47 = vector.extract_strided_slice %38 {offsets = [0, 0], sizes = [1, 128], strides = [1, 1]} : vector<3x128xf32> to vector<1x128xf32>
    %48 = arith.mulf %46, %47 : vector<1x128xf32>
    %49 = arith.subf %45, %48 : vector<1x128xf32>
    %cst_16 = arith.constant 1.000000e-03 : f32
    %50 = vector.broadcast %cst_16 : f32 to vector<1x128xf32>
    %51 = arith.addf %49, %50 : vector<1x128xf32>
    %52 = vector.extract_strided_slice %44 {offsets = [1, 0], sizes = [1, 128], strides = [1, 1]} : vector<9x128xf32> to vector<1x128xf32>
    %53 = vector.extract_strided_slice %38 {offsets = [0, 0], sizes = [1, 128], strides = [1, 1]} : vector<3x128xf32> to vector<1x128xf32>
    %54 = vector.extract_strided_slice %38 {offsets = [1, 0], sizes = [1, 128], strides = [1, 1]} : vector<3x128xf32> to vector<1x128xf32>
    %55 = arith.mulf %53, %54 : vector<1x128xf32>
    %56 = arith.subf %52, %55 : vector<1x128xf32>
    %57 = vector.extract_strided_slice %44 {offsets = [2, 0], sizes = [1, 128], strides = [1, 1]} : vector<9x128xf32> to vector<1x128xf32>
    %58 = vector.extract_strided_slice %38 {offsets = [0, 0], sizes = [1, 128], strides = [1, 1]} : vector<3x128xf32> to vector<1x128xf32>
    %59 = vector.extract_strided_slice %38 {offsets = [2, 0], sizes = [1, 128], strides = [1, 1]} : vector<3x128xf32> to vector<1x128xf32>
    %60 = arith.mulf %58, %59 : vector<1x128xf32>
    %61 = arith.subf %57, %60 : vector<1x128xf32>
    %62 = vector.extract_strided_slice %44 {offsets = [3, 0], sizes = [1, 128], strides = [1, 1]} : vector<9x128xf32> to vector<1x128xf32>
    %63 = vector.extract_strided_slice %38 {offsets = [1, 0], sizes = [1, 128], strides = [1, 1]} : vector<3x128xf32> to vector<1x128xf32>
    %64 = vector.extract_strided_slice %38 {offsets = [0, 0], sizes = [1, 128], strides = [1, 1]} : vector<3x128xf32> to vector<1x128xf32>
    %65 = arith.mulf %63, %64 : vector<1x128xf32>
    %66 = arith.subf %62, %65 : vector<1x128xf32>
    %67 = vector.extract_strided_slice %44 {offsets = [4, 0], sizes = [1, 128], strides = [1, 1]} : vector<9x128xf32> to vector<1x128xf32>
    %68 = vector.extract_strided_slice %38 {offsets = [1, 0], sizes = [1, 128], strides = [1, 1]} : vector<3x128xf32> to vector<1x128xf32>
    %69 = vector.extract_strided_slice %38 {offsets = [1, 0], sizes = [1, 128], strides = [1, 1]} : vector<3x128xf32> to vector<1x128xf32>
    %70 = arith.mulf %68, %69 : vector<1x128xf32>
    %71 = arith.subf %67, %70 : vector<1x128xf32>
    %cst_17 = arith.constant 1.000000e-03 : f32
    %72 = vector.broadcast %cst_17 : f32 to vector<1x128xf32>
    %73 = arith.addf %71, %72 : vector<1x128xf32>
    %74 = vector.extract_strided_slice %44 {offsets = [5, 0], sizes = [1, 128], strides = [1, 1]} : vector<9x128xf32> to vector<1x128xf32>
    %75 = vector.extract_strided_slice %38 {offsets = [1, 0], sizes = [1, 128], strides = [1, 1]} : vector<3x128xf32> to vector<1x128xf32>
    %76 = vector.extract_strided_slice %38 {offsets = [2, 0], sizes = [1, 128], strides = [1, 1]} : vector<3x128xf32> to vector<1x128xf32>
    %77 = arith.mulf %75, %76 : vector<1x128xf32>
    %78 = arith.subf %74, %77 : vector<1x128xf32>
    %79 = vector.extract_strided_slice %44 {offsets = [6, 0], sizes = [1, 128], strides = [1, 1]} : vector<9x128xf32> to vector<1x128xf32>
    %80 = vector.extract_strided_slice %38 {offsets = [2, 0], sizes = [1, 128], strides = [1, 1]} : vector<3x128xf32> to vector<1x128xf32>
    %81 = vector.extract_strided_slice %38 {offsets = [0, 0], sizes = [1, 128], strides = [1, 1]} : vector<3x128xf32> to vector<1x128xf32>
    %82 = arith.mulf %80, %81 : vector<1x128xf32>
    %83 = arith.subf %79, %82 : vector<1x128xf32>
    %84 = vector.extract_strided_slice %44 {offsets = [7, 0], sizes = [1, 128], strides = [1, 1]} : vector<9x128xf32> to vector<1x128xf32>
    %85 = vector.extract_strided_slice %38 {offsets = [2, 0], sizes = [1, 128], strides = [1, 1]} : vector<3x128xf32> to vector<1x128xf32>
    %86 = vector.extract_strided_slice %38 {offsets = [1, 0], sizes = [1, 128], strides = [1, 1]} : vector<3x128xf32> to vector<1x128xf32>
    %87 = arith.mulf %85, %86 : vector<1x128xf32>
    %88 = arith.subf %84, %87 : vector<1x128xf32>
    %89 = vector.extract_strided_slice %44 {offsets = [8, 0], sizes = [1, 128], strides = [1, 1]} : vector<9x128xf32> to vector<1x128xf32>
    %90 = vector.extract_strided_slice %38 {offsets = [2, 0], sizes = [1, 128], strides = [1, 1]} : vector<3x128xf32> to vector<1x128xf32>
    %91 = vector.extract_strided_slice %38 {offsets = [2, 0], sizes = [1, 128], strides = [1, 1]} : vector<3x128xf32> to vector<1x128xf32>
    %92 = arith.mulf %90, %91 : vector<1x128xf32>
    %93 = arith.subf %89, %92 : vector<1x128xf32>
    %cst_18 = arith.constant 1.000000e-03 : f32
    %94 = vector.broadcast %cst_18 : f32 to vector<1x128xf32>
    %95 = arith.addf %93, %94 : vector<1x128xf32>
    %96 = tpu.concatenate %51, %56, %61, %66, %73, %78, %83, %88, %95 in 0 : vector<1x128xf32>, vector<1x128xf32>, vector<1x128xf32>, vector<1x128xf32>, vector<1x128xf32>, vector<1x128xf32>, vector<1x128xf32>, vector<1x128xf32>, vector<1x128xf32> -> vector<9x128xf32>
    %c0_19 = arith.constant 0 : index
    %c0_20 = arith.constant 0 : index
    %c0_21 = arith.constant 0 : index
    %97 = vector.load %arg5[%c0_19, %c0_20, %c0_21] : memref<1x9x128xf32, #tpu.memory_space<vmem>>, vector<1x9x128xf32>
    %98 = vector.shape_cast %97 : vector<1x9x128xf32> to vector<9x128xf32>
    %99 = vector.shape_cast %96 : vector<9x128xf32> to vector<1x9x128xf32>
    tpu.vector_store %arg5[%c0_19, %c0_20, %c0_21], %99 {strides = array<i32>} : memref<1x9x128xf32, #tpu.memory_space<vmem>>, vector<1x9x128xf32>,
    return
  }
  func.func @transform_0(%arg0: i32) -> (i32, i32, i32) {
    %c0_i32 = arith.constant 0 : i32
    %c0_i32_0 = arith.constant 0 : i32
    %c0_i32_1 = arith.constant 0 : i32
    return %arg0, %c0_i32, %c0_i32_0 : i32, i32, i32
  }
  func.func @transform_1(%arg0: i32) -> (i32, i32, i32) {
    %c0_i32 = arith.constant 0 : i32
    %c0_i32_0 = arith.constant 0 : i32
    %c0_i32_1 = arith.constant 0 : i32
    return %arg0, %c0_i32, %c0_i32_0 : i32, i32, i32
  }
  func.func @transform_2(%arg0: i32) -> (i32, i32, i32) {
    %c0_i32 = arith.constant 0 : i32
    %c0_i32_0 = arith.constant 0 : i32
    %c0_i32_1 = arith.constant 0 : i32
    return %arg0, %c0_i32, %c0_i32_0 : i32, i32, i32
  }
  func.func @transform_3(%arg0: i32) -> (i32, i32, i32) {
    %c0_i32 = arith.constant 0 : i32
    %c0_i32_0 = arith.constant 0 : i32
    %c0_i32_1 = arith.constant 0 : i32
    return %arg0, %c0_i32, %c0_i32_0 : i32, i32, i32
  }
  func.func @transform_4(%arg0: i32) -> (i32, i32, i32) {
    %c0_i32 = arith.constant 0 : i32
    %c0_i32_0 = arith.constant 0 : i32
    %c0_i32_1 = arith.constant 0 : i32
    return %arg0, %c0_i32, %c0_i32_0 : i32, i32, i32
  }
}

module attributes {stable_mosaic.version = 11 : i64} {
  func.func @_gmm_params_kernel(%arg0: i32, %arg1: memref<1x16x128xf32, #tpu.memory_space<vmem>>, %arg2: memref<1x3x16xf32, #tpu.memory_space<vmem>>, %arg3: memref<1x1x128xf32, #tpu.memory_space<vmem>>, %arg4: memref<1x3x128xf32, #tpu.memory_space<vmem>>, %arg5: memref<1x9x128xf32, #tpu.memory_space<vmem>>) attributes {dimension_semantics = [#tpu.dimension_semantics<parallel>], iteration_bounds = array<i64: 2>, scalar_prefetch = 0 : i64, scratch_operands = 0 : i64, tpu.core_type = #tpu.core_type<tc>, window_params = [{transform_indices = @transform_0, window_bounds = array<i64: 1, 16, 128>}, {transform_indices = @transform_1, window_bounds = array<i64: 1, 3, 16>}, {transform_indices = @transform_2, window_bounds = array<i64: 1, 1, 128>}, {transform_indices = @transform_3, window_bounds = array<i64: 1, 3, 128>}, {transform_indices = @transform_4, window_bounds = array<i64: 1, 9, 128>}]} {
    %c0 = arith.constant 0 : index
    %c0_0 = arith.constant 0 : index
    %c0_1 = arith.constant 0 : index
    %0 = vector.load %arg1[%c0, %c0_0, %c0_1] : memref<1x16x128xf32, #tpu.memory_space<vmem>>, vector<1x16x128xf32>
    %1 = vector.shape_cast %0 : vector<1x16x128xf32> to vector<16x128xf32>
    %c0_2 = arith.constant 0 : index
    %c0_3 = arith.constant 0 : index
    %c0_4 = arith.constant 0 : index
    %2 = vector.load %arg2[%c0_2, %c0_3, %c0_4] : memref<1x3x16xf32, #tpu.memory_space<vmem>>, vector<1x3x16xf32>
    %3 = vector.shape_cast %2 : vector<1x3x16xf32> to vector<3x16xf32>
    %cst = arith.constant dense<0xFF800000> : vector<16xf32>
    %4 = vector.multi_reduction <maximumf>, %1, %cst [1] : vector<16x128xf32> to vector<16xf32>
    %5 = vector.shape_cast %4 : vector<16xf32> to vector<16x1xf32>
    %6 = vector.broadcast %5 : vector<16x1xf32> to vector<16x128xf32>
    %7 = arith.subf %1, %6 : vector<16x128xf32>
    %8 = math.exp %7 : vector<16x128xf32>
    %cst_5 = arith.constant dense<0.000000e+00> : vector<16xf32>
    %9 = vector.multi_reduction <add>, %8, %cst_5 [1] : vector<16x128xf32> to vector<16xf32>
    %10 = vector.shape_cast %9 : vector<16xf32> to vector<16x1xf32>
    %11 = vector.broadcast %10 : vector<16x1xf32> to vector<16x128xf32>
    %12 = arith.divf %8, %11 : vector<16x128xf32>
    %13 = vector.extract_strided_slice %3 {offsets = [0, 0], sizes = [1, 16], strides = [1, 1]} : vector<3x16xf32> to vector<1x16xf32>
    %14 = vector.extract_strided_slice %3 {offsets = [1, 0], sizes = [1, 16], strides = [1, 1]} : vector<3x16xf32> to vector<1x16xf32>
    %15 = vector.extract_strided_slice %3 {offsets = [2, 0], sizes = [1, 16], strides = [1, 1]} : vector<3x16xf32> to vector<1x16xf32>
    %cst_6 = arith.constant 1.000000e+00 : f32
    %16 = vector.broadcast %cst_6 : f32 to vector<1x16xf32>
    %17 = arith.mulf %13, %13 : vector<1x16xf32>
    %18 = arith.mulf %13, %14 : vector<1x16xf32>
    %19 = arith.mulf %13, %15 : vector<1x16xf32>
    %20 = arith.mulf %14, %13 : vector<1x16xf32>
    %21 = arith.mulf %14, %14 : vector<1x16xf32>
    %22 = arith.mulf %14, %15 : vector<1x16xf32>
    %23 = arith.mulf %15, %13 : vector<1x16xf32>
    %24 = arith.mulf %15, %14 : vector<1x16xf32>
    %25 = arith.mulf %15, %15 : vector<1x16xf32>
    %26 = tpu.concatenate %16, %13, %14, %15, %17, %18, %19, %20, %21, %22, %23, %24, %25 in 0 : vector<1x16xf32>, vector<1x16xf32>, vector<1x16xf32>, vector<1x16xf32>, vector<1x16xf32>, vector<1x16xf32>, vector<1x16xf32>, vector<1x16xf32>, vector<1x16xf32>, vector<1x16xf32>, vector<1x16xf32>, vector<1x16xf32>, vector<1x16xf32> -> vector<13x16xf32>
    %cst_7 = arith.constant dense<0.000000e+00> : vector<13x128xf32>
    %27 = tpu.matmul %26, %12, %cst_7 {dimension_numbers = #tpu.dot_dimension_numbers<[1], [0], [0], [1], [0, 0, 1, 1], [], []>} : vector<13x16xf32>, vector<16x128xf32>, vector<13x128xf32> -> vector<13x128xf32>
    %28 = vector.extract_strided_slice %27 {offsets = [0, 0], sizes = [1, 128], strides = [1, 1]} : vector<13x128xf32> to vector<1x128xf32>
    %cst_8 = arith.constant 1.600000e+01 : f32
    %29 = vector.broadcast %cst_8 : f32 to vector<1x128xf32>
    %30 = arith.divf %28, %29 : vector<1x128xf32>
    %c0_9 = arith.constant 0 : index
    %c0_10 = arith.constant 0 : index
    %c0_11 = arith.constant 0 : index
    %31 = vector.load %arg3[%c0_9, %c0_10, %c0_11] : memref<1x1x128xf32, #tpu.memory_space<vmem>>, vector<1x1x128xf32>
    %32 = vector.shape_cast %31 : vector<1x1x128xf32> to vector<1x128xf32>
    %33 = vector.shape_cast %30 : vector<1x128xf32> to vector<1x1x128xf32>
    tpu.vector_store %arg3[%c0_9, %c0_10, %c0_11], %33 {strides = array<i32>} : memref<1x1x128xf32, #tpu.memory_space<vmem>>, vector<1x1x128xf32>,
    %cst_12 = arith.constant 9.99999996E-13 : f32
    %34 = vector.broadcast %cst_12 : f32 to vector<1x128xf32>
    %35 = arith.addf %28, %34 : vector<1x128xf32>
    %36 = vector.extract_strided_slice %27 {offsets = [1, 0], sizes = [3, 128], strides = [1, 1]} : vector<13x128xf32> to vector<3x128xf32>
    %37 = vector.broadcast %35 : vector<1x128xf32> to vector<3x128xf32>
    %38 = arith.divf %36, %37 : vector<3x128xf32>
    %c0_13 = arith.constant 0 : index
    %c0_14 = arith.constant 0 : index
    %c0_15 = arith.constant 0 : index
    %39 = vector.load %arg4[%c0_13, %c0_14, %c0_15] : memref<1x3x128xf32, #tpu.memory_space<vmem>>, vector<1x3x128xf32>
    %40 = vector.shape_cast %39 : vector<1x3x128xf32> to vector<3x128xf32>
    %41 = vector.shape_cast %38 : vector<3x128xf32> to vector<1x3x128xf32>
    tpu.vector_store %arg4[%c0_13, %c0_14, %c0_15], %41 {strides = array<i32>} : memref<1x3x128xf32, #tpu.memory_space<vmem>>, vector<1x3x128xf32>,
    %42 = vector.extract_strided_slice %27 {offsets = [4, 0], sizes = [9, 128], strides = [1, 1]} : vector<13x128xf32> to vector<9x128xf32>
    %43 = vector.broadcast %35 : vector<1x128xf32> to vector<9x128xf32>
    %44 = arith.divf %42, %43 : vector<9x128xf32>
    %45 = vector.extract_strided_slice %44 {offsets = [0, 0], sizes = [1, 128], strides = [1, 1]} : vector<9x128xf32> to vector<1x128xf32>
    %46 = vector.extract_strided_slice %38 {offsets = [0, 0], sizes = [1, 128], strides = [1, 1]} : vector<3x128xf32> to vector<1x128xf32>
    %47 = vector.extract_strided_slice %38 {offsets = [0, 0], sizes = [1, 128], strides = [1, 1]} : vector<3x128xf32> to vector<1x128xf32>
    %48 = arith.mulf %46, %47 : vector<1x128xf32>
    %49 = arith.subf %45, %48 : vector<1x128xf32>
    %cst_16 = arith.constant 1.000000e-03 : f32
    %50 = vector.broadcast %cst_16 : f32 to vector<1x128xf32>
    %51 = arith.addf %49, %50 : vector<1x128xf32>
    %52 = vector.extract_strided_slice %44 {offsets = [1, 0], sizes = [1, 128], strides = [1, 1]} : vector<9x128xf32> to vector<1x128xf32>
    %53 = vector.extract_strided_slice %38 {offsets = [0, 0], sizes = [1, 128], strides = [1, 1]} : vector<3x128xf32> to vector<1x128xf32>
    %54 = vector.extract_strided_slice %38 {offsets = [1, 0], sizes = [1, 128], strides = [1, 1]} : vector<3x128xf32> to vector<1x128xf32>
    %55 = arith.mulf %53, %54 : vector<1x128xf32>
    %56 = arith.subf %52, %55 : vector<1x128xf32>
    %57 = vector.extract_strided_slice %44 {offsets = [2, 0], sizes = [1, 128], strides = [1, 1]} : vector<9x128xf32> to vector<1x128xf32>
    %58 = vector.extract_strided_slice %38 {offsets = [0, 0], sizes = [1, 128], strides = [1, 1]} : vector<3x128xf32> to vector<1x128xf32>
    %59 = vector.extract_strided_slice %38 {offsets = [2, 0], sizes = [1, 128], strides = [1, 1]} : vector<3x128xf32> to vector<1x128xf32>
    %60 = arith.mulf %58, %59 : vector<1x128xf32>
    %61 = arith.subf %57, %60 : vector<1x128xf32>
    %62 = vector.extract_strided_slice %44 {offsets = [3, 0], sizes = [1, 128], strides = [1, 1]} : vector<9x128xf32> to vector<1x128xf32>
    %63 = vector.extract_strided_slice %38 {offsets = [1, 0], sizes = [1, 128], strides = [1, 1]} : vector<3x128xf32> to vector<1x128xf32>
    %64 = vector.extract_strided_slice %38 {offsets = [0, 0], sizes = [1, 128], strides = [1, 1]} : vector<3x128xf32> to vector<1x128xf32>
    %65 = arith.mulf %63, %64 : vector<1x128xf32>
    %66 = arith.subf %62, %65 : vector<1x128xf32>
    %67 = vector.extract_strided_slice %44 {offsets = [4, 0], sizes = [1, 128], strides = [1, 1]} : vector<9x128xf32> to vector<1x128xf32>
    %68 = vector.extract_strided_slice %38 {offsets = [1, 0], sizes = [1, 128], strides = [1, 1]} : vector<3x128xf32> to vector<1x128xf32>
    %69 = vector.extract_strided_slice %38 {offsets = [1, 0], sizes = [1, 128], strides = [1, 1]} : vector<3x128xf32> to vector<1x128xf32>
    %70 = arith.mulf %68, %69 : vector<1x128xf32>
    %71 = arith.subf %67, %70 : vector<1x128xf32>
    %cst_17 = arith.constant 1.000000e-03 : f32
    %72 = vector.broadcast %cst_17 : f32 to vector<1x128xf32>
    %73 = arith.addf %71, %72 : vector<1x128xf32>
    %74 = vector.extract_strided_slice %44 {offsets = [5, 0], sizes = [1, 128], strides = [1, 1]} : vector<9x128xf32> to vector<1x128xf32>
    %75 = vector.extract_strided_slice %38 {offsets = [1, 0], sizes = [1, 128], strides = [1, 1]} : vector<3x128xf32> to vector<1x128xf32>
    %76 = vector.extract_strided_slice %38 {offsets = [2, 0], sizes = [1, 128], strides = [1, 1]} : vector<3x128xf32> to vector<1x128xf32>
    %77 = arith.mulf %75, %76 : vector<1x128xf32>
    %78 = arith.subf %74, %77 : vector<1x128xf32>
    %79 = vector.extract_strided_slice %44 {offsets = [6, 0], sizes = [1, 128], strides = [1, 1]} : vector<9x128xf32> to vector<1x128xf32>
    %80 = vector.extract_strided_slice %38 {offsets = [2, 0], sizes = [1, 128], strides = [1, 1]} : vector<3x128xf32> to vector<1x128xf32>
    %81 = vector.extract_strided_slice %38 {offsets = [0, 0], sizes = [1, 128], strides = [1, 1]} : vector<3x128xf32> to vector<1x128xf32>
    %82 = arith.mulf %80, %81 : vector<1x128xf32>
    %83 = arith.subf %79, %82 : vector<1x128xf32>
    %84 = vector.extract_strided_slice %44 {offsets = [7, 0], sizes = [1, 128], strides = [1, 1]} : vector<9x128xf32> to vector<1x128xf32>
    %85 = vector.extract_strided_slice %38 {offsets = [2, 0], sizes = [1, 128], strides = [1, 1]} : vector<3x128xf32> to vector<1x128xf32>
    %86 = vector.extract_strided_slice %38 {offsets = [1, 0], sizes = [1, 128], strides = [1, 1]} : vector<3x128xf32> to vector<1x128xf32>
    %87 = arith.mulf %85, %86 : vector<1x128xf32>
    %88 = arith.subf %84, %87 : vector<1x128xf32>
    %89 = vector.extract_strided_slice %44 {offsets = [8, 0], sizes = [1, 128], strides = [1, 1]} : vector<9x128xf32> to vector<1x128xf32>
    %90 = vector.extract_strided_slice %38 {offsets = [2, 0], sizes = [1, 128], strides = [1, 1]} : vector<3x128xf32> to vector<1x128xf32>
    %91 = vector.extract_strided_slice %38 {offsets = [2, 0], sizes = [1, 128], strides = [1, 1]} : vector<3x128xf32> to vector<1x128xf32>
    %92 = arith.mulf %90, %91 : vector<1x128xf32>
    %93 = arith.subf %89, %92 : vector<1x128xf32>
    %cst_18 = arith.constant 1.000000e-03 : f32
    %94 = vector.broadcast %cst_18 : f32 to vector<1x128xf32>
    %95 = arith.addf %93, %94 : vector<1x128xf32>
    %96 = tpu.concatenate %51, %56, %61, %66, %73, %78, %83, %88, %95 in 0 : vector<1x128xf32>, vector<1x128xf32>, vector<1x128xf32>, vector<1x128xf32>, vector<1x128xf32>, vector<1x128xf32>, vector<1x128xf32>, vector<1x128xf32>, vector<1x128xf32> -> vector<9x128xf32>
    %c0_19 = arith.constant 0 : index
    %c0_20 = arith.constant 0 : index
    %c0_21 = arith.constant 0 : index
    %97 = vector.load %arg5[%c0_19, %c0_20, %c0_21] : memref<1x9x128xf32, #tpu.memory_space<vmem>>, vector<1x9x128xf32>
    %98 = vector.shape_cast %97 : vector<1x9x128xf32> to vector<9x128xf32>
    %99 = vector.shape_cast %96 : vector<9x128xf32> to vector<1x9x128xf32>
    tpu.vector_store %arg5[%c0_19, %c0_20, %c0_21], %99 {strides = array<i32>} : memref<1x9x128xf32, #tpu.memory_space<vmem>>, vector<1x9x128xf32>,
    return
  }
  func.func @transform_0(%arg0: i32) -> (i32, i32, i32) {
    %c0_i32 = arith.constant 0 : i32
    %c0_i32_0 = arith.constant 0 : i32
    %c0_i32_1 = arith.constant 0 : i32
    return %arg0, %c0_i32, %c0_i32_0 : i32, i32, i32
  }
  func.func @transform_1(%arg0: i32) -> (i32, i32, i32) {
    %c0_i32 = arith.constant 0 : i32
    %c0_i32_0 = arith.constant 0 : i32
    %c0_i32_1 = arith.constant 0 : i32
    return %arg0, %c0_i32, %c0_i32_0 : i32, i32, i32
  }
  func.func @transform_2(%arg0: i32) -> (i32, i32, i32) {
    %c0_i32 = arith.constant 0 : i32
    %c0_i32_0 = arith.constant 0 : i32
    %c0_i32_1 = arith.constant 0 : i32
    return %arg0, %c0_i32, %c0_i32_0 : i32, i32, i32
  }
  func.func @transform_3(%arg0: i32) -> (i32, i32, i32) {
    %c0_i32 = arith.constant 0 : i32
    %c0_i32_0 = arith.constant 0 : i32
    %c0_i32_1 = arith.constant 0 : i32
    return %arg0, %c0_i32, %c0_i32_0 : i32, i32, i32
  }
  func.func @transform_4(%arg0: i32) -> (i32, i32, i32) {
    %c0_i32 = arith.constant 0 : i32
    %c0_i32_0 = arith.constant 0 : i32
    %c0_i32_1 = arith.constant 0 : i32
    return %arg0, %c0_i32, %c0_i32_0 : i32, i32, i32
  }
}

</mosaic_0001>

<llo_original>
// kernel: neg.1
$region0: #{neg.1}
  #allocation0 [shape = 's32[1]{0}', space=sflag, size = 0x4, scoped, tag = 'scoped memory for neg.1']
  %s0 = inlined_call_operand.vmem [shape: f32[2,16], index: 0, kind: input, shape index: {}]
  %s1 = inlined_call_operand.vmem [shape: f32[2,16], index: 1, kind: output, shape index: {}]
  %v2 = vld [vmem:[%s0] sm:$0x3]
  %3 = xla_tuple %v2
  %4 = xla_tuple %3
  %v5 = vxor.u32 %v2, 2147483648
  %6 = xla_tuple %v5
  %7 = vst [vmem:[%s1] sm:$0x3] %v5

// kernel: deepgmr_forward.9
$region0: #{deepgmr_forward.9}
  #allocation0 [shape = 'u32[]', space=smem, size = 0x4, offset = 0x4, fixed_abs, tag = 'smem constant byte address 0x4 - core index']
  #allocation1 [shape = 'u32[72,128]{1,0:T(1,128)}', space=vmem, size = 0x9000, scoped, tag = 'internal scratch']
  %s0 = inlined_call_operand.vmem [shape: bf16[32,32], index: 0, kind: input, shape index: {}]
  %s1 = inlined_call_operand.vmem [shape: bf16[32,16], index: 1, kind: input, shape index: {}]
  %s2 = inlined_call_operand.vmem [shape: f32[1,16], index: 2, kind: input, shape index: {}]
  %s3 = inlined_call_operand.vmem [shape: bf16[16,128], index: 3, kind: input, shape index: {}]
  %s4 = inlined_call_operand.vmem [shape: f32[1,128], index: 4, kind: input, shape index: {}]
  %s5 = inlined_call_operand.vmem [shape: f32[32,128], index: 5, kind: output, shape index: {}]
  %s6 = sld [smem:[#allocation0]]
  $region30: #{deepgmr_forward.9} parent=0
    _
  %s8 = ssub.s32 1, %s6
  %s9 = scalar_select 0, %s8, %s6
  // Predicated region
  $region2: #{deepgmr_forward.9} parent=0 // pred_check
    _
  $region3: #{deepgmr_forward.9} parent=0 // pred_check_branch
    %11 = sbr.rel (0) target = $region5
  $region4: #{deepgmr_forward.9} parent=0 // pred_region
    _
  $region5: #{deepgmr_forward.9} parent=0 // pred_fallthru
    _
  // Predicated region
  $region6: #{deepgmr_forward.9} parent=0 // pred_check
    _
  $region7: #{deepgmr_forward.9} parent=0 // pred_check_branch
    %13 = sbr.rel (0) target = $region9
  $region8: #{deepgmr_forward.9} parent=0 // pred_region
    _
  $region9: #{deepgmr_forward.9} parent=0 // pred_fallthru
    _
  // Predicated region
  $region10: #{deepgmr_forward.9} parent=0 // pred_check
    _
  $region11: #{deepgmr_forward.9} parent=0 // pred_check_branch
    %15 = sbr.rel (0) target = $region13
  $region12: #{deepgmr_forward.9} parent=0 // pred_region
    _
  $region13: #{deepgmr_forward.9} parent=0 // pred_fallthru
    _
  // Predicated region
  $region14: #{deepgmr_forward.9} parent=0 // pred_check
    _
  $region15: #{deepgmr_forward.9} parent=0 // pred_check_branch
    %17 = sbr.rel (0) target = $region17
  $region16: #{deepgmr_forward.9} parent=0 // pred_region
    _
  $region17: #{deepgmr_forward.9} parent=0 // pred_fallthru
    _
  // Predicated region
  $region18: #{deepgmr_forward.9} parent=0 // pred_check
    _
  $region19: #{deepgmr_forward.9} parent=0 // pred_check_branch
    %19 = sbr.rel (0) target = $region21
  $region20: #{deepgmr_forward.9} parent=0 // pred_region
    _
  $region21: #{deepgmr_forward.9} parent=0 // pred_fallthru
    _
  %v21 = vld [vmem:[%s0] sm:$0xf]
  %v22 = vld [vmem:[%s0 + $0x4] sm:$0xf]
  %v23 = vld [vmem:[%s0 + $0x8] sm:$0xf]
  %v24 = vld [vmem:[%s0 + $0xc] sm:$0xf]
  %v25 = vld [vmem:[%s1] sm:$0xf]
  %v26 = vld [vmem:[%s1 + $0x4] sm:$0xf]
  %v27 = vld [vmem:[%s1 + $0x8] sm:$0xf]
  %v28 = vld [vmem:[%s1 + $0xc] sm:$0xf]
  %v29 = vld [vmem:[%s2] sm:$0x1]
  %v31 = vperm.slane %v29, 0
  %v37 = vunpack.c.l.b16 %v21
  %v38 = vunpack.c.l.b16 %v22
  %v39 = vunpack.c.l.b16 %v23
  %v40 = vunpack.c.l.b16 %v24
  %v41 = vpack.c.b16 %v38, %v37
  %v42 = vpack.c.b16 %v40, %v39
  %v47 = vunpack.c.l.b16 %v25
  %v48 = vunpack.c.l.b16 %v26
  %v49 = vunpack.c.l.b16 %v27
  %v50 = vunpack.c.l.b16 %v28
  %v51 = vpack.c.b16 %v48, %v47
  %v52 = vpack.c.b16 %v50, %v49
  %vm55 = vcmask 261120
  %v57 = vsel %vm55, %v41, 0
  %v60 = vsel %vm55, %v42, 0
  %62 = vmatpush.bf16.msra.mxu0 0
  %63 = vmatpush.bf16.msra.mxu0 0
  %64 = vmatpush.bf16.msra.mxu0 0
  %65 = vmatpush.bf16.msra.mxu0 0
  %66 = vmatpush.bf16.msra.mxu0 0
  %67 = vmatpush.bf16.msra.mxu0 0
  %68 = vmatpush.bf16.msra.mxu0 %v52
  %69 = vmatpush.bf16.msra.mxu0 %v51
  %70 = vmatmul.bf16.gmra.mxu0 %v57
  %v71 = vpop.f32.mrf.mxu0
  %v72 = vadd.f32 %v31, %v71
  %v73 = vpop.f32.mrf.mxu0
  %v74 = vadd.f32 %v31, %v73
  %75 = vmatmul.bf16.gmra.mxu0 %v60
  %v76 = vpop.f32.mrf.mxu0
  %v77 = vadd.f32 %v31, %v76
  %v78 = vpop.f32.mrf.mxu0
  %v79 = vadd.f32 %v31, %v78
  %80 = vdwg.mxu0
  %v81 = vmax.f32 %v72, 0.0
  %v82 = vmax.f32 %v74, 0.0
  %v83 = vmax.f32 %v77, 0.0
  %v84 = vmax.f32 %v79, 0.0
  %v85 = vpack.c.bf16 %v82, %v81
  %v86 = vpack.c.bf16 %v84, %v83
  %v87 = vld [vmem:[%s3] sm:$0xf]
  %v88 = vld [vmem:[%s3 + $0x4] sm:$0xf]
  %v89 = vld [vmem:[%s4] sm:$0x1]
  %v91 = vperm.slane %v89, 0
  %v95 = vunpack.c.l.b16 %v87
  %v96 = vunpack.c.l.b16 %v88
  %v97 = vpack.c.b16 %v96, %v95
  %vm99 = vcmask 130048
  %v101 = vsel %vm99, %v85, 0
  %v104 = vsel %vm99, %v86, 0
  %106 = vmatpush.bf16.msra.mxu0 0
  %107 = vmatpush.bf16.msra.mxu0 0
  %108 = vmatpush.bf16.msra.mxu0 0
  %109 = vmatpush.bf16.msra.mxu0 0
  %110 = vmatpush.bf16.msra.mxu0 0
  %111 = vmatpush.bf16.msra.mxu0 0
  %112 = vmatpush.bf16.msra.mxu0 0
  %113 = vmatpush.bf16.msra.mxu0 %v97
  %114 = vmatmul.bf16.gmra.mxu0 %v101
  %v115 = vpop.f32.mrf.mxu0
  %v116 = vadd.f32 %v91, %v115
  %v117 = vpop.f32.mrf.mxu0
  %v118 = vadd.f32 %v91, %v117
  %119 = vmatmul.bf16.gmra.mxu0 %v104
  %v120 = vpop.f32.mrf.mxu0
  %v121 = vadd.f32 %v91, %v120
  %v122 = vpop.f32.mrf.mxu0
  %v123 = vadd.f32 %v91, %v122
  %124 = vdwg.mxu0
  %125 = vst [vmem:[%s5] sm:$0xff] %v116
  %126 = vst [vmem:[%s5 + $0x8] sm:$0xff] %v118
  %127 = vst [vmem:[%s5 + $0x10] sm:$0xff] %v121
  %128 = vst [vmem:[%s5 + $0x18] sm:$0xff] %v123
  // Predicated region
  $region22: #{deepgmr_forward.9} parent=0 // pred_check
    _
  $region23: #{deepgmr_forward.9} parent=0 // pred_check_branch
    %130 = sbr.rel (0) target = $region25
  $region24: #{deepgmr_forward.9} parent=0 // pred_region
    _
  $region25: #{deepgmr_forward.9} parent=0 // pred_fallthru
    _
  // Predicated region
  $region26: #{deepgmr_forward.9} parent=0 // pred_check
    _
  $region27: #{deepgmr_forward.9} parent=0 // pred_check_branch
    %132 = sbr.rel (0) target = $region29
  $region28: #{deepgmr_forward.9} parent=0 // pred_region
    _
  $region29: #{deepgmr_forward.9} parent=0 // pred_fallthru
    _

// kernel: deepgmr_forward.11
$region0: #{deepgmr_forward.11}
  #allocation0 [shape = 'u32[]', space=smem, size = 0x4, offset = 0x4, fixed_abs, tag = 'smem constant byte address 0x4 - core index']
  #allocation1 [shape = 'u32[72,128]{1,0:T(1,128)}', space=vmem, size = 0x9000, scoped, tag = 'internal scratch']
  %s0 = inlined_call_operand.vmem [shape: f32[2,16,128], index: 0, kind: input, shape index: {}]
  %s1 = inlined_call_operand.vmem [shape: f32[2,3,16], index: 1, kind: input, shape index: {}]
  %s2 = inlined_call_operand.hbm [shape: f32[2,1,128], index: 2, kind: output, shape index: {0}]
  %s3 = inlined_call_operand.vmem [shape: f32[2,3,128], index: 3, kind: output, shape index: {1}]
  %s4 = inlined_call_operand.vmem [shape: f32[2,9,128], index: 4, kind: output, shape index: {2}]
  %5 = xla_tuple %s2, %s3, %s4
  %s6 = sld [smem:[#allocation0]]
  $region57: #{deepgmr_forward.11} parent=0
    _
  %s8 = ssub.s32 1, %s6
  %s9 = scalar_select 0, %s8, %s6
  $region1: #{deepgmr_forward.11} parent=0
    #allocation2 [shape = 'u8[1024]{0}', space=vmem, size = 0x400, scoped, tag = 'output window, operand 0']
    #allocation3 [shape = 's32[2]{0}', space=sflag, size = 0x8, scoped, tag = 'scoped memory for deepgmr_forward.11']
    %10 = vsyncpa [#allocation3], 0
    %s11 = scalar_lea.sflag [#allocation3], 1
    %12 = vsyncpa %s11, 0
    loop: start=0, step=1, limit=4
    $region2: #{deepgmr_forward.11} parent=1 // loop_pre_header
      _
    $region3: #{deepgmr_forward.11} parent=1 // loop_header
      %s14 = sphi 0, %s18
      %p15 = scmp.ge.s32.totalorder %s14, 4
      %s24 = sphi 0, %s26
      %s27 = sphi 0, %s24
      %s28 = sphi 0, %s27
      %s44 = sphi 0, %s28
      %s50 = sphi 0, %s52
      %s53 = sphi 0, %s50
      %s54 = sphi 0, %s53
      %s70 = sphi 0, %s54
      %s76 = sphi 0, %s78
      %s79 = sphi 0, %s76
      %s80 = sphi 0, %s79
      %s96 = sphi 0, %s80
      %s102 = sphi 0, %s104
      %s105 = sphi 0, %s102
      %s106 = sphi 0, %s105
      %s122 = sphi 0, %s106
      %s128 = sphi 0, %s130
      %s131 = sphi 0, %s128
      %s132 = sphi 0, %s131
      %s148 = sphi 0, %s132
    $region4: #{deepgmr_forward.11} parent=1 // loop_header_branch
      %17 = sbr.rel (%p15) target = $region8
    $region5: #{deepgmr_forward.11} parent=1 // loop_body
      %s19 = ssub.s32 %s14, 1
      %s20 = ssub.s32 %s14, 2
      %s21 = sadd.s32 %s14, 1
      %s22 = ssub.s32 %s14, %s21
      %p23 = scmp.eq.s32.totalorder %s22, 0
      %s25 = sadd.s32 %s24, 1
      %s26 = scalar_select %p23, %s24, %s25
      %p29 = pneg %p23
      %p30 = scmp.eq.s32.totalorder %s14, 1
      %p31 = por %p29, %p30
      %p32 = scmp.ne.s32.totalorder %s24, %s27
      %p33 = scmp.eq.s32.totalorder %s14, 0
      %p34 = por %p32, %p33
      %p35 = scmp.ne.s32.totalorder %s24, %s27
      %p36 = scmp.eq.s32.totalorder %s19, 1
      %p37 = por %p35, %p36
      %p38 = scmp.ne.s32.totalorder %s27, %s28
      %p39 = scmp.eq.s32.totalorder %s19, 0
      %p40 = por %p38, %p39
      %p41 = scmp.ne.s32.totalorder %s27, %s28
      %p42 = scmp.eq.s32.totalorder %s20, 1
      %p43 = por %p41, %p42
      %p45 = scmp.ne.s32.totalorder %s28, %s44
      %p46 = scmp.eq.s32.totalorder %s20, 0
      %p47 = por %p45, %p46
      %s48 = ssub.s32 %s14, %s21
      %p49 = scmp.eq.s32.totalorder %s48, 0
      %s51 = sadd.s32 %s50, 1
      %s52 = scalar_select %p49, %s50, %s51
      %p55 = pneg %p49
      %p56 = scmp.eq.s32.totalorder %s14, 1
      %p57 = por %p55, %p56
      %p58 = scmp.ne.s32.totalorder %s50, %s53
      %p59 = scmp.eq.s32.totalorder %s14, 0
      %p60 = por %p58, %p59
      %p61 = scmp.ne.s32.totalorder %s50, %s53
      %p62 = scmp.eq.s32.totalorder %s19, 1
      %p63 = por %p61, %p62
      %p64 = scmp.ne.s32.totalorder %s53, %s54
      %p65 = scmp.eq.s32.totalorder %s19, 0
      %p66 = por %p64, %p65
      %p67 = scmp.ne.s32.totalorder %s53, %s54
      %p68 = scmp.eq.s32.totalorder %s20, 1
      %p69 = por %p67, %p68
      %p71 = scmp.ne.s32.totalorder %s54, %s70
      %p72 = scmp.eq.s32.totalorder %s20, 0
      %p73 = por %p71, %p72
      %s74 = ssub.s32 %s14, %s21
      %p75 = scmp.eq.s32.totalorder %s74, 0
      %s77 = sadd.s32 %s76, 1
      %s78 = scalar_select %p75, %s76, %s77
      %p81 = pneg %p75
      %p82 = scmp.eq.s32.totalorder %s14, 1
      %p83 = por %p81, %p82
      %p84 = scmp.ne.s32.totalorder %s76, %s79
      %p85 = scmp.eq.s32.totalorder %s14, 0
      %p86 = por %p84, %p85
      %p87 = scmp.ne.s32.totalorder %s76, %s79
      %p88 = scmp.eq.s32.totalorder %s19, 1
      %p89 = por %p87, %p88
      %p90 = scmp.ne.s32.totalorder %s79, %s80
      %p91 = scmp.eq.s32.totalorder %s19, 0
      %p92 = por %p90, %p91
      %p93 = scmp.ne.s32.totalorder %s79, %s80
      %p94 = scmp.eq.s32.totalorder %s20, 1
      %p95 = por %p93, %p94
      %p97 = scmp.ne.s32.totalorder %s80, %s96
      %p98 = scmp.eq.s32.totalorder %s20, 0
      %p99 = por %p97, %p98
      %s100 = ssub.s32 %s14, %s21
      %p101 = scmp.eq.s32.totalorder %s100, 0
      %s103 = sadd.s32 %s102, 1
      %s104 = scalar_select %p101, %s102, %s103
      %p107 = pneg %p101
      %p108 = scmp.eq.s32.totalorder %s14, 1
      %p109 = por %p107, %p108
      %p110 = scmp.ne.s32.totalorder %s102, %s105
      %p111 = scmp.eq.s32.totalorder %s14, 0
      %p112 = por %p110, %p111
      %p113 = scmp.ne.s32.totalorder %s102, %s105
      %p114 = scmp.eq.s32.totalorder %s19, 1
      %p115 = por %p113, %p114
      %p116 = scmp.ne.s32.totalorder %s105, %s106
      %p117 = scmp.eq.s32.totalorder %s19, 0
      %p118 = por %p116, %p117
      %p119 = scmp.ne.s32.totalorder %s105, %s106
      %p120 = scmp.eq.s32.totalorder %s20, 1
      %p121 = por %p119, %p120
      %p123 = scmp.ne.s32.totalorder %s106, %s122
      %p124 = scmp.eq.s32.totalorder %s20, 0
      %p125 = por %p123, %p124
      %s126 = ssub.s32 %s14, %s21
      %p127 = scmp.eq.s32.totalorder %s126, 0
      %s129 = sadd.s32 %s128, 1
      %s130 = scalar_select %p127, %s128, %s129
      %p133 = pneg %p127
      %p134 = scmp.eq.s32.totalorder %s14, 1
      %p135 = por %p133, %p134
      %p136 = scmp.ne.s32.totalorder %s128, %s131
      %p137 = scmp.eq.s32.totalorder %s14, 0
      %p138 = por %p136, %p137
      %p139 = scmp.ne.s32.totalorder %s128, %s131
      %p140 = scmp.eq.s32.totalorder %s19, 1
      %p141 = por %p139, %p140
      %p142 = scmp.ne.s32.totalorder %s131, %s132
      %p143 = scmp.eq.s32.totalorder %s19, 0
      %p144 = por %p142, %p143
      %p145 = scmp.ne.s32.totalorder %s131, %s132
      %p146 = scmp.eq.s32.totalorder %s20, 1
      %p147 = por %p145, %p146
      %p149 = scmp.ne.s32.totalorder %s132, %s148
      %p150 = scmp.eq.s32.totalorder %s20, 0
      %p151 = por %p149, %p150
      %p152 = scmp.le.s32.totalorder 1, %s14
      %p153 = scmp.lt.s32.totalorder %s14, 3
      %p154 = pnand %p152, %p153
      %p155 = pneg %p154
      // Predicated region
      $region9: #{deepgmr_forward.11} parent=5 // pred_check
        _
      $region10: #{deepgmr_forward.11} parent=5 // pred_check_branch
        %157 = sbr.rel (%p154) target = $region12
      $region11: #{deepgmr_forward.11} parent=5 // pred_region
        %s158 = ssub.s32 %s14, 1
      $region12: #{deepgmr_forward.11} parent=5 // pred_fallthru
        _
      %p159 = scmp.lt.s32.totalorder %s14, 2
      // Predicated region
      $region13: #{deepgmr_forward.11} parent=5 // pred_check
        %p160 = pneg %p159
      $region14: #{deepgmr_forward.11} parent=5 // pred_check_branch
        %162 = sbr.rel (%p160) target = $region16
      $region15: #{deepgmr_forward.11} parent=5 // pred_region
        // Predicated region
        $region17: #{deepgmr_forward.11} parent=15 // pred_check
          %p163 = pneg %p34
        $region18: #{deepgmr_forward.11} parent=15 // pred_check_branch
          %165 = sbr.rel (%p163) target = $region20
        $region19: #{deepgmr_forward.11} parent=15 // pred_region
          %p166 = scmp.lt.s32.totalorder %s14, 1
          %s167 = scalar_select %p166, %s14, 1
          %s168 = smul.addr %s167, 2
          %s169 = smul.addr %s168, 8
          %s170 = scalar_lea.vmem %s0, %s169
        $region20: #{deepgmr_forward.11} parent=15 // pred_fallthru
          _
        // Predicated region
        $region21: #{deepgmr_forward.11} parent=15 // pred_check
          %p171 = pneg %p60
        $region22: #{deepgmr_forward.11} parent=15 // pred_check_branch
          %173 = sbr.rel (%p171) target = $region24
        $region23: #{deepgmr_forward.11} parent=15 // pred_region
          %p174 = scmp.lt.s32.totalorder %s14, 1
          %s175 = scalar_select %p174, %s14, 1
          %s176 = smul.addr %s175, 4
          %s177 = scalar_lea.vmem %s1, %s176
        $region24: #{deepgmr_forward.11} parent=15 // pred_fallthru
          _
      $region16: #{deepgmr_forward.11} parent=5 // pred_fallthru
        _
      %p178 = scmp.le.s32.totalorder 1, %s14
      %p179 = scmp.lt.s32.totalorder %s14, 3
      %p180 = pnand %p178, %p179
      %p181 = pneg %p180
      // Predicated region
      $region25: #{deepgmr_forward.11} parent=5 // pred_check
        _
      $region26: #{deepgmr_forward.11} parent=5 // pred_check_branch
        %183 = sbr.rel (%p180) target = $region28
      $region27: #{deepgmr_forward.11} parent=5 // pred_region
        %s184 = ssub.s32 %s14, 1
        %p185 = scmp.lt.s32.totalorder %s19, 1
        %s186 = scalar_select %p185, %s19, 1
        %s187 = smul.addr %s186, 2
        %s188 = smul.addr %s187, 8
        %s189 = scalar_lea.vmem %s0, %s188
        %p190 = pneg %p40
        %p191 = pneg %p37
        %p192 = scmp.lt.s32.totalorder %s19, 1
        %s193 = scalar_select %p192, %s19, 1
        %s194 = smul.addr %s193, 4
        %s195 = scalar_lea.vmem %s1, %s194
        %p196 = pneg %p66
        %p197 = pneg %p63
        %p198 = pneg %p92
        %p199 = pneg %p89
        %s200 = sand.u32 %s79, 1
        %s201 = scalar_lea.sflag [#allocation3], %s200
        %s202 = sand.u32 %s79, 1
        %s203 = scalar_lea.vmem [#allocation2], %s202
        %p204 = pneg %p118
        %p205 = pneg %p115
        %p206 = scmp.lt.s32.totalorder %s19, 1
        %s207 = scalar_select %p206, %s19, 1
        %s208 = smul.addr %s207, 4
        %s209 = scalar_lea.vmem %s3, %s208
        %p210 = pneg %p144
        %p211 = pneg %p141
        %p212 = scmp.lt.s32.totalorder %s19, 1
        %s213 = scalar_select %p212, %s19, 1
        %s214 = smul.addr %s213, 2
        %s215 = smul.addr %s214, 8
        %s216 = scalar_lea.vmem %s4, %s215
        %p217 = scmp.lt.s32.totalorder %s19, 1
        %s218 = scalar_select %p217, %s19, 1
        %s219 = smul.addr %s218, 2
        %s220 = smul.addr %s219, 8
        %s221 = scalar_lea.vmem %s0, %s220
        %p222 = scmp.lt.s32.totalorder %s19, 1
        %s223 = scalar_select %p222, %s19, 1
        %s224 = smul.addr %s223, 4
        %s225 = scalar_lea.vmem %s1, %s224
        %p226 = scmp.lt.s32.totalorder %s19, 1
        %s227 = scalar_select %p226, %s19, 1
        %s228 = smul.addr %s227, 4
        %s229 = scalar_lea.vmem %s3, %s228
        %p230 = scmp.lt.s32.totalorder %s19, 1
        %s231 = scalar_select %p230, %s19, 1
        %s232 = smul.addr %s231, 2
        %s233 = smul.addr %s232, 8
        %s234 = scalar_lea.vmem %s4, %s233
        %v235 = vld [vmem:[%s221] sm:$0xff]
        %v236 = vld [vmem:[%s221 + $0x8] sm:$0xff]
        %v237 = vld [vmem:[%s225] sm:$0x7]
        %238 = vmax.xlane.f32.xlu0 %v235
        %v239 = vpop.xlane.xlu0 %238
        %240 = vmax.xlane.f32.xlu0 %v236
        %v241 = vpop.xlane.xlu0 %240
        %v242 = vsub.f32 %v235, %v239
        %v243 = vsub.f32 %v236, %v241
        %v244 = vmul.f32 %v242, 1.442695
        %v245 = vpow.pop %v244
        %v246 = vmul.f32 %v243, 1.442695
        %v247 = vpow.pop %v246
        %248 = vadd.xlane.f32.xlu0 %v245
        %v249 = vpop.xlane.xlu0 %248
        %250 = vadd.xlane.f32.xlu0 %v247
        %v251 = vpop.xlane.xlu0 %250
        %v252 = vrcp.pop %v249
        %v253 = vmul.f32 %v249, %v252
        %v254 = vsub.f32 1.0, %v253
        %v255 = vmul.f32 %v252, %v254
        %v256 = vadd.f32 %v252, %v255
        %vm257 = vweird.f32 %v249
        %vm258 = vweird.f32 %v252
        %vm259 = vmor %vm257, %vm258
        %v260 = vsel %vm259, %v252, %v256
        %v261 = vand.u32 2147483647, %v249
        %vm262 = vcmp.eq.f32.partialorder %v261, 8.507059e+37
        %v263 = vand.u32 %v249, 2147483648
        %v264 = vor.u32 1.1754944e-38, %v263
        %v265 = vsel %vm262, %v264, %v260
        %v266 = vmul.f32 %v245, %v265
        %v267 = vrcp.pop %v251
        %v268 = vmul.f32 %v251, %v267
        %v269 = vsub.f32 1.0, %v268
        %v270 = vmul.f32 %v267, %v269
        %v271 = vadd.f32 %v267, %v270
        %vm272 = vweird.f32 %v251
        %vm273 = vweird.f32 %v267
        %vm274 = vmor %vm272, %vm273
        %v275 = vsel %vm274, %v267, %v271
        %v276 = vand.u32 2147483647, %v251
        %vm277 = vcmp.eq.f32.partialorder %v276, 8.507059e+37
        %v278 = vand.u32 %v251, 2147483648
        %v279 = vor.u32 1.1754944e-38, %v278
        %v280 = vsel %vm277, %v279, %v275
        %v281 = vmul.f32 %v247, %v280
        %v282 = vmul.f32 %v237, %v237
        %v284 = vrot.slane %v237, 1
        %v286 = vmul.f32 %v237, %v284
        %v287 = vrot.slane %v237, 2
        %v289 = vmul.f32 %v237, %v287
        %v290 = vrot.slane %v237, 7
        %v293 = vrot.slane %v282, 4
        %v296 = vrot.slane %v286, 3
        %v299 = vrot.slane %v289, 2
        %v301 = vrot.slane %v286, 1
        %v303 = vrot.slane %v282, 1
        %v305 = vrot.slane %v289, 6
        %v307 = vrot.slane %v286, 6
        %v309 = vrot.slane %v282, 6
        %vm311 = vcmask 1040384
        %v312 = vsel %vm311, 1.0, %v290
        %vm313 = vcmask 1041408
        %v314 = vsel %vm313, %v312, %v290
        %vm315 = vcmask 1042432
        %v316 = vsel %vm315, %v314, %v290
        %vm317 = vcmask 1043456
        %v318 = vsel %vm317, %v316, %v293
        %vm319 = vcmask 1044480
        %v320 = vsel %vm319, %v318, %v296
        %vm321 = vcmask 1045504
        %v322 = vsel %vm321, %v320, %v299
        %vm323 = vcmask 1046528
        %v324 = vsel %vm323, %v322, %v301
        %v325 = vsel %vm311, %v303, %v286
        %v326 = vsel %vm313, %v325, %v305
        %v327 = vsel %vm315, %v326, %v307
        %v328 = vsel %vm317, %v327, %v309
        %vm329 = vcmask 130048
        %v331 = vsel %vm329, %v324, 0
        %v334 = vsel %vm329, %v328, 0
        %336 = vmatpush.msra.mxu0 0.0
        %337 = vmatpush.msra.mxu0 0.0
        %338 = vmatpush.msra.mxu0 0.0
        %339 = vmatpush.msra.mxu0 0.0
        %340 = vmatpush.msra.mxu0 0.0
        %341 = vmatpush.msra.mxu0 0.0
        %342 = vmatpush.msra.mxu0 0.0
        %343 = vmatpush.msra.mxu0 0.0
        %344 = vmatpush.msra.mxu0 0.0
        %345 = vmatpush.msra.mxu0 0.0
        %346 = vmatpush.msra.mxu0 0.0
        %347 = vmatpush.msra.mxu0 0.0
        %348 = vmatpush.msra.mxu0 0.0
        %349 = vmatpush.msra.mxu0 0.0
        %350 = vmatpush.msra.mxu0 %v281
        %351 = vmatpush.msra.mxu0 %v266
        %352 = vmatmul.f32.gmra.mxu0 %v331
        %v353 = vpop.f32.mrf.mxu0
        %v354 = vadd.f32 0.0, %v353
        %355 = vmatmul.f32.gmra.mxu0 %v334
        %v356 = vpop.f32.mrf.mxu0
        %v357 = vadd.f32 0.0, %v356
        %358 = vdwg.mxu0
        %v359 = vrcp.pop 16.0
        %v360 = vmul.f32 16.0, %v359
        %v361 = vsub.f32 1.0, %v360
        %v362 = vmul.f32 %v359, %v361
        %v363 = vadd.f32 %v359, %v362
        %vm364 = vweird.f32 %v359
        %v365 = vsel %vm364, %v359, %v363
        %v366 = vmul.f32 %v354, %v365
        %367 = vst [vmem:[%s203] sm:$0x1] %v366
        %v368 = vadd.f32 %v354, 1e-12
        %v369 = vperm.slane %v368, 0
        %v370 = vrcp.pop %v369
        %v371 = vmul.f32 %v369, %v370
        %v372 = vsub.f32 1.0, %v371
        %v373 = vmul.f32 %v370, %v372
        %v374 = vadd.f32 %v370, %v373
        %vm375 = vweird.f32 %v369
        %vm376 = vweird.f32 %v370
        %vm377 = vmor %vm375, %vm376
        %v378 = vsel %vm377, %v370, %v374
        %v379 = vand.u32 2147483647, %v369
        %vm380 = vcmp.eq.f32.partialorder %v379, 8.507059e+37
        %v381 = vand.u32 %v369, 2147483648
        %v382 = vor.u32 1.1754944e-38, %v381
        %v383 = vsel %vm380, %v382, %v378
        %v384 = vmul.f32 %v354, %v383
        %385 = vst [vmem:[%s229 - $0x1] sm:$0xe] %v384
        %v386 = vmul.f32 %v357, %v383
        %v387 = vmul.f32 %v384, %v384
        %v389 = vrot.slane %v387, 5
        %v391 = vsub.f32 %v384, %v389
        %v392 = vadd.f32 %v391, 0.001
        %v394 = vrot.slane %v384, 1
        %v396 = vmul.f32 %v384, %v394
        %v398 = vrot.slane %v396, 4
        %v400 = vsub.f32 %v384, %v398
        %v401 = vrot.slane %v384, 2
        %v403 = vmul.f32 %v384, %v401
        %v405 = vrot.slane %v403, 3
        %v407 = vsub.f32 %v384, %v405
        %v408 = vrot.slane %v396, 2
        %v410 = vsub.f32 %v384, %v408
        %v411 = vrot.slane %v387, 2
        %v413 = vsub.f32 %v386, %v411
        %v414 = vadd.f32 %v413, 0.001
        %v415 = vrot.slane %v396, 1
        %v417 = vsub.f32 %v386, %v415
        %v418 = vrot.slane %v403, 7
        %v420 = vsub.f32 %v386, %v418
        %v421 = vrot.slane %v396, 7
        %v423 = vsub.f32 %v386, %v421
        %v424 = vrot.slane %v387, 7
        %v426 = vsub.f32 %v386, %v424
        %v427 = vadd.f32 %v426, 0.001
        %v429 = vrot.slane %v392, 4
        %v432 = vrot.slane %v400, 4
        %v435 = vrot.slane %v407, 4
        %v438 = vrot.slane %v410, 4
        %v441 = vrot.slane %v414, 4
        %v444 = vrot.slane %v417, 4
        %v447 = vrot.slane %v420, 4
        %v450 = vrot.slane %v423, 4
        %v453 = vrot.slane %v427, 4
        %v455 = vsel %vm311, %v429, %v432
        %v456 = vsel %vm313, %v455, %v435
        %v457 = vsel %vm315, %v456, %v438
        %v458 = vsel %vm317, %v457, %v441
        %v459 = vsel %vm319, %v458, %v444
        %v460 = vsel %vm321, %v459, %v447
        %v461 = vsel %vm323, %v460, %v450
        %462 = vst [vmem:[%s234] sm:$0xff] %v461
        %463 = vst [vmem:[%s234 + $0x8] sm:$0x1] %v453
        %s464 = sand.u32 %s79, 1
        %s465 = scalar_lea.sflag [#allocation3], %s464
        %s466 = sand.u32 %s79, 1
        %s467 = scalar_lea.vmem [#allocation2], %s466
        %p468 = scmp.lt.s32.totalorder %s19, 1
        %s469 = scalar_select %p468, %s19, 1
        %s470 = smul.addr %s469, 4
        %s471 = scalar_lea.vmem %s3, %s470
        %p472 = scmp.lt.s32.totalorder %s19, 1
        %s473 = scalar_select %p472, %s19, 1
        %s474 = smul.addr %s473, 2
        %s475 = smul.addr %s474, 8
        %s476 = scalar_lea.vmem %s4, %s475
        // Predicated region
        $region29: #{deepgmr_forward.11} parent=27 // pred_check
          %p477 = pneg %p89
        $region30: #{deepgmr_forward.11} parent=27 // pred_check_branch
          %479 = sbr.rel (%p477) target = $region32
        $region31: #{deepgmr_forward.11} parent=27 // pred_region
          %481 = vsyncadd %s465, 0
          %s482 = scalar_lea.hbm %s2, %s19
          %s484 = sshll.u32 %s467, 4
          %s485 = int_to_ptr.vmem [resolvable:$true] %s484
          %s486 = sshll.u32 %s482, 4
          %s487 = int_to_ptr.hbm [resolvable:$true] %s486
          %489 = dma.vmem_to_hbm [thread:$0]  %s485, 16, %s487, %s465
        $region32: #{deepgmr_forward.11} parent=27 // pred_fallthru
          _
        // Predicated region
        $region33: #{deepgmr_forward.11} parent=27 // pred_check
          %p490 = pneg %p115
        $region34: #{deepgmr_forward.11} parent=27 // pred_check_branch
          %492 = sbr.rel (%p490) target = $region36
        $region35: #{deepgmr_forward.11} parent=27 // pred_region
          _
        $region36: #{deepgmr_forward.11} parent=27 // pred_fallthru
          _
        // Predicated region
        $region37: #{deepgmr_forward.11} parent=27 // pred_check
          %p493 = pneg %p141
        $region38: #{deepgmr_forward.11} parent=27 // pred_check_branch
          %495 = sbr.rel (%p493) target = $region40
        $region39: #{deepgmr_forward.11} parent=27 // pred_region
          _
        $region40: #{deepgmr_forward.11} parent=27 // pred_fallthru
          _
      $region28: #{deepgmr_forward.11} parent=5 // pred_fallthru
        _
      %p496 = scmp.le.s32.totalorder 2, %s14
      // Predicated region
      $region41: #{deepgmr_forward.11} parent=5 // pred_check
        %p497 = pneg %p496
      $region42: #{deepgmr_forward.11} parent=5 // pred_check_branch
        %499 = sbr.rel (%p497) target = $region44
      $region43: #{deepgmr_forward.11} parent=5 // pred_region
        %s500 = ssub.s32 %s14, 2
        // Predicated region
        $region45: #{deepgmr_forward.11} parent=43 // pred_check
          %p501 = pneg %p95
        $region46: #{deepgmr_forward.11} parent=43 // pred_check_branch
          %503 = sbr.rel (%p501) target = $region48
        $region47: #{deepgmr_forward.11} parent=43 // pred_region
          %s504 = sand.u32 %s80, 1
          %s505 = scalar_lea.sflag [#allocation3], %s504
          %s506 = sand.u32 %s80, 1
          %s507 = scalar_lea.vmem [#allocation2], %s506
          %509 = dma.done %s505, 16
        $region48: #{deepgmr_forward.11} parent=43 // pred_fallthru
          _
        // Predicated region
        $region49: #{deepgmr_forward.11} parent=43 // pred_check
          %p510 = pneg %p121
        $region50: #{deepgmr_forward.11} parent=43 // pred_check_branch
          %512 = sbr.rel (%p510) target = $region52
        $region51: #{deepgmr_forward.11} parent=43 // pred_region
          %p513 = scmp.lt.s32.totalorder %s20, 1
          %s514 = scalar_select %p513, %s20, 1
          %s515 = smul.addr %s514, 4
          %s516 = scalar_lea.vmem %s3, %s515
        $region52: #{deepgmr_forward.11} parent=43 // pred_fallthru
          _
        // Predicated region
        $region53: #{deepgmr_forward.11} parent=43 // pred_check
          %p517 = pneg %p147
        $region54: #{deepgmr_forward.11} parent=43 // pred_check_branch
          %519 = sbr.rel (%p517) target = $region56
        $region55: #{deepgmr_forward.11} parent=43 // pred_region
          %p520 = scmp.lt.s32.totalorder %s20, 1
          %s521 = scalar_select %p520, %s20, 1
          %s522 = smul.addr %s521, 2
          %s523 = smul.addr %s522, 8
          %s524 = scalar_lea.vmem %s4, %s523
        $region56: #{deepgmr_forward.11} parent=43 // pred_fallthru
          _
      $region44: #{deepgmr_forward.11} parent=5 // pred_fallthru
        _
    $region6: #{deepgmr_forward.11} parent=1 // loop_footer
      %s18 = sadd.s32 1, %s14
    $region7: #{deepgmr_forward.11} parent=1 // loop_footer_branch
      %13 = sbr.rel target = $region3
    $region8: #{deepgmr_forward.11} parent=1 // loop_exit
      _
    %525 = vsyncpa [#allocation3], 1
    %s526 = scalar_lea.sflag [#allocation3], 1
    %527 = vsyncpa %s526, 1

// kernel: custom-call.33
$region0: #{custom-call.33}
  %s0 = inlined_call_operand.vmem [shape: f32[2,8,3,3], index: 0, kind: input, shape index: {}]
  %s1 = inlined_call_operand.vmem [shape: f32[2,8,3,3], index: 1, kind: output, shape index: {0}]
  %s2 = inlined_call_operand.hbm [shape: s32[2,8,3], index: 2, kind: output, shape index: {1}]
  %s3 = inlined_call_operand.vmem [shape: s32[2,8,3], index: 3, kind: output, shape index: {2}]
  %4 = xla_tuple %s1, %s2, %s3
  $region1: #{custom-call.33} parent=0
    #allocation0 [shape = 'u8[4096]{0}', space=vmem, size = 0x1000, scoped, tag = 'operand span for operand 0']
    #allocation1 [shape = 'u8[4096]{0}', space=vmem, size = 0x1000, scoped, tag = 'packed  for operand 0']
    #allocation2 [shape = 'u8[4096]{0}', space=vmem, size = 0x1000, scoped, tag = 'operand span for operand 1']
    #allocation3 [shape = 'u8[4096]{0}', space=vmem, size = 0x1000, scoped, tag = 'packed  for operand 1']
    #allocation4 [shape = 'u8[8192]{0}', space=vmem, size = 0x2000, scoped, tag = 'operand span for operand 2']
    #allocation5 [shape = 's32[2]{0}', space=sflag, size = 0x8, scoped, tag = 'scoped memory for custom-call.33']
    #allocation6 [shape = 'u8[8192]{0}', space=vmem, size = 0x2000, scoped, tag = 'operand span for operand 3']
    %5 = vsyncpa [#allocation5], 0
    %s6 = scalar_lea.sflag [#allocation5], 1
    %7 = vsyncpa %s6, 0
    loop: start=0, step=1, limit=18
    $region2: #{custom-call.33} parent=1 // loop_pre_header
      _
    $region3: #{custom-call.33} parent=1 // loop_header
      %s9 = sphi 0, %s13
      %p10 = scmp.ge.s32.totalorder %s9, 18
      %s16 = sphi 0, %s28
      %s17 = sphi 0, %s24
      %s18 = sphi 0, %s16
      %s19 = sphi 0, %s17
      %s20 = sphi 0, %s18
      %s21 = sphi 0, %s19
      %s35 = sphi 0, %s37
      %s38 = sphi 0, %s35
      %s39 = sphi 0, %s38
      %s55 = sphi 0, %s39
      %s65 = sphi 0, %s67
      %s68 = sphi 0, %s65
      %s69 = sphi 0, %s68
      %s85 = sphi 0, %s69
    $region4: #{custom-call.33} parent=1 // loop_header_branch
      %12 = sbr.rel (%p10) target = $region8
    $region5: #{custom-call.33} parent=1 // loop_body
      %s14 = ssub.s32 %s9, 1
      %s15 = ssub.s32 %s9, 2
      %s22 = sadd.s32 1, %s17
      %p23 = scmp.ge.s32.totalorder %s22, 8
      %s24 = scalar_select %p23, 0, %s22
      %s25 = sadd.s32 1, %s16
      %s26 = scalar_select %p23, %s25, %s16
      %p27 = scmp.ge.s32.totalorder %s26, 2
      %s28 = scalar_select %p27, 0, %s26
      %s29 = sshrl.u32 %s17, 3
      %s30 = sshrl.u32 %s24, 3
      %s31 = ssub.s32 %s16, %s28
      %s32 = ssub.s32 %s29, %s30
      %s33 = sor.u32 %s31, %s32
      %p34 = scmp.eq.s32.totalorder %s33, 0
      %s36 = sadd.s32 %s35, 1
      %s37 = scalar_select %p34, %s35, %s36
      %p40 = pneg %p34
      %p41 = scmp.eq.s32.totalorder %s9, 15
      %p42 = por %p40, %p41
      %p43 = scmp.ne.s32.totalorder %s35, %s38
      %p44 = scmp.eq.s32.totalorder %s9, 0
      %p45 = por %p43, %p44
      %p46 = scmp.ne.s32.totalorder %s35, %s38
      %p47 = scmp.eq.s32.totalorder %s14, 15
      %p48 = por %p46, %p47
      %p49 = scmp.ne.s32.totalorder %s38, %s39
      %p50 = scmp.eq.s32.totalorder %s14, 0
      %p51 = por %p49, %p50
      %p52 = scmp.ne.s32.totalorder %s38, %s39
      %p53 = scmp.eq.s32.totalorder %s15, 15
      %p54 = por %p52, %p53
      %p56 = scmp.ne.s32.totalorder %s39, %s55
      %p57 = scmp.eq.s32.totalorder %s15, 0
      %p58 = por %p56, %p57
      %s59 = sshrl.u32 %s17, 3
      %s60 = sshrl.u32 %s24, 3
      %s61 = ssub.s32 %s16, %s28
      %s62 = ssub.s32 %s59, %s60
      %s63 = sor.u32 %s61, %s62
      %p64 = scmp.eq.s32.totalorder %s63, 0
      %s66 = sadd.s32 %s65, 1
      %s67 = scalar_select %p64, %s65, %s66
      %p70 = pneg %p64
      %p71 = scmp.eq.s32.totalorder %s9, 15
      %p72 = por %p70, %p71
      %p73 = scmp.ne.s32.totalorder %s65, %s68
      %p74 = scmp.eq.s32.totalorder %s9, 0
      %p75 = por %p73, %p74
      %p76 = scmp.ne.s32.totalorder %s65, %s68
      %p77 = scmp.eq.s32.totalorder %s14, 15
      %p78 = por %p76, %p77
      %p79 = scmp.ne.s32.totalorder %s68, %s69
      %p80 = scmp.eq.s32.totalorder %s14, 0
      %p81 = por %p79, %p80
      %p82 = scmp.ne.s32.totalorder %s68, %s69
      %p83 = scmp.eq.s32.totalorder %s15, 15
      %p84 = por %p82, %p83
      %p86 = scmp.ne.s32.totalorder %s69, %s85
      %p87 = scmp.eq.s32.totalorder %s15, 0
      %p88 = por %p86, %p87
      %p89 = scmp.le.s32.totalorder 1, %s9
      %p90 = scmp.lt.s32.totalorder %s9, 17
      %p91 = pnand %p89, %p90
      %p92 = pneg %p91
      // Predicated region
      $region9: #{custom-call.33} parent=5 // pred_check
        _
      $region10: #{custom-call.33} parent=5 // pred_check_branch
        %94 = sbr.rel (%p91) target = $region12
      $region11: #{custom-call.33} parent=5 // pred_region
        %s95 = ssub.s32 %s9, 1
      $region12: #{custom-call.33} parent=5 // pred_fallthru
        _
      %p96 = scmp.lt.s32.totalorder %s9, 16
      // Predicated region
      $region13: #{custom-call.33} parent=5 // pred_check
        %p97 = pneg %p96
      $region14: #{custom-call.33} parent=5 // pred_check_branch
        %99 = sbr.rel (%p97) target = $region16
      $region15: #{custom-call.33} parent=5 // pred_region
        %s100 = sand.u32 %s9, 1
        %s101 = sand.u32 %s9, 1
        %s102 = smul.addr %s101, 4
        %s103 = scalar_lea.vmem [#allocation1], %s102
        %s104 = smul.addr %s16, 8
        %s105 = sadd.s32 %s17, %s104
        %s106 = smul.addr %s105, 4
        %s107 = scalar_lea.vmem %s0, %s106
        // Predicated region
        $region17: #{custom-call.33} parent=15 // pred_check
          _
        $region18: #{custom-call.33} parent=15 // pred_check_branch
          %109 = sbr.rel (0) target = $region20
        $region19: #{custom-call.33} parent=15 // pred_region
          // Predicated region
          $region21: #{custom-call.33} parent=19 // pred_check
            _
          $region22: #{custom-call.33} parent=19 // pred_check_branch
            %111 = sbr.rel target = $region24
          $region23: #{custom-call.33} parent=19 // pred_region
            // Predicated region
            $region36: #{custom-call.33} parent=23 // pred_check
              _
            $region37: #{custom-call.33} parent=23 // pred_check_branch
              %127 = sbr.rel (0) target = $region39
            $region38: #{custom-call.33} parent=23 // pred_region
              %s129 = ssub.s32 16, 1
              loop: start=0, step=1, limit=1
              $region40: #{custom-call.33} parent=38 // loop_pre_header
                _
              $region41: #{custom-call.33} parent=38 // loop_header
                %s131 = sphi 0, %s135
                %p132 = scmp.ge.s32.totalorder %s131, 1
                %s136 = sphi %s107, %s107
                %s137 = sphi %s103, %s103
              $region42: #{custom-call.33} parent=38 // loop_header_branch
                %134 = sbr.rel (%p132) target = $region46
              $region43: #{custom-call.33} parent=38 // loop_body
                %v138 = vld [vmem:[%s136] sm:%s129]
                %139 = vst [vmem:[%s137] sm:%s129] %v138
              $region44: #{custom-call.33} parent=38 // loop_footer
                %s135 = sadd.s32 1, %s131
              $region45: #{custom-call.33} parent=38 // loop_footer_branch
                %130 = sbr.rel target = $region41
              $region46: #{custom-call.33} parent=38 // loop_exit
                _
            $region39: #{custom-call.33} parent=23 // pred_fallthru
              _
          $region24: #{custom-call.33} parent=19 // pred_fallthru
            _
          // Predicated region
          $region25: #{custom-call.33} parent=19 // pred_check
            _
          $region26: #{custom-call.33} parent=19 // pred_check_branch
            %113 = sbr.rel (0) target = $region28
          $region27: #{custom-call.33} parent=19 // pred_region
            %s115 = ssub.s32 16, 1
            loop: start=0, step=1, limit=1
            $region29: #{custom-call.33} parent=27 // loop_pre_header
              _
            $region30: #{custom-call.33} parent=27 // loop_header
              %s117 = sphi 0, %s121
              %p118 = scmp.ge.s32.totalorder %s117, 1
              %s122 = sphi %s107, %s107
              %s123 = sphi %s103, %s103
            $region31: #{custom-call.33} parent=27 // loop_header_branch
              %120 = sbr.rel (%p118) target = $region35
            $region32: #{custom-call.33} parent=27 // loop_body
              %v124 = vld [vmem:[%s122] sm:%s115]
              %125 = vst [vmem:[%s123] sm:%s115] %v124
            $region33: #{custom-call.33} parent=27 // loop_footer
              %s121 = sadd.s32 1, %s117
            $region34: #{custom-call.33} parent=27 // loop_footer_branch
              %116 = sbr.rel target = $region30
            $region35: #{custom-call.33} parent=27 // loop_exit
              _
          $region28: #{custom-call.33} parent=19 // pred_fallthru
            _
        $region20: #{custom-call.33} parent=15 // pred_fallthru
          _
        %140 = vnop
      $region16: #{custom-call.33} parent=5 // pred_fallthru
        _
      %p141 = scmp.le.s32.totalorder 1, %s9
      %p142 = scmp.lt.s32.totalorder %s9, 17
      %p143 = pnand %p141, %p142
      %p144 = pneg %p143
      // Predicated region
      $region47: #{custom-call.33} parent=5 // pred_check
        _
      $region48: #{custom-call.33} parent=5 // pred_check_branch
        %146 = sbr.rel (%p143) target = $region50
      $region49: #{custom-call.33} parent=5 // pred_region
        #allocation7 [shape = 's32[3,128]{1,0}', space=vmem, size = 0x1000, scoped, tag = 'scratch for permutations']
        %s147 = ssub.s32 %s9, 1
        %s148 = sand.u32 %s14, 1
        %s149 = sand.u32 %s14, 1
        %s150 = smul.addr %s149, 4
        %s151 = scalar_lea.vmem [#allocation1], %s150
        %s152 = sand.u32 %s14, 1
        %s153 = sand.u32 %s14, 1
        %s154 = smul.addr %s153, 4
        %s155 = scalar_lea.vmem [#allocation1], %s154
        %s156 = sand.u32 %s14, 1
        %s157 = sand.u32 %s14, 1
        %s158 = smul.addr %s157, 4
        %s159 = scalar_lea.vmem [#allocation3], %s158
        %p160 = pneg %p51
        %p161 = pneg %p48
        %s162 = sand.u32 %s38, 1
        %s163 = scalar_lea.sflag [#allocation5], %s162
        %s164 = sand.u32 %s38, 1
        %s165 = smul.addr %s164, 8
        %s166 = scalar_lea.vmem [#allocation4], %s165
        %p167 = pneg %p81
        %p168 = pneg %p78
        %s169 = sand.u32 %s68, 1
        %s170 = sand.u32 %s68, 1
        %s171 = smul.addr %s170, 8
        %s172 = scalar_lea.vmem [#allocation6], %s171
        %s174 = ssub.s32 16, 1
        %v175 = vld [vmem:[%s155] sm:%s174]
        %176 = vst [vmem:[#allocation0] sm:%s174] %v175
        %s177 = sshrl.u32 %s19, 3
        %s178 = sshrl.u32 %s19, 3
        %v179 = vld [vmem:[#allocation0] sm:$0xff]
        %180 = vst [vmem:[#allocation2] sm:$0xff] %v179
        %s181 = sand.u32 %s19, 7
        %s182 = scalar_lea.vmem %s166, %s181 [#allocation4]
        %s183 = sand.u32 %s19, 7
        %s184 = scalar_lea.vmem %s172, %s183 [#allocation6]
        %185 = vst [vmem:[%s182] sm:$0x1] 0
        %v186 = vlaneseq
        %v187 = vshrl.u32 %v186, 7
        %v188 = vmov %v187
        %190 = vst [vmem:[#allocation7] sm:$0xff] %v188
        loop: start=0, step=1, limit=3
        $region52: #{custom-call.33} parent=49 // loop_pre_header
          _
        $region53: #{custom-call.33} parent=49 // loop_header
          %s192 = sphi 0, %s196
          %p193 = scmp.ge.s32.totalorder %s192, 3
        $region54: #{custom-call.33} parent=49 // loop_header_branch
          %195 = sbr.rel (%p193) target = $region58
        $region55: #{custom-call.33} parent=49 // loop_body
          %v197 = vstv %s192
          %v198 = vlaneseq
          %v199 = vshrl.u32 %v198, 7
          %v200 = vmov %v199
          %v201 = vld [vmem:[#allocation2] sm:$0xff]
          %v202 = vand.u32 2147483647, %v201
          %v204 = vstv %s192
          %vm205 = vcmp.ge.s32.totalorder %v200, %v204
          %vm206 = vcmp.lt.s32.totalorder %v200, 3
          %vm207 = vmand %vm205, %vm206
          %vm208 = vcmp.lt.f32.partialorder -inf, %v202
          %vm209 = vmand %vm207, %vm208
          %v210 = vsel %vm209, %v200, %v197
          %v211 = vsel %vm209, %v202, -inf
          %v212 = vrot.slane %v211, 1
          %v213 = vrot.slane %v210, 1
          %vm214 = vcmp.ge.f32.partialorder %v212, %v211
          %v215 = vsel %vm214, %v212, %v211
          %v216 = vsel %vm214, %v213, %v210
          %v217 = vrot.slane %v212, 1
          %v218 = vrot.slane %v213, 1
          %vm219 = vcmp.ge.f32.partialorder %v217, %v215
          %v220 = vsel %vm219, %v217, %v215
          %v221 = vsel %vm219, %v218, %v216
          %v222 = vrot.slane %v217, 1
          %v223 = vrot.slane %v218, 1
          %vm224 = vcmp.ge.f32.partialorder %v222, %v220
          %v225 = vsel %vm224, %v222, %v220
          %v226 = vsel %vm224, %v223, %v221
          %v227 = vrot.slane %v222, 1
          %v228 = vrot.slane %v223, 1
          %vm229 = vcmp.ge.f32.partialorder %v227, %v225
          %v230 = vsel %vm229, %v227, %v225
          %v231 = vsel %vm229, %v228, %v226
          %v232 = vrot.slane %v227, 1
          %v233 = vrot.slane %v228, 1
          %vm234 = vcmp.ge.f32.partialorder %v232, %v230
          %v235 = vsel %vm234, %v232, %v230
          %v236 = vsel %vm234, %v233, %v231
          %v237 = vrot.slane %v232, 1
          %v238 = vrot.slane %v233, 1
          %vm239 = vcmp.ge.f32.partialorder %v237, %v235
          %v240 = vsel %vm239, %v237, %v235
          %v241 = vsel %vm239, %v238, %v236
          %v242 = vrot.slane %v237, 1
          %v243 = vrot.slane %v238, 1
          %vm244 = vcmp.ge.f32.partialorder %v242, %v240
          %v245 = vsel %vm244, %v242, %v240
          %v246 = vsel %vm244, %v243, %v241
          %s247 = ssub.s32 128, %s192
          %248 = vrot.lane.b32.xlu0 %v246, %s247
          %v249 = vpop.permute.xlu0 %248
          %s250 = vtos %v249
          %v251 = vstv %s192
          %v252 = vlaneseq
          %v253 = vand.u32 %v252, 127
          %vm254 = vcmp.eq.s32.totalorder %v253, %v251
          %v255 = vstv %s250
          %v256 = vld [vmem:[%s182] ss:$0 sm:$0xff]
          %v257 = vsel %vm254, %v255, %v256
          %258 = vst [vmem:[%s182] sm:$0x1] %v257
          %s259 = scalar_lea.vmem [#allocation2], %s192
          %s260 = scalar_lea.vmem [#allocation2], %s250
          %v261 = vld [vmem:[%s259] ss:$0 sm:$0xff]
          %v262 = vld [vmem:[%s260] ss:$0 sm:$0xff]
          %263 = vst [vmem:[%s260] sm:$0x1] %v261
          %264 = vst [vmem:[%s259] sm:$0x1] %v262
          %s265 = scalar_lea.vmem [#allocation7], %s192
          %s266 = scalar_lea.vmem [#allocation7], %s250
          %v267 = vld [vmem:[%s265] ss:$0 sm:$0xff]
          %v268 = vld [vmem:[%s266] ss:$0 sm:$0xff]
          %269 = vst [vmem:[%s266] sm:$0x1] %v267
          %270 = vst [vmem:[%s265] sm:$0x1] %v268
          %vm271 = vcmp.ne.f32.partialorder %v262, 0.0
          %vm272 = vmand %vm254, %vm271
          %v273 = vsel %vm272, %v262, 1.0
          %v274 = vlaneseq
          %v275 = vand.u32 %v274, 127
          %v276 = vstv %s192
          %vm277 = vcmp.gt.s32.totalorder %v275, %v276
          %v278 = vsel %vm277, %v262, 0.0
          %v279 = vlaneseq
          %v280 = vshrl.u32 %v279, 7
          %v281 = vmov %v280
          %v282 = vld [vmem:[#allocation2] sm:$0xff]
          %v284 = vstv %s192
          %vm285 = vcmp.gt.s32.totalorder %v281, %v284
          %v286 = vsel %vm285, %v273, 1.0
          %v287 = vrcp.pop %v286
          %v288 = vmul.f32 %v286, %v287
          %v289 = vsub.f32 1.0, %v288
          %v290 = vmul.f32 %v287, %v289
          %v291 = vadd.f32 %v287, %v290
          %vm292 = vweird.f32 %v286
          %vm293 = vweird.f32 %v287
          %vm294 = vmor %vm292, %vm293
          %v295 = vsel %vm294, %v287, %v291
          %v296 = vand.u32 2147483647, %v286
          %vm297 = vcmp.eq.f32.partialorder %v296, 8.507059e+37
          %v298 = vand.u32 %v286, 2147483648
          %v299 = vor.u32 1.1754944e-38, %v298
          %v300 = vsel %vm297, %v299, %v295
          %v301 = vmul.f32 %v282, %v300
          %vm302 = vmand %vm285, %vm254
          %v303 = vsel %vm302, %v301, 0.0
          %304 = vadd.xlane.f32.xlu0 %v303
          %v305 = vpop.xlane.xlu0 %304
          %v306 = vmul.f32 %v305, %v278
          %v307 = vsub.f32 %v301, %v306
          %308 = vst [vmem:[#allocation2] sm:$0xff] %v307
        $region56: #{custom-call.33} parent=49 // loop_footer
          %s196 = sadd.s32 1, %s192
        $region57: #{custom-call.33} parent=49 // loop_footer_branch
          %191 = sbr.rel target = $region53
        $region58: #{custom-call.33} parent=49 // loop_exit
          _
        %v309 = vld [vmem:[#allocation7] sm:$0xff]
        %s310 = scalar_lea.vmem [#allocation7], 8
        %s311 = scalar_lea.vmem [#allocation7], 16
        %s312 = scalar_lea.vmem [#allocation7], 24
        %s313 = scalar_lea.vmem [#allocation7], 32
        %s314 = scalar_lea.vmem [#allocation7], 40
        %s315 = scalar_lea.vmem [#allocation7], 48
        %s316 = scalar_lea.vmem [#allocation7], 56
        %s317 = scalar_lea.vmem [#allocation7], 64
        %s318 = scalar_lea.vmem [#allocation7], 72
        %s319 = scalar_lea.vmem [#allocation7], 80
        %s320 = scalar_lea.vmem [#allocation7], 88
        %s321 = scalar_lea.vmem [#allocation7], 96
        %s322 = scalar_lea.vmem [#allocation7], 104
        %s323 = scalar_lea.vmem [#allocation7], 112
        %s324 = scalar_lea.vmem [#allocation7], 120
        %325 = vxpose.xlu0.b32.start [1/16] %v309, 128
        %326 = vxpose.xlu0.b32.cont [2/16] 0, 128
        %327 = vxpose.xlu0.b32.cont [3/16] 0, 128
        %328 = vxpose.xlu0.b32.cont [4/16] 0, 128
        %329 = vxpose.xlu0.b32.cont [5/16] 0, 128
        %330 = vxpose.xlu0.b32.cont [6/16] 0, 128
        %331 = vxpose.xlu0.b32.cont [7/16] 0, 128
        %332 = vxpose.xlu0.b32.cont [8/16] 0, 128
        %333 = vxpose.xlu0.b32.cont [9/16] 0, 128
        %334 = vxpose.xlu0.b32.cont [10/16] 0, 128
        %335 = vxpose.xlu0.b32.cont [11/16] 0, 128
        %336 = vxpose.xlu0.b32.cont [12/16] 0, 128
        %337 = vxpose.xlu0.b32.cont [13/16] 0, 128
        %338 = vxpose.xlu0.b32.cont [14/16] 0, 128
        %339 = vxpose.xlu0.b32.cont [15/16] 0, 128
        %340 = vxpose.xlu0.b32.end [16/16] 0, 128
        %v341 = vpop.trf.xlu0
        %v342 = vpop.trf.xlu0
        %v343 = vpop.trf.xlu0
        %v344 = vpop.trf.xlu0
        %v345 = vpop.trf.xlu0
        %v346 = vpop.trf.xlu0
        %v347 = vpop.trf.xlu0
        %v348 = vpop.trf.xlu0
        %v349 = vpop.trf.xlu0
        %v350 = vpop.trf.xlu0
        %v351 = vpop.trf.xlu0
        %v352 = vpop.trf.xlu0
        %v353 = vpop.trf.xlu0
        %v354 = vpop.trf.xlu0
        %v355 = vpop.trf.xlu0
        %v356 = vpop.trf.xlu0
        %357 = vst [vmem:[%s184] sm:$0x1] %v341
        %s359 = ssub.s32 16, 1
        %v360 = vld [vmem:[#allocation2] sm:%s359]
        %s362 = ssub.s32 16, 1
        %363 = vst [vmem:[%s159] sm:%s362] %v360
        %s364 = sand.u32 %s14, 1
        %s365 = sand.u32 %s14, 1
        %s366 = smul.addr %s365, 4
        %s367 = scalar_lea.vmem [#allocation3], %s366
        %s368 = sand.u32 %s38, 1
        %s369 = scalar_lea.sflag [#allocation5], %s368
        %s370 = sand.u32 %s38, 1
        %s371 = smul.addr %s370, 8
        %s372 = scalar_lea.vmem [#allocation4], %s371
        %s373 = sand.u32 %s68, 1
        %s374 = sand.u32 %s68, 1
        %s375 = smul.addr %s374, 8
        %s376 = scalar_lea.vmem [#allocation6], %s375
        %s377 = smul.addr %s18, 8
        %s378 = sadd.s32 %s19, %s377
        %s379 = smul.addr %s378, 4
        %s380 = scalar_lea.vmem %s1, %s379
        // Predicated region
        $region59: #{custom-call.33} parent=49 // pred_check
          _
        $region60: #{custom-call.33} parent=49 // pred_check_branch
          %382 = sbr.rel (0) target = $region62
        $region61: #{custom-call.33} parent=49 // pred_region
          // Predicated region
          $region63: #{custom-call.33} parent=61 // pred_check
            _
          $region64: #{custom-call.33} parent=61 // pred_check_branch
            %384 = sbr.rel target = $region66
          $region65: #{custom-call.33} parent=61 // pred_region
            // Predicated region
            $region78: #{custom-call.33} parent=65 // pred_check
              _
            $region79: #{custom-call.33} parent=65 // pred_check_branch
              %400 = sbr.rel (0) target = $region81
            $region80: #{custom-call.33} parent=65 // pred_region
              %s402 = ssub.s32 16, 1
              loop: start=0, step=1, limit=1
              $region82: #{custom-call.33} parent=80 // loop_pre_header
                _
              $region83: #{custom-call.33} parent=80 // loop_header
                %s404 = sphi 0, %s408
                %p405 = scmp.ge.s32.totalorder %s404, 1
                %s409 = sphi %s367, %s367
                %s410 = sphi %s380, %s380
              $region84: #{custom-call.33} parent=80 // loop_header_branch
                %407 = sbr.rel (%p405) target = $region88
              $region85: #{custom-call.33} parent=80 // loop_body
                %v411 = vld [vmem:[%s409] sm:%s402]
                %412 = vst [vmem:[%s410] sm:%s402] %v411
              $region86: #{custom-call.33} parent=80 // loop_footer
                %s408 = sadd.s32 1, %s404
              $region87: #{custom-call.33} parent=80 // loop_footer_branch
                %403 = sbr.rel target = $region83
              $region88: #{custom-call.33} parent=80 // loop_exit
                _
            $region81: #{custom-call.33} parent=65 // pred_fallthru
              _
          $region66: #{custom-call.33} parent=61 // pred_fallthru
            _
          // Predicated region
          $region67: #{custom-call.33} parent=61 // pred_check
            _
          $region68: #{custom-call.33} parent=61 // pred_check_branch
            %386 = sbr.rel (0) target = $region70
          $region69: #{custom-call.33} parent=61 // pred_region
            %s388 = ssub.s32 16, 1
            loop: start=0, step=1, limit=1
            $region71: #{custom-call.33} parent=69 // loop_pre_header
              _
            $region72: #{custom-call.33} parent=69 // loop_header
              %s390 = sphi 0, %s394
              %p391 = scmp.ge.s32.totalorder %s390, 1
              %s395 = sphi %s367, %s367
              %s396 = sphi %s380, %s380
            $region73: #{custom-call.33} parent=69 // loop_header_branch
              %393 = sbr.rel (%p391) target = $region77
            $region74: #{custom-call.33} parent=69 // loop_body
              %v397 = vld [vmem:[%s395] sm:%s388]
              %398 = vst [vmem:[%s396] sm:%s388] %v397
            $region75: #{custom-call.33} parent=69 // loop_footer
              %s394 = sadd.s32 1, %s390
            $region76: #{custom-call.33} parent=69 // loop_footer_branch
              %389 = sbr.rel target = $region72
            $region77: #{custom-call.33} parent=69 // loop_exit
              _
          $region70: #{custom-call.33} parent=61 // pred_fallthru
            _
        $region62: #{custom-call.33} parent=49 // pred_fallthru
          _
        %413 = vnop
        // Predicated region
        $region89: #{custom-call.33} parent=49 // pred_check
          %p414 = pneg %p48
        $region90: #{custom-call.33} parent=49 // pred_check_branch
          %416 = sbr.rel (%p414) target = $region92
        $region91: #{custom-call.33} parent=49 // pred_region
          %s417 = sshrl.u32 %s19, 3
          %419 = vsyncadd %s369, 0
          %s420 = sadd.s32 %s417, %s18
          %s421 = smul.addr %s420, 8
          %s422 = scalar_lea.hbm %s2, %s421
          %s424 = sshll.u32 %s372, 4
          %s425 = int_to_ptr.vmem [resolvable:$true] %s424
          %s426 = sshll.u32 %s422, 4
          %s427 = int_to_ptr.hbm [resolvable:$true] %s426
          %429 = dma.vmem_to_hbm [thread:$0]  %s425, 128, %s427, %s369
        $region92: #{custom-call.33} parent=49 // pred_fallthru
          _
        // Predicated region
        $region93: #{custom-call.33} parent=49 // pred_check
          %p430 = pneg %p78
        $region94: #{custom-call.33} parent=49 // pred_check_branch
          %432 = sbr.rel (%p430) target = $region96
        $region95: #{custom-call.33} parent=49 // pred_region
          %s433 = sshrl.u32 %s19, 3
          %s434 = sadd.s32 %s433, %s18
          %s435 = smul.addr %s434, 8
          %s436 = scalar_lea.vmem %s3, %s435
          // Predicated region
          $region97: #{custom-call.33} parent=95 // pred_check
            _
          $region98: #{custom-call.33} parent=95 // pred_check_branch
            %438 = sbr.rel (0) target = $region100
          $region99: #{custom-call.33} parent=95 // pred_region
            // Predicated region
            $region101: #{custom-call.33} parent=99 // pred_check
              _
            $region102: #{custom-call.33} parent=99 // pred_check_branch
              %440 = sbr.rel (0) target = $region104
            $region103: #{custom-call.33} parent=99 // pred_region
              // Predicated region
              $region116: #{custom-call.33} parent=103 // pred_check
                _
              $region117: #{custom-call.33} parent=103 // pred_check_branch
                %456 = sbr.rel (0) target = $region119
              $region118: #{custom-call.33} parent=103 // pred_region
                loop: start=0, step=1, limit=1
                $region120: #{custom-call.33} parent=118 // loop_pre_header
                  _
                $region121: #{custom-call.33} parent=118 // loop_header
                  %s458 = sphi 0, %s462
                  %p459 = scmp.ge.s32.totalorder %s458, 1
                  %s463 = sphi %s376, %s376
                  %s464 = sphi %s436, %s436
                $region122: #{custom-call.33} parent=118 // loop_header_branch
                  %461 = sbr.rel (%p459) target = $region126
                $region123: #{custom-call.33} parent=118 // loop_body
                  %v465 = vld [vmem:[%s463] sm:$0xff]
                  %466 = vst [vmem:[%s464] sm:$0xff] %v465
                $region124: #{custom-call.33} parent=118 // loop_footer
                  %s462 = sadd.s32 1, %s458
                $region125: #{custom-call.33} parent=118 // loop_footer_branch
                  %457 = sbr.rel target = $region121
                $region126: #{custom-call.33} parent=118 // loop_exit
                  _
              $region119: #{custom-call.33} parent=103 // pred_fallthru
                _
              // Predicated region
              $region127: #{custom-call.33} parent=103 // pred_check
                _
              $region128: #{custom-call.33} parent=103 // pred_check_branch
                %468 = sbr.rel target = $region130
              $region129: #{custom-call.33} parent=103 // pred_region
                _
              $region130: #{custom-call.33} parent=103 // pred_fallthru
                _
            $region104: #{custom-call.33} parent=99 // pred_fallthru
              _
            // Predicated region
            $region105: #{custom-call.33} parent=99 // pred_check
              _
            $region106: #{custom-call.33} parent=99 // pred_check_branch
              %442 = sbr.rel target = $region108
            $region107: #{custom-call.33} parent=99 // pred_region
              %s444 = ssub.s32 256, 1
              loop: start=0, step=1, limit=1
              $region109: #{custom-call.33} parent=107 // loop_pre_header
                _
              $region110: #{custom-call.33} parent=107 // loop_header
                %s446 = sphi 0, %s450
                %p447 = scmp.ge.s32.totalorder %s446, 1
                %s451 = sphi %s376, %s376
                %s452 = sphi %s436, %s436
              $region111: #{custom-call.33} parent=107 // loop_header_branch
                %449 = sbr.rel (%p447) target = $region115
              $region112: #{custom-call.33} parent=107 // loop_body
                %v453 = vld [vmem:[%s451] sm:%s444]
                %454 = vst [vmem:[%s452] sm:%s444] %v453
              $region113: #{custom-call.33} parent=107 // loop_footer
                %s450 = sadd.s32 1, %s446
              $region114: #{custom-call.33} parent=107 // loop_footer_branch
                %445 = sbr.rel target = $region110
              $region115: #{custom-call.33} parent=107 // loop_exit
                _
            $region108: #{custom-call.33} parent=99 // pred_fallthru
              _
          $region100: #{custom-call.33} parent=95 // pred_fallthru
            _
          %469 = vnop
        $region96: #{custom-call.33} parent=49 // pred_fallthru
          _
      $region50: #{custom-call.33} parent=5 // pred_fallthru
        _
      %p470 = scmp.le.s32.totalorder 2, %s9
      // Predicated region
      $region131: #{custom-call.33} parent=5 // pred_check
        %p471 = pneg %p470
      $region132: #{custom-call.33} parent=5 // pred_check_branch
        %473 = sbr.rel (%p471) target = $region134
      $region133: #{custom-call.33} parent=5 // pred_region
        %s474 = ssub.s32 %s9, 2
        %s475 = sand.u32 %s15, 1
        %s476 = sand.u32 %s15, 1
        %s477 = smul.addr %s476, 4
        %s478 = scalar_lea.vmem [#allocation3], %s477
        // Predicated region
        $region135: #{custom-call.33} parent=133 // pred_check
          %p479 = pneg %p54
        $region136: #{custom-call.33} parent=133 // pred_check_branch
          %481 = sbr.rel (%p479) target = $region138
        $region137: #{custom-call.33} parent=133 // pred_region
          %s482 = sand.u32 %s39, 1
          %s483 = scalar_lea.sflag [#allocation5], %s482
          %s484 = sand.u32 %s39, 1
          %s485 = smul.addr %s484, 8
          %s486 = scalar_lea.vmem [#allocation4], %s485
          %488 = dma.done %s483, 128
        $region138: #{custom-call.33} parent=133 // pred_fallthru
          _
        // Predicated region
        $region139: #{custom-call.33} parent=133 // pred_check
          %p489 = pneg %p84
        $region140: #{custom-call.33} parent=133 // pred_check_branch
          %491 = sbr.rel (%p489) target = $region142
        $region141: #{custom-call.33} parent=133 // pred_region
          %s492 = sand.u32 %s69, 1
          %s493 = sand.u32 %s69, 1
          %s494 = smul.addr %s493, 8
          %s495 = scalar_lea.vmem [#allocation6], %s494
        $region142: #{custom-call.33} parent=133 // pred_fallthru
          _
      $region134: #{custom-call.33} parent=5 // pred_fallthru
        _
    $region6: #{custom-call.33} parent=1 // loop_footer
      %s13 = sadd.s32 1, %s9
    $region7: #{custom-call.33} parent=1 // loop_footer_branch
      %8 = sbr.rel target = $region3
    $region8: #{custom-call.33} parent=1 // loop_exit
      _
    %496 = vsyncpa [#allocation5], 1
    %s497 = scalar_lea.sflag [#allocation5], 1
    %498 = vsyncpa %s497, 1

// kernel: deepgmr_forward.10
$region0: #{deepgmr_forward.10}
  #allocation0 [shape = 'u32[]', space=smem, size = 0x4, offset = 0x4, fixed_abs, tag = 'smem constant byte address 0x4 - core index']
  #allocation1 [shape = 'u32[72,128]{1,0:T(1,128)}', space=vmem, size = 0x9000, scoped, tag = 'internal scratch']
  %s0 = inlined_call_operand.vmem [shape: f32[2,16,128], index: 0, kind: input, shape index: {}]
  %s1 = inlined_call_operand.vmem [shape: f32[2,3,16], index: 1, kind: input, shape index: {}]
  %s2 = inlined_call_operand.vmem [shape: f32[2,1,128], index: 2, kind: output, shape index: {0}]
  %s3 = inlined_call_operand.vmem [shape: f32[2,3,128], index: 3, kind: output, shape index: {1}]
  %s4 = inlined_call_operand.hbm [shape: f32[2,9,128], index: 4, kind: output, shape index: {2}]
  %5 = xla_tuple %s2, %s3, %s4
  %s6 = sld [smem:[#allocation0]]
  $region57: #{deepgmr_forward.10} parent=0
    _
  %s8 = ssub.s32 1, %s6
  %s9 = scalar_select 0, %s8, %s6
  $region1: #{deepgmr_forward.10} parent=0
    #allocation2 [shape = 'u8[16384]{0}', space=vmem, size = 0x4000, scoped, tag = 'output window, operand 2']
    #allocation3 [shape = 's32[2]{0}', space=sflag, size = 0x8, scoped, tag = 'scoped memory for deepgmr_forward.10']
    %10 = vsyncpa [#allocation3], 0
    %s11 = scalar_lea.sflag [#allocation3], 1
    %12 = vsyncpa %s11, 0
    loop: start=0, step=1, limit=4
    $region2: #{deepgmr_forward.10} parent=1 // loop_pre_header
      _
    $region3: #{deepgmr_forward.10} parent=1 // loop_header
      %s14 = sphi 0, %s18
      %p15 = scmp.ge.s32.totalorder %s14, 4
      %s24 = sphi 0, %s26
      %s27 = sphi 0, %s24
      %s28 = sphi 0, %s27
      %s44 = sphi 0, %s28
      %s50 = sphi 0, %s52
      %s53 = sphi 0, %s50
      %s54 = sphi 0, %s53
      %s70 = sphi 0, %s54
      %s76 = sphi 0, %s78
      %s79 = sphi 0, %s76
      %s80 = sphi 0, %s79
      %s96 = sphi 0, %s80
      %s102 = sphi 0, %s104
      %s105 = sphi 0, %s102
      %s106 = sphi 0, %s105
      %s122 = sphi 0, %s106
      %s128 = sphi 0, %s130
      %s131 = sphi 0, %s128
      %s132 = sphi 0, %s131
      %s148 = sphi 0, %s132
    $region4: #{deepgmr_forward.10} parent=1 // loop_header_branch
      %17 = sbr.rel (%p15) target = $region8
    $region5: #{deepgmr_forward.10} parent=1 // loop_body
      %s19 = ssub.s32 %s14, 1
      %s20 = ssub.s32 %s14, 2
      %s21 = sadd.s32 %s14, 1
      %s22 = ssub.s32 %s14, %s21
      %p23 = scmp.eq.s32.totalorder %s22, 0
      %s25 = sadd.s32 %s24, 1
      %s26 = scalar_select %p23, %s24, %s25
      %p29 = pneg %p23
      %p30 = scmp.eq.s32.totalorder %s14, 1
      %p31 = por %p29, %p30
      %p32 = scmp.ne.s32.totalorder %s24, %s27
      %p33 = scmp.eq.s32.totalorder %s14, 0
      %p34 = por %p32, %p33
      %p35 = scmp.ne.s32.totalorder %s24, %s27
      %p36 = scmp.eq.s32.totalorder %s19, 1
      %p37 = por %p35, %p36
      %p38 = scmp.ne.s32.totalorder %s27, %s28
      %p39 = scmp.eq.s32.totalorder %s19, 0
      %p40 = por %p38, %p39
      %p41 = scmp.ne.s32.totalorder %s27, %s28
      %p42 = scmp.eq.s32.totalorder %s20, 1
      %p43 = por %p41, %p42
      %p45 = scmp.ne.s32.totalorder %s28, %s44
      %p46 = scmp.eq.s32.totalorder %s20, 0
      %p47 = por %p45, %p46
      %s48 = ssub.s32 %s14, %s21
      %p49 = scmp.eq.s32.totalorder %s48, 0
      %s51 = sadd.s32 %s50, 1
      %s52 = scalar_select %p49, %s50, %s51
      %p55 = pneg %p49
      %p56 = scmp.eq.s32.totalorder %s14, 1
      %p57 = por %p55, %p56
      %p58 = scmp.ne.s32.totalorder %s50, %s53
      %p59 = scmp.eq.s32.totalorder %s14, 0
      %p60 = por %p58, %p59
      %p61 = scmp.ne.s32.totalorder %s50, %s53
      %p62 = scmp.eq.s32.totalorder %s19, 1
      %p63 = por %p61, %p62
      %p64 = scmp.ne.s32.totalorder %s53, %s54
      %p65 = scmp.eq.s32.totalorder %s19, 0
      %p66 = por %p64, %p65
      %p67 = scmp.ne.s32.totalorder %s53, %s54
      %p68 = scmp.eq.s32.totalorder %s20, 1
      %p69 = por %p67, %p68
      %p71 = scmp.ne.s32.totalorder %s54, %s70
      %p72 = scmp.eq.s32.totalorder %s20, 0
      %p73 = por %p71, %p72
      %s74 = ssub.s32 %s14, %s21
      %p75 = scmp.eq.s32.totalorder %s74, 0
      %s77 = sadd.s32 %s76, 1
      %s78 = scalar_select %p75, %s76, %s77
      %p81 = pneg %p75
      %p82 = scmp.eq.s32.totalorder %s14, 1
      %p83 = por %p81, %p82
      %p84 = scmp.ne.s32.totalorder %s76, %s79
      %p85 = scmp.eq.s32.totalorder %s14, 0
      %p86 = por %p84, %p85
      %p87 = scmp.ne.s32.totalorder %s76, %s79
      %p88 = scmp.eq.s32.totalorder %s19, 1
      %p89 = por %p87, %p88
      %p90 = scmp.ne.s32.totalorder %s79, %s80
      %p91 = scmp.eq.s32.totalorder %s19, 0
      %p92 = por %p90, %p91
      %p93 = scmp.ne.s32.totalorder %s79, %s80
      %p94 = scmp.eq.s32.totalorder %s20, 1
      %p95 = por %p93, %p94
      %p97 = scmp.ne.s32.totalorder %s80, %s96
      %p98 = scmp.eq.s32.totalorder %s20, 0
      %p99 = por %p97, %p98
      %s100 = ssub.s32 %s14, %s21
      %p101 = scmp.eq.s32.totalorder %s100, 0
      %s103 = sadd.s32 %s102, 1
      %s104 = scalar_select %p101, %s102, %s103
      %p107 = pneg %p101
      %p108 = scmp.eq.s32.totalorder %s14, 1
      %p109 = por %p107, %p108
      %p110 = scmp.ne.s32.totalorder %s102, %s105
      %p111 = scmp.eq.s32.totalorder %s14, 0
      %p112 = por %p110, %p111
      %p113 = scmp.ne.s32.totalorder %s102, %s105
      %p114 = scmp.eq.s32.totalorder %s19, 1
      %p115 = por %p113, %p114
      %p116 = scmp.ne.s32.totalorder %s105, %s106
      %p117 = scmp.eq.s32.totalorder %s19, 0
      %p118 = por %p116, %p117
      %p119 = scmp.ne.s32.totalorder %s105, %s106
      %p120 = scmp.eq.s32.totalorder %s20, 1
      %p121 = por %p119, %p120
      %p123 = scmp.ne.s32.totalorder %s106, %s122
      %p124 = scmp.eq.s32.totalorder %s20, 0
      %p125 = por %p123, %p124
      %s126 = ssub.s32 %s14, %s21
      %p127 = scmp.eq.s32.totalorder %s126, 0
      %s129 = sadd.s32 %s128, 1
      %s130 = scalar_select %p127, %s128, %s129
      %p133 = pneg %p127
      %p134 = scmp.eq.s32.totalorder %s14, 1
      %p135 = por %p133, %p134
      %p136 = scmp.ne.s32.totalorder %s128, %s131
      %p137 = scmp.eq.s32.totalorder %s14, 0
      %p138 = por %p136, %p137
      %p139 = scmp.ne.s32.totalorder %s128, %s131
      %p140 = scmp.eq.s32.totalorder %s19, 1
      %p141 = por %p139, %p140
      %p142 = scmp.ne.s32.totalorder %s131, %s132
      %p143 = scmp.eq.s32.totalorder %s19, 0
      %p144 = por %p142, %p143
      %p145 = scmp.ne.s32.totalorder %s131, %s132
      %p146 = scmp.eq.s32.totalorder %s20, 1
      %p147 = por %p145, %p146
      %p149 = scmp.ne.s32.totalorder %s132, %s148
      %p150 = scmp.eq.s32.totalorder %s20, 0
      %p151 = por %p149, %p150
      %p152 = scmp.le.s32.totalorder 1, %s14
      %p153 = scmp.lt.s32.totalorder %s14, 3
      %p154 = pnand %p152, %p153
      %p155 = pneg %p154
      // Predicated region
      $region9: #{deepgmr_forward.10} parent=5 // pred_check
        _
      $region10: #{deepgmr_forward.10} parent=5 // pred_check_branch
        %157 = sbr.rel (%p154) target = $region12
      $region11: #{deepgmr_forward.10} parent=5 // pred_region
        %s158 = ssub.s32 %s14, 1
      $region12: #{deepgmr_forward.10} parent=5 // pred_fallthru
        _
      %p159 = scmp.lt.s32.totalorder %s14, 2
      // Predicated region
      $region13: #{deepgmr_forward.10} parent=5 // pred_check
        %p160 = pneg %p159
      $region14: #{deepgmr_forward.10} parent=5 // pred_check_branch
        %162 = sbr.rel (%p160) target = $region16
      $region15: #{deepgmr_forward.10} parent=5 // pred_region
        // Predicated region
        $region17: #{deepgmr_forward.10} parent=15 // pred_check
          %p163 = pneg %p34
        $region18: #{deepgmr_forward.10} parent=15 // pred_check_branch
          %165 = sbr.rel (%p163) target = $region20
        $region19: #{deepgmr_forward.10} parent=15 // pred_region
          %p166 = scmp.lt.s32.totalorder %s14, 1
          %s167 = scalar_select %p166, %s14, 1
          %s168 = smul.addr %s167, 2
          %s169 = smul.addr %s168, 8
          %s170 = scalar_lea.vmem %s0, %s169
        $region20: #{deepgmr_forward.10} parent=15 // pred_fallthru
          _
        // Predicated region
        $region21: #{deepgmr_forward.10} parent=15 // pred_check
          %p171 = pneg %p60
        $region22: #{deepgmr_forward.10} parent=15 // pred_check_branch
          %173 = sbr.rel (%p171) target = $region24
        $region23: #{deepgmr_forward.10} parent=15 // pred_region
          %p174 = scmp.lt.s32.totalorder %s14, 1
          %s175 = scalar_select %p174, %s14, 1
          %s176 = smul.addr %s175, 4
          %s177 = scalar_lea.vmem %s1, %s176
        $region24: #{deepgmr_forward.10} parent=15 // pred_fallthru
          _
      $region16: #{deepgmr_forward.10} parent=5 // pred_fallthru
        _
      %p178 = scmp.le.s32.totalorder 1, %s14
      %p179 = scmp.lt.s32.totalorder %s14, 3
      %p180 = pnand %p178, %p179
      %p181 = pneg %p180
      // Predicated region
      $region25: #{deepgmr_forward.10} parent=5 // pred_check
        _
      $region26: #{deepgmr_forward.10} parent=5 // pred_check_branch
        %183 = sbr.rel (%p180) target = $region28
      $region27: #{deepgmr_forward.10} parent=5 // pred_region
        %s184 = ssub.s32 %s14, 1
        %p185 = scmp.lt.s32.totalorder %s19, 1
        %s186 = scalar_select %p185, %s19, 1
        %s187 = smul.addr %s186, 2
        %s188 = smul.addr %s187, 8
        %s189 = scalar_lea.vmem %s0, %s188
        %p190 = pneg %p40
        %p191 = pneg %p37
        %p192 = scmp.lt.s32.totalorder %s19, 1
        %s193 = scalar_select %p192, %s19, 1
        %s194 = smul.addr %s193, 4
        %s195 = scalar_lea.vmem %s1, %s194
        %p196 = pneg %p66
        %p197 = pneg %p63
        %p198 = pneg %p92
        %p199 = pneg %p89
        %p200 = scmp.lt.s32.totalorder %s19, 1
        %s201 = scalar_select %p200, %s19, 1
        %s202 = scalar_lea.vmem %s2, %s201
        %p203 = pneg %p118
        %p204 = pneg %p115
        %p205 = scmp.lt.s32.totalorder %s19, 1
        %s206 = scalar_select %p205, %s19, 1
        %s207 = smul.addr %s206, 4
        %s208 = scalar_lea.vmem %s3, %s207
        %p209 = pneg %p144
        %p210 = pneg %p141
        %s211 = sand.u32 %s131, 1
        %s212 = scalar_lea.sflag [#allocation3], %s211
        %s213 = sand.u32 %s131, 1
        %s214 = smul.addr %s213, 16
        %s215 = scalar_lea.vmem [#allocation2], %s214
        %p216 = scmp.lt.s32.totalorder %s19, 1
        %s217 = scalar_select %p216, %s19, 1
        %s218 = smul.addr %s217, 2
        %s219 = smul.addr %s218, 8
        %s220 = scalar_lea.vmem %s0, %s219
        %p221 = scmp.lt.s32.totalorder %s19, 1
        %s222 = scalar_select %p221, %s19, 1
        %s223 = smul.addr %s222, 4
        %s224 = scalar_lea.vmem %s1, %s223
        %p225 = scmp.lt.s32.totalorder %s19, 1
        %s226 = scalar_select %p225, %s19, 1
        %s227 = scalar_lea.vmem %s2, %s226
        %p228 = scmp.lt.s32.totalorder %s19, 1
        %s229 = scalar_select %p228, %s19, 1
        %s230 = smul.addr %s229, 4
        %s231 = scalar_lea.vmem %s3, %s230
        %v232 = vld [vmem:[%s220] sm:$0xff]
        %v233 = vld [vmem:[%s220 + $0x8] sm:$0xff]
        %v234 = vld [vmem:[%s224] sm:$0x7]
        %235 = vmax.xlane.f32.xlu0 %v232
        %v236 = vpop.xlane.xlu0 %235
        %237 = vmax.xlane.f32.xlu0 %v233
        %v238 = vpop.xlane.xlu0 %237
        %v239 = vsub.f32 %v232, %v236
        %v240 = vsub.f32 %v233, %v238
        %v241 = vmul.f32 %v239, 1.442695
        %v242 = vpow.pop %v241
        %v243 = vmul.f32 %v240, 1.442695
        %v244 = vpow.pop %v243
        %245 = vadd.xlane.f32.xlu0 %v242
        %v246 = vpop.xlane.xlu0 %245
        %247 = vadd.xlane.f32.xlu0 %v244
        %v248 = vpop.xlane.xlu0 %247
        %v249 = vrcp.pop %v246
        %v250 = vmul.f32 %v246, %v249
        %v251 = vsub.f32 1.0, %v250
        %v252 = vmul.f32 %v249, %v251
        %v253 = vadd.f32 %v249, %v252
        %vm254 = vweird.f32 %v246
        %vm255 = vweird.f32 %v249
        %vm256 = vmor %vm254, %vm255
        %v257 = vsel %vm256, %v249, %v253
        %v258 = vand.u32 2147483647, %v246
        %vm259 = vcmp.eq.f32.partialorder %v258, 8.507059e+37
        %v260 = vand.u32 %v246, 2147483648
        %v261 = vor.u32 1.1754944e-38, %v260
        %v262 = vsel %vm259, %v261, %v257
        %v263 = vmul.f32 %v242, %v262
        %v264 = vrcp.pop %v248
        %v265 = vmul.f32 %v248, %v264
        %v266 = vsub.f32 1.0, %v265
        %v267 = vmul.f32 %v264, %v266
        %v268 = vadd.f32 %v264, %v267
        %vm269 = vweird.f32 %v248
        %vm270 = vweird.f32 %v264
        %vm271 = vmor %vm269, %vm270
        %v272 = vsel %vm271, %v264, %v268
        %v273 = vand.u32 2147483647, %v248
        %vm274 = vcmp.eq.f32.partialorder %v273, 8.507059e+37
        %v275 = vand.u32 %v248, 2147483648
        %v276 = vor.u32 1.1754944e-38, %v275
        %v277 = vsel %vm274, %v276, %v272
        %v278 = vmul.f32 %v244, %v277
        %v279 = vmul.f32 %v234, %v234
        %v281 = vrot.slane %v234, 1
        %v283 = vmul.f32 %v234, %v281
        %v284 = vrot.slane %v234, 2
        %v286 = vmul.f32 %v234, %v284
        %v287 = vrot.slane %v234, 7
        %v290 = vrot.slane %v279, 4
        %v293 = vrot.slane %v283, 3
        %v296 = vrot.slane %v286, 2
        %v298 = vrot.slane %v283, 1
        %v300 = vrot.slane %v279, 1
        %v302 = vrot.slane %v286, 6
        %v304 = vrot.slane %v283, 6
        %v306 = vrot.slane %v279, 6
        %vm308 = vcmask 1040384
        %v309 = vsel %vm308, 1.0, %v287
        %vm310 = vcmask 1041408
        %v311 = vsel %vm310, %v309, %v287
        %vm312 = vcmask 1042432
        %v313 = vsel %vm312, %v311, %v287
        %vm314 = vcmask 1043456
        %v315 = vsel %vm314, %v313, %v290
        %vm316 = vcmask 1044480
        %v317 = vsel %vm316, %v315, %v293
        %vm318 = vcmask 1045504
        %v319 = vsel %vm318, %v317, %v296
        %vm320 = vcmask 1046528
        %v321 = vsel %vm320, %v319, %v298
        %v322 = vsel %vm308, %v300, %v283
        %v323 = vsel %vm310, %v322, %v302
        %v324 = vsel %vm312, %v323, %v304
        %v325 = vsel %vm314, %v324, %v306
        %vm326 = vcmask 130048
        %v328 = vsel %vm326, %v321, 0
        %v331 = vsel %vm326, %v325, 0
        %333 = vmatpush.msra.mxu0 0.0
        %334 = vmatpush.msra.mxu0 0.0
        %335 = vmatpush.msra.mxu0 0.0
        %336 = vmatpush.msra.mxu0 0.0
        %337 = vmatpush.msra.mxu0 0.0
        %338 = vmatpush.msra.mxu0 0.0
        %339 = vmatpush.msra.mxu0 0.0
        %340 = vmatpush.msra.mxu0 0.0
        %341 = vmatpush.msra.mxu0 0.0
        %342 = vmatpush.msra.mxu0 0.0
        %343 = vmatpush.msra.mxu0 0.0
        %344 = vmatpush.msra.mxu0 0.0
        %345 = vmatpush.msra.mxu0 0.0
        %346 = vmatpush.msra.mxu0 0.0
        %347 = vmatpush.msra.mxu0 %v278
        %348 = vmatpush.msra.mxu0 %v263
        %349 = vmatmul.f32.gmra.mxu0 %v328
        %v350 = vpop.f32.mrf.mxu0
        %v351 = vadd.f32 0.0, %v350
        %352 = vmatmul.f32.gmra.mxu0 %v331
        %v353 = vpop.f32.mrf.mxu0
        %v354 = vadd.f32 0.0, %v353
        %355 = vdwg.mxu0
        %v356 = vrcp.pop 16.0
        %v357 = vmul.f32 16.0, %v356
        %v358 = vsub.f32 1.0, %v357
        %v359 = vmul.f32 %v356, %v358
        %v360 = vadd.f32 %v356, %v359
        %vm361 = vweird.f32 %v356
        %v362 = vsel %vm361, %v356, %v360
        %v363 = vmul.f32 %v351, %v362
        %364 = vst [vmem:[%s227] sm:$0x1] %v363
        %v365 = vadd.f32 %v351, 1e-12
        %v366 = vperm.slane %v365, 0
        %v367 = vrcp.pop %v366
        %v368 = vmul.f32 %v366, %v367
        %v369 = vsub.f32 1.0, %v368
        %v370 = vmul.f32 %v367, %v369
        %v371 = vadd.f32 %v367, %v370
        %vm372 = vweird.f32 %v366
        %vm373 = vweird.f32 %v367
        %vm374 = vmor %vm372, %vm373
        %v375 = vsel %vm374, %v367, %v371
        %v376 = vand.u32 2147483647, %v366
        %vm377 = vcmp.eq.f32.partialorder %v376, 8.507059e+37
        %v378 = vand.u32 %v366, 2147483648
        %v379 = vor.u32 1.1754944e-38, %v378
        %v380 = vsel %vm377, %v379, %v375
        %v381 = vmul.f32 %v351, %v380
        %382 = vst [vmem:[%s231 - $0x1] sm:$0xe] %v381
        %v383 = vmul.f32 %v354, %v380
        %v384 = vmul.f32 %v381, %v381
        %v386 = vrot.slane %v384, 5
        %v388 = vsub.f32 %v381, %v386
        %v389 = vadd.f32 %v388, 0.001
        %v391 = vrot.slane %v381, 1
        %v393 = vmul.f32 %v381, %v391
        %v395 = vrot.slane %v393, 4
        %v397 = vsub.f32 %v381, %v395
        %v398 = vrot.slane %v381, 2
        %v400 = vmul.f32 %v381, %v398
        %v402 = vrot.slane %v400, 3
        %v404 = vsub.f32 %v381, %v402
        %v405 = vrot.slane %v393, 2
        %v407 = vsub.f32 %v381, %v405
        %v408 = vrot.slane %v384, 2
        %v410 = vsub.f32 %v383, %v408
        %v411 = vadd.f32 %v410, 0.001
        %v412 = vrot.slane %v393, 1
        %v414 = vsub.f32 %v383, %v412
        %v415 = vrot.slane %v400, 7
        %v417 = vsub.f32 %v383, %v415
        %v418 = vrot.slane %v393, 7
        %v420 = vsub.f32 %v383, %v418
        %v421 = vrot.slane %v384, 7
        %v423 = vsub.f32 %v383, %v421
        %v424 = vadd.f32 %v423, 0.001
        %v426 = vrot.slane %v389, 4
        %v429 = vrot.slane %v397, 4
        %v432 = vrot.slane %v404, 4
        %v435 = vrot.slane %v407, 4
        %v438 = vrot.slane %v411, 4
        %v441 = vrot.slane %v414, 4
        %v444 = vrot.slane %v417, 4
        %v447 = vrot.slane %v420, 4
        %v450 = vrot.slane %v424, 4
        %v452 = vsel %vm308, %v426, %v429
        %v453 = vsel %vm310, %v452, %v432
        %v454 = vsel %vm312, %v453, %v435
        %v455 = vsel %vm314, %v454, %v438
        %v456 = vsel %vm316, %v455, %v441
        %v457 = vsel %vm318, %v456, %v444
        %v458 = vsel %vm320, %v457, %v447
        %459 = vst [vmem:[%s215] sm:$0xff] %v458
        %460 = vst [vmem:[%s215 + $0x8] sm:$0x1] %v450
        %p461 = scmp.lt.s32.totalorder %s19, 1
        %s462 = scalar_select %p461, %s19, 1
        %s463 = scalar_lea.vmem %s2, %s462
        %p464 = scmp.lt.s32.totalorder %s19, 1
        %s465 = scalar_select %p464, %s19, 1
        %s466 = smul.addr %s465, 4
        %s467 = scalar_lea.vmem %s3, %s466
        %s468 = sand.u32 %s131, 1
        %s469 = scalar_lea.sflag [#allocation3], %s468
        %s470 = sand.u32 %s131, 1
        %s471 = smul.addr %s470, 16
        %s472 = scalar_lea.vmem [#allocation2], %s471
        // Predicated region
        $region29: #{deepgmr_forward.10} parent=27 // pred_check
          %p473 = pneg %p89
        $region30: #{deepgmr_forward.10} parent=27 // pred_check_branch
          %475 = sbr.rel (%p473) target = $region32
        $region31: #{deepgmr_forward.10} parent=27 // pred_region
          _
        $region32: #{deepgmr_forward.10} parent=27 // pred_fallthru
          _
        // Predicated region
        $region33: #{deepgmr_forward.10} parent=27 // pred_check
          %p476 = pneg %p115
        $region34: #{deepgmr_forward.10} parent=27 // pred_check_branch
          %478 = sbr.rel (%p476) target = $region36
        $region35: #{deepgmr_forward.10} parent=27 // pred_region
          _
        $region36: #{deepgmr_forward.10} parent=27 // pred_fallthru
          _
        // Predicated region
        $region37: #{deepgmr_forward.10} parent=27 // pred_check
          %p479 = pneg %p141
        $region38: #{deepgmr_forward.10} parent=27 // pred_check_branch
          %481 = sbr.rel (%p479) target = $region40
        $region39: #{deepgmr_forward.10} parent=27 // pred_region
          %483 = vsyncadd %s469, 0
          %s484 = smul.addr %s19, 2
          %s485 = smul.addr %s484, 8
          %s486 = scalar_lea.hbm %s4, %s485
          %s487 = sshll.u32 %s472, 4
          %s488 = int_to_ptr.vmem [resolvable:$true] %s487
          %s489 = sshll.u32 %s486, 4
          %s490 = int_to_ptr.hbm [resolvable:$true] %s489
          %495 = dma.vmem_to_hbm [thread:$0]  %s488, 256, %s490, %s469, 128, 128, 8
        $region40: #{deepgmr_forward.10} parent=27 // pred_fallthru
          _
      $region28: #{deepgmr_forward.10} parent=5 // pred_fallthru
        _
      %p496 = scmp.le.s32.totalorder 2, %s14
      // Predicated region
      $region41: #{deepgmr_forward.10} parent=5 // pred_check
        %p497 = pneg %p496
      $region42: #{deepgmr_forward.10} parent=5 // pred_check_branch
        %499 = sbr.rel (%p497) target = $region44
      $region43: #{deepgmr_forward.10} parent=5 // pred_region
        %s500 = ssub.s32 %s14, 2
        // Predicated region
        $region45: #{deepgmr_forward.10} parent=43 // pred_check
          %p501 = pneg %p95
        $region46: #{deepgmr_forward.10} parent=43 // pred_check_branch
          %503 = sbr.rel (%p501) target = $region48
        $region47: #{deepgmr_forward.10} parent=43 // pred_region
          %p504 = scmp.lt.s32.totalorder %s20, 1
          %s505 = scalar_select %p504, %s20, 1
          %s506 = scalar_lea.vmem %s2, %s505
        $region48: #{deepgmr_forward.10} parent=43 // pred_fallthru
          _
        // Predicated region
        $region49: #{deepgmr_forward.10} parent=43 // pred_check
          %p507 = pneg %p121
        $region50: #{deepgmr_forward.10} parent=43 // pred_check_branch
          %509 = sbr.rel (%p507) target = $region52
        $region51: #{deepgmr_forward.10} parent=43 // pred_region
          %p510 = scmp.lt.s32.totalorder %s20, 1
          %s511 = scalar_select %p510, %s20, 1
          %s512 = smul.addr %s511, 4
          %s513 = scalar_lea.vmem %s3, %s512
        $region52: #{deepgmr_forward.10} parent=43 // pred_fallthru
          _
        // Predicated region
        $region53: #{deepgmr_forward.10} parent=43 // pred_check
          %p514 = pneg %p147
        $region54: #{deepgmr_forward.10} parent=43 // pred_check_branch
          %516 = sbr.rel (%p514) target = $region56
        $region55: #{deepgmr_forward.10} parent=43 // pred_region
          %s517 = sand.u32 %s132, 1
          %s518 = scalar_lea.sflag [#allocation3], %s517
          %s519 = sand.u32 %s132, 1
          %s520 = smul.addr %s519, 16
          %s521 = scalar_lea.vmem [#allocation2], %s520
          %523 = dma.done %s518, 256
        $region56: #{deepgmr_forward.10} parent=43 // pred_fallthru
          _
      $region44: #{deepgmr_forward.10} parent=5 // pred_fallthru
        _
    $region6: #{deepgmr_forward.10} parent=1 // loop_footer
      %s18 = sadd.s32 1, %s14
    $region7: #{deepgmr_forward.10} parent=1 // loop_footer_branch
      %13 = sbr.rel target = $region3
    $region8: #{deepgmr_forward.10} parent=1 // loop_exit
      _
    %524 = vsyncpa [#allocation3], 1
    %s525 = scalar_lea.sflag [#allocation3], 1
    %526 = vsyncpa %s525, 1

// kernel: deepgmr_forward.7
$region0: #{deepgmr_forward.7}
  #allocation0 [shape = 'u32[]', space=smem, size = 0x4, offset = 0x4, fixed_abs, tag = 'smem constant byte address 0x4 - core index']
  #allocation1 [shape = 'u32[72,128]{1,0:T(1,128)}', space=vmem, size = 0x9000, scoped, tag = 'internal scratch']
  %s0 = inlined_call_operand.vmem [shape: f32[4,32,3], index: 0, kind: input, shape index: {}]
  %s1 = inlined_call_operand.vmem [shape: f32[32,3], index: 1, kind: input, shape index: {}]
  %s2 = inlined_call_operand.vmem [shape: f32[3,64], index: 2, kind: input, shape index: {}]
  %s3 = inlined_call_operand.vmem [shape: f32[3,64], index: 3, kind: input, shape index: {}]
  %s4 = inlined_call_operand.vmem [shape: bf16[64,64], index: 4, kind: input, shape index: {}]
  %s5 = inlined_call_operand.vmem [shape: bf16[64,128], index: 5, kind: input, shape index: {}]
  %s6 = inlined_call_operand.vmem [shape: bf16[128,256], index: 6, kind: input, shape index: {}]
  %s7 = inlined_call_operand.vmem [shape: bf16[512,32], index: 7, kind: input, shape index: {}]
  %s8 = inlined_call_operand.vmem [shape: bf16[32,32], index: 8, kind: output, shape index: {}]
  %s9 = sld [smem:[#allocation0]]
  $region42: #{deepgmr_forward.7} parent=0
    _
  %s11 = ssub.s32 1, %s9
  %s12 = scalar_select 0, %s11, %s9
  // Predicated region
  $region2: #{deepgmr_forward.7} parent=0 // pred_check
    _
  $region3: #{deepgmr_forward.7} parent=0 // pred_check_branch
    %14 = sbr.rel (0) target = $region5
  $region4: #{deepgmr_forward.7} parent=0 // pred_region
    _
  $region5: #{deepgmr_forward.7} parent=0 // pred_fallthru
    _
  // Predicated region
  $region6: #{deepgmr_forward.7} parent=0 // pred_check
    _
  $region7: #{deepgmr_forward.7} parent=0 // pred_check_branch
    %16 = sbr.rel (0) target = $region9
  $region8: #{deepgmr_forward.7} parent=0 // pred_region
    _
  $region9: #{deepgmr_forward.7} parent=0 // pred_fallthru
    _
  // Predicated region
  $region10: #{deepgmr_forward.7} parent=0 // pred_check
    _
  $region11: #{deepgmr_forward.7} parent=0 // pred_check_branch
    %18 = sbr.rel (0) target = $region13
  $region12: #{deepgmr_forward.7} parent=0 // pred_region
    _
  $region13: #{deepgmr_forward.7} parent=0 // pred_fallthru
    _
  // Predicated region
  $region14: #{deepgmr_forward.7} parent=0 // pred_check
    _
  $region15: #{deepgmr_forward.7} parent=0 // pred_check_branch
    %20 = sbr.rel (0) target = $region17
  $region16: #{deepgmr_forward.7} parent=0 // pred_region
    _
  $region17: #{deepgmr_forward.7} parent=0 // pred_fallthru
    _
  // Predicated region
  $region18: #{deepgmr_forward.7} parent=0 // pred_check
    _
  $region19: #{deepgmr_forward.7} parent=0 // pred_check_branch
    %22 = sbr.rel (0) target = $region21
  $region20: #{deepgmr_forward.7} parent=0 // pred_region
    _
  $region21: #{deepgmr_forward.7} parent=0 // pred_fallthru
    _
  // Predicated region
  $region22: #{deepgmr_forward.7} parent=0 // pred_check
    _
  $region23: #{deepgmr_forward.7} parent=0 // pred_check_branch
    %24 = sbr.rel (0) target = $region25
  $region24: #{deepgmr_forward.7} parent=0 // pred_region
    _
  $region25: #{deepgmr_forward.7} parent=0 // pred_fallthru
    _
  // Predicated region
  $region26: #{deepgmr_forward.7} parent=0 // pred_check
    _
  $region27: #{deepgmr_forward.7} parent=0 // pred_check_branch
    %26 = sbr.rel (0) target = $region29
  $region28: #{deepgmr_forward.7} parent=0 // pred_region
    _
  $region29: #{deepgmr_forward.7} parent=0 // pred_fallthru
    _
  // Predicated region
  $region30: #{deepgmr_forward.7} parent=0 // pred_check
    _
  $region31: #{deepgmr_forward.7} parent=0 // pred_check_branch
    %28 = sbr.rel (0) target = $region33
  $region32: #{deepgmr_forward.7} parent=0 // pred_region
    _
  $region33: #{deepgmr_forward.7} parent=0 // pred_fallthru
    _
  %v30 = vld [vmem:[%s2] sm:$0x7]
  %v31 = vld [vmem:[%s3] sm:$0x7]
  %v32 = vld [vmem:[%s4] sm:$0xf]
  %v33 = vld [vmem:[%s4 + $0x4] sm:$0xf]
  %v34 = vld [vmem:[%s4 + $0x8] sm:$0xf]
  %v35 = vld [vmem:[%s4 + $0xc] sm:$0xf]
  %v36 = vld [vmem:[%s4 + $0x10] sm:$0xf]
  %v37 = vld [vmem:[%s4 + $0x14] sm:$0xf]
  %v38 = vld [vmem:[%s4 + $0x18] sm:$0xf]
  %v39 = vld [vmem:[%s4 + $0x1c] sm:$0xf]
  %v40 = vld [vmem:[%s5] sm:$0xf]
  %v41 = vld [vmem:[%s5 + $0x4] sm:$0xf]
  %v42 = vld [vmem:[%s5 + $0x8] sm:$0xf]
  %v43 = vld [vmem:[%s5 + $0xc] sm:$0xf]
  %v44 = vld [vmem:[%s5 + $0x10] sm:$0xf]
  %v45 = vld [vmem:[%s5 + $0x14] sm:$0xf]
  %v46 = vld [vmem:[%s5 + $0x18] sm:$0xf]
  %v47 = vld [vmem:[%s5 + $0x1c] sm:$0xf]
  %v48 = vld [vmem:[%s6] sm:$0xff]
  %v49 = vld [vmem:[%s6 + $0x8] sm:$0xff]
  %v50 = vld [vmem:[%s6 + $0x10] sm:$0xff]
  %v51 = vld [vmem:[%s6 + $0x18] sm:$0xff]
  %v52 = vld [vmem:[%s6 + $0x20] sm:$0xff]
  %v53 = vld [vmem:[%s6 + $0x28] sm:$0xff]
  %v54 = vld [vmem:[%s6 + $0x30] sm:$0xff]
  %v55 = vld [vmem:[%s6 + $0x38] sm:$0xff]
  %v56 = vld [vmem:[%s6 + $0x40] sm:$0xff]
  %v57 = vld [vmem:[%s6 + $0x48] sm:$0xff]
  %v58 = vld [vmem:[%s6 + $0x50] sm:$0xff]
  %v59 = vld [vmem:[%s6 + $0x58] sm:$0xff]
  %v60 = vld [vmem:[%s6 + $0x60] sm:$0xff]
  %v61 = vld [vmem:[%s6 + $0x68] sm:$0xff]
  %v62 = vld [vmem:[%s6 + $0x70] sm:$0xff]
  %v63 = vld [vmem:[%s6 + $0x78] sm:$0xff]
  %v64 = vld [vmem:[%s1] sm:$0xff]
  %v65 = vld [vmem:[%s1 + $0x8] sm:$0xff]
  %v66 = vld [vmem:[%s1 + $0x10] sm:$0xff]
  %v67 = vld [vmem:[%s1 + $0x18] sm:$0xff]
  %vm68 = vcmask 23552
  %v70 = vsel %vm68, %v64, 0
  %v73 = vsel %vm68, %v65, 0
  %v76 = vsel %vm68, %v66, 0
  %v79 = vsel %vm68, %v67, 0
  %vm81 = vcmask 1042432
  %v83 = vsel %vm81, %v31, 0
  %85 = vmatpush.msra.mxu0 0.0
  %86 = vmatpush.msra.mxu0 0.0
  %87 = vmatpush.msra.mxu0 0.0
  %88 = vmatpush.msra.mxu0 0.0
  %89 = vmatpush.msra.mxu0 0.0
  %90 = vmatpush.msra.mxu0 0.0
  %91 = vmatpush.msra.mxu0 0.0
  %92 = vmatpush.msra.mxu0 0.0
  %93 = vmatpush.msra.mxu0 0.0
  %94 = vmatpush.msra.mxu0 0.0
  %95 = vmatpush.msra.mxu0 0.0
  %96 = vmatpush.msra.mxu0 0.0
  %97 = vmatpush.msra.mxu0 0.0
  %98 = vmatpush.msra.mxu0 0.0
  %99 = vmatpush.msra.mxu0 0.0
  %100 = vmatpush.msra.mxu0 %v83
  %101 = vmatmul.f32.gmra.mxu0 %v70
  %v102 = vpop.f32.mrf.mxu0
  %v103 = vadd.f32 0.0, %v102
  %104 = vmatmul.f32.gmra.mxu0 %v73
  %v105 = vpop.f32.mrf.mxu0
  %v106 = vadd.f32 0.0, %v105
  %107 = vmatmul.f32.gmra.mxu0 %v76
  %v108 = vpop.f32.mrf.mxu0
  %v109 = vadd.f32 0.0, %v108
  %110 = vmatmul.f32.gmra.mxu0 %v79
  %v111 = vpop.f32.mrf.mxu0
  %v112 = vadd.f32 0.0, %v111
  %113 = vdwg.mxu0
  %v114 = vld [vmem:[%s0] sm:$0xff]
  %v115 = vld [vmem:[%s0 + $0x8] sm:$0xff]
  %v116 = vld [vmem:[%s0 + $0x10] sm:$0xff]
  %v117 = vld [vmem:[%s0 + $0x18] sm:$0xff]
  %v119 = vsel %vm68, %v114, 0
  %v122 = vsel %vm68, %v115, 0
  %v125 = vsel %vm68, %v116, 0
  %v128 = vsel %vm68, %v117, 0
  %v131 = vsel %vm81, %v30, 0
  %133 = vmatpush.msra.mxu0 0.0
  %134 = vmatpush.msra.mxu0 0.0
  %135 = vmatpush.msra.mxu0 0.0
  %136 = vmatpush.msra.mxu0 0.0
  %137 = vmatpush.msra.mxu0 0.0
  %138 = vmatpush.msra.mxu0 0.0
  %139 = vmatpush.msra.mxu0 0.0
  %140 = vmatpush.msra.mxu0 0.0
  %141 = vmatpush.msra.mxu0 0.0
  %142 = vmatpush.msra.mxu0 0.0
  %143 = vmatpush.msra.mxu0 0.0
  %144 = vmatpush.msra.mxu0 0.0
  %145 = vmatpush.msra.mxu0 0.0
  %146 = vmatpush.msra.mxu0 0.0
  %147 = vmatpush.msra.mxu0 0.0
  %148 = vmatpush.msra.mxu0 %v131
  %149 = vmatmul.f32.gmra.mxu0 %v119
  %v150 = vpop.f32.mrf.mxu0
  %v151 = vadd.f32 %v103, %v150
  %152 = vmatmul.f32.gmra.mxu0 %v122
  %v153 = vpop.f32.mrf.mxu0
  %v154 = vadd.f32 %v106, %v153
  %155 = vmatmul.f32.gmra.mxu0 %v125
  %v156 = vpop.f32.mrf.mxu0
  %v157 = vadd.f32 %v109, %v156
  %158 = vmatmul.f32.gmra.mxu0 %v128
  %v159 = vpop.f32.mrf.mxu0
  %v160 = vadd.f32 %v112, %v159
  %161 = vdwg.mxu0
  %v162 = vmax.f32 %v151, 0.0
  %v163 = vmax.f32 %v154, 0.0
  %v164 = vmax.f32 %v157, 0.0
  %v165 = vmax.f32 %v160, 0.0
  %v166 = vpack.c.bf16 %v163, %v162
  %v167 = vpack.c.bf16 %v165, %v164
  %v176 = vunpack.c.l.b16 %v32
  %v177 = vunpack.c.l.b16 %v33
  %v178 = vunpack.c.l.b16 %v34
  %v179 = vunpack.c.l.b16 %v35
  %v180 = vunpack.c.l.b16 %v36
  %v181 = vunpack.c.l.b16 %v37
  %v182 = vunpack.c.l.b16 %v38
  %v183 = vunpack.c.l.b16 %v39
  %v184 = vpack.c.b16 %v177, %v176
  %v185 = vpack.c.b16 %v179, %v178
  %v186 = vpack.c.b16 %v181, %v180
  %v187 = vpack.c.b16 %v183, %v182
  %vm192 = vcmask 523264
  %v194 = vsel %vm192, %v166, 0
  %v197 = vsel %vm192, %v167, 0
  %199 = vmatpush.bf16.msra.mxu0 0
  %200 = vmatpush.bf16.msra.mxu0 0
  %201 = vmatpush.bf16.msra.mxu0 0
  %202 = vmatpush.bf16.msra.mxu0 0
  %203 = vmatpush.bf16.msra.mxu0 %v187
  %204 = vmatpush.bf16.msra.mxu0 %v186
  %205 = vmatpush.bf16.msra.mxu0 %v185
  %206 = vmatpush.bf16.msra.mxu0 %v184
  %207 = vmatmul.bf16.gmra.mxu0 %v194
  %v208 = vpop.f32.mrf.mxu0
  %v209 = vadd.f32 0.0, %v208
  %v210 = vpop.f32.mrf.mxu0
  %v211 = vadd.f32 0.0, %v210
  %212 = vmatmul.bf16.gmra.mxu0 %v197
  %v213 = vpop.f32.mrf.mxu0
  %v214 = vadd.f32 0.0, %v213
  %v215 = vpop.f32.mrf.mxu0
  %v216 = vadd.f32 0.0, %v215
  %217 = vdwg.mxu0
  %v218 = vmax.f32 %v209, 0.0
  %v219 = vmax.f32 %v211, 0.0
  %v220 = vmax.f32 %v214, 0.0
  %v221 = vmax.f32 %v216, 0.0
  %v222 = vpack.c.bf16 %v219, %v218
  %v223 = vpack.c.bf16 %v221, %v220
  %v232 = vunpack.c.l.b16 %v40
  %v233 = vunpack.c.l.b16 %v41
  %v234 = vunpack.c.l.b16 %v42
  %v235 = vunpack.c.l.b16 %v43
  %v236 = vunpack.c.l.b16 %v44
  %v237 = vunpack.c.l.b16 %v45
  %v238 = vunpack.c.l.b16 %v46
  %v239 = vunpack.c.l.b16 %v47
  %v240 = vpack.c.b16 %v233, %v232
  %v241 = vpack.c.b16 %v235, %v234
  %v242 = vpack.c.b16 %v237, %v236
  %v243 = vpack.c.b16 %v239, %v238
  %v249 = vsel %vm192, %v222, 0
  %v252 = vsel %vm192, %v223, 0
  %254 = vmatpush.bf16.msra.mxu0 0
  %255 = vmatpush.bf16.msra.mxu0 0
  %256 = vmatpush.bf16.msra.mxu0 0
  %257 = vmatpush.bf16.msra.mxu0 0
  %258 = vmatpush.bf16.msra.mxu0 %v243
  %259 = vmatpush.bf16.msra.mxu0 %v242
  %260 = vmatpush.bf16.msra.mxu0 %v241
  %261 = vmatpush.bf16.msra.mxu0 %v240
  %262 = vmatmul.bf16.gmra.mxu0 %v249
  %v263 = vpop.f32.mrf.mxu0
  %v264 = vadd.f32 0.0, %v263
  %v265 = vpop.f32.mrf.mxu0
  %v266 = vadd.f32 0.0, %v265
  %267 = vmatmul.bf16.gmra.mxu0 %v252
  %v268 = vpop.f32.mrf.mxu0
  %v269 = vadd.f32 0.0, %v268
  %v270 = vpop.f32.mrf.mxu0
  %v271 = vadd.f32 0.0, %v270
  %272 = vdwg.mxu0
  %v273 = vmax.f32 %v264, 0.0
  %v274 = vmax.f32 %v266, 0.0
  %v275 = vmax.f32 %v269, 0.0
  %v276 = vmax.f32 %v271, 0.0
  %v277 = vpack.c.bf16 %v274, %v273
  %v278 = vpack.c.bf16 %v276, %v275
  %v295 = vunpack.c.l.b16 %v48
  %v296 = vunpack.c.h.b16 %v48
  %v297 = vunpack.c.l.b16 %v49
  %v298 = vunpack.c.h.b16 %v49
  %v299 = vunpack.c.l.b16 %v50
  %v300 = vunpack.c.h.b16 %v50
  %v301 = vunpack.c.l.b16 %v51
  %v302 = vunpack.c.h.b16 %v51
  %v303 = vunpack.c.l.b16 %v52
  %v304 = vunpack.c.h.b16 %v52
  %v305 = vunpack.c.l.b16 %v53
  %v306 = vunpack.c.h.b16 %v53
  %v307 = vunpack.c.l.b16 %v54
  %v308 = vunpack.c.h.b16 %v54
  %v309 = vunpack.c.l.b16 %v55
  %v310 = vunpack.c.h.b16 %v55
  %v311 = vunpack.c.l.b16 %v56
  %v312 = vunpack.c.h.b16 %v56
  %v313 = vunpack.c.l.b16 %v57
  %v314 = vunpack.c.h.b16 %v57
  %v315 = vunpack.c.l.b16 %v58
  %v316 = vunpack.c.h.b16 %v58
  %v317 = vunpack.c.l.b16 %v59
  %v318 = vunpack.c.h.b16 %v59
  %v319 = vunpack.c.l.b16 %v60
  %v320 = vunpack.c.h.b16 %v60
  %v321 = vunpack.c.l.b16 %v61
  %v322 = vunpack.c.h.b16 %v61
  %v323 = vunpack.c.l.b16 %v62
  %v324 = vunpack.c.h.b16 %v62
  %v325 = vunpack.c.l.b16 %v63
  %v326 = vunpack.c.h.b16 %v63
  %v327 = vpack.c.b16 %v297, %v295
  %v328 = vpack.c.b16 %v298, %v296
  %v329 = vpack.c.b16 %v301, %v299
  %v330 = vpack.c.b16 %v302, %v300
  %v331 = vpack.c.b16 %v305, %v303
  %v332 = vpack.c.b16 %v306, %v304
  %v333 = vpack.c.b16 %v309, %v307
  %v334 = vpack.c.b16 %v310, %v308
  %v335 = vpack.c.b16 %v313, %v311
  %v336 = vpack.c.b16 %v314, %v312
  %v337 = vpack.c.b16 %v317, %v315
  %v338 = vpack.c.b16 %v318, %v316
  %v339 = vpack.c.b16 %v321, %v319
  %v340 = vpack.c.b16 %v322, %v320
  %v341 = vpack.c.b16 %v325, %v323
  %v342 = vpack.c.b16 %v326, %v324
  %359 = vmatpush.bf16.msra.mxu0 %v341
  %360 = vmatpush.bf16.msra.mxu0 %v339
  %361 = vmatpush.bf16.msra.mxu0 %v337
  %362 = vmatpush.bf16.msra.mxu0 %v335
  %363 = vmatpush.bf16.msra.mxu0 %v333
  %364 = vmatpush.bf16.msra.mxu0 %v331
  %365 = vmatpush.bf16.msra.mxu0 %v329
  %366 = vmatpush.bf16.msra.mxu0 %v327
  %367 = vmatmul.bf16.gmra.mxu0 %v277
  %v368 = vpop.f32.mrf.mxu0
  %v369 = vadd.f32 0.0, %v368
  %v370 = vpop.f32.mrf.mxu0
  %v371 = vadd.f32 0.0, %v370
  %372 = vmatmul.bf16.gmra.mxu0 %v278
  %v373 = vpop.f32.mrf.mxu0
  %v374 = vadd.f32 0.0, %v373
  %v375 = vpop.f32.mrf.mxu0
  %v376 = vadd.f32 0.0, %v375
  %377 = vdwg.mxu0
  %378 = vmatpush.bf16.msra.mxu0 %v342
  %379 = vmatpush.bf16.msra.mxu0 %v340
  %380 = vmatpush.bf16.msra.mxu0 %v338
  %381 = vmatpush.bf16.msra.mxu0 %v336
  %382 = vmatpush.bf16.msra.mxu0 %v334
  %383 = vmatpush.bf16.msra.mxu0 %v332
  %384 = vmatpush.bf16.msra.mxu0 %v330
  %385 = vmatpush.bf16.msra.mxu0 %v328
  %386 = vmatmul.bf16.gmra.mxu0 %v277
  %v387 = vpop.f32.mrf.mxu0
  %v388 = vadd.f32 0.0, %v387
  %v389 = vpop.f32.mrf.mxu0
  %v390 = vadd.f32 0.0, %v389
  %391 = vmatmul.bf16.gmra.mxu0 %v278
  %v392 = vpop.f32.mrf.mxu0
  %v393 = vadd.f32 0.0, %v392
  %v394 = vpop.f32.mrf.mxu0
  %v395 = vadd.f32 0.0, %v394
  %396 = vdwg.mxu0
  %v397 = vmax.f32 %v369, 0.0
  %v398 = vmax.f32 %v388, 0.0
  %v399 = vmax.f32 %v371, 0.0
  %v400 = vmax.f32 %v390, 0.0
  %v401 = vmax.f32 %v374, 0.0
  %v402 = vmax.f32 %v393, 0.0
  %v403 = vmax.f32 %v376, 0.0
  %v404 = vmax.f32 %v395, 0.0
  %s405 = scalar_lea.vmem %s0, 32
  %v406 = vld [vmem:[%s405] sm:$0xff]
  %v407 = vld [vmem:[%s405 + $0x8] sm:$0xff]
  %v408 = vld [vmem:[%s405 + $0x10] sm:$0xff]
  %v409 = vld [vmem:[%s405 + $0x18] sm:$0xff]
  %v411 = vsel %vm68, %v406, 0
  %v414 = vsel %vm68, %v407, 0
  %v417 = vsel %vm68, %v408, 0
  %v420 = vsel %vm68, %v409, 0
  %422 = vmatpush.msra.mxu0 0.0
  %423 = vmatpush.msra.mxu0 0.0
  %424 = vmatpush.msra.mxu0 0.0
  %425 = vmatpush.msra.mxu0 0.0
  %426 = vmatpush.msra.mxu0 0.0
  %427 = vmatpush.msra.mxu0 0.0
  %428 = vmatpush.msra.mxu0 0.0
  %429 = vmatpush.msra.mxu0 0.0
  %430 = vmatpush.msra.mxu0 0.0
  %431 = vmatpush.msra.mxu0 0.0
  %432 = vmatpush.msra.mxu0 0.0
  %433 = vmatpush.msra.mxu0 0.0
  %434 = vmatpush.msra.mxu0 0.0
  %435 = vmatpush.msra.mxu0 0.0
  %436 = vmatpush.msra.mxu0 0.0
  %437 = vmatpush.msra.mxu0 %v131
  %438 = vmatmul.f32.gmra.mxu0 %v411
  %v439 = vpop.f32.mrf.mxu0
  %v440 = vadd.f32 %v103, %v439
  %441 = vmatmul.f32.gmra.mxu0 %v414
  %v442 = vpop.f32.mrf.mxu0
  %v443 = vadd.f32 %v106, %v442
  %444 = vmatmul.f32.gmra.mxu0 %v417
  %v445 = vpop.f32.mrf.mxu0
  %v446 = vadd.f32 %v109, %v445
  %447 = vmatmul.f32.gmra.mxu0 %v420
  %v448 = vpop.f32.mrf.mxu0
  %v449 = vadd.f32 %v112, %v448
  %450 = vdwg.mxu0
  %v451 = vmax.f32 %v440, 0.0
  %v452 = vmax.f32 %v443, 0.0
  %v453 = vmax.f32 %v446, 0.0
  %v454 = vmax.f32 %v449, 0.0
  %v455 = vpack.c.bf16 %v452, %v451
  %v456 = vpack.c.bf16 %v454, %v453
  %v458 = vsel %vm192, %v455, 0
  %v461 = vsel %vm192, %v456, 0
  %463 = vmatpush.bf16.msra.mxu0 0
  %464 = vmatpush.bf16.msra.mxu0 0
  %465 = vmatpush.bf16.msra.mxu0 0
  %466 = vmatpush.bf16.msra.mxu0 0
  %467 = vmatpush.bf16.msra.mxu0 %v187
  %468 = vmatpush.bf16.msra.mxu0 %v186
  %469 = vmatpush.bf16.msra.mxu0 %v185
  %470 = vmatpush.bf16.msra.mxu0 %v184
  %471 = vmatmul.bf16.gmra.mxu0 %v458
  %v472 = vpop.f32.mrf.mxu0
  %v473 = vadd.f32 0.0, %v472
  %v474 = vpop.f32.mrf.mxu0
  %v475 = vadd.f32 0.0, %v474
  %476 = vmatmul.bf16.gmra.mxu0 %v461
  %v477 = vpop.f32.mrf.mxu0
  %v478 = vadd.f32 0.0, %v477
  %v479 = vpop.f32.mrf.mxu0
  %v480 = vadd.f32 0.0, %v479
  %481 = vdwg.mxu0
  %v482 = vmax.f32 %v473, 0.0
  %v483 = vmax.f32 %v475, 0.0
  %v484 = vmax.f32 %v478, 0.0
  %v485 = vmax.f32 %v480, 0.0
  %v486 = vpack.c.bf16 %v483, %v482
  %v487 = vpack.c.bf16 %v485, %v484
  %v489 = vsel %vm192, %v486, 0
  %v492 = vsel %vm192, %v487, 0
  %494 = vmatpush.bf16.msra.mxu0 0
  %495 = vmatpush.bf16.msra.mxu0 0
  %496 = vmatpush.bf16.msra.mxu0 0
  %497 = vmatpush.bf16.msra.mxu0 0
  %498 = vmatpush.bf16.msra.mxu0 %v243
  %499 = vmatpush.bf16.msra.mxu0 %v242
  %500 = vmatpush.bf16.msra.mxu0 %v241
  %501 = vmatpush.bf16.msra.mxu0 %v240
  %502 = vmatmul.bf16.gmra.mxu0 %v489
  %v503 = vpop.f32.mrf.mxu0
  %v504 = vadd.f32 0.0, %v503
  %v505 = vpop.f32.mrf.mxu0
  %v506 = vadd.f32 0.0, %v505
  %507 = vmatmul.bf16.gmra.mxu0 %v492
  %v508 = vpop.f32.mrf.mxu0
  %v509 = vadd.f32 0.0, %v508
  %v510 = vpop.f32.mrf.mxu0
  %v511 = vadd.f32 0.0, %v510
  %512 = vdwg.mxu0
  %v513 = vmax.f32 %v504, 0.0
  %v514 = vmax.f32 %v506, 0.0
  %v515 = vmax.f32 %v509, 0.0
  %v516 = vmax.f32 %v511, 0.0
  %v517 = vpack.c.bf16 %v514, %v513
  %v518 = vpack.c.bf16 %v516, %v515
  %519 = vmatpush.bf16.msra.mxu0 %v341
  %520 = vmatpush.bf16.msra.mxu0 %v339
  %521 = vmatpush.bf16.msra.mxu0 %v337
  %522 = vmatpush.bf16.msra.mxu0 %v335
  %523 = vmatpush.bf16.msra.mxu0 %v333
  %524 = vmatpush.bf16.msra.mxu0 %v331
  %525 = vmatpush.bf16.msra.mxu0 %v329
  %526 = vmatpush.bf16.msra.mxu0 %v327
  %527 = vmatmul.bf16.gmra.mxu0 %v517
  %v528 = vpop.f32.mrf.mxu0
  %v529 = vadd.f32 0.0, %v528
  %v530 = vpop.f32.mrf.mxu0
  %v531 = vadd.f32 0.0, %v530
  %532 = vmatmul.bf16.gmra.mxu0 %v518
  %v533 = vpop.f32.mrf.mxu0
  %v534 = vadd.f32 0.0, %v533
  %v535 = vpop.f32.mrf.mxu0
  %v536 = vadd.f32 0.0, %v535
  %537 = vdwg.mxu0
  %538 = vmatpush.bf16.msra.mxu0 %v342
  %539 = vmatpush.bf16.msra.mxu0 %v340
  %540 = vmatpush.bf16.msra.mxu0 %v338
  %541 = vmatpush.bf16.msra.mxu0 %v336
  %542 = vmatpush.bf16.msra.mxu0 %v334
  %543 = vmatpush.bf16.msra.mxu0 %v332
  %544 = vmatpush.bf16.msra.mxu0 %v330
  %545 = vmatpush.bf16.msra.mxu0 %v328
  %546 = vmatmul.bf16.gmra.mxu0 %v517
  %v547 = vpop.f32.mrf.mxu0
  %v548 = vadd.f32 0.0, %v547
  %v549 = vpop.f32.mrf.mxu0
  %v550 = vadd.f32 0.0, %v549
  %551 = vmatmul.bf16.gmra.mxu0 %v518
  %v552 = vpop.f32.mrf.mxu0
  %v553 = vadd.f32 0.0, %v552
  %v554 = vpop.f32.mrf.mxu0
  %v555 = vadd.f32 0.0, %v554
  %556 = vdwg.mxu0
  %v557 = vmax.f32 %v529, 0.0
  %v558 = vmax.f32 %v548, 0.0
  %v559 = vmax.f32 %v531, 0.0
  %v560 = vmax.f32 %v550, 0.0
  %v561 = vmax.f32 %v534, 0.0
  %v562 = vmax.f32 %v553, 0.0
  %v563 = vmax.f32 %v536, 0.0
  %v564 = vmax.f32 %v555, 0.0
  %v565 = vmax.f32 %v162, %v451
  %v566 = vmax.f32 %v163, %v452
  %v567 = vmax.f32 %v164, %v453
  %v568 = vmax.f32 %v165, %v454
  %v569 = vmax.f32 %v218, %v482
  %v570 = vmax.f32 %v219, %v483
  %v571 = vmax.f32 %v220, %v484
  %v572 = vmax.f32 %v221, %v485
  %v573 = vmax.f32 %v273, %v513
  %v574 = vmax.f32 %v274, %v514
  %v575 = vmax.f32 %v275, %v515
  %v576 = vmax.f32 %v276, %v516
  %v577 = vmax.f32 %v397, %v557
  %v578 = vmax.f32 %v398, %v558
  %v579 = vmax.f32 %v399, %v559
  %v580 = vmax.f32 %v400, %v560
  %v581 = vmax.f32 %v401, %v561
  %v582 = vmax.f32 %v402, %v562
  %v583 = vmax.f32 %v403, %v563
  %v584 = vmax.f32 %v404, %v564
  %s585 = scalar_lea.vmem %s0, 64
  %v586 = vld [vmem:[%s585] sm:$0xff]
  %v587 = vld [vmem:[%s585 + $0x8] sm:$0xff]
  %v588 = vld [vmem:[%s585 + $0x10] sm:$0xff]
  %v589 = vld [vmem:[%s585 + $0x18] sm:$0xff]
  %v591 = vsel %vm68, %v586, 0
  %v594 = vsel %vm68, %v587, 0
  %v597 = vsel %vm68, %v588, 0
  %v600 = vsel %vm68, %v589, 0
  %602 = vmatpush.msra.mxu0 0.0
  %603 = vmatpush.msra.mxu0 0.0
  %604 = vmatpush.msra.mxu0 0.0
  %605 = vmatpush.msra.mxu0 0.0
  %606 = vmatpush.msra.mxu0 0.0
  %607 = vmatpush.msra.mxu0 0.0
  %608 = vmatpush.msra.mxu0 0.0
  %609 = vmatpush.msra.mxu0 0.0
  %610 = vmatpush.msra.mxu0 0.0
  %611 = vmatpush.msra.mxu0 0.0
  %612 = vmatpush.msra.mxu0 0.0
  %613 = vmatpush.msra.mxu0 0.0
  %614 = vmatpush.msra.mxu0 0.0
  %615 = vmatpush.msra.mxu0 0.0
  %616 = vmatpush.msra.mxu0 0.0
  %617 = vmatpush.msra.mxu0 %v131
  %618 = vmatmul.f32.gmra.mxu0 %v591
  %v619 = vpop.f32.mrf.mxu0
  %v620 = vadd.f32 %v103, %v619
  %621 = vmatmul.f32.gmra.mxu0 %v594
  %v622 = vpop.f32.mrf.mxu0
  %v623 = vadd.f32 %v106, %v622
  %624 = vmatmul.f32.gmra.mxu0 %v597
  %v625 = vpop.f32.mrf.mxu0
  %v626 = vadd.f32 %v109, %v625
  %627 = vmatmul.f32.gmra.mxu0 %v600
  %v628 = vpop.f32.mrf.mxu0
  %v629 = vadd.f32 %v112, %v628
  %630 = vdwg.mxu0
  %v631 = vmax.f32 %v620, 0.0
  %v632 = vmax.f32 %v623, 0.0
  %v633 = vmax.f32 %v626, 0.0
  %v634 = vmax.f32 %v629, 0.0
  %v635 = vpack.c.bf16 %v632, %v631
  %v636 = vpack.c.bf16 %v634, %v633
  %v638 = vsel %vm192, %v635, 0
  %v641 = vsel %vm192, %v636, 0
  %643 = vmatpush.bf16.msra.mxu0 0
  %644 = vmatpush.bf16.msra.mxu0 0
  %645 = vmatpush.bf16.msra.mxu0 0
  %646 = vmatpush.bf16.msra.mxu0 0
  %647 = vmatpush.bf16.msra.mxu0 %v187
  %648 = vmatpush.bf16.msra.mxu0 %v186
  %649 = vmatpush.bf16.msra.mxu0 %v185
  %650 = vmatpush.bf16.msra.mxu0 %v184
  %651 = vmatmul.bf16.gmra.mxu0 %v638
  %v652 = vpop.f32.mrf.mxu0
  %v653 = vadd.f32 0.0, %v652
  %v654 = vpop.f32.mrf.mxu0
  %v655 = vadd.f32 0.0, %v654
  %656 = vmatmul.bf16.gmra.mxu0 %v641
  %v657 = vpop.f32.mrf.mxu0
  %v658 = vadd.f32 0.0, %v657
  %v659 = vpop.f32.mrf.mxu0
  %v660 = vadd.f32 0.0, %v659
  %661 = vdwg.mxu0
  %v662 = vmax.f32 %v653, 0.0
  %v663 = vmax.f32 %v655, 0.0
  %v664 = vmax.f32 %v658, 0.0
  %v665 = vmax.f32 %v660, 0.0
  %v666 = vpack.c.bf16 %v663, %v662
  %v667 = vpack.c.bf16 %v665, %v664
  %v669 = vsel %vm192, %v666, 0
  %v672 = vsel %vm192, %v667, 0
  %674 = vmatpush.bf16.msra.mxu0 0
  %675 = vmatpush.bf16.msra.mxu0 0
  %676 = vmatpush.bf16.msra.mxu0 0
  %677 = vmatpush.bf16.msra.mxu0 0
  %678 = vmatpush.bf16.msra.mxu0 %v243
  %679 = vmatpush.bf16.msra.mxu0 %v242
  %680 = vmatpush.bf16.msra.mxu0 %v241
  %681 = vmatpush.bf16.msra.mxu0 %v240
  %682 = vmatmul.bf16.gmra.mxu0 %v669
  %v683 = vpop.f32.mrf.mxu0
  %v684 = vadd.f32 0.0, %v683
  %v685 = vpop.f32.mrf.mxu0
  %v686 = vadd.f32 0.0, %v685
  %687 = vmatmul.bf16.gmra.mxu0 %v672
  %v688 = vpop.f32.mrf.mxu0
  %v689 = vadd.f32 0.0, %v688
  %v690 = vpop.f32.mrf.mxu0
  %v691 = vadd.f32 0.0, %v690
  %692 = vdwg.mxu0
  %v693 = vmax.f32 %v684, 0.0
  %v694 = vmax.f32 %v686, 0.0
  %v695 = vmax.f32 %v689, 0.0
  %v696 = vmax.f32 %v691, 0.0
  %v697 = vpack.c.bf16 %v694, %v693
  %v698 = vpack.c.bf16 %v696, %v695
  %699 = vmatpush.bf16.msra.mxu0 %v341
  %700 = vmatpush.bf16.msra.mxu0 %v339
  %701 = vmatpush.bf16.msra.mxu0 %v337
  %702 = vmatpush.bf16.msra.mxu0 %v335
  %703 = vmatpush.bf16.msra.mxu0 %v333
  %704 = vmatpush.bf16.msra.mxu0 %v331
  %705 = vmatpush.bf16.msra.mxu0 %v329
  %706 = vmatpush.bf16.msra.mxu0 %v327
  %707 = vmatmul.bf16.gmra.mxu0 %v697
  %v708 = vpop.f32.mrf.mxu0
  %v709 = vadd.f32 0.0, %v708
  %v710 = vpop.f32.mrf.mxu0
  %v711 = vadd.f32 0.0, %v710
  %712 = vmatmul.bf16.gmra.mxu0 %v698
  %v713 = vpop.f32.mrf.mxu0
  %v714 = vadd.f32 0.0, %v713
  %v715 = vpop.f32.mrf.mxu0
  %v716 = vadd.f32 0.0, %v715
  %717 = vdwg.mxu0
  %718 = vmatpush.bf16.msra.mxu0 %v342
  %719 = vmatpush.bf16.msra.mxu0 %v340
  %720 = vmatpush.bf16.msra.mxu0 %v338
  %721 = vmatpush.bf16.msra.mxu0 %v336
  %722 = vmatpush.bf16.msra.mxu0 %v334
  %723 = vmatpush.bf16.msra.mxu0 %v332
  %724 = vmatpush.bf16.msra.mxu0 %v330
  %725 = vmatpush.bf16.msra.mxu0 %v328
  %726 = vmatmul.bf16.gmra.mxu0 %v697
  %v727 = vpop.f32.mrf.mxu0
  %v728 = vadd.f32 0.0, %v727
  %v729 = vpop.f32.mrf.mxu0
  %v730 = vadd.f32 0.0, %v729
  %731 = vmatmul.bf16.gmra.mxu0 %v698
  %v732 = vpop.f32.mrf.mxu0
  %v733 = vadd.f32 0.0, %v732
  %v734 = vpop.f32.mrf.mxu0
  %v735 = vadd.f32 0.0, %v734
  %736 = vdwg.mxu0
  %v737 = vmax.f32 %v709, 0.0
  %v738 = vmax.f32 %v728, 0.0
  %v739 = vmax.f32 %v711, 0.0
  %v740 = vmax.f32 %v730, 0.0
  %v741 = vmax.f32 %v714, 0.0
  %v742 = vmax.f32 %v733, 0.0
  %v743 = vmax.f32 %v716, 0.0
  %v744 = vmax.f32 %v735, 0.0
  %v745 = vmax.f32 %v565, %v631
  %v746 = vmax.f32 %v566, %v632
  %v747 = vmax.f32 %v567, %v633
  %v748 = vmax.f32 %v568, %v634
  %v749 = vmax.f32 %v569, %v662
  %v750 = vmax.f32 %v570, %v663
  %v751 = vmax.f32 %v571, %v664
  %v752 = vmax.f32 %v572, %v665
  %v753 = vmax.f32 %v573, %v693
  %v754 = vmax.f32 %v574, %v694
  %v755 = vmax.f32 %v575, %v695
  %v756 = vmax.f32 %v576, %v696
  %v757 = vmax.f32 %v577, %v737
  %v758 = vmax.f32 %v578, %v738
  %v759 = vmax.f32 %v579, %v739
  %v760 = vmax.f32 %v580, %v740
  %v761 = vmax.f32 %v581, %v741
  %v762 = vmax.f32 %v582, %v742
  %v763 = vmax.f32 %v583, %v743
  %v764 = vmax.f32 %v584, %v744
  %s765 = scalar_lea.vmem %s0, 96
  %v766 = vld [vmem:[%s765] sm:$0xff]
  %v767 = vld [vmem:[%s765 + $0x8] sm:$0xff]
  %v768 = vld [vmem:[%s765 + $0x10] sm:$0xff]
  %v769 = vld [vmem:[%s765 + $0x18] sm:$0xff]
  %v771 = vsel %vm68, %v766, 0
  %v774 = vsel %vm68, %v767, 0
  %v777 = vsel %vm68, %v768, 0
  %v780 = vsel %vm68, %v769, 0
  %782 = vmatpush.msra.mxu0 0.0
  %783 = vmatpush.msra.mxu0 0.0
  %784 = vmatpush.msra.mxu0 0.0
  %785 = vmatpush.msra.mxu0 0.0
  %786 = vmatpush.msra.mxu0 0.0
  %787 = vmatpush.msra.mxu0 0.0
  %788 = vmatpush.msra.mxu0 0.0
  %789 = vmatpush.msra.mxu0 0.0
  %790 = vmatpush.msra.mxu0 0.0
  %791 = vmatpush.msra.mxu0 0.0
  %792 = vmatpush.msra.mxu0 0.0
  %793 = vmatpush.msra.mxu0 0.0
  %794 = vmatpush.msra.mxu0 0.0
  %795 = vmatpush.msra.mxu0 0.0
  %796 = vmatpush.msra.mxu0 0.0
  %797 = vmatpush.msra.mxu0 %v131
  %798 = vmatmul.f32.gmra.mxu0 %v771
  %v799 = vpop.f32.mrf.mxu0
  %v800 = vadd.f32 %v103, %v799
  %801 = vmatmul.f32.gmra.mxu0 %v774
  %v802 = vpop.f32.mrf.mxu0
  %v803 = vadd.f32 %v106, %v802
  %804 = vmatmul.f32.gmra.mxu0 %v777
  %v805 = vpop.f32.mrf.mxu0
  %v806 = vadd.f32 %v109, %v805
  %807 = vmatmul.f32.gmra.mxu0 %v780
  %v808 = vpop.f32.mrf.mxu0
  %v809 = vadd.f32 %v112, %v808
  %810 = vdwg.mxu0
  %v811 = vmax.f32 %v800, 0.0
  %v812 = vmax.f32 %v803, 0.0
  %v813 = vmax.f32 %v806, 0.0
  %v814 = vmax.f32 %v809, 0.0
  %v815 = vpack.c.bf16 %v812, %v811
  %v816 = vpack.c.bf16 %v814, %v813
  %v818 = vsel %vm192, %v815, 0
  %v821 = vsel %vm192, %v816, 0
  %823 = vmatpush.bf16.msra.mxu0 0
  %824 = vmatpush.bf16.msra.mxu0 0
  %825 = vmatpush.bf16.msra.mxu0 0
  %826 = vmatpush.bf16.msra.mxu0 0
  %827 = vmatpush.bf16.msra.mxu0 %v187
  %828 = vmatpush.bf16.msra.mxu0 %v186
  %829 = vmatpush.bf16.msra.mxu0 %v185
  %830 = vmatpush.bf16.msra.mxu0 %v184
  %831 = vmatmul.bf16.gmra.mxu0 %v818
  %v832 = vpop.f32.mrf.mxu0
  %v833 = vadd.f32 0.0, %v832
  %v834 = vpop.f32.mrf.mxu0
  %v835 = vadd.f32 0.0, %v834
  %836 = vmatmul.bf16.gmra.mxu0 %v821
  %v837 = vpop.f32.mrf.mxu0
  %v838 = vadd.f32 0.0, %v837
  %v839 = vpop.f32.mrf.mxu0
  %v840 = vadd.f32 0.0, %v839
  %841 = vdwg.mxu0
  %v842 = vmax.f32 %v833, 0.0
  %v843 = vmax.f32 %v835, 0.0
  %v844 = vmax.f32 %v838, 0.0
  %v845 = vmax.f32 %v840, 0.0
  %v846 = vpack.c.bf16 %v843, %v842
  %v847 = vpack.c.bf16 %v845, %v844
  %v849 = vsel %vm192, %v846, 0
  %v852 = vsel %vm192, %v847, 0
  %854 = vmatpush.bf16.msra.mxu0 0
  %855 = vmatpush.bf16.msra.mxu0 0
  %856 = vmatpush.bf16.msra.mxu0 0
  %857 = vmatpush.bf16.msra.mxu0 0
  %858 = vmatpush.bf16.msra.mxu0 %v243
  %859 = vmatpush.bf16.msra.mxu0 %v242
  %860 = vmatpush.bf16.msra.mxu0 %v241
  %861 = vmatpush.bf16.msra.mxu0 %v240
  %862 = vmatmul.bf16.gmra.mxu0 %v849
  %v863 = vpop.f32.mrf.mxu0
  %v864 = vadd.f32 0.0, %v863
  %v865 = vpop.f32.mrf.mxu0
  %v866 = vadd.f32 0.0, %v865
  %867 = vmatmul.bf16.gmra.mxu0 %v852
  %v868 = vpop.f32.mrf.mxu0
  %v869 = vadd.f32 0.0, %v868
  %v870 = vpop.f32.mrf.mxu0
  %v871 = vadd.f32 0.0, %v870
  %872 = vdwg.mxu0
  %v873 = vmax.f32 %v864, 0.0
  %v874 = vmax.f32 %v866, 0.0
  %v875 = vmax.f32 %v869, 0.0
  %v876 = vmax.f32 %v871, 0.0
  %v877 = vpack.c.bf16 %v874, %v873
  %v878 = vpack.c.bf16 %v876, %v875
  %879 = vmatpush.bf16.msra.mxu0 %v341
  %880 = vmatpush.bf16.msra.mxu0 %v339
  %881 = vmatpush.bf16.msra.mxu0 %v337
  %882 = vmatpush.bf16.msra.mxu0 %v335
  %883 = vmatpush.bf16.msra.mxu0 %v333
  %884 = vmatpush.bf16.msra.mxu0 %v331
  %885 = vmatpush.bf16.msra.mxu0 %v329
  %886 = vmatpush.bf16.msra.mxu0 %v327
  %887 = vmatmul.bf16.gmra.mxu0 %v877
  %v888 = vpop.f32.mrf.mxu0
  %v889 = vadd.f32 0.0, %v888
  %v890 = vpop.f32.mrf.mxu0
  %v891 = vadd.f32 0.0, %v890
  %892 = vmatmul.bf16.gmra.mxu0 %v878
  %v893 = vpop.f32.mrf.mxu0
  %v894 = vadd.f32 0.0, %v893
  %v895 = vpop.f32.mrf.mxu0
  %v896 = vadd.f32 0.0, %v895
  %897 = vdwg.mxu0
  %898 = vmatpush.bf16.msra.mxu0 %v342
  %899 = vmatpush.bf16.msra.mxu0 %v340
  %900 = vmatpush.bf16.msra.mxu0 %v338
  %901 = vmatpush.bf16.msra.mxu0 %v336
  %902 = vmatpush.bf16.msra.mxu0 %v334
  %903 = vmatpush.bf16.msra.mxu0 %v332
  %904 = vmatpush.bf16.msra.mxu0 %v330
  %905 = vmatpush.bf16.msra.mxu0 %v328
  %906 = vmatmul.bf16.gmra.mxu0 %v877
  %v907 = vpop.f32.mrf.mxu0
  %v908 = vadd.f32 0.0, %v907
  %v909 = vpop.f32.mrf.mxu0
  %v910 = vadd.f32 0.0, %v909
  %911 = vmatmul.bf16.gmra.mxu0 %v878
  %v912 = vpop.f32.mrf.mxu0
  %v913 = vadd.f32 0.0, %v912
  %v914 = vpop.f32.mrf.mxu0
  %v915 = vadd.f32 0.0, %v914
  %916 = vdwg.mxu0
  %v917 = vmax.f32 %v889, 0.0
  %v918 = vmax.f32 %v908, 0.0
  %v919 = vmax.f32 %v891, 0.0
  %v920 = vmax.f32 %v910, 0.0
  %v921 = vmax.f32 %v894, 0.0
  %v922 = vmax.f32 %v913, 0.0
  %v923 = vmax.f32 %v896, 0.0
  %v924 = vmax.f32 %v915, 0.0
  %v925 = vmax.f32 %v745, %v811
  %v926 = vmax.f32 %v746, %v812
  %v927 = vmax.f32 %v747, %v813
  %v928 = vmax.f32 %v748, %v814
  %v929 = vmax.f32 %v749, %v842
  %v930 = vmax.f32 %v750, %v843
  %v931 = vmax.f32 %v751, %v844
  %v932 = vmax.f32 %v752, %v845
  %v933 = vmax.f32 %v753, %v873
  %v934 = vmax.f32 %v754, %v874
  %v935 = vmax.f32 %v755, %v875
  %v936 = vmax.f32 %v756, %v876
  %v937 = vmax.f32 %v757, %v917
  %v938 = vmax.f32 %v758, %v918
  %v939 = vmax.f32 %v759, %v919
  %v940 = vmax.f32 %v760, %v920
  %v941 = vmax.f32 %v761, %v921
  %v942 = vmax.f32 %v762, %v922
  %v943 = vmax.f32 %v763, %v923
  %v944 = vmax.f32 %v764, %v924
  %949 = vrot.lane.b32.xlu0 %v929, 64
  %v950 = vpop.permute.xlu0 %949
  %951 = vrot.lane.b32.xlu0 %v930, 64
  %v952 = vpop.permute.xlu0 %951
  %953 = vrot.lane.b32.xlu0 %v931, 64
  %v954 = vpop.permute.xlu0 %953
  %955 = vrot.lane.b32.xlu0 %v932, 64
  %v956 = vpop.permute.xlu0 %955
  %v961 = vsel %vm192, %v925, %v950
  %v962 = vsel %vm192, %v926, %v952
  %v963 = vsel %vm192, %v927, %v954
  %v964 = vsel %vm192, %v928, %v956
  %v965 = vpack.c.bf16 %v962, %v961
  %v966 = vpack.c.bf16 %v934, %v933
  %v967 = vpack.c.bf16 %v939, %v937
  %v968 = vpack.c.bf16 %v940, %v938
  %v969 = vpack.c.bf16 %v964, %v963
  %v970 = vpack.c.bf16 %v936, %v935
  %v971 = vpack.c.bf16 %v943, %v941
  %v972 = vpack.c.bf16 %v944, %v942
  %v973 = vld [vmem:[%s7] sm:$0xf]
  %v974 = vld [vmem:[%s7 + $0x4] sm:$0xf]
  %v975 = vld [vmem:[%s7 + $0x8] sm:$0xf]
  %v976 = vld [vmem:[%s7 + $0xc] sm:$0xf]
  %v977 = vld [vmem:[%s7 + $0x10] sm:$0xf]
  %v978 = vld [vmem:[%s7 + $0x14] sm:$0xf]
  %v979 = vld [vmem:[%s7 + $0x18] sm:$0xf]
  %v980 = vld [vmem:[%s7 + $0x1c] sm:$0xf]
  %v981 = vld [vmem:[%s7 + $0x20] sm:$0xf]
  %v982 = vld [vmem:[%s7 + $0x24] sm:$0xf]
  %v983 = vld [vmem:[%s7 + $0x28] sm:$0xf]
  %v984 = vld [vmem:[%s7 + $0x2c] sm:$0xf]
  %v985 = vld [vmem:[%s7 + $0x30] sm:$0xf]
  %v986 = vld [vmem:[%s7 + $0x34] sm:$0xf]
  %v987 = vld [vmem:[%s7 + $0x38] sm:$0xf]
  %v988 = vld [vmem:[%s7 + $0x3c] sm:$0xf]
  %v989 = vld [vmem:[%s7 + $0x40] sm:$0xf]
  %v990 = vld [vmem:[%s7 + $0x44] sm:$0xf]
  %v991 = vld [vmem:[%s7 + $0x48] sm:$0xf]
  %v992 = vld [vmem:[%s7 + $0x4c] sm:$0xf]
  %v993 = vld [vmem:[%s7 + $0x50] sm:$0xf]
  %v994 = vld [vmem:[%s7 + $0x54] sm:$0xf]
  %v995 = vld [vmem:[%s7 + $0x58] sm:$0xf]
  %v996 = vld [vmem:[%s7 + $0x5c] sm:$0xf]
  %v997 = vld [vmem:[%s7 + $0x60] sm:$0xf]
  %v998 = vld [vmem:[%s7 + $0x64] sm:$0xf]
  %v999 = vld [vmem:[%s7 + $0x68] sm:$0xf]
  %v1000 = vld [vmem:[%s7 + $0x6c] sm:$0xf]
  %v1001 = vld [vmem:[%s7 + $0x70] sm:$0xf]
  %v1002 = vld [vmem:[%s7 + $0x74] sm:$0xf]
  %v1003 = vld [vmem:[%s7 + $0x78] sm:$0xf]
  %v1004 = vld [vmem:[%s7 + $0x7c] sm:$0xf]
  %v1005 = vld [vmem:[%s7 + $0x80] sm:$0xf]
  %v1006 = vld [vmem:[%s7 + $0x84] sm:$0xf]
  %v1007 = vld [vmem:[%s7 + $0x88] sm:$0xf]
  %v1008 = vld [vmem:[%s7 + $0x8c] sm:$0xf]
  %v1009 = vld [vmem:[%s7 + $0x90] sm:$0xf]
  %v1010 = vld [vmem:[%s7 + $0x94] sm:$0xf]
  %v1011 = vld [vmem:[%s7 + $0x98] sm:$0xf]
  %v1012 = vld [vmem:[%s7 + $0x9c] sm:$0xf]
  %v1013 = vld [vmem:[%s7 + $0xa0] sm:$0xf]
  %v1014 = vld [vmem:[%s7 + $0xa4] sm:$0xf]
  %v1015 = vld [vmem:[%s7 + $0xa8] sm:$0xf]
  %v1016 = vld [vmem:[%s7 + $0xac] sm:$0xf]
  %v1017 = vld [vmem:[%s7 + $0xb0] sm:$0xf]
  %v1018 = vld [vmem:[%s7 + $0xb4] sm:$0xf]
  %v1019 = vld [vmem:[%s7 + $0xb8] sm:$0xf]
  %v1020 = vld [vmem:[%s7 + $0xbc] sm:$0xf]
  %v1021 = vld [vmem:[%s7 + $0xc0] sm:$0xf]
  %v1022 = vld [vmem:[%s7 + $0xc4] sm:$0xf]
  %v1023 = vld [vmem:[%s7 + $0xc8] sm:$0xf]
  %v1024 = vld [vmem:[%s7 + $0xcc] sm:$0xf]
  %v1025 = vld [vmem:[%s7 + $0xd0] sm:$0xf]
  %v1026 = vld [vmem:[%s7 + $0xd4] sm:$0xf]
  %v1027 = vld [vmem:[%s7 + $0xd8] sm:$0xf]
  %v1028 = vld [vmem:[%s7 + $0xdc] sm:$0xf]
  %v1029 = vld [vmem:[%s7 + $0xe0] sm:$0xf]
  %v1030 = vld [vmem:[%s7 + $0xe4] sm:$0xf]
  %v1031 = vld [vmem:[%s7 + $0xe8] sm:$0xf]
  %v1032 = vld [vmem:[%s7 + $0xec] sm:$0xf]
  %v1033 = vld [vmem:[%s7 + $0xf0] sm:$0xf]
  %v1034 = vld [vmem:[%s7 + $0xf4] sm:$0xf]
  %v1035 = vld [vmem:[%s7 + $0xf8] sm:$0xf]
  %v1036 = vld [vmem:[%s7 + $0xfc] sm:$0xf]
  %v1101 = vunpack.c.l.b16 %v973
  %v1102 = vunpack.c.l.b16 %v974
  %v1103 = vunpack.c.l.b16 %v975
  %v1104 = vunpack.c.l.b16 %v976
  %v1105 = vunpack.c.l.b16 %v977
  %v1106 = vunpack.c.l.b16 %v978
  %v1107 = vunpack.c.l.b16 %v979
  %v1108 = vunpack.c.l.b16 %v980
  %v1109 = vunpack.c.l.b16 %v981
  %v1110 = vunpack.c.l.b16 %v982
  %v1111 = vunpack.c.l.b16 %v983
  %v1112 = vunpack.c.l.b16 %v984
  %v1113 = vunpack.c.l.b16 %v985
  %v1114 = vunpack.c.l.b16 %v986
  %v1115 = vunpack.c.l.b16 %v987
  %v1116 = vunpack.c.l.b16 %v988
  %v1117 = vunpack.c.l.b16 %v989
  %v1118 = vunpack.c.l.b16 %v990
  %v1119 = vunpack.c.l.b16 %v991
  %v1120 = vunpack.c.l.b16 %v992
  %v1121 = vunpack.c.l.b16 %v993
  %v1122 = vunpack.c.l.b16 %v994
  %v1123 = vunpack.c.l.b16 %v995
  %v1124 = vunpack.c.l.b16 %v996
  %v1125 = vunpack.c.l.b16 %v997
  %v1126 = vunpack.c.l.b16 %v998
  %v1127 = vunpack.c.l.b16 %v999
  %v1128 = vunpack.c.l.b16 %v1000
  %v1129 = vunpack.c.l.b16 %v1001
  %v1130 = vunpack.c.l.b16 %v1002
  %v1131 = vunpack.c.l.b16 %v1003
  %v1132 = vunpack.c.l.b16 %v1004
  %v1133 = vunpack.c.l.b16 %v1005
  %v1134 = vunpack.c.l.b16 %v1006
  %v1135 = vunpack.c.l.b16 %v1007
  %v1136 = vunpack.c.l.b16 %v1008
  %v1137 = vunpack.c.l.b16 %v1009
  %v1138 = vunpack.c.l.b16 %v1010
  %v1139 = vunpack.c.l.b16 %v1011
  %v1140 = vunpack.c.l.b16 %v1012
  %v1141 = vunpack.c.l.b16 %v1013
  %v1142 = vunpack.c.l.b16 %v1014
  %v1143 = vunpack.c.l.b16 %v1015
  %v1144 = vunpack.c.l.b16 %v1016
  %v1145 = vunpack.c.l.b16 %v1017
  %v1146 = vunpack.c.l.b16 %v1018
  %v1147 = vunpack.c.l.b16 %v1019
  %v1148 = vunpack.c.l.b16 %v1020
  %v1149 = vunpack.c.l.b16 %v1021
  %v1150 = vunpack.c.l.b16 %v1022
  %v1151 = vunpack.c.l.b16 %v1023
  %v1152 = vunpack.c.l.b16 %v1024
  %v1153 = vunpack.c.l.b16 %v1025
  %v1154 = vunpack.c.l.b16 %v1026
  %v1155 = vunpack.c.l.b16 %v1027
  %v1156 = vunpack.c.l.b16 %v1028
  %v1157 = vunpack.c.l.b16 %v1029
  %v1158 = vunpack.c.l.b16 %v1030
  %v1159 = vunpack.c.l.b16 %v1031
  %v1160 = vunpack.c.l.b16 %v1032
  %v1161 = vunpack.c.l.b16 %v1033
  %v1162 = vunpack.c.l.b16 %v1034
  %v1163 = vunpack.c.l.b16 %v1035
  %v1164 = vunpack.c.l.b16 %v1036
  %v1165 = vpack.c.b16 %v1102, %v1101
  %v1166 = vpack.c.b16 %v1104, %v1103
  %v1167 = vpack.c.b16 %v1106, %v1105
  %v1168 = vpack.c.b16 %v1108, %v1107
  %v1169 = vpack.c.b16 %v1110, %v1109
  %v1170 = vpack.c.b16 %v1112, %v1111
  %v1171 = vpack.c.b16 %v1114, %v1113
  %v1172 = vpack.c.b16 %v1116, %v1115
  %v1173 = vpack.c.b16 %v1118, %v1117
  %v1174 = vpack.c.b16 %v1120, %v1119
  %v1175 = vpack.c.b16 %v1122, %v1121
  %v1176 = vpack.c.b16 %v1124, %v1123
  %v1177 = vpack.c.b16 %v1126, %v1125
  %v1178 = vpack.c.b16 %v1128, %v1127
  %v1179 = vpack.c.b16 %v1130, %v1129
  %v1180 = vpack.c.b16 %v1132, %v1131
  %v1181 = vpack.c.b16 %v1134, %v1133
  %v1182 = vpack.c.b16 %v1136, %v1135
  %v1183 = vpack.c.b16 %v1138, %v1137
  %v1184 = vpack.c.b16 %v1140, %v1139
  %v1185 = vpack.c.b16 %v1142, %v1141
  %v1186 = vpack.c.b16 %v1144, %v1143
  %v1187 = vpack.c.b16 %v1146, %v1145
  %v1188 = vpack.c.b16 %v1148, %v1147
  %v1189 = vpack.c.b16 %v1150, %v1149
  %v1190 = vpack.c.b16 %v1152, %v1151
  %v1191 = vpack.c.b16 %v1154, %v1153
  %v1192 = vpack.c.b16 %v1156, %v1155
  %v1193 = vpack.c.b16 %v1158, %v1157
  %v1194 = vpack.c.b16 %v1160, %v1159
  %v1195 = vpack.c.b16 %v1162, %v1161
  %v1196 = vpack.c.b16 %v1164, %v1163
  %1229 = vmatpush.bf16.msra.mxu0 %v1172
  %1230 = vmatpush.bf16.msra.mxu0 %v1171
  %1231 = vmatpush.bf16.msra.mxu0 %v1170
  %1232 = vmatpush.bf16.msra.mxu0 %v1169
  %1233 = vmatpush.bf16.msra.mxu0 %v1168
  %1234 = vmatpush.bf16.msra.mxu0 %v1167
  %1235 = vmatpush.bf16.msra.mxu0 %v1166
  %1236 = vmatpush.bf16.msra.mxu0 %v1165
  %1237 = vmatmul.bf16.gmra.mxu0 %v965
  %v1238 = vpop.f32.mrf.mxu0
  %v1239 = vadd.f32 0.0, %v1238
  %v1240 = vpop.f32.mrf.mxu0
  %v1241 = vadd.f32 0.0, %v1240
  %1242 = vmatmul.bf16.gmra.mxu0 %v969
  %v1243 = vpop.f32.mrf.mxu0
  %v1244 = vadd.f32 0.0, %v1243
  %v1245 = vpop.f32.mrf.mxu0
  %v1246 = vadd.f32 0.0, %v1245
  %1247 = vdwg.mxu0
  %1248 = vmatpush.bf16.msra.mxu0 %v1180
  %1249 = vmatpush.bf16.msra.mxu0 %v1179
  %1250 = vmatpush.bf16.msra.mxu0 %v1178
  %1251 = vmatpush.bf16.msra.mxu0 %v1177
  %1252 = vmatpush.bf16.msra.mxu0 %v1176
  %1253 = vmatpush.bf16.msra.mxu0 %v1175
  %1254 = vmatpush.bf16.msra.mxu0 %v1174
  %1255 = vmatpush.bf16.msra.mxu0 %v1173
  %1256 = vmatmul.bf16.gmra.mxu0 %v966
  %v1257 = vpop.f32.mrf.mxu0
  %v1258 = vadd.f32 %v1239, %v1257
  %v1259 = vpop.f32.mrf.mxu0
  %v1260 = vadd.f32 %v1241, %v1259
  %1261 = vmatmul.bf16.gmra.mxu0 %v970
  %v1262 = vpop.f32.mrf.mxu0
  %v1263 = vadd.f32 %v1244, %v1262
  %v1264 = vpop.f32.mrf.mxu0
  %v1265 = vadd.f32 %v1246, %v1264
  %1266 = vdwg.mxu0
  %1267 = vmatpush.bf16.msra.mxu0 %v1188
  %1268 = vmatpush.bf16.msra.mxu0 %v1187
  %1269 = vmatpush.bf16.msra.mxu0 %v1186
  %1270 = vmatpush.bf16.msra.mxu0 %v1185
  %1271 = vmatpush.bf16.msra.mxu0 %v1184
  %1272 = vmatpush.bf16.msra.mxu0 %v1183
  %1273 = vmatpush.bf16.msra.mxu0 %v1182
  %1274 = vmatpush.bf16.msra.mxu0 %v1181
  %1275 = vmatmul.bf16.gmra.mxu0 %v967
  %v1276 = vpop.f32.mrf.mxu0
  %v1277 = vadd.f32 %v1258, %v1276
  %v1278 = vpop.f32.mrf.mxu0
  %v1279 = vadd.f32 %v1260, %v1278
  %1280 = vmatmul.bf16.gmra.mxu0 %v971
  %v1281 = vpop.f32.mrf.mxu0
  %v1282 = vadd.f32 %v1263, %v1281
  %v1283 = vpop.f32.mrf.mxu0
  %v1284 = vadd.f32 %v1265, %v1283
  %1285 = vdwg.mxu0
  %1286 = vmatpush.bf16.msra.mxu0 %v1196
  %1287 = vmatpush.bf16.msra.mxu0 %v1195
  %1288 = vmatpush.bf16.msra.mxu0 %v1194
  %1289 = vmatpush.bf16.msra.mxu0 %v1193
  %1290 = vmatpush.bf16.msra.mxu0 %v1192
  %1291 = vmatpush.bf16.msra.mxu0 %v1191
  %1292 = vmatpush.bf16.msra.mxu0 %v1190
  %1293 = vmatpush.bf16.msra.mxu0 %v1189
  %1294 = vmatmul.bf16.gmra.mxu0 %v968
  %v1295 = vpop.f32.mrf.mxu0
  %v1296 = vadd.f32 %v1277, %v1295
  %v1297 = vpop.f32.mrf.mxu0
  %v1298 = vadd.f32 %v1279, %v1297
  %1299 = vmatmul.bf16.gmra.mxu0 %v972
  %v1300 = vpop.f32.mrf.mxu0
  %v1301 = vadd.f32 %v1282, %v1300
  %v1302 = vpop.f32.mrf.mxu0
  %v1303 = vadd.f32 %v1284, %v1302
  %1304 = vdwg.mxu0
  %v1305 = vmax.f32 %v1296, 0.0
  %v1306 = vmax.f32 %v1298, 0.0
  %v1307 = vmax.f32 %v1301, 0.0
  %v1308 = vmax.f32 %v1303, 0.0
  %v1309 = vpack.c.bf16 %v1305, %v1305
  %v1310 = vpack.c.bf16 %v1306, %v1306
  %v1311 = vpack.c.bf16 %v1307, %v1307
  %v1312 = vpack.c.bf16 %v1308, %v1308
  %vm1313 = vcmask 257024
  %1314 = vst.msk [vmem:[%s8] sm:$0xf] %vm1313, %v1309
  %1315 = vst.msk [vmem:[%s8 + $0x4] sm:$0xf] %vm1313, %v1310
  %1316 = vst.msk [vmem:[%s8 + $0x8] sm:$0xf] %vm1313, %v1311
  %1317 = vst.msk [vmem:[%s8 + $0xc] sm:$0xf] %vm1313, %v1312
  // Predicated region
  $region34: #{deepgmr_forward.7} parent=0 // pred_check
    _
  $region35: #{deepgmr_forward.7} parent=0 // pred_check_branch
    %1319 = sbr.rel (0) target = $region37
  $region36: #{deepgmr_forward.7} parent=0 // pred_region
    _
  $region37: #{deepgmr_forward.7} parent=0 // pred_fallthru
    _
  // Predicated region
  $region38: #{deepgmr_forward.7} parent=0 // pred_check
    _
  $region39: #{deepgmr_forward.7} parent=0 // pred_check_branch
    %1321 = sbr.rel (0) target = $region41
  $region40: #{deepgmr_forward.7} parent=0 // pred_region
    _
  $region41: #{deepgmr_forward.7} parent=0 // pred_fallthru
    _

// kernel: custom-call.35
$region0: #{custom-call.35}
  %s0 = inlined_call_operand.vmem [shape: f32[2,8,1,3,3], index: 0, kind: input, shape index: {}]
  %s1 = inlined_call_operand.vmem [shape: f32[2,8,1,3,3], index: 1, kind: output, shape index: {}]
  $region1: #{custom-call.35} parent=0
    #allocation0 [shape = 'u8[4096]{0}', space=vmem, size = 0x1000, scoped, tag = 'operand span for operand 0']
    #allocation1 [shape = 'u8[4096]{0}', space=vmem, size = 0x1000, scoped, tag = 'packed  for operand 0']
    #allocation2 [shape = 'u8[4096]{0}', space=vmem, size = 0x1000, scoped, tag = 'operand span for operand 1']
    #allocation3 [shape = 'u8[4096]{0}', space=vmem, size = 0x1000, scoped, tag = 'packed  for operand 1']
    loop: start=0, step=1, limit=18
    $region2: #{custom-call.35} parent=1 // loop_pre_header
      _
    $region3: #{custom-call.35} parent=1 // loop_header
      %s3 = sphi 0, %s7
      %p4 = scmp.ge.s32.totalorder %s3, 18
      %s10 = sphi 0, %s43
      %s11 = sphi 0, %s39
      %s12 = sphi 0, %s35
      %s13 = sphi 0, %s31
      %s14 = sphi 0, %s27
      %s15 = sphi 0, %s10
      %s16 = sphi 0, %s11
      %s17 = sphi 0, %s12
      %s18 = sphi 0, %s13
      %s19 = sphi 0, %s14
      %s20 = sphi 0, %s15
      %s21 = sphi 0, %s16
      %s22 = sphi 0, %s17
      %s23 = sphi 0, %s18
      %s24 = sphi 0, %s19
    $region4: #{custom-call.35} parent=1 // loop_header_branch
      %6 = sbr.rel (%p4) target = $region8
    $region5: #{custom-call.35} parent=1 // loop_body
      %s8 = ssub.s32 %s3, 1
      %s9 = ssub.s32 %s3, 2
      %s25 = sadd.s32 1, %s14
      %p26 = scmp.ge.s32.totalorder %s25, 1
      %s27 = scalar_select %p26, 0, %s25
      %s28 = sadd.s32 1, %s13
      %s29 = scalar_select %p26, %s28, %s13
      %p30 = scmp.ge.s32.totalorder %s29, 1
      %s31 = scalar_select %p30, 0, %s29
      %s32 = sadd.s32 1, %s12
      %s33 = scalar_select %p30, %s32, %s12
      %p34 = scmp.ge.s32.totalorder %s33, 1
      %s35 = scalar_select %p34, 0, %s33
      %s36 = sadd.s32 1, %s11
      %s37 = scalar_select %p34, %s36, %s11
      %p38 = scmp.ge.s32.totalorder %s37, 8
      %s39 = scalar_select %p38, 0, %s37
      %s40 = sadd.s32 1, %s10
      %s41 = scalar_select %p38, %s40, %s10
      %p42 = scmp.ge.s32.totalorder %s41, 2
      %s43 = scalar_select %p42, 0, %s41
      %p44 = scmp.le.s32.totalorder 1, %s3
      %p45 = scmp.lt.s32.totalorder %s3, 17
      %p46 = pnand %p44, %p45
      %p47 = pneg %p46
      // Predicated region
      $region9: #{custom-call.35} parent=5 // pred_check
        _
      $region10: #{custom-call.35} parent=5 // pred_check_branch
        %49 = sbr.rel (%p46) target = $region12
      $region11: #{custom-call.35} parent=5 // pred_region
        %s50 = ssub.s32 %s3, 1
      $region12: #{custom-call.35} parent=5 // pred_fallthru
        _
      %p51 = scmp.lt.s32.totalorder %s3, 16
      // Predicated region
      $region13: #{custom-call.35} parent=5 // pred_check
        %p52 = pneg %p51
      $region14: #{custom-call.35} parent=5 // pred_check_branch
        %54 = sbr.rel (%p52) target = $region16
      $region15: #{custom-call.35} parent=5 // pred_region
        %s55 = sand.u32 %s3, 1
        %s56 = sand.u32 %s3, 1
        %s57 = smul.addr %s56, 4
        %s58 = scalar_lea.vmem [#allocation1], %s57
        %s59 = sadd.s32 %s14, %s13
        %s60 = sadd.s32 %s59, %s12
        %s61 = sadd.s32 %s60, %s11
        %s62 = smul.addr %s10, 8
        %s63 = sadd.s32 %s61, %s62
        %s64 = smul.addr %s63, 4
        %s65 = scalar_lea.vmem %s0, %s64
        // Predicated region
        $region17: #{custom-call.35} parent=15 // pred_check
          _
        $region18: #{custom-call.35} parent=15 // pred_check_branch
          %67 = sbr.rel (0) target = $region20
        $region19: #{custom-call.35} parent=15 // pred_region
          // Predicated region
          $region21: #{custom-call.35} parent=19 // pred_check
            _
          $region22: #{custom-call.35} parent=19 // pred_check_branch
            %69 = sbr.rel target = $region24
          $region23: #{custom-call.35} parent=19 // pred_region
            // Predicated region
            $region36: #{custom-call.35} parent=23 // pred_check
              _
            $region37: #{custom-call.35} parent=23 // pred_check_branch
              %85 = sbr.rel (0) target = $region39
            $region38: #{custom-call.35} parent=23 // pred_region
              %s87 = ssub.s32 16, 1
              loop: start=0, step=1, limit=1
              $region40: #{custom-call.35} parent=38 // loop_pre_header
                _
              $region41: #{custom-call.35} parent=38 // loop_header
                %s89 = sphi 0, %s93
                %p90 = scmp.ge.s32.totalorder %s89, 1
                %s94 = sphi %s65, %s65
                %s95 = sphi %s58, %s58
              $region42: #{custom-call.35} parent=38 // loop_header_branch
                %92 = sbr.rel (%p90) target = $region46
              $region43: #{custom-call.35} parent=38 // loop_body
                %v96 = vld [vmem:[%s94] sm:%s87]
                %97 = vst [vmem:[%s95] sm:%s87] %v96
              $region44: #{custom-call.35} parent=38 // loop_footer
                %s93 = sadd.s32 1, %s89
              $region45: #{custom-call.35} parent=38 // loop_footer_branch
                %88 = sbr.rel target = $region41
              $region46: #{custom-call.35} parent=38 // loop_exit
                _
            $region39: #{custom-call.35} parent=23 // pred_fallthru
              _
          $region24: #{custom-call.35} parent=19 // pred_fallthru
            _
          // Predicated region
          $region25: #{custom-call.35} parent=19 // pred_check
            _
          $region26: #{custom-call.35} parent=19 // pred_check_branch
            %71 = sbr.rel (0) target = $region28
          $region27: #{custom-call.35} parent=19 // pred_region
            %s73 = ssub.s32 16, 1
            loop: start=0, step=1, limit=1
            $region29: #{custom-call.35} parent=27 // loop_pre_header
              _
            $region30: #{custom-call.35} parent=27 // loop_header
              %s75 = sphi 0, %s79
              %p76 = scmp.ge.s32.totalorder %s75, 1
              %s80 = sphi %s65, %s65
              %s81 = sphi %s58, %s58
            $region31: #{custom-call.35} parent=27 // loop_header_branch
              %78 = sbr.rel (%p76) target = $region35
            $region32: #{custom-call.35} parent=27 // loop_body
              %v82 = vld [vmem:[%s80] sm:%s73]
              %83 = vst [vmem:[%s81] sm:%s73] %v82
            $region33: #{custom-call.35} parent=27 // loop_footer
              %s79 = sadd.s32 1, %s75
            $region34: #{custom-call.35} parent=27 // loop_footer_branch
              %74 = sbr.rel target = $region30
            $region35: #{custom-call.35} parent=27 // loop_exit
              _
          $region28: #{custom-call.35} parent=19 // pred_fallthru
            _
        $region20: #{custom-call.35} parent=15 // pred_fallthru
          _
        %98 = vnop
      $region16: #{custom-call.35} parent=5 // pred_fallthru
        _
      %p99 = scmp.le.s32.totalorder 1, %s3
      %p100 = scmp.lt.s32.totalorder %s3, 17
      %p101 = pnand %p99, %p100
      %p102 = pneg %p101
      // Predicated region
      $region47: #{custom-call.35} parent=5 // pred_check
        _
      $region48: #{custom-call.35} parent=5 // pred_check_branch
        %104 = sbr.rel (%p101) target = $region50
      $region49: #{custom-call.35} parent=5 // pred_region
        #allocation4 [shape = 'f32[3,3]{1,0}', space=vmem, size = 0x1000, scoped, tag = 'rescaled input a']
        %s105 = ssub.s32 %s3, 1
        %s106 = sand.u32 %s8, 1
        %s107 = sand.u32 %s8, 1
        %s108 = smul.addr %s107, 4
        %s109 = scalar_lea.vmem [#allocation1], %s108
        %s110 = sand.u32 %s8, 1
        %s111 = sand.u32 %s8, 1
        %s112 = smul.addr %s111, 4
        %s113 = scalar_lea.vmem [#allocation1], %s112
        %s114 = sand.u32 %s8, 1
        %s115 = sand.u32 %s8, 1
        %s116 = smul.addr %s115, 4
        %s117 = scalar_lea.vmem [#allocation3], %s116
        %s119 = ssub.s32 16, 1
        %v120 = vld [vmem:[%s113] sm:%s119]
        %121 = vst [vmem:[#allocation0] sm:%s119] %v120
        %v122 = vlaneseq
        %v123 = vand.u32 %v122, 127
        %vm124 = vcmp.lt.s32.totalorder %v123, 3
        %v125 = vlaneseq
        %v126 = vshrl.u32 %v125, 7
        %vm128 = vcmp.eq.s32.totalorder %v126, %v123
        %v129 = vld [vmem:[#allocation0] sm:$0xff]
        %v130 = vsel %vm128, %v129, 0.0
        %131 = vadd.xlane.f32.xlu0 %v130
        %v132 = vpop.xlane.xlu0 %131
        %vm133 = vcmp.ge.s32.totalorder %v126, %v123
        %vm134 = vmand %vm133, %vm124
        %v135 = vsel %vm134, %v129, 0.0
        %v136 = vrcp.pop %v132
        %v137 = vmul.f32 %v132, %v136
        %v138 = vsub.f32 1.0, %v137
        %v139 = vmul.f32 %v136, %v138
        %v140 = vadd.f32 %v136, %v139
        %vm141 = vweird.f32 %v132
        %vm142 = vweird.f32 %v136
        %vm143 = vmor %vm141, %vm142
        %v144 = vsel %vm143, %v136, %v140
        %v145 = vand.u32 2147483647, %v132
        %vm146 = vcmp.eq.f32.partialorder %v145, 8.507059e+37
        %v147 = vand.u32 %v132, 2147483648
        %v148 = vor.u32 1.1754944e-38, %v147
        %v149 = vsel %vm146, %v148, %v144
        %v150 = vmul.f32 %v135, %v149
        %151 = vst [vmem:[#allocation4] sm:$0xff] %v150
        %v152 = vlaneseq
        %v153 = vand.u32 %v152, 127
        %v154 = vlaneseq
        %v155 = vshrl.u32 %v154, 7
        %vm157 = vcmp.eq.s32.totalorder %v153, %v155
        %v158 = vlaneseq
        %v159 = vand.u32 %v158, 127
        %vm160 = vcmp.eq.s32.totalorder %v159, 0
        %v161 = vsel %vm160, 1.0, -1.0
        %v162 = vsel %vm157, %v161, 0.0
        %s163 = scalar_lea.vmem [#allocation4], 1
        %v164 = vld [vmem:[%s163] ss:$0 sm:$0xff]
        %v165 = vxor.u32 %v164, 2147483648
        %v166 = vlaneseq
        %v167 = vand.u32 %v166, 127
        %vm168 = vcmp.eq.s32.totalorder %v167, 1
        %v169 = vmul.f32 %v165, %v162
        %170 = vadd.xlane.f32.xlu0 %v169
        %v171 = vpop.xlane.xlu0 %170
        %v172 = vsel %vm168, %v171, %v162
        %s173 = scalar_lea.vmem [#allocation4], 2
        %v174 = vld [vmem:[%s173] ss:$0 sm:$0xff]
        %v175 = vxor.u32 %v174, 2147483648
        %v176 = vlaneseq
        %v177 = vand.u32 %v176, 127
        %vm178 = vcmp.eq.s32.totalorder %v177, 2
        %v179 = vmul.f32 %v175, %v172
        %180 = vadd.xlane.f32.xlu0 %v179
        %v181 = vpop.xlane.xlu0 %180
        %v182 = vsel %vm178, %v181, %v172
        %v183 = vrcp.pop %v132
        %v184 = vmul.f32 %v132, %v183
        %v185 = vsub.f32 1.0, %v184
        %v186 = vmul.f32 %v183, %v185
        %v187 = vadd.f32 %v183, %v186
        %vm188 = vweird.f32 %v132
        %vm189 = vweird.f32 %v183
        %vm190 = vmor %vm188, %vm189
        %v191 = vsel %vm190, %v183, %v187
        %v192 = vand.u32 2147483647, %v132
        %vm193 = vcmp.eq.f32.partialorder %v192, 8.507059e+37
        %v194 = vand.u32 %v132, 2147483648
        %v195 = vor.u32 1.1754944e-38, %v194
        %v196 = vsel %vm193, %v195, %v191
        %v197 = vmul.f32 %v182, %v196
        %vm198 = vweird.f32 %v132
        %v199 = vsel %vm198, %v182, %v197
        %200 = vst [vmem:[#allocation2] sm:$0xff] %v199
        %s202 = ssub.s32 16, 1
        %v203 = vld [vmem:[#allocation2] sm:%s202]
        %s205 = ssub.s32 16, 1
        %206 = vst [vmem:[%s117] sm:%s205] %v203
        %s207 = sand.u32 %s8, 1
        %s208 = sand.u32 %s8, 1
        %s209 = smul.addr %s208, 4
        %s210 = scalar_lea.vmem [#allocation3], %s209
        %s211 = sadd.s32 %s19, %s18
        %s212 = sadd.s32 %s211, %s17
        %s213 = sadd.s32 %s212, %s16
        %s214 = smul.addr %s15, 8
        %s215 = sadd.s32 %s213, %s214
        %s216 = smul.addr %s215, 4
        %s217 = scalar_lea.vmem %s1, %s216
        // Predicated region
        $region51: #{custom-call.35} parent=49 // pred_check
          _
        $region52: #{custom-call.35} parent=49 // pred_check_branch
          %219 = sbr.rel (0) target = $region54
        $region53: #{custom-call.35} parent=49 // pred_region
          // Predicated region
          $region55: #{custom-call.35} parent=53 // pred_check
            _
          $region56: #{custom-call.35} parent=53 // pred_check_branch
            %221 = sbr.rel target = $region58
          $region57: #{custom-call.35} parent=53 // pred_region
            // Predicated region
            $region70: #{custom-call.35} parent=57 // pred_check
              _
            $region71: #{custom-call.35} parent=57 // pred_check_branch
              %237 = sbr.rel (0) target = $region73
            $region72: #{custom-call.35} parent=57 // pred_region
              %s239 = ssub.s32 16, 1
              loop: start=0, step=1, limit=1
              $region74: #{custom-call.35} parent=72 // loop_pre_header
                _
              $region75: #{custom-call.35} parent=72 // loop_header
                %s241 = sphi 0, %s245
                %p242 = scmp.ge.s32.totalorder %s241, 1
                %s246 = sphi %s210, %s210
                %s247 = sphi %s217, %s217
              $region76: #{custom-call.35} parent=72 // loop_header_branch
                %244 = sbr.rel (%p242) target = $region80
              $region77: #{custom-call.35} parent=72 // loop_body
                %v248 = vld [vmem:[%s246] sm:%s239]
                %249 = vst [vmem:[%s247] sm:%s239] %v248
              $region78: #{custom-call.35} parent=72 // loop_footer
                %s245 = sadd.s32 1, %s241
              $region79: #{custom-call.35} parent=72 // loop_footer_branch
                %240 = sbr.rel target = $region75
              $region80: #{custom-call.35} parent=72 // loop_exit
                _
            $region73: #{custom-call.35} parent=57 // pred_fallthru
              _
          $region58: #{custom-call.35} parent=53 // pred_fallthru
            _
          // Predicated region
          $region59: #{custom-call.35} parent=53 // pred_check
            _
          $region60: #{custom-call.35} parent=53 // pred_check_branch
            %223 = sbr.rel (0) target = $region62
          $region61: #{custom-call.35} parent=53 // pred_region
            %s225 = ssub.s32 16, 1
            loop: start=0, step=1, limit=1
            $region63: #{custom-call.35} parent=61 // loop_pre_header
              _
            $region64: #{custom-call.35} parent=61 // loop_header
              %s227 = sphi 0, %s231
              %p228 = scmp.ge.s32.totalorder %s227, 1
              %s232 = sphi %s210, %s210
              %s233 = sphi %s217, %s217
            $region65: #{custom-call.35} parent=61 // loop_header_branch
              %230 = sbr.rel (%p228) target = $region69
            $region66: #{custom-call.35} parent=61 // loop_body
              %v234 = vld [vmem:[%s232] sm:%s225]
              %235 = vst [vmem:[%s233] sm:%s225] %v234
            $region67: #{custom-call.35} parent=61 // loop_footer
              %s231 = sadd.s32 1, %s227
            $region68: #{custom-call.35} parent=61 // loop_footer_branch
              %226 = sbr.rel target = $region64
            $region69: #{custom-call.35} parent=61 // loop_exit
              _
          $region62: #{custom-call.35} parent=53 // pred_fallthru
            _
        $region54: #{custom-call.35} parent=49 // pred_fallthru
          _
        %250 = vnop
      $region50: #{custom-call.35} parent=5 // pred_fallthru
        _
      %p251 = scmp.le.s32.totalorder 2, %s3
      // Predicated region
      $region81: #{custom-call.35} parent=5 // pred_check
        %p252 = pneg %p251
      $region82: #{custom-call.35} parent=5 // pred_check_branch
        %254 = sbr.rel (%p252) target = $region84
      $region83: #{custom-call.35} parent=5 // pred_region
        %s255 = ssub.s32 %s3, 2
        %s256 = sand.u32 %s9, 1
        %s257 = sand.u32 %s9, 1
        %s258 = smul.addr %s257, 4
        %s259 = scalar_lea.vmem [#allocation3], %s258
      $region84: #{custom-call.35} parent=5 // pred_fallthru
        _
    $region6: #{custom-call.35} parent=1 // loop_footer
      %s7 = sadd.s32 1, %s3
    $region7: #{custom-call.35} parent=1 // loop_footer_branch
      %2 = sbr.rel target = $region3
    $region8: #{custom-call.35} parent=1 // loop_exit
      _

// kernel: custom-call.34
$region0: #{custom-call.34}
  %s0 = inlined_call_operand.vmem [shape: f32[2,8,1,3,3], index: 0, kind: input, shape index: {}]
  %s1 = inlined_call_operand.vmem [shape: f32[2,8,1,3,3], index: 1, kind: output, shape index: {}]
  $region1: #{custom-call.34} parent=0
    #allocation0 [shape = 'u8[4096]{0}', space=vmem, size = 0x1000, scoped, tag = 'operand span for operand 0']
    #allocation1 [shape = 'u8[4096]{0}', space=vmem, size = 0x1000, scoped, tag = 'packed  for operand 0']
    #allocation2 [shape = 'u8[4096]{0}', space=vmem, size = 0x1000, scoped, tag = 'operand span for operand 1']
    #allocation3 [shape = 'u8[4096]{0}', space=vmem, size = 0x1000, scoped, tag = 'packed  for operand 1']
    loop: start=0, step=1, limit=18
    $region2: #{custom-call.34} parent=1 // loop_pre_header
      _
    $region3: #{custom-call.34} parent=1 // loop_header
      %s3 = sphi 0, %s7
      %p4 = scmp.ge.s32.totalorder %s3, 18
      %s10 = sphi 0, %s43
      %s11 = sphi 0, %s39
      %s12 = sphi 0, %s35
      %s13 = sphi 0, %s31
      %s14 = sphi 0, %s27
      %s15 = sphi 0, %s10
      %s16 = sphi 0, %s11
      %s17 = sphi 0, %s12
      %s18 = sphi 0, %s13
      %s19 = sphi 0, %s14
      %s20 = sphi 0, %s15
      %s21 = sphi 0, %s16
      %s22 = sphi 0, %s17
      %s23 = sphi 0, %s18
      %s24 = sphi 0, %s19
    $region4: #{custom-call.34} parent=1 // loop_header_branch
      %6 = sbr.rel (%p4) target = $region8
    $region5: #{custom-call.34} parent=1 // loop_body
      %s8 = ssub.s32 %s3, 1
      %s9 = ssub.s32 %s3, 2
      %s25 = sadd.s32 1, %s14
      %p26 = scmp.ge.s32.totalorder %s25, 1
      %s27 = scalar_select %p26, 0, %s25
      %s28 = sadd.s32 1, %s13
      %s29 = scalar_select %p26, %s28, %s13
      %p30 = scmp.ge.s32.totalorder %s29, 1
      %s31 = scalar_select %p30, 0, %s29
      %s32 = sadd.s32 1, %s12
      %s33 = scalar_select %p30, %s32, %s12
      %p34 = scmp.ge.s32.totalorder %s33, 1
      %s35 = scalar_select %p34, 0, %s33
      %s36 = sadd.s32 1, %s11
      %s37 = scalar_select %p34, %s36, %s11
      %p38 = scmp.ge.s32.totalorder %s37, 8
      %s39 = scalar_select %p38, 0, %s37
      %s40 = sadd.s32 1, %s10
      %s41 = scalar_select %p38, %s40, %s10
      %p42 = scmp.ge.s32.totalorder %s41, 2
      %s43 = scalar_select %p42, 0, %s41
      %p44 = scmp.le.s32.totalorder 1, %s3
      %p45 = scmp.lt.s32.totalorder %s3, 17
      %p46 = pnand %p44, %p45
      %p47 = pneg %p46
      // Predicated region
      $region9: #{custom-call.34} parent=5 // pred_check
        _
      $region10: #{custom-call.34} parent=5 // pred_check_branch
        %49 = sbr.rel (%p46) target = $region12
      $region11: #{custom-call.34} parent=5 // pred_region
        %s50 = ssub.s32 %s3, 1
      $region12: #{custom-call.34} parent=5 // pred_fallthru
        _
      %p51 = scmp.lt.s32.totalorder %s3, 16
      // Predicated region
      $region13: #{custom-call.34} parent=5 // pred_check
        %p52 = pneg %p51
      $region14: #{custom-call.34} parent=5 // pred_check_branch
        %54 = sbr.rel (%p52) target = $region16
      $region15: #{custom-call.34} parent=5 // pred_region
        %s55 = sand.u32 %s3, 1
        %s56 = sand.u32 %s3, 1
        %s57 = smul.addr %s56, 4
        %s58 = scalar_lea.vmem [#allocation1], %s57
        %s59 = sadd.s32 %s14, %s13
        %s60 = sadd.s32 %s59, %s12
        %s61 = sadd.s32 %s60, %s11
        %s62 = smul.addr %s10, 8
        %s63 = sadd.s32 %s61, %s62
        %s64 = smul.addr %s63, 4
        %s65 = scalar_lea.vmem %s0, %s64
        // Predicated region
        $region17: #{custom-call.34} parent=15 // pred_check
          _
        $region18: #{custom-call.34} parent=15 // pred_check_branch
          %67 = sbr.rel (0) target = $region20
        $region19: #{custom-call.34} parent=15 // pred_region
          // Predicated region
          $region21: #{custom-call.34} parent=19 // pred_check
            _
          $region22: #{custom-call.34} parent=19 // pred_check_branch
            %69 = sbr.rel target = $region24
          $region23: #{custom-call.34} parent=19 // pred_region
            // Predicated region
            $region36: #{custom-call.34} parent=23 // pred_check
              _
            $region37: #{custom-call.34} parent=23 // pred_check_branch
              %85 = sbr.rel (0) target = $region39
            $region38: #{custom-call.34} parent=23 // pred_region
              %s87 = ssub.s32 16, 1
              loop: start=0, step=1, limit=1
              $region40: #{custom-call.34} parent=38 // loop_pre_header
                _
              $region41: #{custom-call.34} parent=38 // loop_header
                %s89 = sphi 0, %s93
                %p90 = scmp.ge.s32.totalorder %s89, 1
                %s94 = sphi %s65, %s65
                %s95 = sphi %s58, %s58
              $region42: #{custom-call.34} parent=38 // loop_header_branch
                %92 = sbr.rel (%p90) target = $region46
              $region43: #{custom-call.34} parent=38 // loop_body
                %v96 = vld [vmem:[%s94] sm:%s87]
                %97 = vst [vmem:[%s95] sm:%s87] %v96
              $region44: #{custom-call.34} parent=38 // loop_footer
                %s93 = sadd.s32 1, %s89
              $region45: #{custom-call.34} parent=38 // loop_footer_branch
                %88 = sbr.rel target = $region41
              $region46: #{custom-call.34} parent=38 // loop_exit
                _
            $region39: #{custom-call.34} parent=23 // pred_fallthru
              _
          $region24: #{custom-call.34} parent=19 // pred_fallthru
            _
          // Predicated region
          $region25: #{custom-call.34} parent=19 // pred_check
            _
          $region26: #{custom-call.34} parent=19 // pred_check_branch
            %71 = sbr.rel (0) target = $region28
          $region27: #{custom-call.34} parent=19 // pred_region
            %s73 = ssub.s32 16, 1
            loop: start=0, step=1, limit=1
            $region29: #{custom-call.34} parent=27 // loop_pre_header
              _
            $region30: #{custom-call.34} parent=27 // loop_header
              %s75 = sphi 0, %s79
              %p76 = scmp.ge.s32.totalorder %s75, 1
              %s80 = sphi %s65, %s65
              %s81 = sphi %s58, %s58
            $region31: #{custom-call.34} parent=27 // loop_header_branch
              %78 = sbr.rel (%p76) target = $region35
            $region32: #{custom-call.34} parent=27 // loop_body
              %v82 = vld [vmem:[%s80] sm:%s73]
              %83 = vst [vmem:[%s81] sm:%s73] %v82
            $region33: #{custom-call.34} parent=27 // loop_footer
              %s79 = sadd.s32 1, %s75
            $region34: #{custom-call.34} parent=27 // loop_footer_branch
              %74 = sbr.rel target = $region30
            $region35: #{custom-call.34} parent=27 // loop_exit
              _
          $region28: #{custom-call.34} parent=19 // pred_fallthru
            _
        $region20: #{custom-call.34} parent=15 // pred_fallthru
          _
        %98 = vnop
      $region16: #{custom-call.34} parent=5 // pred_fallthru
        _
      %p99 = scmp.le.s32.totalorder 1, %s3
      %p100 = scmp.lt.s32.totalorder %s3, 17
      %p101 = pnand %p99, %p100
      %p102 = pneg %p101
      // Predicated region
      $region47: #{custom-call.34} parent=5 // pred_check
        _
      $region48: #{custom-call.34} parent=5 // pred_check_branch
        %104 = sbr.rel (%p101) target = $region50
      $region49: #{custom-call.34} parent=5 // pred_region
        #allocation4 [shape = 'f32[3,3]{1,0}', space=vmem, size = 0x1000, scoped, tag = 'rescaled input a']
        %s105 = ssub.s32 %s3, 1
        %s106 = sand.u32 %s8, 1
        %s107 = sand.u32 %s8, 1
        %s108 = smul.addr %s107, 4
        %s109 = scalar_lea.vmem [#allocation1], %s108
        %s110 = sand.u32 %s8, 1
        %s111 = sand.u32 %s8, 1
        %s112 = smul.addr %s111, 4
        %s113 = scalar_lea.vmem [#allocation1], %s112
        %s114 = sand.u32 %s8, 1
        %s115 = sand.u32 %s8, 1
        %s116 = smul.addr %s115, 4
        %s117 = scalar_lea.vmem [#allocation3], %s116
        %s119 = ssub.s32 16, 1
        %v120 = vld [vmem:[%s113] sm:%s119]
        %121 = vst [vmem:[#allocation0] sm:%s119] %v120
        %v122 = vlaneseq
        %v123 = vand.u32 %v122, 127
        %vm124 = vcmp.lt.s32.totalorder %v123, 3
        %v125 = vlaneseq
        %v126 = vshrl.u32 %v125, 7
        %vm128 = vcmp.eq.s32.totalorder %v126, %v123
        %v129 = vld [vmem:[#allocation0] sm:$0xff]
        %v130 = vsel %vm128, %v129, 0.0
        %131 = vadd.xlane.f32.xlu0 %v130
        %v132 = vpop.xlane.xlu0 %131
        %vm133 = vcmp.le.s32.totalorder %v126, %v123
        %vm134 = vmand %vm133, %vm124
        %v135 = vsel %vm134, %v129, 0.0
        %v136 = vrcp.pop %v132
        %v137 = vmul.f32 %v132, %v136
        %v138 = vsub.f32 1.0, %v137
        %v139 = vmul.f32 %v136, %v138
        %v140 = vadd.f32 %v136, %v139
        %vm141 = vweird.f32 %v132
        %vm142 = vweird.f32 %v136
        %vm143 = vmor %vm141, %vm142
        %v144 = vsel %vm143, %v136, %v140
        %v145 = vand.u32 2147483647, %v132
        %vm146 = vcmp.eq.f32.partialorder %v145, 8.507059e+37
        %v147 = vand.u32 %v132, 2147483648
        %v148 = vor.u32 1.1754944e-38, %v147
        %v149 = vsel %vm146, %v148, %v144
        %v150 = vmul.f32 %v135, %v149
        %151 = vst [vmem:[#allocation4] sm:$0xff] %v150
        %v152 = vlaneseq
        %v153 = vand.u32 %v152, 127
        %v154 = vlaneseq
        %v155 = vshrl.u32 %v154, 7
        %vm157 = vcmp.eq.s32.totalorder %v153, %v155
        %v158 = vlaneseq
        %v159 = vand.u32 %v158, 127
        %vm160 = vcmp.eq.s32.totalorder %v159, 2
        %v161 = vsel %vm160, 1.0, -1.0
        %v162 = vsel %vm157, %v161, 0.0
        %s163 = scalar_lea.vmem [#allocation4], 1
        %v164 = vld [vmem:[%s163] ss:$0 sm:$0xff]
        %v165 = vxor.u32 %v164, 2147483648
        %v166 = vlaneseq
        %v167 = vand.u32 %v166, 127
        %vm168 = vcmp.eq.s32.totalorder %v167, 1
        %v169 = vmul.f32 %v165, %v162
        %170 = vadd.xlane.f32.xlu0 %v169
        %v171 = vpop.xlane.xlu0 %170
        %v172 = vsel %vm168, %v171, %v162
        %v173 = vld [vmem:[#allocation4] ss:$0 sm:$0xff]
        %v174 = vxor.u32 %v173, 2147483648
        %v175 = vlaneseq
        %v176 = vand.u32 %v175, 127
        %vm177 = vcmp.eq.s32.totalorder %v176, 0
        %v178 = vmul.f32 %v174, %v172
        %179 = vadd.xlane.f32.xlu0 %v178
        %v180 = vpop.xlane.xlu0 %179
        %v181 = vsel %vm177, %v180, %v172
        %v182 = vrcp.pop %v132
        %v183 = vmul.f32 %v132, %v182
        %v184 = vsub.f32 1.0, %v183
        %v185 = vmul.f32 %v182, %v184
        %v186 = vadd.f32 %v182, %v185
        %vm187 = vweird.f32 %v132
        %vm188 = vweird.f32 %v182
        %vm189 = vmor %vm187, %vm188
        %v190 = vsel %vm189, %v182, %v186
        %v191 = vand.u32 2147483647, %v132
        %vm192 = vcmp.eq.f32.partialorder %v191, 8.507059e+37
        %v193 = vand.u32 %v132, 2147483648
        %v194 = vor.u32 1.1754944e-38, %v193
        %v195 = vsel %vm192, %v194, %v190
        %v196 = vmul.f32 %v181, %v195
        %vm197 = vweird.f32 %v132
        %v198 = vsel %vm197, %v181, %v196
        %199 = vst [vmem:[#allocation2] sm:$0xff] %v198
        %s201 = ssub.s32 16, 1
        %v202 = vld [vmem:[#allocation2] sm:%s201]
        %s204 = ssub.s32 16, 1
        %205 = vst [vmem:[%s117] sm:%s204] %v202
        %s206 = sand.u32 %s8, 1
        %s207 = sand.u32 %s8, 1
        %s208 = smul.addr %s207, 4
        %s209 = scalar_lea.vmem [#allocation3], %s208
        %s210 = sadd.s32 %s19, %s18
        %s211 = sadd.s32 %s210, %s17
        %s212 = sadd.s32 %s211, %s16
        %s213 = smul.addr %s15, 8
        %s214 = sadd.s32 %s212, %s213
        %s215 = smul.addr %s214, 4
        %s216 = scalar_lea.vmem %s1, %s215
        // Predicated region
        $region51: #{custom-call.34} parent=49 // pred_check
          _
        $region52: #{custom-call.34} parent=49 // pred_check_branch
          %218 = sbr.rel (0) target = $region54
        $region53: #{custom-call.34} parent=49 // pred_region
          // Predicated region
          $region55: #{custom-call.34} parent=53 // pred_check
            _
          $region56: #{custom-call.34} parent=53 // pred_check_branch
            %220 = sbr.rel target = $region58
          $region57: #{custom-call.34} parent=53 // pred_region
            // Predicated region
            $region70: #{custom-call.34} parent=57 // pred_check
              _
            $region71: #{custom-call.34} parent=57 // pred_check_branch
              %236 = sbr.rel (0) target = $region73
            $region72: #{custom-call.34} parent=57 // pred_region
              %s238 = ssub.s32 16, 1
              loop: start=0, step=1, limit=1
              $region74: #{custom-call.34} parent=72 // loop_pre_header
                _
              $region75: #{custom-call.34} parent=72 // loop_header
                %s240 = sphi 0, %s244
                %p241 = scmp.ge.s32.totalorder %s240, 1
                %s245 = sphi %s209, %s209
                %s246 = sphi %s216, %s216
              $region76: #{custom-call.34} parent=72 // loop_header_branch
                %243 = sbr.rel (%p241) target = $region80
              $region77: #{custom-call.34} parent=72 // loop_body
                %v247 = vld [vmem:[%s245] sm:%s238]
                %248 = vst [vmem:[%s246] sm:%s238] %v247
              $region78: #{custom-call.34} parent=72 // loop_footer
                %s244 = sadd.s32 1, %s240
              $region79: #{custom-call.34} parent=72 // loop_footer_branch
                %239 = sbr.rel target = $region75
              $region80: #{custom-call.34} parent=72 // loop_exit
                _
            $region73: #{custom-call.34} parent=57 // pred_fallthru
              _
          $region58: #{custom-call.34} parent=53 // pred_fallthru
            _
          // Predicated region
          $region59: #{custom-call.34} parent=53 // pred_check
            _
          $region60: #{custom-call.34} parent=53 // pred_check_branch
            %222 = sbr.rel (0) target = $region62
          $region61: #{custom-call.34} parent=53 // pred_region
            %s224 = ssub.s32 16, 1
            loop: start=0, step=1, limit=1
            $region63: #{custom-call.34} parent=61 // loop_pre_header
              _
            $region64: #{custom-call.34} parent=61 // loop_header
              %s226 = sphi 0, %s230
              %p227 = scmp.ge.s32.totalorder %s226, 1
              %s231 = sphi %s209, %s209
              %s232 = sphi %s216, %s216
            $region65: #{custom-call.34} parent=61 // loop_header_branch
              %229 = sbr.rel (%p227) target = $region69
            $region66: #{custom-call.34} parent=61 // loop_body
              %v233 = vld [vmem:[%s231] sm:%s224]
              %234 = vst [vmem:[%s232] sm:%s224] %v233
            $region67: #{custom-call.34} parent=61 // loop_footer
              %s230 = sadd.s32 1, %s226
            $region68: #{custom-call.34} parent=61 // loop_footer_branch
              %225 = sbr.rel target = $region64
            $region69: #{custom-call.34} parent=61 // loop_exit
              _
          $region62: #{custom-call.34} parent=53 // pred_fallthru
            _
        $region54: #{custom-call.34} parent=49 // pred_fallthru
          _
        %249 = vnop
      $region50: #{custom-call.34} parent=5 // pred_fallthru
        _
      %p250 = scmp.le.s32.totalorder 2, %s3
      // Predicated region
      $region81: #{custom-call.34} parent=5 // pred_check
        %p251 = pneg %p250
      $region82: #{custom-call.34} parent=5 // pred_check_branch
        %253 = sbr.rel (%p251) target = $region84
      $region83: #{custom-call.34} parent=5 // pred_region
        %s254 = ssub.s32 %s3, 2
        %s255 = sand.u32 %s9, 1
        %s256 = sand.u32 %s9, 1
        %s257 = smul.addr %s256, 4
        %s258 = scalar_lea.vmem [#allocation3], %s257
      $region84: #{custom-call.34} parent=5 // pred_fallthru
        _
    $region6: #{custom-call.34} parent=1 // loop_footer
      %s7 = sadd.s32 1, %s3
    $region7: #{custom-call.34} parent=1 // loop_footer_branch
      %2 = sbr.rel target = $region3
    $region8: #{custom-call.34} parent=1 // loop_exit
      _

// kernel: custom-call.79
$region0: #{custom-call.79}
  %s0 = inlined_call_operand.vmem [shape: f32[2,6,3], index: 0, kind: input, shape index: {}]
  %s1 = inlined_call_operand.vmem [shape: f32[2,6,3], index: 1, kind: output, shape index: {0}]
  %s2 = inlined_call_operand.vmem [shape: f32[2,3], index: 2, kind: output, shape index: {1}]
  %3 = xla_tuple %s1, %s2
  $region1: #{custom-call.79} parent=0
    #allocation0 [shape = 'u8[8192]{0}', space=vmem, size = 0x2000, scoped, tag = 'operand span for operand 0']
    #allocation1 [shape = 'u8[8192]{0}', space=vmem, size = 0x2000, scoped, tag = 'operand span for operand 1']
    #allocation2 [shape = 'u8[4096]{0}', space=vmem, size = 0x1000, scoped, tag = 'operand span for operand 2']
    #allocation3 [shape = 'u8[2048]{0}', space=vmem, size = 0x800, scoped, tag = 'packed  for operand 2']
    loop: start=0, step=1, limit=4
    $region2: #{custom-call.79} parent=1 // loop_pre_header
      _
    $region3: #{custom-call.79} parent=1 // loop_header
      %s5 = sphi 0, %s9
      %p6 = scmp.ge.s32.totalorder %s5, 4
      %s12 = sphi 0, %s31
      %s13 = sphi 0, %s27
      %s14 = sphi 0, %s23
      %s15 = sphi 0, %s12
      %s16 = sphi 0, %s13
      %s17 = sphi 0, %s14
      %s18 = sphi 0, %s15
      %s19 = sphi 0, %s16
      %s20 = sphi 0, %s17
      %s46 = sphi 0, %s48
      %s49 = sphi 0, %s46
      %s50 = sphi 0, %s49
      %s66 = sphi 0, %s50
    $region4: #{custom-call.79} parent=1 // loop_header_branch
      %8 = sbr.rel (%p6) target = $region8
    $region5: #{custom-call.79} parent=1 // loop_body
      %s10 = ssub.s32 %s5, 1
      %s11 = ssub.s32 %s5, 2
      %s21 = sadd.s32 1, %s14
      %p22 = scmp.ge.s32.totalorder %s21, 1
      %s23 = scalar_select %p22, 0, %s21
      %s24 = sadd.s32 1, %s13
      %s25 = scalar_select %p22, %s24, %s13
      %p26 = scmp.ge.s32.totalorder %s25, 1
      %s27 = scalar_select %p26, 0, %s25
      %s28 = sadd.s32 1, %s12
      %s29 = scalar_select %p26, %s28, %s12
      %p30 = scmp.ge.s32.totalorder %s29, 2
      %s31 = scalar_select %p30, 0, %s29
      %p32 = scmp.lt.s32.totalorder %s12, 0
      %s33 = ssub.s32 0, %s12
      %s34 = scalar_select %p32, %s33, %s12
      %s35 = sshrl.u32 %s34, 3
      %s36 = ssub.s32 0, %s35
      %s37 = scalar_select %p32, %s36, %s35
      %p38 = scmp.lt.s32.totalorder %s31, 0
      %s39 = ssub.s32 0, %s31
      %s40 = scalar_select %p38, %s39, %s31
      %s41 = sshrl.u32 %s40, 3
      %s42 = ssub.s32 0, %s41
      %s43 = scalar_select %p38, %s42, %s41
      %s44 = ssub.s32 %s37, %s43
      %p45 = scmp.eq.s32.totalorder %s44, 0
      %s47 = sadd.s32 %s46, 1
      %s48 = scalar_select %p45, %s46, %s47
      %p51 = pneg %p45
      %p52 = scmp.eq.s32.totalorder %s5, 1
      %p53 = por %p51, %p52
      %p54 = scmp.ne.s32.totalorder %s46, %s49
      %p55 = scmp.eq.s32.totalorder %s5, 0
      %p56 = por %p54, %p55
      %p57 = scmp.ne.s32.totalorder %s46, %s49
      %p58 = scmp.eq.s32.totalorder %s10, 1
      %p59 = por %p57, %p58
      %p60 = scmp.ne.s32.totalorder %s49, %s50
      %p61 = scmp.eq.s32.totalorder %s10, 0
      %p62 = por %p60, %p61
      %p63 = scmp.ne.s32.totalorder %s49, %s50
      %p64 = scmp.eq.s32.totalorder %s11, 1
      %p65 = por %p63, %p64
      %p67 = scmp.ne.s32.totalorder %s50, %s66
      %p68 = scmp.eq.s32.totalorder %s11, 0
      %p69 = por %p67, %p68
      %p70 = scmp.le.s32.totalorder 1, %s5
      %p71 = scmp.lt.s32.totalorder %s5, 3
      %p72 = pnand %p70, %p71
      %p73 = pneg %p72
      // Predicated region
      $region9: #{custom-call.79} parent=5 // pred_check
        _
      $region10: #{custom-call.79} parent=5 // pred_check_branch
        %75 = sbr.rel (%p72) target = $region12
      $region11: #{custom-call.79} parent=5 // pred_region
        %s76 = ssub.s32 %s5, 1
      $region12: #{custom-call.79} parent=5 // pred_fallthru
        _
      %p77 = scmp.lt.s32.totalorder %s5, 2
      // Predicated region
      $region13: #{custom-call.79} parent=5 // pred_check
        %p78 = pneg %p77
      $region14: #{custom-call.79} parent=5 // pred_check_branch
        %80 = sbr.rel (%p78) target = $region16
      $region15: #{custom-call.79} parent=5 // pred_region
        %s81 = sand.u32 %s5, 1
        %s82 = sand.u32 %s5, 1
        %s83 = smul.addr %s82, 8
        %s84 = scalar_lea.vmem [#allocation0], %s83
        %s85 = sadd.s32 %s14, %s13
        %s86 = sadd.s32 %s85, %s12
        %s87 = smul.addr %s86, 8
        %s88 = scalar_lea.vmem %s0, %s87
        // Predicated region
        $region17: #{custom-call.79} parent=15 // pred_check
          _
        $region18: #{custom-call.79} parent=15 // pred_check_branch
          %90 = sbr.rel (0) target = $region20
        $region19: #{custom-call.79} parent=15 // pred_region
          // Predicated region
          $region21: #{custom-call.79} parent=19 // pred_check
            _
          $region22: #{custom-call.79} parent=19 // pred_check_branch
            %92 = sbr.rel (0) target = $region24
          $region23: #{custom-call.79} parent=19 // pred_region
            // Predicated region
            $region36: #{custom-call.79} parent=23 // pred_check
              _
            $region37: #{custom-call.79} parent=23 // pred_check_branch
              %108 = sbr.rel (0) target = $region39
            $region38: #{custom-call.79} parent=23 // pred_region
              loop: start=0, step=1, limit=1
              $region40: #{custom-call.79} parent=38 // loop_pre_header
                _
              $region41: #{custom-call.79} parent=38 // loop_header
                %s110 = sphi 0, %s114
                %p111 = scmp.ge.s32.totalorder %s110, 1
                %s115 = sphi %s88, %s88
                %s116 = sphi %s84, %s84
              $region42: #{custom-call.79} parent=38 // loop_header_branch
                %113 = sbr.rel (%p111) target = $region46
              $region43: #{custom-call.79} parent=38 // loop_body
                %v117 = vld [vmem:[%s115] sm:$0xff]
                %118 = vst [vmem:[%s116] sm:$0xff] %v117
              $region44: #{custom-call.79} parent=38 // loop_footer
                %s114 = sadd.s32 1, %s110
              $region45: #{custom-call.79} parent=38 // loop_footer_branch
                %109 = sbr.rel target = $region41
              $region46: #{custom-call.79} parent=38 // loop_exit
                _
            $region39: #{custom-call.79} parent=23 // pred_fallthru
              _
            // Predicated region
            $region47: #{custom-call.79} parent=23 // pred_check
              _
            $region48: #{custom-call.79} parent=23 // pred_check_branch
              %120 = sbr.rel target = $region50
            $region49: #{custom-call.79} parent=23 // pred_region
              _
            $region50: #{custom-call.79} parent=23 // pred_fallthru
              _
          $region24: #{custom-call.79} parent=19 // pred_fallthru
            _
          // Predicated region
          $region25: #{custom-call.79} parent=19 // pred_check
            _
          $region26: #{custom-call.79} parent=19 // pred_check_branch
            %94 = sbr.rel target = $region28
          $region27: #{custom-call.79} parent=19 // pred_region
            %s96 = ssub.s32 256, 1
            loop: start=0, step=1, limit=1
            $region29: #{custom-call.79} parent=27 // loop_pre_header
              _
            $region30: #{custom-call.79} parent=27 // loop_header
              %s98 = sphi 0, %s102
              %p99 = scmp.ge.s32.totalorder %s98, 1
              %s103 = sphi %s88, %s88
              %s104 = sphi %s84, %s84
            $region31: #{custom-call.79} parent=27 // loop_header_branch
              %101 = sbr.rel (%p99) target = $region35
            $region32: #{custom-call.79} parent=27 // loop_body
              %v105 = vld [vmem:[%s103] sm:%s96]
              %106 = vst [vmem:[%s104] sm:%s96] %v105
            $region33: #{custom-call.79} parent=27 // loop_footer
              %s102 = sadd.s32 1, %s98
            $region34: #{custom-call.79} parent=27 // loop_footer_branch
              %97 = sbr.rel target = $region30
            $region35: #{custom-call.79} parent=27 // loop_exit
              _
          $region28: #{custom-call.79} parent=19 // pred_fallthru
            _
        $region20: #{custom-call.79} parent=15 // pred_fallthru
          _
        %121 = vnop
      $region16: #{custom-call.79} parent=5 // pred_fallthru
        _
      %p122 = scmp.le.s32.totalorder 1, %s5
      %p123 = scmp.lt.s32.totalorder %s5, 3
      %p124 = pnand %p122, %p123
      %p125 = pneg %p124
      // Predicated region
      $region51: #{custom-call.79} parent=5 // pred_check
        _
      $region52: #{custom-call.79} parent=5 // pred_check_branch
        %127 = sbr.rel (%p124) target = $region54
      $region53: #{custom-call.79} parent=5 // pred_region
        #allocation4 [shape = 'f32[6,128]{1,0}', space=vmem, size = 0x1000, scoped, tag = 'scratch for Householder reflectors']
        %s128 = ssub.s32 %s5, 1
        %s129 = sand.u32 %s10, 1
        %s130 = sand.u32 %s10, 1
        %s131 = smul.addr %s130, 8
        %s132 = scalar_lea.vmem [#allocation0], %s131
        %s133 = sand.u32 %s10, 1
        %s134 = sand.u32 %s10, 1
        %s135 = smul.addr %s134, 8
        %s136 = scalar_lea.vmem [#allocation0], %s135
        %s137 = sand.u32 %s10, 1
        %s138 = sand.u32 %s10, 1
        %s139 = smul.addr %s138, 8
        %s140 = scalar_lea.vmem [#allocation1], %s139
        %p141 = pneg %p62
        %p142 = pneg %p59
        %s143 = sand.u32 %s49, 1
        %s144 = sand.u32 %s49, 1
        %s145 = smul.addr %s144, 2
        %s146 = scalar_lea.vmem [#allocation3], %s145
        %p147 = scmp.lt.s32.totalorder %s15, 0
        %s148 = ssub.s32 0, %s15
        %s149 = scalar_select %p147, %s148, %s15
        %s150 = sshrl.u32 %s149, 3
        %s151 = ssub.s32 0, %s150
        %s152 = scalar_select %p147, %s151, %s150
        %s153 = sand.u32 %s15, 7
        %s154 = scalar_lea.vmem [#allocation2], %s153
        %v155 = vld [vmem:[%s132] sm:$0xff]
        %156 = vst [vmem:[%s140] sm:$0xff] %v155
        %157 = vst [vmem:[%s154] sm:$0x1] 0.0
        loop: start=0, step=1, limit=3
        $region55: #{custom-call.79} parent=53 // loop_pre_header
          _
        $region56: #{custom-call.79} parent=53 // loop_header
          %s159 = sphi 0, %s163
          %p160 = scmp.ge.s32.totalorder %s159, 3
        $region57: #{custom-call.79} parent=53 // loop_header_branch
          %162 = sbr.rel (%p160) target = $region61
        $region58: #{custom-call.79} parent=53 // loop_body
          %v164 = vld [vmem:[%s140] sm:$0xff]
          %v165 = vlaneseq
          %v166 = vshrl.u32 %v165, 7
          %v168 = vstv %s159
          %vm169 = vcmp.gt.s32.totalorder %v166, %v168
          %vm170 = vcmp.lt.s32.totalorder %v166, 6
          %vm171 = vmand %vm169, %vm170
          %v172 = vsel %vm171, %v164, 0.0
          %v173 = vmul.f32 %v172, %v172
          %v174 = vrot.slane %v173, 4
          %v175 = vadd.f32 %v173, %v174
          %v176 = vrot.slane %v175, 2
          %v177 = vadd.f32 %v175, %v176
          %v178 = vrot.slane %v177, 1
          %v179 = vadd.f32 %v177, %v178
          %v180 = vrsqrt.pop %v179
          %v181 = vmul.f32 %v180, %v179
          %v182 = vmul.f32 %v181, %v180
          %v183 = vmul.f32 0.5, %v182
          %v184 = vsub.f32 1.5, %v183
          %v185 = vmul.f32 %v180, %v184
          %v186 = vmul.f32 %v179, %v185
          %vm187 = vcmp.eq.f32.partialorder %v179, inf
          %v188 = vsel %vm187, %v179, %v186
          %vm189 = vcmp.eq.f32.partialorder %v179, 0.0
          %v190 = vand.u32 %v179, 2147483648
          %v191 = vsel %vm189, %v190, %v188
          %vm192 = vcmp.eq.f32.partialorder %v179, 0.0
          %s193 = sshrl.u32 %s159, 3
          %s194 = sand.u32 %s159, 7
          %s195 = smul.addr %s193, 8
          %s196 = sadd.s32 %s194, %s195
          %s197 = scalar_lea.vmem %s140, %s196 [#allocation1]
          %v198 = vld [vmem:[%s197] ss:$0 sm:$0xff]
          %v199 = vand.u32 2147483647, %v198
          %v200 = vmax.f32 %v199, 0.0
          %v201 = vand.u32 2147483647, %v191
          %v202 = vmax.f32 %v200, %v201
          %v203 = vrcp.pop %v202
          %v204 = vmul.f32 %v202, %v203
          %v205 = vsub.f32 1.0, %v204
          %v206 = vmul.f32 %v203, %v205
          %v207 = vadd.f32 %v203, %v206
          %vm208 = vweird.f32 %v202
          %vm209 = vweird.f32 %v203
          %vm210 = vmor %vm208, %vm209
          %v211 = vsel %vm210, %v203, %v207
          %v212 = vand.u32 2147483647, %v202
          %vm213 = vcmp.eq.f32.partialorder %v212, 8.507059e+37
          %v214 = vand.u32 %v202, 2147483648
          %v215 = vor.u32 1.1754944e-38, %v214
          %v216 = vsel %vm213, %v215, %v211
          %v217 = vmul.f32 %v199, %v216
          %v218 = vmul.f32 %v217, %v217
          %v219 = vrcp.pop %v202
          %v220 = vmul.f32 %v202, %v219
          %v221 = vsub.f32 1.0, %v220
          %v222 = vmul.f32 %v219, %v221
          %v223 = vadd.f32 %v219, %v222
          %vm224 = vweird.f32 %v202
          %vm225 = vweird.f32 %v219
          %vm226 = vmor %vm224, %vm225
          %v227 = vsel %vm226, %v219, %v223
          %v228 = vand.u32 2147483647, %v202
          %vm229 = vcmp.eq.f32.partialorder %v228, 8.507059e+37
          %v230 = vand.u32 %v202, 2147483648
          %v231 = vor.u32 1.1754944e-38, %v230
          %v232 = vsel %vm229, %v231, %v227
          %v233 = vmul.f32 0.0, %v232
          %v234 = vmul.f32 %v233, %v233
          %v235 = vadd.f32 %v218, %v234
          %v236 = vrcp.pop %v202
          %v237 = vmul.f32 %v202, %v236
          %v238 = vsub.f32 1.0, %v237
          %v239 = vmul.f32 %v236, %v238
          %v240 = vadd.f32 %v236, %v239
          %vm241 = vweird.f32 %v202
          %vm242 = vweird.f32 %v236
          %vm243 = vmor %vm241, %vm242
          %v244 = vsel %vm243, %v236, %v240
          %v245 = vand.u32 2147483647, %v202
          %vm246 = vcmp.eq.f32.partialorder %v245, 8.507059e+37
          %v247 = vand.u32 %v202, 2147483648
          %v248 = vor.u32 1.1754944e-38, %v247
          %v249 = vsel %vm246, %v248, %v244
          %v250 = vmul.f32 %v201, %v249
          %v251 = vmul.f32 %v250, %v250
          %v252 = vadd.f32 %v235, %v251
          %vm253 = vcmp.eq.f32.partialorder %v202, 0.0
          %v254 = vrsqrt.pop %v252
          %v255 = vmul.f32 %v254, %v252
          %v256 = vmul.f32 %v255, %v254
          %v257 = vmul.f32 0.5, %v256
          %v258 = vsub.f32 1.5, %v257
          %v259 = vmul.f32 %v254, %v258
          %v260 = vmul.f32 %v252, %v259
          %vm261 = vcmp.eq.f32.partialorder %v252, inf
          %v262 = vsel %vm261, %v252, %v260
          %vm263 = vcmp.eq.f32.partialorder %v252, 0.0
          %v264 = vand.u32 %v252, 2147483648
          %v265 = vsel %vm263, %v264, %v262
          %v266 = vmul.f32 %v202, %v265
          %v267 = vsel %vm253, 0.0, %v266
          %vm268 = vcmp.lt.f32.partialorder %v198, 0.0
          %v269 = vxor.u32 %v267, 2147483648
          %v270 = vsel %vm268, %v267, %v269
          %v271 = vsub.f32 %v270, %v198
          %v272 = vrcp.pop %v270
          %v273 = vmul.f32 %v270, %v272
          %v274 = vsub.f32 1.0, %v273
          %v275 = vmul.f32 %v272, %v274
          %v276 = vadd.f32 %v272, %v275
          %vm277 = vweird.f32 %v270
          %vm278 = vweird.f32 %v272
          %vm279 = vmor %vm277, %vm278
          %v280 = vsel %vm279, %v272, %v276
          %v281 = vand.u32 2147483647, %v270
          %vm282 = vcmp.eq.f32.partialorder %v281, 8.507059e+37
          %v283 = vand.u32 %v270, 2147483648
          %v284 = vor.u32 1.1754944e-38, %v283
          %v285 = vsel %vm282, %v284, %v280
          %v286 = vmul.f32 %v271, %v285
          %v287 = vsel %vm192, %v198, %v270
          %v288 = vsel %vm192, 0.0, %v286
          %v289 = vsub.f32 %v198, %v287
          %s290 = smov %s140
          %v291 = vlaneseq
          %v292 = vshrl.u32 %v291, 7
          %v293 = vmov %v292
          %v294 = vld [vmem:[%s290] sm:$0xff]
          %v296 = vstv %s159
          %vm297 = vcmp.gt.s32.totalorder %v293, %v296
          %vm298 = vcmp.lt.s32.totalorder %v293, 6
          %vm299 = vmand %vm297, %vm298
          %v300 = vsel %vm299, %v294, 0.0
          %v301 = vrcp.pop %v289
          %v302 = vmul.f32 %v289, %v301
          %v303 = vsub.f32 1.0, %v302
          %v304 = vmul.f32 %v301, %v303
          %v305 = vadd.f32 %v301, %v304
          %vm306 = vweird.f32 %v289
          %vm307 = vweird.f32 %v301
          %vm308 = vmor %vm306, %vm307
          %v309 = vsel %vm308, %v301, %v305
          %v310 = vand.u32 2147483647, %v289
          %vm311 = vcmp.eq.f32.partialorder %v310, 8.507059e+37
          %v312 = vand.u32 %v289, 2147483648
          %v313 = vor.u32 1.1754944e-38, %v312
          %v314 = vsel %vm311, %v313, %v309
          %v315 = vmul.f32 %v300, %v314
          %v316 = vsel %vm192, 0.0, %v315
          %v317 = vstv %s159
          %v318 = vlaneseq
          %v319 = vand.u32 %v318, 127
          %vm320 = vcmp.eq.s32.totalorder %v319, %v317
          %v321 = vsel %vm320, %v316, 0.0
          %322 = vadd.xlane.f32.xlu0 %v321
          %v323 = vpop.xlane.xlu0 %322
          %324 = vst [vmem:[#allocation4] sm:$0xff] %v323
          %s325 = scalar_lea.vmem [#allocation4], %s159
          %326 = vst [vmem:[%s325] sm:$0x1] 1.0
          %v327 = vstv %s159
          %v328 = vlaneseq
          %v329 = vand.u32 %v328, 127
          %vm330 = vcmp.eq.s32.totalorder %v329, %v327
          %v331 = vsel %vm330, %v288, 0.0
          %332 = vadd.xlane.f32.xlu0 %v331
          %v333 = vpop.xlane.xlu0 %332
          %v334 = vstv %s159
          %v335 = vlaneseq
          %v336 = vand.u32 %v335, 127
          %vm337 = vcmp.eq.s32.totalorder %v336, %v334
          %v338 = vld [vmem:[%s154] ss:$0 sm:$0xff]
          %v339 = vsel %vm337, %v333, %v338
          %340 = vst [vmem:[%s154] sm:$0x1] %v339
          %s341 = smov %s140
          %s342 = smov [#allocation4]
          %v343 = vlaneseq
          %v344 = vshrl.u32 %v343, 7
          %v345 = vmov %v344
          %v347 = vld [vmem:[%s342] sm:$0xff]
          %v348 = vld [vmem:[%s341] sm:$0xff]
          %v349 = vmul.f32 %v347, %v348
          %vm350 = vcmp.lt.s32.totalorder %v345, 6
          %v351 = vsel %vm350, %v349, 0.0
          %v352 = vrot.slane %v351, 4
          %v353 = vadd.f32 %v351, %v352
          %v354 = vrot.slane %v353, 2
          %v355 = vadd.f32 %v353, %v354
          %v356 = vrot.slane %v355, 1
          %v357 = vadd.f32 %v355, %v356
          %s358 = smov %s341
          %s359 = smov %s342
          %v360 = vlaneseq
          %v361 = vshrl.u32 %v360, 7
          %v362 = vmov %v361
          %v363 = vmul.f32 %v357, %v333
          %v365 = vlaneseq
          %v366 = vand.u32 %v365, 127
          %v367 = vld [vmem:[%s359] sm:$0xff]
          %v368 = vmul.f32 %v367, %v363
          %v369 = vld [vmem:[%s358] sm:$0xff]
          %v370 = vstv %s159
          %vm371 = vcmp.gt.s32.totalorder %v366, %v370
          %v372 = vsub.f32 %v369, %v368
          %v373 = vsel %vm371, %v372, %v369
          %v374 = vstv %s159
          %v375 = vlaneseq
          %v376 = vand.u32 %v375, 127
          %vm377 = vcmp.eq.s32.totalorder %v376, %v374
          %v378 = vstv %s159
          %vm379 = vcmp.ge.s32.totalorder %v362, %v378
          %vm380 = vmand %vm377, %vm379
          %v381 = vsel %vm380, %v367, %v373
          %382 = vst [vmem:[%s358] sm:$0xff] %v381
          %s383 = scalar_lea.vmem %s358, %s159
          %v384 = vld [vmem:[%s383] ss:$0 sm:$0xff]
          %v385 = vstv %s159
          %v386 = vlaneseq
          %v387 = vand.u32 %v386, 127
          %vm388 = vcmp.eq.s32.totalorder %v387, %v385
          %v389 = vsel %vm388, %v287, %v384
          %390 = vst [vmem:[%s383] sm:$0x1] %v389
        $region59: #{custom-call.79} parent=53 // loop_footer
          %s163 = sadd.s32 1, %s159
        $region60: #{custom-call.79} parent=53 // loop_footer_branch
          %158 = sbr.rel target = $region56
        $region61: #{custom-call.79} parent=53 // loop_exit
          _
        %s392 = ssub.s32 4, 1
        %v393 = vld [vmem:[#allocation2] sm:%s392]
        %s395 = ssub.s32 4, 1
        %396 = vst [vmem:[%s146] sm:%s395] %v393
        %s397 = sand.u32 %s10, 1
        %s398 = sand.u32 %s10, 1
        %s399 = smul.addr %s398, 8
        %s400 = scalar_lea.vmem [#allocation1], %s399
        %s401 = sand.u32 %s49, 1
        %s402 = sand.u32 %s49, 1
        %s403 = smul.addr %s402, 2
        %s404 = scalar_lea.vmem [#allocation3], %s403
        %s405 = sadd.s32 %s17, %s16
        %s406 = sadd.s32 %s405, %s15
        %s407 = smul.addr %s406, 8
        %s408 = scalar_lea.vmem %s1, %s407
        // Predicated region
        $region62: #{custom-call.79} parent=53 // pred_check
          _
        $region63: #{custom-call.79} parent=53 // pred_check_branch
          %410 = sbr.rel (0) target = $region65
        $region64: #{custom-call.79} parent=53 // pred_region
          // Predicated region
          $region66: #{custom-call.79} parent=64 // pred_check
            _
          $region67: #{custom-call.79} parent=64 // pred_check_branch
            %412 = sbr.rel (0) target = $region69
          $region68: #{custom-call.79} parent=64 // pred_region
            // Predicated region
            $region81: #{custom-call.79} parent=68 // pred_check
              _
            $region82: #{custom-call.79} parent=68 // pred_check_branch
              %428 = sbr.rel (0) target = $region84
            $region83: #{custom-call.79} parent=68 // pred_region
              loop: start=0, step=1, limit=1
              $region85: #{custom-call.79} parent=83 // loop_pre_header
                _
              $region86: #{custom-call.79} parent=83 // loop_header
                %s430 = sphi 0, %s434
                %p431 = scmp.ge.s32.totalorder %s430, 1
                %s435 = sphi %s400, %s400
                %s436 = sphi %s408, %s408
              $region87: #{custom-call.79} parent=83 // loop_header_branch
                %433 = sbr.rel (%p431) target = $region91
              $region88: #{custom-call.79} parent=83 // loop_body
                %v437 = vld [vmem:[%s435] sm:$0xff]
                %438 = vst [vmem:[%s436] sm:$0xff] %v437
              $region89: #{custom-call.79} parent=83 // loop_footer
                %s434 = sadd.s32 1, %s430
              $region90: #{custom-call.79} parent=83 // loop_footer_branch
                %429 = sbr.rel target = $region86
              $region91: #{custom-call.79} parent=83 // loop_exit
                _
            $region84: #{custom-call.79} parent=68 // pred_fallthru
              _
            // Predicated region
            $region92: #{custom-call.79} parent=68 // pred_check
              _
            $region93: #{custom-call.79} parent=68 // pred_check_branch
              %440 = sbr.rel target = $region95
            $region94: #{custom-call.79} parent=68 // pred_region
              _
            $region95: #{custom-call.79} parent=68 // pred_fallthru
              _
          $region69: #{custom-call.79} parent=64 // pred_fallthru
            _
          // Predicated region
          $region70: #{custom-call.79} parent=64 // pred_check
            _
          $region71: #{custom-call.79} parent=64 // pred_check_branch
            %414 = sbr.rel target = $region73
          $region72: #{custom-call.79} parent=64 // pred_region
            %s416 = ssub.s32 256, 1
            loop: start=0, step=1, limit=1
            $region74: #{custom-call.79} parent=72 // loop_pre_header
              _
            $region75: #{custom-call.79} parent=72 // loop_header
              %s418 = sphi 0, %s422
              %p419 = scmp.ge.s32.totalorder %s418, 1
              %s423 = sphi %s400, %s400
              %s424 = sphi %s408, %s408
            $region76: #{custom-call.79} parent=72 // loop_header_branch
              %421 = sbr.rel (%p419) target = $region80
            $region77: #{custom-call.79} parent=72 // loop_body
              %v425 = vld [vmem:[%s423] sm:%s416]
              %426 = vst [vmem:[%s424] sm:%s416] %v425
            $region78: #{custom-call.79} parent=72 // loop_footer
              %s422 = sadd.s32 1, %s418
            $region79: #{custom-call.79} parent=72 // loop_footer_branch
              %417 = sbr.rel target = $region75
            $region80: #{custom-call.79} parent=72 // loop_exit
              _
          $region73: #{custom-call.79} parent=64 // pred_fallthru
            _
        $region65: #{custom-call.79} parent=53 // pred_fallthru
          _
        %441 = vnop
        // Predicated region
        $region96: #{custom-call.79} parent=53 // pred_check
          %p442 = pneg %p59
        $region97: #{custom-call.79} parent=53 // pred_check_branch
          %444 = sbr.rel (%p442) target = $region99
        $region98: #{custom-call.79} parent=53 // pred_region
          %p445 = scmp.lt.s32.totalorder %s15, 0
          %s446 = ssub.s32 0, %s15
          %s447 = scalar_select %p445, %s446, %s15
          %s448 = sshrl.u32 %s447, 3
          %s449 = ssub.s32 0, %s448
          %s450 = scalar_select %p445, %s449, %s448
          %s451 = smul.addr %s450, 2
          %s452 = scalar_lea.vmem %s2, %s451
          // Predicated region
          $region100: #{custom-call.79} parent=98 // pred_check
            _
          $region101: #{custom-call.79} parent=98 // pred_check_branch
            %454 = sbr.rel (0) target = $region103
          $region102: #{custom-call.79} parent=98 // pred_region
            // Predicated region
            $region104: #{custom-call.79} parent=102 // pred_check
              _
            $region105: #{custom-call.79} parent=102 // pred_check_branch
              %456 = sbr.rel target = $region107
            $region106: #{custom-call.79} parent=102 // pred_region
              // Predicated region
              $region119: #{custom-call.79} parent=106 // pred_check
                _
              $region120: #{custom-call.79} parent=106 // pred_check_branch
                %472 = sbr.rel (0) target = $region122
              $region121: #{custom-call.79} parent=106 // pred_region
                %s474 = ssub.s32 4, 1
                loop: start=0, step=1, limit=1
                $region123: #{custom-call.79} parent=121 // loop_pre_header
                  _
                $region124: #{custom-call.79} parent=121 // loop_header
                  %s476 = sphi 0, %s480
                  %p477 = scmp.ge.s32.totalorder %s476, 1
                  %s481 = sphi %s404, %s404
                  %s482 = sphi %s452, %s452
                $region125: #{custom-call.79} parent=121 // loop_header_branch
                  %479 = sbr.rel (%p477) target = $region129
                $region126: #{custom-call.79} parent=121 // loop_body
                  %v483 = vld [vmem:[%s481] sm:%s474]
                  %484 = vst [vmem:[%s482] sm:%s474] %v483
                $region127: #{custom-call.79} parent=121 // loop_footer
                  %s480 = sadd.s32 1, %s476
                $region128: #{custom-call.79} parent=121 // loop_footer_branch
                  %475 = sbr.rel target = $region124
                $region129: #{custom-call.79} parent=121 // loop_exit
                  _
              $region122: #{custom-call.79} parent=106 // pred_fallthru
                _
            $region107: #{custom-call.79} parent=102 // pred_fallthru
              _
            // Predicated region
            $region108: #{custom-call.79} parent=102 // pred_check
              _
            $region109: #{custom-call.79} parent=102 // pred_check_branch
              %458 = sbr.rel (0) target = $region111
            $region110: #{custom-call.79} parent=102 // pred_region
              %s460 = ssub.s32 4, 1
              loop: start=0, step=1, limit=1
              $region112: #{custom-call.79} parent=110 // loop_pre_header
                _
              $region113: #{custom-call.79} parent=110 // loop_header
                %s462 = sphi 0, %s466
                %p463 = scmp.ge.s32.totalorder %s462, 1
                %s467 = sphi %s404, %s404
                %s468 = sphi %s452, %s452
              $region114: #{custom-call.79} parent=110 // loop_header_branch
                %465 = sbr.rel (%p463) target = $region118
              $region115: #{custom-call.79} parent=110 // loop_body
                %v469 = vld [vmem:[%s467] sm:%s460]
                %470 = vst [vmem:[%s468] sm:%s460] %v469
              $region116: #{custom-call.79} parent=110 // loop_footer
                %s466 = sadd.s32 1, %s462
              $region117: #{custom-call.79} parent=110 // loop_footer_branch
                %461 = sbr.rel target = $region113
              $region118: #{custom-call.79} parent=110 // loop_exit
                _
            $region111: #{custom-call.79} parent=102 // pred_fallthru
              _
          $region103: #{custom-call.79} parent=98 // pred_fallthru
            _
          %485 = vnop
        $region99: #{custom-call.79} parent=53 // pred_fallthru
          _
      $region54: #{custom-call.79} parent=5 // pred_fallthru
        _
      %p486 = scmp.le.s32.totalorder 2, %s5
      // Predicated region
      $region130: #{custom-call.79} parent=5 // pred_check
        %p487 = pneg %p486
      $region131: #{custom-call.79} parent=5 // pred_check_branch
        %489 = sbr.rel (%p487) target = $region133
      $region132: #{custom-call.79} parent=5 // pred_region
        %s490 = ssub.s32 %s5, 2
        %s491 = sand.u32 %s11, 1
        %s492 = sand.u32 %s11, 1
        %s493 = smul.addr %s492, 8
        %s494 = scalar_lea.vmem [#allocation1], %s493
        // Predicated region
        $region134: #{custom-call.79} parent=132 // pred_check
          %p495 = pneg %p65
        $region135: #{custom-call.79} parent=132 // pred_check_branch
          %497 = sbr.rel (%p495) target = $region137
        $region136: #{custom-call.79} parent=132 // pred_region
          %s498 = sand.u32 %s50, 1
          %s499 = sand.u32 %s50, 1
          %s500 = smul.addr %s499, 2
          %s501 = scalar_lea.vmem [#allocation3], %s500
        $region137: #{custom-call.79} parent=132 // pred_fallthru
          _
      $region133: #{custom-call.79} parent=5 // pred_fallthru
        _
    $region6: #{custom-call.79} parent=1 // loop_footer
      %s9 = sadd.s32 1, %s5
    $region7: #{custom-call.79} parent=1 // loop_footer_branch
      %4 = sbr.rel target = $region3
    $region8: #{custom-call.79} parent=1 // loop_exit
      _

// kernel: custom-call.80
$region0: #{custom-call.80}
  %s0 = inlined_call_operand.vmem [shape: f32[2,3,3], index: 0, kind: input, shape index: {}]
  %s1 = inlined_call_operand.vmem [shape: f32[2,3,3], index: 1, kind: output, shape index: {}]
  $region1: #{custom-call.80} parent=0
    #allocation0 [shape = 'u8[4096]{0}', space=vmem, size = 0x1000, scoped, tag = 'operand span for operand 0']
    #allocation1 [shape = 'u8[4096]{0}', space=vmem, size = 0x1000, scoped, tag = 'packed  for operand 0']
    #allocation2 [shape = 'u8[4096]{0}', space=vmem, size = 0x1000, scoped, tag = 'operand span for operand 1']
    #allocation3 [shape = 'u8[4096]{0}', space=vmem, size = 0x1000, scoped, tag = 'packed  for operand 1']
    loop: start=0, step=1, limit=4
    $region2: #{custom-call.80} parent=1 // loop_pre_header
      _
    $region3: #{custom-call.80} parent=1 // loop_header
      %s3 = sphi 0, %s7
      %p4 = scmp.ge.s32.totalorder %s3, 4
    $region4: #{custom-call.80} parent=1 // loop_header_branch
      %6 = sbr.rel (%p4) target = $region8
    $region5: #{custom-call.80} parent=1 // loop_body
      %s8 = ssub.s32 %s3, 1
      %s9 = ssub.s32 %s3, 2
      %s10 = sadd.s32 %s3, 1
      %p11 = scmp.le.s32.totalorder 1, %s3
      %p12 = scmp.lt.s32.totalorder %s3, 3
      %p13 = pnand %p11, %p12
      %p14 = pneg %p13
      // Predicated region
      $region9: #{custom-call.80} parent=5 // pred_check
        _
      $region10: #{custom-call.80} parent=5 // pred_check_branch
        %16 = sbr.rel (%p13) target = $region12
      $region11: #{custom-call.80} parent=5 // pred_region
        %s17 = ssub.s32 %s3, 1
      $region12: #{custom-call.80} parent=5 // pred_fallthru
        _
      %p18 = scmp.lt.s32.totalorder %s3, 2
      // Predicated region
      $region13: #{custom-call.80} parent=5 // pred_check
        %p19 = pneg %p18
      $region14: #{custom-call.80} parent=5 // pred_check_branch
        %21 = sbr.rel (%p19) target = $region16
      $region15: #{custom-call.80} parent=5 // pred_region
        %s22 = sand.u32 %s3, 1
        %s23 = sand.u32 %s3, 1
        %s24 = smul.addr %s23, 4
        %s25 = scalar_lea.vmem [#allocation1], %s24
        %s26 = smul.addr %s3, 4
        %s27 = scalar_lea.vmem %s0, %s26
        // Predicated region
        $region17: #{custom-call.80} parent=15 // pred_check
          _
        $region18: #{custom-call.80} parent=15 // pred_check_branch
          %29 = sbr.rel (0) target = $region20
        $region19: #{custom-call.80} parent=15 // pred_region
          // Predicated region
          $region21: #{custom-call.80} parent=19 // pred_check
            _
          $region22: #{custom-call.80} parent=19 // pred_check_branch
            %31 = sbr.rel target = $region24
          $region23: #{custom-call.80} parent=19 // pred_region
            // Predicated region
            $region36: #{custom-call.80} parent=23 // pred_check
              _
            $region37: #{custom-call.80} parent=23 // pred_check_branch
              %47 = sbr.rel (0) target = $region39
            $region38: #{custom-call.80} parent=23 // pred_region
              %s49 = ssub.s32 16, 1
              loop: start=0, step=1, limit=1
              $region40: #{custom-call.80} parent=38 // loop_pre_header
                _
              $region41: #{custom-call.80} parent=38 // loop_header
                %s51 = sphi 0, %s55
                %p52 = scmp.ge.s32.totalorder %s51, 1
                %s56 = sphi %s27, %s27
                %s57 = sphi %s25, %s25
              $region42: #{custom-call.80} parent=38 // loop_header_branch
                %54 = sbr.rel (%p52) target = $region46
              $region43: #{custom-call.80} parent=38 // loop_body
                %v58 = vld [vmem:[%s56] sm:%s49]
                %59 = vst [vmem:[%s57] sm:%s49] %v58
              $region44: #{custom-call.80} parent=38 // loop_footer
                %s55 = sadd.s32 1, %s51
              $region45: #{custom-call.80} parent=38 // loop_footer_branch
                %50 = sbr.rel target = $region41
              $region46: #{custom-call.80} parent=38 // loop_exit
                _
            $region39: #{custom-call.80} parent=23 // pred_fallthru
              _
          $region24: #{custom-call.80} parent=19 // pred_fallthru
            _
          // Predicated region
          $region25: #{custom-call.80} parent=19 // pred_check
            _
          $region26: #{custom-call.80} parent=19 // pred_check_branch
            %33 = sbr.rel (0) target = $region28
          $region27: #{custom-call.80} parent=19 // pred_region
            %s35 = ssub.s32 16, 1
            loop: start=0, step=1, limit=1
            $region29: #{custom-call.80} parent=27 // loop_pre_header
              _
            $region30: #{custom-call.80} parent=27 // loop_header
              %s37 = sphi 0, %s41
              %p38 = scmp.ge.s32.totalorder %s37, 1
              %s42 = sphi %s27, %s27
              %s43 = sphi %s25, %s25
            $region31: #{custom-call.80} parent=27 // loop_header_branch
              %40 = sbr.rel (%p38) target = $region35
            $region32: #{custom-call.80} parent=27 // loop_body
              %v44 = vld [vmem:[%s42] sm:%s35]
              %45 = vst [vmem:[%s43] sm:%s35] %v44
            $region33: #{custom-call.80} parent=27 // loop_footer
              %s41 = sadd.s32 1, %s37
            $region34: #{custom-call.80} parent=27 // loop_footer_branch
              %36 = sbr.rel target = $region30
            $region35: #{custom-call.80} parent=27 // loop_exit
              _
          $region28: #{custom-call.80} parent=19 // pred_fallthru
            _
        $region20: #{custom-call.80} parent=15 // pred_fallthru
          _
        %60 = vnop
      $region16: #{custom-call.80} parent=5 // pred_fallthru
        _
      %p61 = scmp.le.s32.totalorder 1, %s3
      %p62 = scmp.lt.s32.totalorder %s3, 3
      %p63 = pnand %p61, %p62
      %p64 = pneg %p63
      // Predicated region
      $region47: #{custom-call.80} parent=5 // pred_check
        _
      $region48: #{custom-call.80} parent=5 // pred_check_branch
        %66 = sbr.rel (%p63) target = $region50
      $region49: #{custom-call.80} parent=5 // pred_region
        %s67 = ssub.s32 %s3, 1
        %s68 = sand.u32 %s8, 1
        %s69 = sand.u32 %s8, 1
        %s70 = smul.addr %s69, 4
        %s71 = scalar_lea.vmem [#allocation1], %s70
        %s72 = sand.u32 %s8, 1
        %s73 = sand.u32 %s8, 1
        %s74 = smul.addr %s73, 4
        %s75 = scalar_lea.vmem [#allocation1], %s74
        %s76 = sand.u32 %s8, 1
        %s77 = sand.u32 %s8, 1
        %s78 = smul.addr %s77, 4
        %s79 = scalar_lea.vmem [#allocation3], %s78
        %s81 = ssub.s32 16, 1
        %v82 = vld [vmem:[%s75] sm:%s81]
        %83 = vst [vmem:[#allocation0] sm:%s81] %v82
        %v84 = vlaneseq
        %v85 = vand.u32 %v84, 127
        %v86 = vlaneseq
        %v87 = vshrl.u32 %v86, 7
        %vm89 = vcmp.eq.s32.totalorder %v85, %v87
        %v90 = vld [vmem:[#allocation0] sm:$0xff]
        %v91 = vlaneseq
        %v92 = vand.u32 %v91, 127
        %vm93 = vcmp.eq.s32.totalorder %v92, 0
        %v94 = vsel %vm93, %v90, 1.0
        %v95 = vsel %vm89, %v94, 0.0
        %s96 = scalar_lea.vmem [#allocation0], 1
        %v97 = vld [vmem:[%s96] ss:$0 sm:$0xff]
        %vm98 = vcmask 23552
        %v99 = vsel %vm98, %v97, 0.0
        %v100 = vlaneseq
        %v101 = vand.u32 %v100, 127
        %vm102 = vcmp.eq.s32.totalorder %v101, 1
        %v103 = vmul.f32 %v99, %v95
        %104 = vadd.xlane.f32.xlu0 %v103
        %v105 = vpop.xlane.xlu0 %104
        %v106 = vsel %vm102, %v105, %v95
        %s107 = scalar_lea.vmem [#allocation0], 2
        %v108 = vld [vmem:[%s107] ss:$0 sm:$0xff]
        %vm109 = vcmask 23552
        %v110 = vsel %vm109, %v108, 0.0
        %v111 = vlaneseq
        %v112 = vand.u32 %v111, 127
        %vm113 = vcmp.eq.s32.totalorder %v112, 2
        %v114 = vmul.f32 %v110, %v106
        %115 = vadd.xlane.f32.xlu0 %v114
        %v116 = vpop.xlane.xlu0 %115
        %v117 = vsel %vm113, %v116, %v106
        %118 = vst [vmem:[#allocation2] sm:$0xff] %v117
        %s120 = ssub.s32 16, 1
        %v121 = vld [vmem:[#allocation2] sm:%s120]
        %s123 = ssub.s32 16, 1
        %124 = vst [vmem:[%s79] sm:%s123] %v121
        %s125 = sand.u32 %s8, 1
        %s126 = sand.u32 %s8, 1
        %s127 = smul.addr %s126, 4
        %s128 = scalar_lea.vmem [#allocation3], %s127
        %s129 = smul.addr %s8, 4
        %s130 = scalar_lea.vmem %s1, %s129
        // Predicated region
        $region51: #{custom-call.80} parent=49 // pred_check
          _
        $region52: #{custom-call.80} parent=49 // pred_check_branch
          %132 = sbr.rel (0) target = $region54
        $region53: #{custom-call.80} parent=49 // pred_region
          // Predicated region
          $region55: #{custom-call.80} parent=53 // pred_check
            _
          $region56: #{custom-call.80} parent=53 // pred_check_branch
            %134 = sbr.rel target = $region58
          $region57: #{custom-call.80} parent=53 // pred_region
            // Predicated region
            $region70: #{custom-call.80} parent=57 // pred_check
              _
            $region71: #{custom-call.80} parent=57 // pred_check_branch
              %150 = sbr.rel (0) target = $region73
            $region72: #{custom-call.80} parent=57 // pred_region
              %s152 = ssub.s32 16, 1
              loop: start=0, step=1, limit=1
              $region74: #{custom-call.80} parent=72 // loop_pre_header
                _
              $region75: #{custom-call.80} parent=72 // loop_header
                %s154 = sphi 0, %s158
                %p155 = scmp.ge.s32.totalorder %s154, 1
                %s159 = sphi %s128, %s128
                %s160 = sphi %s130, %s130
              $region76: #{custom-call.80} parent=72 // loop_header_branch
                %157 = sbr.rel (%p155) target = $region80
              $region77: #{custom-call.80} parent=72 // loop_body
                %v161 = vld [vmem:[%s159] sm:%s152]
                %162 = vst [vmem:[%s160] sm:%s152] %v161
              $region78: #{custom-call.80} parent=72 // loop_footer
                %s158 = sadd.s32 1, %s154
              $region79: #{custom-call.80} parent=72 // loop_footer_branch
                %153 = sbr.rel target = $region75
              $region80: #{custom-call.80} parent=72 // loop_exit
                _
            $region73: #{custom-call.80} parent=57 // pred_fallthru
              _
          $region58: #{custom-call.80} parent=53 // pred_fallthru
            _
          // Predicated region
          $region59: #{custom-call.80} parent=53 // pred_check
            _
          $region60: #{custom-call.80} parent=53 // pred_check_branch
            %136 = sbr.rel (0) target = $region62
          $region61: #{custom-call.80} parent=53 // pred_region
            %s138 = ssub.s32 16, 1
            loop: start=0, step=1, limit=1
            $region63: #{custom-call.80} parent=61 // loop_pre_header
              _
            $region64: #{custom-call.80} parent=61 // loop_header
              %s140 = sphi 0, %s144
              %p141 = scmp.ge.s32.totalorder %s140, 1
              %s145 = sphi %s128, %s128
              %s146 = sphi %s130, %s130
            $region65: #{custom-call.80} parent=61 // loop_header_branch
              %143 = sbr.rel (%p141) target = $region69
            $region66: #{custom-call.80} parent=61 // loop_body
              %v147 = vld [vmem:[%s145] sm:%s138]
              %148 = vst [vmem:[%s146] sm:%s138] %v147
            $region67: #{custom-call.80} parent=61 // loop_footer
              %s144 = sadd.s32 1, %s140
            $region68: #{custom-call.80} parent=61 // loop_footer_branch
              %139 = sbr.rel target = $region64
            $region69: #{custom-call.80} parent=61 // loop_exit
              _
          $region62: #{custom-call.80} parent=53 // pred_fallthru
            _
        $region54: #{custom-call.80} parent=49 // pred_fallthru
          _
        %163 = vnop
      $region50: #{custom-call.80} parent=5 // pred_fallthru
        _
      %p164 = scmp.le.s32.totalorder 2, %s3
      // Predicated region
      $region81: #{custom-call.80} parent=5 // pred_check
        %p165 = pneg %p164
      $region82: #{custom-call.80} parent=5 // pred_check_branch
        %167 = sbr.rel (%p165) target = $region84
      $region83: #{custom-call.80} parent=5 // pred_region
        %s168 = ssub.s32 %s3, 2
        %s169 = sand.u32 %s9, 1
        %s170 = sand.u32 %s9, 1
        %s171 = smul.addr %s170, 4
        %s172 = scalar_lea.vmem [#allocation3], %s171
      $region84: #{custom-call.80} parent=5 // pred_fallthru
        _
    $region6: #{custom-call.80} parent=1 // loop_footer
      %s7 = sadd.s32 1, %s3
    $region7: #{custom-call.80} parent=1 // loop_footer_branch
      %2 = sbr.rel target = $region3
    $region8: #{custom-call.80} parent=1 // loop_exit
      _

// kernel: custom-call.72
$region0: #{custom-call.72}
  %s0 = inlined_call_operand.hbm [shape: pred[2], index: 0, kind: output, shape index: {}]

// kernel: custom-call.77
$region0: #{custom-call.77}
  %s0 = inlined_call_operand.vmem [shape: f32[2,3,3], index: 0, kind: input, shape index: {}]
  %s1 = inlined_call_operand.vmem [shape: f32[2,3,3], index: 1, kind: output, shape index: {}]
  $region1: #{custom-call.77} parent=0
    #allocation0 [shape = 'u8[4096]{0}', space=vmem, size = 0x1000, scoped, tag = 'operand span for operand 0']
    #allocation1 [shape = 'u8[4096]{0}', space=vmem, size = 0x1000, scoped, tag = 'packed  for operand 0']
    #allocation2 [shape = 'u8[4096]{0}', space=vmem, size = 0x1000, scoped, tag = 'operand span for operand 1']
    #allocation3 [shape = 'u8[4096]{0}', space=vmem, size = 0x1000, scoped, tag = 'packed  for operand 1']
    loop: start=0, step=1, limit=4
    $region2: #{custom-call.77} parent=1 // loop_pre_header
      _
    $region3: #{custom-call.77} parent=1 // loop_header
      %s3 = sphi 0, %s7
      %p4 = scmp.ge.s32.totalorder %s3, 4
      %s10 = sphi 0, %s29
      %s11 = sphi 0, %s25
      %s12 = sphi 0, %s21
      %s13 = sphi 0, %s10
      %s14 = sphi 0, %s11
      %s15 = sphi 0, %s12
      %s16 = sphi 0, %s13
      %s17 = sphi 0, %s14
      %s18 = sphi 0, %s15
    $region4: #{custom-call.77} parent=1 // loop_header_branch
      %6 = sbr.rel (%p4) target = $region8
    $region5: #{custom-call.77} parent=1 // loop_body
      %s8 = ssub.s32 %s3, 1
      %s9 = ssub.s32 %s3, 2
      %s19 = sadd.s32 1, %s12
      %p20 = scmp.ge.s32.totalorder %s19, 1
      %s21 = scalar_select %p20, 0, %s19
      %s22 = sadd.s32 1, %s11
      %s23 = scalar_select %p20, %s22, %s11
      %p24 = scmp.ge.s32.totalorder %s23, 1
      %s25 = scalar_select %p24, 0, %s23
      %s26 = sadd.s32 1, %s10
      %s27 = scalar_select %p24, %s26, %s10
      %p28 = scmp.ge.s32.totalorder %s27, 2
      %s29 = scalar_select %p28, 0, %s27
      %p30 = scmp.le.s32.totalorder 1, %s3
      %p31 = scmp.lt.s32.totalorder %s3, 3
      %p32 = pnand %p30, %p31
      %p33 = pneg %p32
      // Predicated region
      $region9: #{custom-call.77} parent=5 // pred_check
        _
      $region10: #{custom-call.77} parent=5 // pred_check_branch
        %35 = sbr.rel (%p32) target = $region12
      $region11: #{custom-call.77} parent=5 // pred_region
        %s36 = ssub.s32 %s3, 1
      $region12: #{custom-call.77} parent=5 // pred_fallthru
        _
      %p37 = scmp.lt.s32.totalorder %s3, 2
      // Predicated region
      $region13: #{custom-call.77} parent=5 // pred_check
        %p38 = pneg %p37
      $region14: #{custom-call.77} parent=5 // pred_check_branch
        %40 = sbr.rel (%p38) target = $region16
      $region15: #{custom-call.77} parent=5 // pred_region
        %s41 = sand.u32 %s3, 1
        %s42 = sand.u32 %s3, 1
        %s43 = smul.addr %s42, 4
        %s44 = scalar_lea.vmem [#allocation1], %s43
        %s45 = sadd.s32 %s12, %s11
        %s46 = sadd.s32 %s45, %s10
        %s47 = smul.addr %s46, 4
        %s48 = scalar_lea.vmem %s0, %s47
        // Predicated region
        $region17: #{custom-call.77} parent=15 // pred_check
          _
        $region18: #{custom-call.77} parent=15 // pred_check_branch
          %50 = sbr.rel (0) target = $region20
        $region19: #{custom-call.77} parent=15 // pred_region
          // Predicated region
          $region21: #{custom-call.77} parent=19 // pred_check
            _
          $region22: #{custom-call.77} parent=19 // pred_check_branch
            %52 = sbr.rel target = $region24
          $region23: #{custom-call.77} parent=19 // pred_region
            // Predicated region
            $region36: #{custom-call.77} parent=23 // pred_check
              _
            $region37: #{custom-call.77} parent=23 // pred_check_branch
              %68 = sbr.rel (0) target = $region39
            $region38: #{custom-call.77} parent=23 // pred_region
              %s70 = ssub.s32 16, 1
              loop: start=0, step=1, limit=1
              $region40: #{custom-call.77} parent=38 // loop_pre_header
                _
              $region41: #{custom-call.77} parent=38 // loop_header
                %s72 = sphi 0, %s76
                %p73 = scmp.ge.s32.totalorder %s72, 1
                %s77 = sphi %s48, %s48
                %s78 = sphi %s44, %s44
              $region42: #{custom-call.77} parent=38 // loop_header_branch
                %75 = sbr.rel (%p73) target = $region46
              $region43: #{custom-call.77} parent=38 // loop_body
                %v79 = vld [vmem:[%s77] sm:%s70]
                %80 = vst [vmem:[%s78] sm:%s70] %v79
              $region44: #{custom-call.77} parent=38 // loop_footer
                %s76 = sadd.s32 1, %s72
              $region45: #{custom-call.77} parent=38 // loop_footer_branch
                %71 = sbr.rel target = $region41
              $region46: #{custom-call.77} parent=38 // loop_exit
                _
            $region39: #{custom-call.77} parent=23 // pred_fallthru
              _
          $region24: #{custom-call.77} parent=19 // pred_fallthru
            _
          // Predicated region
          $region25: #{custom-call.77} parent=19 // pred_check
            _
          $region26: #{custom-call.77} parent=19 // pred_check_branch
            %54 = sbr.rel (0) target = $region28
          $region27: #{custom-call.77} parent=19 // pred_region
            %s56 = ssub.s32 16, 1
            loop: start=0, step=1, limit=1
            $region29: #{custom-call.77} parent=27 // loop_pre_header
              _
            $region30: #{custom-call.77} parent=27 // loop_header
              %s58 = sphi 0, %s62
              %p59 = scmp.ge.s32.totalorder %s58, 1
              %s63 = sphi %s48, %s48
              %s64 = sphi %s44, %s44
            $region31: #{custom-call.77} parent=27 // loop_header_branch
              %61 = sbr.rel (%p59) target = $region35
            $region32: #{custom-call.77} parent=27 // loop_body
              %v65 = vld [vmem:[%s63] sm:%s56]
              %66 = vst [vmem:[%s64] sm:%s56] %v65
            $region33: #{custom-call.77} parent=27 // loop_footer
              %s62 = sadd.s32 1, %s58
            $region34: #{custom-call.77} parent=27 // loop_footer_branch
              %57 = sbr.rel target = $region30
            $region35: #{custom-call.77} parent=27 // loop_exit
              _
          $region28: #{custom-call.77} parent=19 // pred_fallthru
            _
        $region20: #{custom-call.77} parent=15 // pred_fallthru
          _
        %81 = vnop
      $region16: #{custom-call.77} parent=5 // pred_fallthru
        _
      %p82 = scmp.le.s32.totalorder 1, %s3
      %p83 = scmp.lt.s32.totalorder %s3, 3
      %p84 = pnand %p82, %p83
      %p85 = pneg %p84
      // Predicated region
      $region47: #{custom-call.77} parent=5 // pred_check
        _
      $region48: #{custom-call.77} parent=5 // pred_check_branch
        %87 = sbr.rel (%p84) target = $region50
      $region49: #{custom-call.77} parent=5 // pred_region
        %s88 = ssub.s32 %s3, 1
        %s89 = sand.u32 %s8, 1
        %s90 = sand.u32 %s8, 1
        %s91 = smul.addr %s90, 4
        %s92 = scalar_lea.vmem [#allocation1], %s91
        %s93 = sand.u32 %s8, 1
        %s94 = sand.u32 %s8, 1
        %s95 = smul.addr %s94, 4
        %s96 = scalar_lea.vmem [#allocation1], %s95
        %s97 = sand.u32 %s8, 1
        %s98 = sand.u32 %s8, 1
        %s99 = smul.addr %s98, 4
        %s100 = scalar_lea.vmem [#allocation3], %s99
        %s102 = ssub.s32 16, 1
        %v103 = vld [vmem:[%s96] sm:%s102]
        %104 = vst [vmem:[#allocation0] sm:%s102] %v103
        %105 = vst [vmem:[#allocation2] sm:$0xff] 0.0
        %vm106 = vcmask 7168
        %v107 = vld [vmem:[#allocation2] ss:$0 sm:$0xff]
        %v108 = vld [vmem:[#allocation0] ss:$0 sm:$0xff]
        %v109 = vmul.f32 %v107, %v107
        %110 = vadd.xlane.f32.xlu0 %v109
        %v111 = vpop.xlane.xlu0 %110
        %v112 = vsub.f32 %v108, %v111
        %v113 = vrsqrt.pop %v112
        %v114 = vmul.f32 %v113, %v112
        %v115 = vmul.f32 %v114, %v113
        %v116 = vmul.f32 0.5, %v115
        %v117 = vsub.f32 1.5, %v116
        %v118 = vmul.f32 %v113, %v117
        %vm119 = vweird.f32 %v112
        %vm120 = vweird.f32 %v113
        %vm121 = vmor %vm119, %vm120
        %v122 = vsel %vm121, %v113, %v118
        %v123 = vld [vmem:[#allocation0] sm:$0xff]
        %v124 = vld [vmem:[#allocation2] sm:$0xff]
        %v125 = vmul.f32 %v124, %v107
        %126 = vadd.xlane.f32.xlu0 %v125
        %v127 = vpop.xlane.xlu0 %126
        %v128 = vsub.f32 %v123, %v127
        %v129 = vmul.f32 %v128, %v122
        %v130 = vsel %vm106, %v129, 0.0
        %v131 = vadd.f32 %v124, %v130
        %132 = vst [vmem:[#allocation2] sm:$0xff] %v131
        %vm133 = vcmask 15368
        %s134 = scalar_lea.vmem [#allocation2], 1
        %v135 = vld [vmem:[%s134] ss:$0 sm:$0xff]
        %s136 = scalar_lea.vmem [#allocation0], 1
        %v137 = vld [vmem:[%s136] ss:$0 sm:$0xff]
        %v138 = vmul.f32 %v135, %v135
        %139 = vadd.xlane.f32.xlu0 %v138
        %v140 = vpop.xlane.xlu0 %139
        %v141 = vsub.f32 %v137, %v140
        %v142 = vrsqrt.pop %v141
        %v143 = vmul.f32 %v142, %v141
        %v144 = vmul.f32 %v143, %v142
        %v145 = vmul.f32 0.5, %v144
        %v146 = vsub.f32 1.5, %v145
        %v147 = vmul.f32 %v142, %v146
        %vm148 = vweird.f32 %v141
        %vm149 = vweird.f32 %v142
        %vm150 = vmor %vm148, %vm149
        %v151 = vsel %vm150, %v142, %v147
        %v152 = vld [vmem:[#allocation0] sm:$0xff]
        %v153 = vld [vmem:[#allocation2] sm:$0xff]
        %v154 = vmul.f32 %v153, %v135
        %155 = vadd.xlane.f32.xlu0 %v154
        %v156 = vpop.xlane.xlu0 %155
        %v157 = vsub.f32 %v152, %v156
        %v158 = vmul.f32 %v157, %v151
        %vm159 = vcmask 1047553
        %vm160 = vmand %vm133, %vm159
        %v161 = vsel %vm160, %v158, 0.0
        %v162 = vadd.f32 %v153, %v161
        %163 = vst [vmem:[#allocation2] sm:$0xff] %v162
        %vm164 = vcmask 23568
        %s165 = scalar_lea.vmem [#allocation2], 2
        %v166 = vld [vmem:[%s165] ss:$0 sm:$0xff]
        %s167 = scalar_lea.vmem [#allocation0], 2
        %v168 = vld [vmem:[%s167] ss:$0 sm:$0xff]
        %v169 = vmul.f32 %v166, %v166
        %170 = vadd.xlane.f32.xlu0 %v169
        %v171 = vpop.xlane.xlu0 %170
        %v172 = vsub.f32 %v168, %v171
        %v173 = vrsqrt.pop %v172
        %v174 = vmul.f32 %v173, %v172
        %v175 = vmul.f32 %v174, %v173
        %v176 = vmul.f32 0.5, %v175
        %v177 = vsub.f32 1.5, %v176
        %v178 = vmul.f32 %v173, %v177
        %vm179 = vweird.f32 %v172
        %vm180 = vweird.f32 %v173
        %vm181 = vmor %vm179, %vm180
        %v182 = vsel %vm181, %v173, %v178
        %v183 = vld [vmem:[#allocation0] sm:$0xff]
        %v184 = vld [vmem:[#allocation2] sm:$0xff]
        %v185 = vmul.f32 %v184, %v166
        %186 = vadd.xlane.f32.xlu0 %v185
        %v187 = vpop.xlane.xlu0 %186
        %v188 = vsub.f32 %v183, %v187
        %v189 = vmul.f32 %v188, %v182
        %vm190 = vcmask 1047554
        %vm191 = vmand %vm164, %vm190
        %v192 = vsel %vm191, %v189, 0.0
        %v193 = vadd.f32 %v184, %v192
        %194 = vst [vmem:[#allocation2] sm:$0xff] %v193
        %s196 = ssub.s32 16, 1
        %v197 = vld [vmem:[#allocation2] sm:%s196]
        %s199 = ssub.s32 16, 1
        %200 = vst [vmem:[%s100] sm:%s199] %v197
        %s201 = sand.u32 %s8, 1
        %s202 = sand.u32 %s8, 1
        %s203 = smul.addr %s202, 4
        %s204 = scalar_lea.vmem [#allocation3], %s203
        %s205 = sadd.s32 %s15, %s14
        %s206 = sadd.s32 %s205, %s13
        %s207 = smul.addr %s206, 4
        %s208 = scalar_lea.vmem %s1, %s207
        // Predicated region
        $region51: #{custom-call.77} parent=49 // pred_check
          _
        $region52: #{custom-call.77} parent=49 // pred_check_branch
          %210 = sbr.rel (0) target = $region54
        $region53: #{custom-call.77} parent=49 // pred_region
          // Predicated region
          $region55: #{custom-call.77} parent=53 // pred_check
            _
          $region56: #{custom-call.77} parent=53 // pred_check_branch
            %212 = sbr.rel target = $region58
          $region57: #{custom-call.77} parent=53 // pred_region
            // Predicated region
            $region70: #{custom-call.77} parent=57 // pred_check
              _
            $region71: #{custom-call.77} parent=57 // pred_check_branch
              %228 = sbr.rel (0) target = $region73
            $region72: #{custom-call.77} parent=57 // pred_region
              %s230 = ssub.s32 16, 1
              loop: start=0, step=1, limit=1
              $region74: #{custom-call.77} parent=72 // loop_pre_header
                _
              $region75: #{custom-call.77} parent=72 // loop_header
                %s232 = sphi 0, %s236
                %p233 = scmp.ge.s32.totalorder %s232, 1
                %s237 = sphi %s204, %s204
                %s238 = sphi %s208, %s208
              $region76: #{custom-call.77} parent=72 // loop_header_branch
                %235 = sbr.rel (%p233) target = $region80
              $region77: #{custom-call.77} parent=72 // loop_body
                %v239 = vld [vmem:[%s237] sm:%s230]
                %240 = vst [vmem:[%s238] sm:%s230] %v239
              $region78: #{custom-call.77} parent=72 // loop_footer
                %s236 = sadd.s32 1, %s232
              $region79: #{custom-call.77} parent=72 // loop_footer_branch
                %231 = sbr.rel target = $region75
              $region80: #{custom-call.77} parent=72 // loop_exit
                _
            $region73: #{custom-call.77} parent=57 // pred_fallthru
              _
          $region58: #{custom-call.77} parent=53 // pred_fallthru
            _
          // Predicated region
          $region59: #{custom-call.77} parent=53 // pred_check
            _
          $region60: #{custom-call.77} parent=53 // pred_check_branch
            %214 = sbr.rel (0) target = $region62
          $region61: #{custom-call.77} parent=53 // pred_region
            %s216 = ssub.s32 16, 1
            loop: start=0, step=1, limit=1
            $region63: #{custom-call.77} parent=61 // loop_pre_header
              _
            $region64: #{custom-call.77} parent=61 // loop_header
              %s218 = sphi 0, %s222
              %p219 = scmp.ge.s32.totalorder %s218, 1
              %s223 = sphi %s204, %s204
              %s224 = sphi %s208, %s208
            $region65: #{custom-call.77} parent=61 // loop_header_branch
              %221 = sbr.rel (%p219) target = $region69
            $region66: #{custom-call.77} parent=61 // loop_body
              %v225 = vld [vmem:[%s223] sm:%s216]
              %226 = vst [vmem:[%s224] sm:%s216] %v225
            $region67: #{custom-call.77} parent=61 // loop_footer
              %s222 = sadd.s32 1, %s218
            $region68: #{custom-call.77} parent=61 // loop_footer_branch
              %217 = sbr.rel target = $region64
            $region69: #{custom-call.77} parent=61 // loop_exit
              _
          $region62: #{custom-call.77} parent=53 // pred_fallthru
            _
        $region54: #{custom-call.77} parent=49 // pred_fallthru
          _
        %241 = vnop
      $region50: #{custom-call.77} parent=5 // pred_fallthru
        _
      %p242 = scmp.le.s32.totalorder 2, %s3
      // Predicated region
      $region81: #{custom-call.77} parent=5 // pred_check
        %p243 = pneg %p242
      $region82: #{custom-call.77} parent=5 // pred_check_branch
        %245 = sbr.rel (%p243) target = $region84
      $region83: #{custom-call.77} parent=5 // pred_region
        %s246 = ssub.s32 %s3, 2
        %s247 = sand.u32 %s9, 1
        %s248 = sand.u32 %s9, 1
        %s249 = smul.addr %s248, 4
        %s250 = scalar_lea.vmem [#allocation3], %s249
      $region84: #{custom-call.77} parent=5 // pred_fallthru
        _
    $region6: #{custom-call.77} parent=1 // loop_footer
      %s7 = sadd.s32 1, %s3
    $region7: #{custom-call.77} parent=1 // loop_footer_branch
      %2 = sbr.rel target = $region3
    $region8: #{custom-call.77} parent=1 // loop_exit
      _

// kernel: custom-call.78
$region0: #{custom-call.78}
  %s0 = inlined_call_operand.vmem [shape: f32[2,1,3,3], index: 0, kind: input, shape index: {}]
  %s1 = inlined_call_operand.vmem [shape: f32[2,1,3,3], index: 1, kind: output, shape index: {}]
  $region1: #{custom-call.78} parent=0
    #allocation0 [shape = 'u8[4096]{0}', space=vmem, size = 0x1000, scoped, tag = 'operand span for operand 0']
    #allocation1 [shape = 'u8[4096]{0}', space=vmem, size = 0x1000, scoped, tag = 'packed  for operand 0']
    #allocation2 [shape = 'u8[4096]{0}', space=vmem, size = 0x1000, scoped, tag = 'operand span for operand 1']
    #allocation3 [shape = 'u8[4096]{0}', space=vmem, size = 0x1000, scoped, tag = 'packed  for operand 1']
    loop: start=0, step=1, limit=4
    $region2: #{custom-call.78} parent=1 // loop_pre_header
      _
    $region3: #{custom-call.78} parent=1 // loop_header
      %s3 = sphi 0, %s7
      %p4 = scmp.ge.s32.totalorder %s3, 4
      %s10 = sphi 0, %s36
      %s11 = sphi 0, %s32
      %s12 = sphi 0, %s28
      %s13 = sphi 0, %s24
      %s14 = sphi 0, %s10
      %s15 = sphi 0, %s11
      %s16 = sphi 0, %s12
      %s17 = sphi 0, %s13
      %s18 = sphi 0, %s14
      %s19 = sphi 0, %s15
      %s20 = sphi 0, %s16
      %s21 = sphi 0, %s17
    $region4: #{custom-call.78} parent=1 // loop_header_branch
      %6 = sbr.rel (%p4) target = $region8
    $region5: #{custom-call.78} parent=1 // loop_body
      %s8 = ssub.s32 %s3, 1
      %s9 = ssub.s32 %s3, 2
      %s22 = sadd.s32 1, %s13
      %p23 = scmp.ge.s32.totalorder %s22, 1
      %s24 = scalar_select %p23, 0, %s22
      %s25 = sadd.s32 1, %s12
      %s26 = scalar_select %p23, %s25, %s12
      %p27 = scmp.ge.s32.totalorder %s26, 1
      %s28 = scalar_select %p27, 0, %s26
      %s29 = sadd.s32 1, %s11
      %s30 = scalar_select %p27, %s29, %s11
      %p31 = scmp.ge.s32.totalorder %s30, 1
      %s32 = scalar_select %p31, 0, %s30
      %s33 = sadd.s32 1, %s10
      %s34 = scalar_select %p31, %s33, %s10
      %p35 = scmp.ge.s32.totalorder %s34, 2
      %s36 = scalar_select %p35, 0, %s34
      %p37 = scmp.le.s32.totalorder 1, %s3
      %p38 = scmp.lt.s32.totalorder %s3, 3
      %p39 = pnand %p37, %p38
      %p40 = pneg %p39
      // Predicated region
      $region9: #{custom-call.78} parent=5 // pred_check
        _
      $region10: #{custom-call.78} parent=5 // pred_check_branch
        %42 = sbr.rel (%p39) target = $region12
      $region11: #{custom-call.78} parent=5 // pred_region
        %s43 = ssub.s32 %s3, 1
      $region12: #{custom-call.78} parent=5 // pred_fallthru
        _
      %p44 = scmp.lt.s32.totalorder %s3, 2
      // Predicated region
      $region13: #{custom-call.78} parent=5 // pred_check
        %p45 = pneg %p44
      $region14: #{custom-call.78} parent=5 // pred_check_branch
        %47 = sbr.rel (%p45) target = $region16
      $region15: #{custom-call.78} parent=5 // pred_region
        %s48 = sand.u32 %s3, 1
        %s49 = sand.u32 %s3, 1
        %s50 = smul.addr %s49, 4
        %s51 = scalar_lea.vmem [#allocation1], %s50
        %s52 = sadd.s32 %s13, %s12
        %s53 = sadd.s32 %s52, %s11
        %s54 = sadd.s32 %s53, %s10
        %s55 = smul.addr %s54, 4
        %s56 = scalar_lea.vmem %s0, %s55
        // Predicated region
        $region17: #{custom-call.78} parent=15 // pred_check
          _
        $region18: #{custom-call.78} parent=15 // pred_check_branch
          %58 = sbr.rel (0) target = $region20
        $region19: #{custom-call.78} parent=15 // pred_region
          // Predicated region
          $region21: #{custom-call.78} parent=19 // pred_check
            _
          $region22: #{custom-call.78} parent=19 // pred_check_branch
            %60 = sbr.rel target = $region24
          $region23: #{custom-call.78} parent=19 // pred_region
            // Predicated region
            $region36: #{custom-call.78} parent=23 // pred_check
              _
            $region37: #{custom-call.78} parent=23 // pred_check_branch
              %76 = sbr.rel (0) target = $region39
            $region38: #{custom-call.78} parent=23 // pred_region
              %s78 = ssub.s32 16, 1
              loop: start=0, step=1, limit=1
              $region40: #{custom-call.78} parent=38 // loop_pre_header
                _
              $region41: #{custom-call.78} parent=38 // loop_header
                %s80 = sphi 0, %s84
                %p81 = scmp.ge.s32.totalorder %s80, 1
                %s85 = sphi %s56, %s56
                %s86 = sphi %s51, %s51
              $region42: #{custom-call.78} parent=38 // loop_header_branch
                %83 = sbr.rel (%p81) target = $region46
              $region43: #{custom-call.78} parent=38 // loop_body
                %v87 = vld [vmem:[%s85] sm:%s78]
                %88 = vst [vmem:[%s86] sm:%s78] %v87
              $region44: #{custom-call.78} parent=38 // loop_footer
                %s84 = sadd.s32 1, %s80
              $region45: #{custom-call.78} parent=38 // loop_footer_branch
                %79 = sbr.rel target = $region41
              $region46: #{custom-call.78} parent=38 // loop_exit
                _
            $region39: #{custom-call.78} parent=23 // pred_fallthru
              _
          $region24: #{custom-call.78} parent=19 // pred_fallthru
            _
          // Predicated region
          $region25: #{custom-call.78} parent=19 // pred_check
            _
          $region26: #{custom-call.78} parent=19 // pred_check_branch
            %62 = sbr.rel (0) target = $region28
          $region27: #{custom-call.78} parent=19 // pred_region
            %s64 = ssub.s32 16, 1
            loop: start=0, step=1, limit=1
            $region29: #{custom-call.78} parent=27 // loop_pre_header
              _
            $region30: #{custom-call.78} parent=27 // loop_header
              %s66 = sphi 0, %s70
              %p67 = scmp.ge.s32.totalorder %s66, 1
              %s71 = sphi %s56, %s56
              %s72 = sphi %s51, %s51
            $region31: #{custom-call.78} parent=27 // loop_header_branch
              %69 = sbr.rel (%p67) target = $region35
            $region32: #{custom-call.78} parent=27 // loop_body
              %v73 = vld [vmem:[%s71] sm:%s64]
              %74 = vst [vmem:[%s72] sm:%s64] %v73
            $region33: #{custom-call.78} parent=27 // loop_footer
              %s70 = sadd.s32 1, %s66
            $region34: #{custom-call.78} parent=27 // loop_footer_branch
              %65 = sbr.rel target = $region30
            $region35: #{custom-call.78} parent=27 // loop_exit
              _
          $region28: #{custom-call.78} parent=19 // pred_fallthru
            _
        $region20: #{custom-call.78} parent=15 // pred_fallthru
          _
        %89 = vnop
      $region16: #{custom-call.78} parent=5 // pred_fallthru
        _
      %p90 = scmp.le.s32.totalorder 1, %s3
      %p91 = scmp.lt.s32.totalorder %s3, 3
      %p92 = pnand %p90, %p91
      %p93 = pneg %p92
      // Predicated region
      $region47: #{custom-call.78} parent=5 // pred_check
        _
      $region48: #{custom-call.78} parent=5 // pred_check_branch
        %95 = sbr.rel (%p92) target = $region50
      $region49: #{custom-call.78} parent=5 // pred_region
        #allocation4 [shape = 'f32[3,3]{1,0}', space=vmem, size = 0x1000, scoped, tag = 'rescaled input a']
        %s96 = ssub.s32 %s3, 1
        %s97 = sand.u32 %s8, 1
        %s98 = sand.u32 %s8, 1
        %s99 = smul.addr %s98, 4
        %s100 = scalar_lea.vmem [#allocation1], %s99
        %s101 = sand.u32 %s8, 1
        %s102 = sand.u32 %s8, 1
        %s103 = smul.addr %s102, 4
        %s104 = scalar_lea.vmem [#allocation1], %s103
        %s105 = sand.u32 %s8, 1
        %s106 = sand.u32 %s8, 1
        %s107 = smul.addr %s106, 4
        %s108 = scalar_lea.vmem [#allocation3], %s107
        %s110 = ssub.s32 16, 1
        %v111 = vld [vmem:[%s104] sm:%s110]
        %112 = vst [vmem:[#allocation0] sm:%s110] %v111
        %v113 = vlaneseq
        %v114 = vand.u32 %v113, 127
        %vm115 = vcmp.lt.s32.totalorder %v114, 3
        %v116 = vlaneseq
        %v117 = vshrl.u32 %v116, 7
        %vm119 = vcmp.eq.s32.totalorder %v117, %v114
        %v120 = vld [vmem:[#allocation0] sm:$0xff]
        %v121 = vsel %vm119, %v120, 0.0
        %122 = vadd.xlane.f32.xlu0 %v121
        %v123 = vpop.xlane.xlu0 %122
        %vm124 = vcmp.ge.s32.totalorder %v117, %v114
        %vm125 = vmand %vm124, %vm115
        %v126 = vsel %vm125, %v120, 0.0
        %v127 = vrcp.pop %v123
        %v128 = vmul.f32 %v123, %v127
        %v129 = vsub.f32 1.0, %v128
        %v130 = vmul.f32 %v127, %v129
        %v131 = vadd.f32 %v127, %v130
        %vm132 = vweird.f32 %v123
        %vm133 = vweird.f32 %v127
        %vm134 = vmor %vm132, %vm133
        %v135 = vsel %vm134, %v127, %v131
        %v136 = vand.u32 2147483647, %v123
        %vm137 = vcmp.eq.f32.partialorder %v136, 8.507059e+37
        %v138 = vand.u32 %v123, 2147483648
        %v139 = vor.u32 1.1754944e-38, %v138
        %v140 = vsel %vm137, %v139, %v135
        %v141 = vmul.f32 %v126, %v140
        %142 = vst [vmem:[#allocation4] sm:$0xff] %v141
        %v143 = vlaneseq
        %v144 = vand.u32 %v143, 127
        %v145 = vlaneseq
        %v146 = vshrl.u32 %v145, 7
        %vm148 = vcmp.eq.s32.totalorder %v144, %v146
        %v149 = vlaneseq
        %v150 = vand.u32 %v149, 127
        %vm151 = vcmp.eq.s32.totalorder %v150, 0
        %v152 = vsel %vm151, 1.0, -1.0
        %v153 = vsel %vm148, %v152, 0.0
        %s154 = scalar_lea.vmem [#allocation4], 1
        %v155 = vld [vmem:[%s154] ss:$0 sm:$0xff]
        %v156 = vxor.u32 %v155, 2147483648
        %v157 = vlaneseq
        %v158 = vand.u32 %v157, 127
        %vm159 = vcmp.eq.s32.totalorder %v158, 1
        %v160 = vmul.f32 %v156, %v153
        %161 = vadd.xlane.f32.xlu0 %v160
        %v162 = vpop.xlane.xlu0 %161
        %v163 = vsel %vm159, %v162, %v153
        %s164 = scalar_lea.vmem [#allocation4], 2
        %v165 = vld [vmem:[%s164] ss:$0 sm:$0xff]
        %v166 = vxor.u32 %v165, 2147483648
        %v167 = vlaneseq
        %v168 = vand.u32 %v167, 127
        %vm169 = vcmp.eq.s32.totalorder %v168, 2
        %v170 = vmul.f32 %v166, %v163
        %171 = vadd.xlane.f32.xlu0 %v170
        %v172 = vpop.xlane.xlu0 %171
        %v173 = vsel %vm169, %v172, %v163
        %v174 = vrcp.pop %v123
        %v175 = vmul.f32 %v123, %v174
        %v176 = vsub.f32 1.0, %v175
        %v177 = vmul.f32 %v174, %v176
        %v178 = vadd.f32 %v174, %v177
        %vm179 = vweird.f32 %v123
        %vm180 = vweird.f32 %v174
        %vm181 = vmor %vm179, %vm180
        %v182 = vsel %vm181, %v174, %v178
        %v183 = vand.u32 2147483647, %v123
        %vm184 = vcmp.eq.f32.partialorder %v183, 8.507059e+37
        %v185 = vand.u32 %v123, 2147483648
        %v186 = vor.u32 1.1754944e-38, %v185
        %v187 = vsel %vm184, %v186, %v182
        %v188 = vmul.f32 %v173, %v187
        %vm189 = vweird.f32 %v123
        %v190 = vsel %vm189, %v173, %v188
        %191 = vst [vmem:[#allocation2] sm:$0xff] %v190
        %s193 = ssub.s32 16, 1
        %v194 = vld [vmem:[#allocation2] sm:%s193]
        %s196 = ssub.s32 16, 1
        %197 = vst [vmem:[%s108] sm:%s196] %v194
        %s198 = sand.u32 %s8, 1
        %s199 = sand.u32 %s8, 1
        %s200 = smul.addr %s199, 4
        %s201 = scalar_lea.vmem [#allocation3], %s200
        %s202 = sadd.s32 %s17, %s16
        %s203 = sadd.s32 %s202, %s15
        %s204 = sadd.s32 %s203, %s14
        %s205 = smul.addr %s204, 4
        %s206 = scalar_lea.vmem %s1, %s205
        // Predicated region
        $region51: #{custom-call.78} parent=49 // pred_check
          _
        $region52: #{custom-call.78} parent=49 // pred_check_branch
          %208 = sbr.rel (0) target = $region54
        $region53: #{custom-call.78} parent=49 // pred_region
          // Predicated region
          $region55: #{custom-call.78} parent=53 // pred_check
            _
          $region56: #{custom-call.78} parent=53 // pred_check_branch
            %210 = sbr.rel target = $region58
          $region57: #{custom-call.78} parent=53 // pred_region
            // Predicated region
            $region70: #{custom-call.78} parent=57 // pred_check
              _
            $region71: #{custom-call.78} parent=57 // pred_check_branch
              %226 = sbr.rel (0) target = $region73
            $region72: #{custom-call.78} parent=57 // pred_region
              %s228 = ssub.s32 16, 1
              loop: start=0, step=1, limit=1
              $region74: #{custom-call.78} parent=72 // loop_pre_header
                _
              $region75: #{custom-call.78} parent=72 // loop_header
                %s230 = sphi 0, %s234
                %p231 = scmp.ge.s32.totalorder %s230, 1
                %s235 = sphi %s201, %s201
                %s236 = sphi %s206, %s206
              $region76: #{custom-call.78} parent=72 // loop_header_branch
                %233 = sbr.rel (%p231) target = $region80
              $region77: #{custom-call.78} parent=72 // loop_body
                %v237 = vld [vmem:[%s235] sm:%s228]
                %238 = vst [vmem:[%s236] sm:%s228] %v237
              $region78: #{custom-call.78} parent=72 // loop_footer
                %s234 = sadd.s32 1, %s230
              $region79: #{custom-call.78} parent=72 // loop_footer_branch
                %229 = sbr.rel target = $region75
              $region80: #{custom-call.78} parent=72 // loop_exit
                _
            $region73: #{custom-call.78} parent=57 // pred_fallthru
              _
          $region58: #{custom-call.78} parent=53 // pred_fallthru
            _
          // Predicated region
          $region59: #{custom-call.78} parent=53 // pred_check
            _
          $region60: #{custom-call.78} parent=53 // pred_check_branch
            %212 = sbr.rel (0) target = $region62
          $region61: #{custom-call.78} parent=53 // pred_region
            %s214 = ssub.s32 16, 1
            loop: start=0, step=1, limit=1
            $region63: #{custom-call.78} parent=61 // loop_pre_header
              _
            $region64: #{custom-call.78} parent=61 // loop_header
              %s216 = sphi 0, %s220
              %p217 = scmp.ge.s32.totalorder %s216, 1
              %s221 = sphi %s201, %s201
              %s222 = sphi %s206, %s206
            $region65: #{custom-call.78} parent=61 // loop_header_branch
              %219 = sbr.rel (%p217) target = $region69
            $region66: #{custom-call.78} parent=61 // loop_body
              %v223 = vld [vmem:[%s221] sm:%s214]
              %224 = vst [vmem:[%s222] sm:%s214] %v223
            $region67: #{custom-call.78} parent=61 // loop_footer
              %s220 = sadd.s32 1, %s216
            $region68: #{custom-call.78} parent=61 // loop_footer_branch
              %215 = sbr.rel target = $region64
            $region69: #{custom-call.78} parent=61 // loop_exit
              _
          $region62: #{custom-call.78} parent=53 // pred_fallthru
            _
        $region54: #{custom-call.78} parent=49 // pred_fallthru
          _
        %239 = vnop
      $region50: #{custom-call.78} parent=5 // pred_fallthru
        _
      %p240 = scmp.le.s32.totalorder 2, %s3
      // Predicated region
      $region81: #{custom-call.78} parent=5 // pred_check
        %p241 = pneg %p240
      $region82: #{custom-call.78} parent=5 // pred_check_branch
        %243 = sbr.rel (%p241) target = $region84
      $region83: #{custom-call.78} parent=5 // pred_region
        %s244 = ssub.s32 %s3, 2
        %s245 = sand.u32 %s9, 1
        %s246 = sand.u32 %s9, 1
        %s247 = smul.addr %s246, 4
        %s248 = scalar_lea.vmem [#allocation3], %s247
      $region84: #{custom-call.78} parent=5 // pred_fallthru
        _
    $region6: #{custom-call.78} parent=1 // loop_footer
      %s7 = sadd.s32 1, %s3
    $region7: #{custom-call.78} parent=1 // loop_footer_branch
      %2 = sbr.rel target = $region3
    $region8: #{custom-call.78} parent=1 // loop_exit
      _

// kernel: custom-call.36
$region0: #{custom-call.36}
  %s0 = inlined_call_operand.vmem [shape: f32[2,2,2], index: 0, kind: input, shape index: {}]
  %s1 = inlined_call_operand.vmem [shape: f32[2,2,2], index: 1, kind: input, shape index: {}]
  %s2 = inlined_call_operand.vmem [shape: f32[2,2,2], index: 2, kind: input, shape index: {}]
  %s3 = inlined_call_operand.vmem [shape: f32[2,2,2], index: 3, kind: input, shape index: {}]
  %s4 = inlined_call_operand.vmem [shape: f32[2,2], index: 4, kind: output, shape index: {0}]
  %s5 = inlined_call_operand.vmem [shape: f32[2,2], index: 5, kind: output, shape index: {1}]
  %s6 = inlined_call_operand.vmem [shape: f32[2,2,2], index: 6, kind: output, shape index: {2}]
  %s7 = inlined_call_operand.vmem [shape: f32[2,2,2], index: 7, kind: output, shape index: {3}]
  %s8 = inlined_call_operand.vmem [shape: f32[2,2,2], index: 8, kind: output, shape index: {4}]
  %s9 = inlined_call_operand.vmem [shape: f32[2,2,2], index: 9, kind: output, shape index: {5}]
  %10 = xla_tuple %s4, %s5, %s6, %s7, %s8, %s9
  $region1: #{custom-call.36} parent=0
    #allocation0 [shape = 'u8[4096]{0}', space=vmem, size = 0x1000, scoped, tag = 'operand span for operand 0']
    #allocation1 [shape = 'u8[2048]{0}', space=vmem, size = 0x800, scoped, tag = 'packed  for operand 0']
    #allocation2 [shape = 'u8[4096]{0}', space=vmem, size = 0x1000, scoped, tag = 'operand span for operand 1']
    #allocation3 [shape = 'u8[2048]{0}', space=vmem, size = 0x800, scoped, tag = 'packed  for operand 1']
    #allocation4 [shape = 'u8[4096]{0}', space=vmem, size = 0x1000, scoped, tag = 'operand span for operand 2']
    #allocation5 [shape = 'u8[2048]{0}', space=vmem, size = 0x800, scoped, tag = 'packed  for operand 2']
    #allocation6 [shape = 'u8[4096]{0}', space=vmem, size = 0x1000, scoped, tag = 'operand span for operand 3']
    #allocation7 [shape = 'u8[2048]{0}', space=vmem, size = 0x800, scoped, tag = 'packed  for operand 3']
    #allocation8 [shape = 'u8[4096]{0}', space=vmem, size = 0x1000, scoped, tag = 'operand span for operand 4']
    #allocation9 [shape = 'u8[2048]{0}', space=vmem, size = 0x800, scoped, tag = 'packed  for operand 4']
    #allocation10 [shape = 'u8[4096]{0}', space=vmem, size = 0x1000, scoped, tag = 'operand span for operand 5']
    #allocation11 [shape = 'u8[2048]{0}', space=vmem, size = 0x800, scoped, tag = 'packed  for operand 5']
    #allocation12 [shape = 'u8[4096]{0}', space=vmem, size = 0x1000, scoped, tag = 'operand span for operand 6']
    #allocation13 [shape = 'u8[2048]{0}', space=vmem, size = 0x800, scoped, tag = 'packed  for operand 6']
    #allocation14 [shape = 'u8[4096]{0}', space=vmem, size = 0x1000, scoped, tag = 'operand span for operand 7']
    #allocation15 [shape = 'u8[2048]{0}', space=vmem, size = 0x800, scoped, tag = 'packed  for operand 7']
    #allocation16 [shape = 'u8[4096]{0}', space=vmem, size = 0x1000, scoped, tag = 'operand span for operand 8']
    #allocation17 [shape = 'u8[2048]{0}', space=vmem, size = 0x800, scoped, tag = 'packed  for operand 8']
    #allocation18 [shape = 'u8[4096]{0}', space=vmem, size = 0x1000, scoped, tag = 'operand span for operand 9']
    #allocation19 [shape = 'u8[2048]{0}', space=vmem, size = 0x800, scoped, tag = 'packed  for operand 9']
    loop: start=0, step=1, limit=4
    $region2: #{custom-call.36} parent=1 // loop_pre_header
      _
    $region3: #{custom-call.36} parent=1 // loop_header
      %s12 = sphi 0, %s16
      %p13 = scmp.ge.s32.totalorder %s12, 4
      %s24 = sphi 0, %s26
      %s27 = sphi 0, %s24
      %s28 = sphi 0, %s27
      %s44 = sphi 0, %s28
      %s52 = sphi 0, %s54
      %s55 = sphi 0, %s52
      %s56 = sphi 0, %s55
      %s72 = sphi 0, %s56
    $region4: #{custom-call.36} parent=1 // loop_header_branch
      %15 = sbr.rel (%p13) target = $region8
    $region5: #{custom-call.36} parent=1 // loop_body
      %s17 = ssub.s32 %s12, 1
      %s18 = ssub.s32 %s12, 2
      %s19 = sadd.s32 %s12, 1
      %s20 = sshrl.u32 %s12, 3
      %s21 = sshrl.u32 %s19, 3
      %s22 = ssub.s32 %s20, %s21
      %p23 = scmp.eq.s32.totalorder %s22, 0
      %s25 = sadd.s32 %s24, 1
      %s26 = scalar_select %p23, %s24, %s25
      %p29 = pneg %p23
      %p30 = scmp.eq.s32.totalorder %s12, 1
      %p31 = por %p29, %p30
      %p32 = scmp.ne.s32.totalorder %s24, %s27
      %p33 = scmp.eq.s32.totalorder %s12, 0
      %p34 = por %p32, %p33
      %p35 = scmp.ne.s32.totalorder %s24, %s27
      %p36 = scmp.eq.s32.totalorder %s17, 1
      %p37 = por %p35, %p36
      %p38 = scmp.ne.s32.totalorder %s27, %s28
      %p39 = scmp.eq.s32.totalorder %s17, 0
      %p40 = por %p38, %p39
      %p41 = scmp.ne.s32.totalorder %s27, %s28
      %p42 = scmp.eq.s32.totalorder %s18, 1
      %p43 = por %p41, %p42
      %p45 = scmp.ne.s32.totalorder %s28, %s44
      %p46 = scmp.eq.s32.totalorder %s18, 0
      %p47 = por %p45, %p46
      %s48 = sshrl.u32 %s12, 3
      %s49 = sshrl.u32 %s19, 3
      %s50 = ssub.s32 %s48, %s49
      %p51 = scmp.eq.s32.totalorder %s50, 0
      %s53 = sadd.s32 %s52, 1
      %s54 = scalar_select %p51, %s52, %s53
      %p57 = pneg %p51
      %p58 = scmp.eq.s32.totalorder %s12, 1
      %p59 = por %p57, %p58
      %p60 = scmp.ne.s32.totalorder %s52, %s55
      %p61 = scmp.eq.s32.totalorder %s12, 0
      %p62 = por %p60, %p61
      %p63 = scmp.ne.s32.totalorder %s52, %s55
      %p64 = scmp.eq.s32.totalorder %s17, 1
      %p65 = por %p63, %p64
      %p66 = scmp.ne.s32.totalorder %s55, %s56
      %p67 = scmp.eq.s32.totalorder %s17, 0
      %p68 = por %p66, %p67
      %p69 = scmp.ne.s32.totalorder %s55, %s56
      %p70 = scmp.eq.s32.totalorder %s18, 1
      %p71 = por %p69, %p70
      %p73 = scmp.ne.s32.totalorder %s56, %s72
      %p74 = scmp.eq.s32.totalorder %s18, 0
      %p75 = por %p73, %p74
      %p76 = scmp.le.s32.totalorder 1, %s12
      %p77 = scmp.lt.s32.totalorder %s12, 3
      %p78 = pnand %p76, %p77
      %p79 = pneg %p78
      // Predicated region
      $region9: #{custom-call.36} parent=5 // pred_check
        _
      $region10: #{custom-call.36} parent=5 // pred_check_branch
        %81 = sbr.rel (%p78) target = $region12
      $region11: #{custom-call.36} parent=5 // pred_region
        %s82 = ssub.s32 %s12, 1
      $region12: #{custom-call.36} parent=5 // pred_fallthru
        _
      %p83 = scmp.lt.s32.totalorder %s12, 2
      // Predicated region
      $region13: #{custom-call.36} parent=5 // pred_check
        %p84 = pneg %p83
      $region14: #{custom-call.36} parent=5 // pred_check_branch
        %86 = sbr.rel (%p84) target = $region16
      $region15: #{custom-call.36} parent=5 // pred_region
        %s87 = sand.u32 %s12, 1
        %s88 = sand.u32 %s12, 1
        %s89 = smul.addr %s88, 2
        %s90 = scalar_lea.vmem [#allocation1], %s89
        %s91 = smul.addr %s12, 2
        %s92 = scalar_lea.vmem %s0, %s91
        // Predicated region
        $region17: #{custom-call.36} parent=15 // pred_check
          _
        $region18: #{custom-call.36} parent=15 // pred_check_branch
          %94 = sbr.rel (0) target = $region20
        $region19: #{custom-call.36} parent=15 // pred_region
          // Predicated region
          $region21: #{custom-call.36} parent=19 // pred_check
            _
          $region22: #{custom-call.36} parent=19 // pred_check_branch
            %96 = sbr.rel target = $region24
          $region23: #{custom-call.36} parent=19 // pred_region
            // Predicated region
            $region36: #{custom-call.36} parent=23 // pred_check
              _
            $region37: #{custom-call.36} parent=23 // pred_check_branch
              %112 = sbr.rel (0) target = $region39
            $region38: #{custom-call.36} parent=23 // pred_region
              %s114 = ssub.s32 4, 1
              loop: start=0, step=1, limit=1
              $region40: #{custom-call.36} parent=38 // loop_pre_header
                _
              $region41: #{custom-call.36} parent=38 // loop_header
                %s116 = sphi 0, %s120
                %p117 = scmp.ge.s32.totalorder %s116, 1
                %s121 = sphi %s92, %s92
                %s122 = sphi %s90, %s90
              $region42: #{custom-call.36} parent=38 // loop_header_branch
                %119 = sbr.rel (%p117) target = $region46
              $region43: #{custom-call.36} parent=38 // loop_body
                %v123 = vld [vmem:[%s121] sm:%s114]
                %124 = vst [vmem:[%s122] sm:%s114] %v123
              $region44: #{custom-call.36} parent=38 // loop_footer
                %s120 = sadd.s32 1, %s116
              $region45: #{custom-call.36} parent=38 // loop_footer_branch
                %115 = sbr.rel target = $region41
              $region46: #{custom-call.36} parent=38 // loop_exit
                _
            $region39: #{custom-call.36} parent=23 // pred_fallthru
              _
          $region24: #{custom-call.36} parent=19 // pred_fallthru
            _
          // Predicated region
          $region25: #{custom-call.36} parent=19 // pred_check
            _
          $region26: #{custom-call.36} parent=19 // pred_check_branch
            %98 = sbr.rel (0) target = $region28
          $region27: #{custom-call.36} parent=19 // pred_region
            %s100 = ssub.s32 4, 1
            loop: start=0, step=1, limit=1
            $region29: #{custom-call.36} parent=27 // loop_pre_header
              _
            $region30: #{custom-call.36} parent=27 // loop_header
              %s102 = sphi 0, %s106
              %p103 = scmp.ge.s32.totalorder %s102, 1
              %s107 = sphi %s92, %s92
              %s108 = sphi %s90, %s90
            $region31: #{custom-call.36} parent=27 // loop_header_branch
              %105 = sbr.rel (%p103) target = $region35
            $region32: #{custom-call.36} parent=27 // loop_body
              %v109 = vld [vmem:[%s107] sm:%s100]
              %110 = vst [vmem:[%s108] sm:%s100] %v109
            $region33: #{custom-call.36} parent=27 // loop_footer
              %s106 = sadd.s32 1, %s102
            $region34: #{custom-call.36} parent=27 // loop_footer_branch
              %101 = sbr.rel target = $region30
            $region35: #{custom-call.36} parent=27 // loop_exit
              _
          $region28: #{custom-call.36} parent=19 // pred_fallthru
            _
        $region20: #{custom-call.36} parent=15 // pred_fallthru
          _
        %125 = vnop
        %s126 = sand.u32 %s12, 1
        %s127 = sand.u32 %s12, 1
        %s128 = smul.addr %s127, 2
        %s129 = scalar_lea.vmem [#allocation3], %s128
        %s130 = smul.addr %s12, 2
        %s131 = scalar_lea.vmem %s1, %s130
        // Predicated region
        $region47: #{custom-call.36} parent=15 // pred_check
          _
        $region48: #{custom-call.36} parent=15 // pred_check_branch
          %133 = sbr.rel (0) target = $region50
        $region49: #{custom-call.36} parent=15 // pred_region
          // Predicated region
          $region51: #{custom-call.36} parent=49 // pred_check
            _
          $region52: #{custom-call.36} parent=49 // pred_check_branch
            %135 = sbr.rel target = $region54
          $region53: #{custom-call.36} parent=49 // pred_region
            // Predicated region
            $region66: #{custom-call.36} parent=53 // pred_check
              _
            $region67: #{custom-call.36} parent=53 // pred_check_branch
              %151 = sbr.rel (0) target = $region69
            $region68: #{custom-call.36} parent=53 // pred_region
              %s153 = ssub.s32 4, 1
              loop: start=0, step=1, limit=1
              $region70: #{custom-call.36} parent=68 // loop_pre_header
                _
              $region71: #{custom-call.36} parent=68 // loop_header
                %s155 = sphi 0, %s159
                %p156 = scmp.ge.s32.totalorder %s155, 1
                %s160 = sphi %s131, %s131
                %s161 = sphi %s129, %s129
              $region72: #{custom-call.36} parent=68 // loop_header_branch
                %158 = sbr.rel (%p156) target = $region76
              $region73: #{custom-call.36} parent=68 // loop_body
                %v162 = vld [vmem:[%s160] sm:%s153]
                %163 = vst [vmem:[%s161] sm:%s153] %v162
              $region74: #{custom-call.36} parent=68 // loop_footer
                %s159 = sadd.s32 1, %s155
              $region75: #{custom-call.36} parent=68 // loop_footer_branch
                %154 = sbr.rel target = $region71
              $region76: #{custom-call.36} parent=68 // loop_exit
                _
            $region69: #{custom-call.36} parent=53 // pred_fallthru
              _
          $region54: #{custom-call.36} parent=49 // pred_fallthru
            _
          // Predicated region
          $region55: #{custom-call.36} parent=49 // pred_check
            _
          $region56: #{custom-call.36} parent=49 // pred_check_branch
            %137 = sbr.rel (0) target = $region58
          $region57: #{custom-call.36} parent=49 // pred_region
            %s139 = ssub.s32 4, 1
            loop: start=0, step=1, limit=1
            $region59: #{custom-call.36} parent=57 // loop_pre_header
              _
            $region60: #{custom-call.36} parent=57 // loop_header
              %s141 = sphi 0, %s145
              %p142 = scmp.ge.s32.totalorder %s141, 1
              %s146 = sphi %s131, %s131
              %s147 = sphi %s129, %s129
            $region61: #{custom-call.36} parent=57 // loop_header_branch
              %144 = sbr.rel (%p142) target = $region65
            $region62: #{custom-call.36} parent=57 // loop_body
              %v148 = vld [vmem:[%s146] sm:%s139]
              %149 = vst [vmem:[%s147] sm:%s139] %v148
            $region63: #{custom-call.36} parent=57 // loop_footer
              %s145 = sadd.s32 1, %s141
            $region64: #{custom-call.36} parent=57 // loop_footer_branch
              %140 = sbr.rel target = $region60
            $region65: #{custom-call.36} parent=57 // loop_exit
              _
          $region58: #{custom-call.36} parent=49 // pred_fallthru
            _
        $region50: #{custom-call.36} parent=15 // pred_fallthru
          _
        %164 = vnop
        %s165 = sand.u32 %s12, 1
        %s166 = sand.u32 %s12, 1
        %s167 = smul.addr %s166, 2
        %s168 = scalar_lea.vmem [#allocation5], %s167
        %s169 = smul.addr %s12, 2
        %s170 = scalar_lea.vmem %s2, %s169
        // Predicated region
        $region77: #{custom-call.36} parent=15 // pred_check
          _
        $region78: #{custom-call.36} parent=15 // pred_check_branch
          %172 = sbr.rel (0) target = $region80
        $region79: #{custom-call.36} parent=15 // pred_region
          // Predicated region
          $region81: #{custom-call.36} parent=79 // pred_check
            _
          $region82: #{custom-call.36} parent=79 // pred_check_branch
            %174 = sbr.rel target = $region84
          $region83: #{custom-call.36} parent=79 // pred_region
            // Predicated region
            $region96: #{custom-call.36} parent=83 // pred_check
              _
            $region97: #{custom-call.36} parent=83 // pred_check_branch
              %190 = sbr.rel (0) target = $region99
            $region98: #{custom-call.36} parent=83 // pred_region
              %s192 = ssub.s32 4, 1
              loop: start=0, step=1, limit=1
              $region100: #{custom-call.36} parent=98 // loop_pre_header
                _
              $region101: #{custom-call.36} parent=98 // loop_header
                %s194 = sphi 0, %s198
                %p195 = scmp.ge.s32.totalorder %s194, 1
                %s199 = sphi %s170, %s170
                %s200 = sphi %s168, %s168
              $region102: #{custom-call.36} parent=98 // loop_header_branch
                %197 = sbr.rel (%p195) target = $region106
              $region103: #{custom-call.36} parent=98 // loop_body
                %v201 = vld [vmem:[%s199] sm:%s192]
                %202 = vst [vmem:[%s200] sm:%s192] %v201
              $region104: #{custom-call.36} parent=98 // loop_footer
                %s198 = sadd.s32 1, %s194
              $region105: #{custom-call.36} parent=98 // loop_footer_branch
                %193 = sbr.rel target = $region101
              $region106: #{custom-call.36} parent=98 // loop_exit
                _
            $region99: #{custom-call.36} parent=83 // pred_fallthru
              _
          $region84: #{custom-call.36} parent=79 // pred_fallthru
            _
          // Predicated region
          $region85: #{custom-call.36} parent=79 // pred_check
            _
          $region86: #{custom-call.36} parent=79 // pred_check_branch
            %176 = sbr.rel (0) target = $region88
          $region87: #{custom-call.36} parent=79 // pred_region
            %s178 = ssub.s32 4, 1
            loop: start=0, step=1, limit=1
            $region89: #{custom-call.36} parent=87 // loop_pre_header
              _
            $region90: #{custom-call.36} parent=87 // loop_header
              %s180 = sphi 0, %s184
              %p181 = scmp.ge.s32.totalorder %s180, 1
              %s185 = sphi %s170, %s170
              %s186 = sphi %s168, %s168
            $region91: #{custom-call.36} parent=87 // loop_header_branch
              %183 = sbr.rel (%p181) target = $region95
            $region92: #{custom-call.36} parent=87 // loop_body
              %v187 = vld [vmem:[%s185] sm:%s178]
              %188 = vst [vmem:[%s186] sm:%s178] %v187
            $region93: #{custom-call.36} parent=87 // loop_footer
              %s184 = sadd.s32 1, %s180
            $region94: #{custom-call.36} parent=87 // loop_footer_branch
              %179 = sbr.rel target = $region90
            $region95: #{custom-call.36} parent=87 // loop_exit
              _
          $region88: #{custom-call.36} parent=79 // pred_fallthru
            _
        $region80: #{custom-call.36} parent=15 // pred_fallthru
          _
        %203 = vnop
        %s204 = sand.u32 %s12, 1
        %s205 = sand.u32 %s12, 1
        %s206 = smul.addr %s205, 2
        %s207 = scalar_lea.vmem [#allocation7], %s206
        %s208 = smul.addr %s12, 2
        %s209 = scalar_lea.vmem %s3, %s208
        // Predicated region
        $region107: #{custom-call.36} parent=15 // pred_check
          _
        $region108: #{custom-call.36} parent=15 // pred_check_branch
          %211 = sbr.rel (0) target = $region110
        $region109: #{custom-call.36} parent=15 // pred_region
          // Predicated region
          $region111: #{custom-call.36} parent=109 // pred_check
            _
          $region112: #{custom-call.36} parent=109 // pred_check_branch
            %213 = sbr.rel target = $region114
          $region113: #{custom-call.36} parent=109 // pred_region
            // Predicated region
            $region126: #{custom-call.36} parent=113 // pred_check
              _
            $region127: #{custom-call.36} parent=113 // pred_check_branch
              %229 = sbr.rel (0) target = $region129
            $region128: #{custom-call.36} parent=113 // pred_region
              %s231 = ssub.s32 4, 1
              loop: start=0, step=1, limit=1
              $region130: #{custom-call.36} parent=128 // loop_pre_header
                _
              $region131: #{custom-call.36} parent=128 // loop_header
                %s233 = sphi 0, %s237
                %p234 = scmp.ge.s32.totalorder %s233, 1
                %s238 = sphi %s209, %s209
                %s239 = sphi %s207, %s207
              $region132: #{custom-call.36} parent=128 // loop_header_branch
                %236 = sbr.rel (%p234) target = $region136
              $region133: #{custom-call.36} parent=128 // loop_body
                %v240 = vld [vmem:[%s238] sm:%s231]
                %241 = vst [vmem:[%s239] sm:%s231] %v240
              $region134: #{custom-call.36} parent=128 // loop_footer
                %s237 = sadd.s32 1, %s233
              $region135: #{custom-call.36} parent=128 // loop_footer_branch
                %232 = sbr.rel target = $region131
              $region136: #{custom-call.36} parent=128 // loop_exit
                _
            $region129: #{custom-call.36} parent=113 // pred_fallthru
              _
          $region114: #{custom-call.36} parent=109 // pred_fallthru
            _
          // Predicated region
          $region115: #{custom-call.36} parent=109 // pred_check
            _
          $region116: #{custom-call.36} parent=109 // pred_check_branch
            %215 = sbr.rel (0) target = $region118
          $region117: #{custom-call.36} parent=109 // pred_region
            %s217 = ssub.s32 4, 1
            loop: start=0, step=1, limit=1
            $region119: #{custom-call.36} parent=117 // loop_pre_header
              _
            $region120: #{custom-call.36} parent=117 // loop_header
              %s219 = sphi 0, %s223
              %p220 = scmp.ge.s32.totalorder %s219, 1
              %s224 = sphi %s209, %s209
              %s225 = sphi %s207, %s207
            $region121: #{custom-call.36} parent=117 // loop_header_branch
              %222 = sbr.rel (%p220) target = $region125
            $region122: #{custom-call.36} parent=117 // loop_body
              %v226 = vld [vmem:[%s224] sm:%s217]
              %227 = vst [vmem:[%s225] sm:%s217] %v226
            $region123: #{custom-call.36} parent=117 // loop_footer
              %s223 = sadd.s32 1, %s219
            $region124: #{custom-call.36} parent=117 // loop_footer_branch
              %218 = sbr.rel target = $region120
            $region125: #{custom-call.36} parent=117 // loop_exit
              _
          $region118: #{custom-call.36} parent=109 // pred_fallthru
            _
        $region110: #{custom-call.36} parent=15 // pred_fallthru
          _
        %242 = vnop
      $region16: #{custom-call.36} parent=5 // pred_fallthru
        _
      %p243 = scmp.le.s32.totalorder 1, %s12
      %p244 = scmp.lt.s32.totalorder %s12, 3
      %p245 = pnand %p243, %p244
      %p246 = pneg %p245
      // Predicated region
      $region137: #{custom-call.36} parent=5 // pred_check
        _
      $region138: #{custom-call.36} parent=5 // pred_check_branch
        %248 = sbr.rel (%p245) target = $region140
      $region139: #{custom-call.36} parent=5 // pred_region
        #allocation20 [shape = 'f32[2,2]{1,0}', space=vmem, size = 0x1000, scoped, tag = 'a top-left matrix']
        #allocation21 [shape = 'f32[2,2]{1,0}', space=vmem, size = 0x1000, scoped, tag = 'a top-right matrix']
        #allocation22 [shape = 'f32[2,2]{1,0}', space=vmem, size = 0x1000, scoped, tag = 'a bottom-left matrix']
        #allocation23 [shape = 'f32[2,2]{1,0}', space=vmem, size = 0x1000, scoped, tag = 'a bottom-right matrix']
        %s249 = ssub.s32 %s12, 1
        %s250 = sand.u32 %s17, 1
        %s251 = sand.u32 %s17, 1
        %s252 = smul.addr %s251, 2
        %s253 = scalar_lea.vmem [#allocation1], %s252
        %s254 = sand.u32 %s17, 1
        %s255 = sand.u32 %s17, 1
        %s256 = smul.addr %s255, 2
        %s257 = scalar_lea.vmem [#allocation3], %s256
        %s258 = sand.u32 %s17, 1
        %s259 = sand.u32 %s17, 1
        %s260 = smul.addr %s259, 2
        %s261 = scalar_lea.vmem [#allocation5], %s260
        %s262 = sand.u32 %s17, 1
        %s263 = sand.u32 %s17, 1
        %s264 = smul.addr %s263, 2
        %s265 = scalar_lea.vmem [#allocation7], %s264
        %s266 = sand.u32 %s17, 1
        %s267 = sand.u32 %s17, 1
        %s268 = smul.addr %s267, 2
        %s269 = scalar_lea.vmem [#allocation1], %s268
        %s270 = sand.u32 %s17, 1
        %s271 = sand.u32 %s17, 1
        %s272 = smul.addr %s271, 2
        %s273 = scalar_lea.vmem [#allocation3], %s272
        %s274 = sand.u32 %s17, 1
        %s275 = sand.u32 %s17, 1
        %s276 = smul.addr %s275, 2
        %s277 = scalar_lea.vmem [#allocation5], %s276
        %s278 = sand.u32 %s17, 1
        %s279 = sand.u32 %s17, 1
        %s280 = smul.addr %s279, 2
        %s281 = scalar_lea.vmem [#allocation7], %s280
        %p282 = pneg %p40
        %p283 = pneg %p37
        %s284 = sand.u32 %s27, 1
        %s285 = sand.u32 %s27, 1
        %s286 = smul.addr %s285, 2
        %s287 = scalar_lea.vmem [#allocation9], %s286
        %p288 = pneg %p68
        %p289 = pneg %p65
        %s290 = sand.u32 %s55, 1
        %s291 = sand.u32 %s55, 1
        %s292 = smul.addr %s291, 2
        %s293 = scalar_lea.vmem [#allocation11], %s292
        %s294 = sand.u32 %s17, 1
        %s295 = sand.u32 %s17, 1
        %s296 = smul.addr %s295, 2
        %s297 = scalar_lea.vmem [#allocation13], %s296
        %s298 = sand.u32 %s17, 1
        %s299 = sand.u32 %s17, 1
        %s300 = smul.addr %s299, 2
        %s301 = scalar_lea.vmem [#allocation15], %s300
        %s302 = sand.u32 %s17, 1
        %s303 = sand.u32 %s17, 1
        %s304 = smul.addr %s303, 2
        %s305 = scalar_lea.vmem [#allocation17], %s304
        %s306 = sand.u32 %s17, 1
        %s307 = sand.u32 %s17, 1
        %s308 = smul.addr %s307, 2
        %s309 = scalar_lea.vmem [#allocation19], %s308
        %s311 = ssub.s32 4, 1
        %v312 = vld [vmem:[%s269] sm:%s311]
        %313 = vst [vmem:[#allocation0] sm:%s311] %v312
        %s315 = ssub.s32 4, 1
        %v316 = vld [vmem:[%s273] sm:%s315]
        %317 = vst [vmem:[#allocation2] sm:%s315] %v316
        %s319 = ssub.s32 4, 1
        %v320 = vld [vmem:[%s277] sm:%s319]
        %321 = vst [vmem:[#allocation4] sm:%s319] %v320
        %s323 = ssub.s32 4, 1
        %v324 = vld [vmem:[%s281] sm:%s323]
        %325 = vst [vmem:[#allocation6] sm:%s323] %v324
        %s326 = sshrl.u32 %s17, 3
        %s327 = sshrl.u32 %s17, 3
        %s328 = smov [#allocation20]
        %v329 = vld [vmem:[#allocation0] sm:$0xff]
        %330 = vst [vmem:[%s328] sm:$0xff] %v329
        %s331 = smov [#allocation21]
        %v332 = vld [vmem:[#allocation2] sm:$0xff]
        %333 = vst [vmem:[%s331] sm:$0xff] %v332
        %s334 = smov [#allocation22]
        %v335 = vld [vmem:[#allocation4] sm:$0xff]
        %336 = vst [vmem:[%s334] sm:$0xff] %v335
        %s337 = smov [#allocation23]
        %v338 = vld [vmem:[#allocation6] sm:$0xff]
        %339 = vst [vmem:[%s337] sm:$0xff] %v338
        %340 = vst [vmem:[#allocation12] sm:$0xff] 0.0
        %341 = vst [vmem:[#allocation14] sm:$0xff] 0.0
        %342 = vst [vmem:[#allocation16] sm:$0xff] 0.0
        %343 = vst [vmem:[#allocation18] sm:$0xff] 0.0
        %s344 = smov [#allocation12]
        %v345 = vlaneseq
        %v346 = vand.u32 %v345, 127
        %v347 = vmov %v346
        %v348 = vlaneseq
        %v349 = vshrl.u32 %v348, 7
        %v350 = vmov %v349
        %v351 = vld [vmem:[%s344] sm:$0x3]
        %vm354 = vcmp.eq.s32.totalorder %v350, %v347
        %v355 = vsel %vm354, 1.0, %v351
        %356 = vst [vmem:[%s344] sm:$0x3] %v355
        %s357 = smov [#allocation18]
        %v358 = vlaneseq
        %v359 = vand.u32 %v358, 127
        %v360 = vmov %v359
        %v361 = vlaneseq
        %v362 = vshrl.u32 %v361, 7
        %v363 = vmov %v362
        %v364 = vld [vmem:[%s357] sm:$0x3]
        %vm367 = vcmp.eq.s32.totalorder %v363, %v360
        %v368 = vsel %vm367, 1.0, %v364
        %369 = vst [vmem:[%s357] sm:$0x3] %v368
        // While loop
        $region141: #{custom-call.36} parent=139 // loop_pre_header
          _
        $region142: #{custom-call.36} parent=139 // loop_header
          %s371 = sphi 0, %s953
          %v372 = vlaneseq
          %v373 = vand.u32 %v372, 127
          %v374 = vmov %v373
          %v375 = vlaneseq
          %v376 = vshrl.u32 %v375, 7
          %v377 = vmov %v376
          %s378 = smov [#allocation20]
          %v379 = vlaneseq
          %v380 = vand.u32 %v379, 127
          %vm381 = vcmp.ge.s32.totalorder %v380, 0
          %vm382 = vcmp.lt.s32.totalorder %v380, 2
          %vm383 = vmand %vm381, %vm382
          %v384 = vld [vmem:[%s378] sm:$0x3]
          %v385 = vsel %vm383, %v384, 0.0
          %v386 = vmul.f32 %v385, %v385
          %vm389 = vcmp.eq.s32.totalorder %v377, %v374
          %v390 = vsel %vm389, 0.0, %v386
          %v391 = vlaneseq
          %v392 = vand.u32 %v391, 127
          %v393 = vmov %v392
          %v394 = vlaneseq
          %v395 = vshrl.u32 %v394, 7
          %v396 = vmov %v395
          %s397 = smov [#allocation21]
          %v398 = vlaneseq
          %v399 = vand.u32 %v398, 127
          %vm400 = vcmp.ge.s32.totalorder %v399, 0
          %vm401 = vcmp.lt.s32.totalorder %v399, 2
          %vm402 = vmand %vm400, %vm401
          %v403 = vld [vmem:[%s397] sm:$0x3]
          %v404 = vsel %vm402, %v403, 0.0
          %v405 = vmul.f32 %v404, %v404
          %v406 = vadd.f32 %v390, %v405
          %v407 = vadd.f32 %v386, %v405
          %v408 = vlaneseq
          %v409 = vand.u32 %v408, 127
          %v410 = vmov %v409
          %v411 = vlaneseq
          %v412 = vshrl.u32 %v411, 7
          %v413 = vmov %v412
          %s414 = smov [#allocation22]
          %v415 = vlaneseq
          %v416 = vand.u32 %v415, 127
          %vm417 = vcmp.ge.s32.totalorder %v416, 0
          %vm418 = vcmp.lt.s32.totalorder %v416, 2
          %vm419 = vmand %vm417, %vm418
          %v420 = vld [vmem:[%s414] sm:$0x3]
          %v421 = vsel %vm419, %v420, 0.0
          %v422 = vmul.f32 %v421, %v421
          %v423 = vadd.f32 %v406, %v422
          %v424 = vadd.f32 %v407, %v422
          %v425 = vlaneseq
          %v426 = vand.u32 %v425, 127
          %v427 = vmov %v426
          %v428 = vlaneseq
          %v429 = vshrl.u32 %v428, 7
          %v430 = vmov %v429
          %s431 = smov [#allocation23]
          %v432 = vlaneseq
          %v433 = vand.u32 %v432, 127
          %vm434 = vcmp.ge.s32.totalorder %v433, 0
          %vm435 = vcmp.lt.s32.totalorder %v433, 2
          %vm436 = vmand %vm434, %vm435
          %v437 = vld [vmem:[%s431] sm:$0x3]
          %v438 = vsel %vm436, %v437, 0.0
          %v439 = vmul.f32 %v438, %v438
          %vm442 = vcmp.eq.s32.totalorder %v430, %v427
          %v443 = vsel %vm442, 0.0, %v439
          %v444 = vadd.f32 %v423, %v443
          %v445 = vadd.f32 %v424, %v439
          %446 = vadd.xlane.f32.xlu0 %v445
          %v447 = vpop.xlane.xlu0 %446
          %v448 = vrot.slane %v447, 4
          %v449 = vadd.f32 %v447, %v448
          %v450 = vrot.slane %v449, 2
          %v451 = vadd.f32 %v449, %v450
          %v452 = vrot.slane %v451, 1
          %v453 = vadd.f32 %v451, %v452
          %454 = vadd.xlane.f32.xlu0 %v444
          %v455 = vpop.xlane.xlu0 %454
          %v456 = vrot.slane %v455, 4
          %v457 = vadd.f32 %v455, %v456
          %v458 = vrot.slane %v457, 2
          %v459 = vadd.f32 %v457, %v458
          %v460 = vrot.slane %v459, 1
          %v461 = vadd.f32 %v459, %v460
          %s462 = vtos %v461
          %s463 = vtos %v453
          %s464 = smul.f32 1e-10, %s463
          %p465 = scmp.le.f32.partialorder %s462, %s464
          %p466 = scmp.ge.s32.totalorder %s371, 15
          %p467 = por %p465, %p466
        $region143: #{custom-call.36} parent=139 // loop_header_branch
          %955 = sbr.rel (%p467) target = $region147
        $region144: #{custom-call.36} parent=139 // loop_body
          loop: start=0, step=1, limit=3
          $region148: #{custom-call.36} parent=144 // loop_pre_header
            _
          $region149: #{custom-call.36} parent=144 // loop_header
            %s469 = sphi 0, %s473
            %p470 = scmp.ge.s32.totalorder %s469, 3
          $region150: #{custom-call.36} parent=144 // loop_header_branch
            %472 = sbr.rel (%p470) target = $region154
          $region151: #{custom-call.36} parent=144 // loop_body
            #allocation24 [shape = 'f32[1024]{0}', space=vmem, size = 0x1000, scoped, tag = 'a_tl_diag vmem']
            #allocation25 [shape = 'f32[1024]{0}', space=vmem, size = 0x1000, scoped, tag = 'a_tr_diag vmem']
            #allocation26 [shape = 'f32[1024]{0}', space=vmem, size = 0x1000, scoped, tag = 'a_br_diag vmem']
            #allocation27 [shape = 'f32[1024]{0}', space=vmem, size = 0x1000, scoped, tag = 'rt1 vmem']
            #allocation28 [shape = 'f32[1024]{0}', space=vmem, size = 0x1000, scoped, tag = 'rt2 vmem']
            #allocation29 [shape = 'f32[1024]{0}', space=vmem, size = 0x1000, scoped, tag = 'c vmem']
            #allocation30 [shape = 'f32[1024]{0}', space=vmem, size = 0x1000, scoped, tag = 's vmem']
            #allocation31 [shape = 'f32[4096]{0}', space=vmem, size = 0x4000, scoped, tag = 'c broadcast']
            #allocation32 [shape = 'f32[4096]{0}', space=vmem, size = 0x4000, scoped, tag = 's broadcast']
            %s474 = smov [#allocation20]
            %s475 = smov [#allocation24]
            %v476 = vlaneseq
            %v477 = vand.u32 %v476, 127
            %v478 = vmov %v477
            %v479 = vlaneseq
            %v480 = vshrl.u32 %v479, 7
            %v481 = vmov %v480
            %v482 = vld [vmem:[%s474] sm:$0x3]
            %vm485 = vcmp.eq.s32.totalorder %v481, %v478
            %v486 = vsel %vm485, %v482, 0.0
            %v487 = vrot.slane %v486, 4
            %v488 = vadd.f32 %v486, %v487
            %v489 = vrot.slane %v488, 2
            %v490 = vadd.f32 %v488, %v489
            %v491 = vrot.slane %v490, 1
            %v492 = vadd.f32 %v490, %v491
            %493 = vst [vmem:[%s475] sm:$0x1] %v492
            %s494 = smov [#allocation21]
            %s495 = smov [#allocation25]
            %v496 = vlaneseq
            %v497 = vand.u32 %v496, 127
            %v498 = vmov %v497
            %v499 = vlaneseq
            %v500 = vshrl.u32 %v499, 7
            %v501 = vmov %v500
            %v502 = vld [vmem:[%s494] sm:$0x3]
            %vm505 = vcmp.eq.s32.totalorder %v501, %v498
            %v506 = vsel %vm505, %v502, 0.0
            %v507 = vrot.slane %v506, 4
            %v508 = vadd.f32 %v506, %v507
            %v509 = vrot.slane %v508, 2
            %v510 = vadd.f32 %v508, %v509
            %v511 = vrot.slane %v510, 1
            %v512 = vadd.f32 %v510, %v511
            %513 = vst [vmem:[%s495] sm:$0x1] %v512
            %s514 = smov [#allocation23]
            %s515 = smov [#allocation26]
            %v516 = vlaneseq
            %v517 = vand.u32 %v516, 127
            %v518 = vmov %v517
            %v519 = vlaneseq
            %v520 = vshrl.u32 %v519, 7
            %v521 = vmov %v520
            %v522 = vld [vmem:[%s514] sm:$0x3]
            %vm525 = vcmp.eq.s32.totalorder %v521, %v518
            %v526 = vsel %vm525, %v522, 0.0
            %v527 = vrot.slane %v526, 4
            %v528 = vadd.f32 %v526, %v527
            %v529 = vrot.slane %v528, 2
            %v530 = vadd.f32 %v528, %v529
            %v531 = vrot.slane %v530, 1
            %v532 = vadd.f32 %v530, %v531
            %533 = vst [vmem:[%s515] sm:$0x1] %v532
            %s534 = smov [#allocation29]
            %s535 = smov [#allocation30]
            %s536 = smov [#allocation24]
            %v537 = vld [vmem:[%s536] sm:$0xff]
            %s538 = smov [#allocation25]
            %v539 = vld [vmem:[%s538] sm:$0xff]
            %s540 = smov [#allocation26]
            %v541 = vld [vmem:[%s540] sm:$0xff]
            %v542 = vsub.f32 %v541, %v537
            %v543 = vmul.f32 2.0, %v539
            %v544 = vrcp.pop %v543
            %v545 = vmul.f32 %v543, %v544
            %v546 = vsub.f32 1.0, %v545
            %v547 = vmul.f32 %v544, %v546
            %v548 = vadd.f32 %v544, %v547
            %vm549 = vweird.f32 %v543
            %vm550 = vweird.f32 %v544
            %vm551 = vmor %vm549, %vm550
            %v552 = vsel %vm551, %v544, %v548
            %v553 = vand.u32 2147483647, %v543
            %vm554 = vcmp.eq.f32.partialorder %v553, 8.507059e+37
            %v555 = vand.u32 %v543, 2147483648
            %v556 = vor.u32 1.1754944e-38, %v555
            %v557 = vsel %vm554, %v556, %v552
            %v558 = vmul.f32 %v542, %v557
            %vm559 = vcmp.ge.f32.partialorder %v558, 0.0
            %v560 = vmul.f32 %v558, %v558
            %v561 = vadd.f32 1.0, %v560
            %v562 = vrsqrt.pop %v561
            %v563 = vmul.f32 %v562, %v561
            %v564 = vmul.f32 %v563, %v562
            %v565 = vmul.f32 0.5, %v564
            %v566 = vsub.f32 1.5, %v565
            %v567 = vmul.f32 %v562, %v566
            %v568 = vmul.f32 %v561, %v567
            %vm569 = vcmp.eq.f32.partialorder %v561, inf
            %v570 = vsel %vm569, %v561, %v568
            %vm571 = vcmp.eq.f32.partialorder %v561, 0.0
            %v572 = vand.u32 %v561, 2147483648
            %v573 = vsel %vm571, %v572, %v570
            %v574 = vxor.u32 %v573, 2147483648
            %v575 = vsel %vm559, %v573, %v574
            %v576 = vadd.f32 %v558, %v575
            %v577 = vrcp.pop %v576
            %v578 = vmul.f32 %v576, %v577
            %v579 = vsub.f32 1.0, %v578
            %v580 = vmul.f32 %v577, %v579
            %v581 = vadd.f32 %v577, %v580
            %vm582 = vweird.f32 %v576
            %vm583 = vweird.f32 %v577
            %vm584 = vmor %vm582, %vm583
            %v585 = vsel %vm584, %v577, %v581
            %v586 = vand.u32 2147483647, %v576
            %vm587 = vcmp.eq.f32.partialorder %v586, 8.507059e+37
            %v588 = vand.u32 %v576, 2147483648
            %v589 = vor.u32 1.1754944e-38, %v588
            %v590 = vsel %vm587, %v589, %v585
            %v591 = vand.u32 2147483647, %v537
            %v592 = vand.u32 2147483647, %v539
            %v593 = vand.u32 2147483647, %v541
            %v594 = vmin.f32 %v591, %v593
            %v595 = vmul.f32 1.1920929e-08, %v594
            %vm596 = vcmp.le.f32.partialorder %v592, %v595
            %v597 = vsel %vm596, 0.0, %v590
            %v598 = vmul.f32 %v597, %v597
            %v599 = vadd.f32 1.0, %v598
            %v600 = vrsqrt.pop %v599
            %v601 = vmul.f32 %v600, %v599
            %v602 = vmul.f32 %v601, %v600
            %v603 = vmul.f32 0.5, %v602
            %v604 = vsub.f32 1.5, %v603
            %v605 = vmul.f32 %v600, %v604
            %vm606 = vweird.f32 %v599
            %vm607 = vweird.f32 %v600
            %vm608 = vmor %vm606, %vm607
            %v609 = vsel %vm608, %v600, %v605
            %v610 = vmul.f32 %v597, %v609
            %v611 = vmul.f32 %v597, %v539
            %v612 = vsub.f32 %v537, %v611
            %v613 = vmul.f32 %v597, %v539
            %v614 = vadd.f32 %v541, %v613
            %s615 = smov [#allocation27]
            %616 = vst [vmem:[%s615] sm:$0xff] %v612
            %s617 = smov [#allocation28]
            %618 = vst [vmem:[%s617] sm:$0xff] %v614
            %s619 = smov %s534
            %620 = vst [vmem:[%s619] sm:$0xff] %v609
            %s621 = smov %s535
            %622 = vst [vmem:[%s621] sm:$0xff] %v610
            %s623 = smov [#allocation29]
            %v624 = vld [vmem:[%s623] ss:$0 sm:$0xff]
            %v625 = vlaneseq
            %v626 = vand.u32 %v625, 127
            %v627 = vmov %v626
            %v628 = vlaneseq
            %v629 = vshrl.u32 %v628, 7
            %v630 = vmov %v629
            %vm632 = vcmp.eq.s32.totalorder %v630, %v627
            %v633 = vsel %vm632, %v624, 0.0
            %634 = vadd.xlane.f32.xlu0 %v633
            %v635 = vpop.xlane.xlu0 %634
            %s636 = smov [#allocation31]
            %637 = vst [vmem:[%s636] sm:$0xff] %v635
            %s638 = smov [#allocation30]
            %v639 = vld [vmem:[%s638] ss:$0 sm:$0xff]
            %v640 = vlaneseq
            %v641 = vand.u32 %v640, 127
            %v642 = vmov %v641
            %v643 = vlaneseq
            %v644 = vshrl.u32 %v643, 7
            %v645 = vmov %v644
            %vm647 = vcmp.eq.s32.totalorder %v645, %v642
            %v648 = vsel %vm647, %v639, 0.0
            %649 = vadd.xlane.f32.xlu0 %v648
            %v650 = vpop.xlane.xlu0 %649
            %s651 = smov [#allocation32]
            %652 = vst [vmem:[%s651] sm:$0xff] %v650
            %s653 = smov [#allocation31]
            %v654 = vld [vmem:[%s653] sm:$0xff]
            %s655 = smov [#allocation32]
            %v656 = vld [vmem:[%s655] sm:$0xff]
            %s657 = smov [#allocation20]
            %s658 = smov [#allocation21]
            %s659 = smov [#allocation22]
            %s660 = smov [#allocation23]
            %v661 = vld [vmem:[%s657] sm:$0x3]
            %v662 = vld [vmem:[%s658] sm:$0x3]
            %v663 = vld [vmem:[%s659] sm:$0x3]
            %v664 = vld [vmem:[%s660] sm:$0x3]
            %v665 = vmul.f32 %v654, %v661
            %v666 = vmul.f32 %v656, %v663
            %v667 = vsub.f32 %v665, %v666
            %v668 = vmul.f32 %v654, %v662
            %v669 = vmul.f32 %v656, %v664
            %v670 = vsub.f32 %v668, %v669
            %v671 = vmul.f32 %v656, %v661
            %v672 = vmul.f32 %v654, %v663
            %v673 = vadd.f32 %v671, %v672
            %v674 = vmul.f32 %v656, %v662
            %v675 = vmul.f32 %v654, %v664
            %v676 = vadd.f32 %v674, %v675
            %677 = vst [vmem:[%s657] sm:$0x3] %v667
            %678 = vst [vmem:[%s658] sm:$0x3] %v670
            %679 = vst [vmem:[%s659] sm:$0x3] %v673
            %680 = vst [vmem:[%s660] sm:$0x3] %v676
            %s681 = smov [#allocation29]
            %v682 = vld [vmem:[%s681] ss:$0 sm:$0xff]
            %s683 = smov [#allocation30]
            %v684 = vld [vmem:[%s683] ss:$0 sm:$0xff]
            %s685 = smov [#allocation20]
            %s686 = smov [#allocation21]
            %s687 = smov [#allocation22]
            %s688 = smov [#allocation23]
            %v689 = vld [vmem:[%s685] sm:$0x3]
            %v690 = vld [vmem:[%s686] sm:$0x3]
            %v691 = vld [vmem:[%s687] sm:$0x3]
            %v692 = vld [vmem:[%s688] sm:$0x3]
            %v693 = vmul.f32 %v682, %v689
            %v694 = vmul.f32 %v684, %v690
            %v695 = vsub.f32 %v693, %v694
            %v696 = vmul.f32 %v684, %v689
            %v697 = vmul.f32 %v682, %v690
            %v698 = vadd.f32 %v696, %v697
            %v699 = vmul.f32 %v682, %v691
            %v700 = vmul.f32 %v684, %v692
            %v701 = vsub.f32 %v699, %v700
            %v702 = vmul.f32 %v684, %v691
            %v703 = vmul.f32 %v682, %v692
            %v704 = vadd.f32 %v702, %v703
            %705 = vst [vmem:[%s685] sm:$0x3] %v695
            %706 = vst [vmem:[%s686] sm:$0x3] %v698
            %707 = vst [vmem:[%s687] sm:$0x3] %v701
            %708 = vst [vmem:[%s688] sm:$0x3] %v704
            %s709 = smov [#allocation20]
            %s710 = smov [#allocation27]
            %v711 = vlaneseq
            %v712 = vand.u32 %v711, 127
            %v713 = vmov %v712
            %v714 = vlaneseq
            %v715 = vshrl.u32 %v714, 7
            %v716 = vmov %v715
            %v717 = vld [vmem:[%s710] ss:$0 sm:$0xff]
            %v718 = vld [vmem:[%s709] sm:$0x3]
            %vm721 = vcmp.eq.s32.totalorder %v716, %v713
            %v722 = vsel %vm721, %v717, %v718
            %723 = vst [vmem:[%s709] sm:$0x3] %v722
            %s724 = smov [#allocation21]
            %v725 = vlaneseq
            %v726 = vand.u32 %v725, 127
            %v727 = vmov %v726
            %v728 = vlaneseq
            %v729 = vshrl.u32 %v728, 7
            %v730 = vmov %v729
            %v731 = vld [vmem:[%s724] sm:$0x3]
            %vm734 = vcmp.eq.s32.totalorder %v730, %v727
            %v735 = vsel %vm734, 0.0, %v731
            %736 = vst [vmem:[%s724] sm:$0x3] %v735
            %s737 = smov [#allocation22]
            %v738 = vlaneseq
            %v739 = vand.u32 %v738, 127
            %v740 = vmov %v739
            %v741 = vlaneseq
            %v742 = vshrl.u32 %v741, 7
            %v743 = vmov %v742
            %v744 = vld [vmem:[%s737] sm:$0x3]
            %vm747 = vcmp.eq.s32.totalorder %v743, %v740
            %v748 = vsel %vm747, 0.0, %v744
            %749 = vst [vmem:[%s737] sm:$0x3] %v748
            %s750 = smov [#allocation23]
            %s751 = smov [#allocation28]
            %v752 = vlaneseq
            %v753 = vand.u32 %v752, 127
            %v754 = vmov %v753
            %v755 = vlaneseq
            %v756 = vshrl.u32 %v755, 7
            %v757 = vmov %v756
            %v758 = vld [vmem:[%s751] ss:$0 sm:$0xff]
            %v759 = vld [vmem:[%s750] sm:$0x3]
            %vm762 = vcmp.eq.s32.totalorder %v757, %v754
            %v763 = vsel %vm762, %v758, %v759
            %764 = vst [vmem:[%s750] sm:$0x3] %v763
            %s765 = smov [#allocation20]
            %s766 = smov [#allocation21]
            %v767 = vld [vmem:[%s766] sm:$0x3]
            %768 = vrot.lane.b32.xlu0 %v767, 1
            %v769 = vpop.permute.xlu0 %768
            %v770 = vld [vmem:[%s765] sm:$0x3]
            %v771 = vld [vmem:[%s765] sm:$0x3]
            %772 = vrot.lane.b32.xlu0 %v771, 1
            %v773 = vpop.permute.xlu0 %772
            %v774 = vlaneseq
            %v775 = vand.u32 %v774, 127
            %vm776 = vcmp.eq.s32.totalorder %v775, 0
            %v777 = vsel %vm776, %v771, %v773
            %v778 = vlaneseq
            %v779 = vand.u32 %v778, 127
            %vm780 = vcmp.eq.s32.totalorder %v779, 1
            %v781 = vsel %vm780, %v769, %v777
            %v782 = vlaneseq
            %v783 = vand.u32 %v782, 127
            %vm784 = vcmp.ge.s32.totalorder %v783, 0
            %vm785 = vcmp.lt.s32.totalorder %v783, 2
            %vm786 = vmand %vm784, %vm785
            %v787 = vsel %vm786, %v781, 0.0
            %v788 = vld [vmem:[%s766] sm:$0x3]
            %789 = vrot.lane.b32.xlu0 %v788, 127
            %v790 = vpop.permute.xlu0 %789
            %v791 = vlaneseq
            %v792 = vand.u32 %v791, 127
            %vm793 = vcmp.eq.s32.totalorder %v792, 1
            %v794 = vsel %vm793, %v770, %v790
            %795 = vst [vmem:[%s765] sm:$0x3] %v787
            %796 = vst [vmem:[%s766] sm:$0x3] %v794
            %s797 = smov [#allocation22]
            %s798 = smov [#allocation23]
            %v799 = vld [vmem:[%s798] sm:$0x3]
            %800 = vrot.lane.b32.xlu0 %v799, 1
            %v801 = vpop.permute.xlu0 %800
            %v802 = vld [vmem:[%s797] sm:$0x3]
            %v803 = vld [vmem:[%s797] sm:$0x3]
            %804 = vrot.lane.b32.xlu0 %v803, 1
            %v805 = vpop.permute.xlu0 %804
            %v806 = vlaneseq
            %v807 = vand.u32 %v806, 127
            %vm808 = vcmp.eq.s32.totalorder %v807, 0
            %v809 = vsel %vm808, %v803, %v805
            %v810 = vlaneseq
            %v811 = vand.u32 %v810, 127
            %vm812 = vcmp.eq.s32.totalorder %v811, 1
            %v813 = vsel %vm812, %v801, %v809
            %v814 = vlaneseq
            %v815 = vand.u32 %v814, 127
            %vm816 = vcmp.ge.s32.totalorder %v815, 0
            %vm817 = vcmp.lt.s32.totalorder %v815, 2
            %vm818 = vmand %vm816, %vm817
            %v819 = vsel %vm818, %v813, 0.0
            %v820 = vld [vmem:[%s798] sm:$0x3]
            %821 = vrot.lane.b32.xlu0 %v820, 127
            %v822 = vpop.permute.xlu0 %821
            %v823 = vlaneseq
            %v824 = vand.u32 %v823, 127
            %vm825 = vcmp.eq.s32.totalorder %v824, 1
            %v826 = vsel %vm825, %v802, %v822
            %827 = vst [vmem:[%s797] sm:$0x3] %v819
            %828 = vst [vmem:[%s798] sm:$0x3] %v826
            %s829 = smov [#allocation20]
            %s830 = smov [#allocation22]
            %v831 = vld [vmem:[%s829] ss:$0 sm:$0xff]
            %s833 = scalar_lea.vmem %s829, 4294967295
            %v834 = vld [vmem:[%s833] sm:$0x2]
            %v835 = vlaneseq
            %v836 = vshrl.u32 %v835, 7
            %vm837 = vcmp.eq.s32.totalorder %v836, 0
            %v838 = vsel %vm837, %v831, %v834
            %s839 = scalar_lea.vmem %s829, 1
            %v840 = vld [vmem:[%s839] ss:$0 sm:$0xff]
            %841 = vst [vmem:[%s829] sm:$0x3] %v838
            %v842 = vld [vmem:[%s830] ss:$0 sm:$0xff]
            %s843 = scalar_lea.vmem %s829, 1
            %844 = vst [vmem:[%s843] sm:$0x1] %v842
            %s845 = scalar_lea.vmem %s830, 1
            %v846 = vld [vmem:[%s845] sm:$0x1]
            %v847 = vlaneseq
            %v848 = vshrl.u32 %v847, 7
            %vm849 = vcmp.eq.s32.totalorder %v848, 1
            %v850 = vsel %vm849, %v840, %v846
            %v851 = vld [vmem:[%s830] ss:$0 sm:$0xff]
            %852 = vst [vmem:[%s830] sm:$0x3] %v850
            %s853 = smov [#allocation21]
            %s854 = smov [#allocation23]
            %v855 = vld [vmem:[%s853] ss:$0 sm:$0xff]
            %s857 = scalar_lea.vmem %s853, 4294967295
            %v858 = vld [vmem:[%s857] sm:$0x2]
            %v859 = vlaneseq
            %v860 = vshrl.u32 %v859, 7
            %vm861 = vcmp.eq.s32.totalorder %v860, 0
            %v862 = vsel %vm861, %v855, %v858
            %s863 = scalar_lea.vmem %s853, 1
            %v864 = vld [vmem:[%s863] ss:$0 sm:$0xff]
            %865 = vst [vmem:[%s853] sm:$0x3] %v862
            %v866 = vld [vmem:[%s854] ss:$0 sm:$0xff]
            %s867 = scalar_lea.vmem %s853, 1
            %868 = vst [vmem:[%s867] sm:$0x1] %v866
            %s869 = scalar_lea.vmem %s854, 1
            %v870 = vld [vmem:[%s869] sm:$0x1]
            %v871 = vlaneseq
            %v872 = vshrl.u32 %v871, 7
            %vm873 = vcmp.eq.s32.totalorder %v872, 1
            %v874 = vsel %vm873, %v864, %v870
            %v875 = vld [vmem:[%s854] ss:$0 sm:$0xff]
            %876 = vst [vmem:[%s854] sm:$0x3] %v874
            %s877 = smov [#allocation31]
            %v878 = vld [vmem:[%s877] sm:$0xff]
            %s879 = smov [#allocation32]
            %v880 = vld [vmem:[%s879] sm:$0xff]
            %s881 = smov [#allocation12]
            %s882 = smov [#allocation14]
            %s883 = smov [#allocation16]
            %s884 = smov [#allocation18]
            %v885 = vld [vmem:[%s881] sm:$0x3]
            %v886 = vld [vmem:[%s882] sm:$0x3]
            %v887 = vld [vmem:[%s883] sm:$0x3]
            %v888 = vld [vmem:[%s884] sm:$0x3]
            %v889 = vmul.f32 %v878, %v885
            %v890 = vmul.f32 %v880, %v887
            %v891 = vsub.f32 %v889, %v890
            %v892 = vmul.f32 %v878, %v886
            %v893 = vmul.f32 %v880, %v888
            %v894 = vsub.f32 %v892, %v893
            %v895 = vmul.f32 %v880, %v885
            %v896 = vmul.f32 %v878, %v887
            %v897 = vadd.f32 %v895, %v896
            %v898 = vmul.f32 %v880, %v886
            %v899 = vmul.f32 %v878, %v888
            %v900 = vadd.f32 %v898, %v899
            %901 = vst [vmem:[%s881] sm:$0x3] %v891
            %902 = vst [vmem:[%s882] sm:$0x3] %v894
            %903 = vst [vmem:[%s883] sm:$0x3] %v897
            %904 = vst [vmem:[%s884] sm:$0x3] %v900
            %s905 = smov [#allocation12]
            %s906 = smov [#allocation16]
            %v907 = vld [vmem:[%s905] ss:$0 sm:$0xff]
            %s909 = scalar_lea.vmem %s905, 4294967295
            %v910 = vld [vmem:[%s909] sm:$0x2]
            %v911 = vlaneseq
            %v912 = vshrl.u32 %v911, 7
            %vm913 = vcmp.eq.s32.totalorder %v912, 0
            %v914 = vsel %vm913, %v907, %v910
            %s915 = scalar_lea.vmem %s905, 1
            %v916 = vld [vmem:[%s915] ss:$0 sm:$0xff]
            %917 = vst [vmem:[%s905] sm:$0x3] %v914
            %v918 = vld [vmem:[%s906] ss:$0 sm:$0xff]
            %s919 = scalar_lea.vmem %s905, 1
            %920 = vst [vmem:[%s919] sm:$0x1] %v918
            %s921 = scalar_lea.vmem %s906, 1
            %v922 = vld [vmem:[%s921] sm:$0x1]
            %v923 = vlaneseq
            %v924 = vshrl.u32 %v923, 7
            %vm925 = vcmp.eq.s32.totalorder %v924, 1
            %v926 = vsel %vm925, %v916, %v922
            %v927 = vld [vmem:[%s906] ss:$0 sm:$0xff]
            %928 = vst [vmem:[%s906] sm:$0x3] %v926
            %s929 = smov [#allocation14]
            %s930 = smov [#allocation18]
            %v931 = vld [vmem:[%s929] ss:$0 sm:$0xff]
            %s933 = scalar_lea.vmem %s929, 4294967295
            %v934 = vld [vmem:[%s933] sm:$0x2]
            %v935 = vlaneseq
            %v936 = vshrl.u32 %v935, 7
            %vm937 = vcmp.eq.s32.totalorder %v936, 0
            %v938 = vsel %vm937, %v931, %v934
            %s939 = scalar_lea.vmem %s929, 1
            %v940 = vld [vmem:[%s939] ss:$0 sm:$0xff]
            %941 = vst [vmem:[%s929] sm:$0x3] %v938
            %v942 = vld [vmem:[%s930] ss:$0 sm:$0xff]
            %s943 = scalar_lea.vmem %s929, 1
            %944 = vst [vmem:[%s943] sm:$0x1] %v942
            %s945 = scalar_lea.vmem %s930, 1
            %v946 = vld [vmem:[%s945] sm:$0x1]
            %v947 = vlaneseq
            %v948 = vshrl.u32 %v947, 7
            %vm949 = vcmp.eq.s32.totalorder %v948, 1
            %v950 = vsel %vm949, %v940, %v946
            %v951 = vld [vmem:[%s930] ss:$0 sm:$0xff]
            %952 = vst [vmem:[%s930] sm:$0x3] %v950
          $region152: #{custom-call.36} parent=144 // loop_footer
            %s473 = sadd.s32 1, %s469
          $region153: #{custom-call.36} parent=144 // loop_footer_branch
            %468 = sbr.rel target = $region149
          $region154: #{custom-call.36} parent=144 // loop_exit
            _
          %s953 = sadd.s32 %s371, 1
        $region145: #{custom-call.36} parent=139 // loop_footer
          _
        $region146: #{custom-call.36} parent=139 // loop_footer_branch
          %370 = sbr.rel target = $region142
        $region147: #{custom-call.36} parent=139 // loop_exit
          _
        %s956 = sand.u32 %s17, 7
        %s957 = scalar_lea.vmem [#allocation8], %s956
        %s958 = sand.u32 %s17, 7
        %s959 = scalar_lea.vmem [#allocation10], %s958
        %s960 = smov [#allocation20]
        %s961 = smov %s957
        %v962 = vlaneseq
        %v963 = vand.u32 %v962, 127
        %v964 = vmov %v963
        %v965 = vlaneseq
        %v966 = vshrl.u32 %v965, 7
        %v967 = vmov %v966
        %v968 = vld [vmem:[%s960] sm:$0x3]
        %vm971 = vcmp.eq.s32.totalorder %v967, %v964
        %v972 = vsel %vm971, %v968, 0.0
        %v973 = vrot.slane %v972, 4
        %v974 = vadd.f32 %v972, %v973
        %v975 = vrot.slane %v974, 2
        %v976 = vadd.f32 %v974, %v975
        %v977 = vrot.slane %v976, 1
        %v978 = vadd.f32 %v976, %v977
        %979 = vst [vmem:[%s961] sm:$0x1] %v978
        %s980 = smov [#allocation23]
        %s981 = smov %s959
        %v982 = vlaneseq
        %v983 = vand.u32 %v982, 127
        %v984 = vmov %v983
        %v985 = vlaneseq
        %v986 = vshrl.u32 %v985, 7
        %v987 = vmov %v986
        %v988 = vld [vmem:[%s980] sm:$0x3]
        %vm991 = vcmp.eq.s32.totalorder %v987, %v984
        %v992 = vsel %vm991, %v988, 0.0
        %v993 = vrot.slane %v992, 4
        %v994 = vadd.f32 %v992, %v993
        %v995 = vrot.slane %v994, 2
        %v996 = vadd.f32 %v994, %v995
        %v997 = vrot.slane %v996, 1
        %v998 = vadd.f32 %v996, %v997
        %999 = vst [vmem:[%s981] sm:$0x1] %v998
        %s1001 = ssub.s32 4, 1
        %v1002 = vld [vmem:[#allocation8] sm:%s1001]
        %s1004 = ssub.s32 4, 1
        %1005 = vst [vmem:[%s287] sm:%s1004] %v1002
        %s1007 = ssub.s32 4, 1
        %v1008 = vld [vmem:[#allocation10] sm:%s1007]
        %s1010 = ssub.s32 4, 1
        %1011 = vst [vmem:[%s293] sm:%s1010] %v1008
        %s1013 = ssub.s32 4, 1
        %v1014 = vld [vmem:[#allocation12] sm:%s1013]
        %s1016 = ssub.s32 4, 1
        %1017 = vst [vmem:[%s297] sm:%s1016] %v1014
        %s1019 = ssub.s32 4, 1
        %v1020 = vld [vmem:[#allocation14] sm:%s1019]
        %s1022 = ssub.s32 4, 1
        %1023 = vst [vmem:[%s301] sm:%s1022] %v1020
        %s1025 = ssub.s32 4, 1
        %v1026 = vld [vmem:[#allocation16] sm:%s1025]
        %s1028 = ssub.s32 4, 1
        %1029 = vst [vmem:[%s305] sm:%s1028] %v1026
        %s1031 = ssub.s32 4, 1
        %v1032 = vld [vmem:[#allocation18] sm:%s1031]
        %s1034 = ssub.s32 4, 1
        %1035 = vst [vmem:[%s309] sm:%s1034] %v1032
        %s1036 = sand.u32 %s27, 1
        %s1037 = sand.u32 %s27, 1
        %s1038 = smul.addr %s1037, 2
        %s1039 = scalar_lea.vmem [#allocation9], %s1038
        %s1040 = sand.u32 %s55, 1
        %s1041 = sand.u32 %s55, 1
        %s1042 = smul.addr %s1041, 2
        %s1043 = scalar_lea.vmem [#allocation11], %s1042
        %s1044 = sand.u32 %s17, 1
        %s1045 = sand.u32 %s17, 1
        %s1046 = smul.addr %s1045, 2
        %s1047 = scalar_lea.vmem [#allocation13], %s1046
        %s1048 = sand.u32 %s17, 1
        %s1049 = sand.u32 %s17, 1
        %s1050 = smul.addr %s1049, 2
        %s1051 = scalar_lea.vmem [#allocation15], %s1050
        %s1052 = sand.u32 %s17, 1
        %s1053 = sand.u32 %s17, 1
        %s1054 = smul.addr %s1053, 2
        %s1055 = scalar_lea.vmem [#allocation17], %s1054
        %s1056 = sand.u32 %s17, 1
        %s1057 = sand.u32 %s17, 1
        %s1058 = smul.addr %s1057, 2
        %s1059 = scalar_lea.vmem [#allocation19], %s1058
        // Predicated region
        $region155: #{custom-call.36} parent=139 // pred_check
          %p1060 = pneg %p37
        $region156: #{custom-call.36} parent=139 // pred_check_branch
          %1062 = sbr.rel (%p1060) target = $region158
        $region157: #{custom-call.36} parent=139 // pred_region
          %s1063 = sshrl.u32 %s17, 3
          %s1064 = smul.addr %s1063, 2
          %s1065 = scalar_lea.vmem %s4, %s1064
          // Predicated region
          $region159: #{custom-call.36} parent=157 // pred_check
            _
          $region160: #{custom-call.36} parent=157 // pred_check_branch
            %1067 = sbr.rel (0) target = $region162
          $region161: #{custom-call.36} parent=157 // pred_region
            // Predicated region
            $region163: #{custom-call.36} parent=161 // pred_check
              _
            $region164: #{custom-call.36} parent=161 // pred_check_branch
              %1069 = sbr.rel target = $region166
            $region165: #{custom-call.36} parent=161 // pred_region
              // Predicated region
              $region178: #{custom-call.36} parent=165 // pred_check
                _
              $region179: #{custom-call.36} parent=165 // pred_check_branch
                %1085 = sbr.rel (0) target = $region181
              $region180: #{custom-call.36} parent=165 // pred_region
                %s1087 = ssub.s32 4, 1
                loop: start=0, step=1, limit=1
                $region182: #{custom-call.36} parent=180 // loop_pre_header
                  _
                $region183: #{custom-call.36} parent=180 // loop_header
                  %s1089 = sphi 0, %s1093
                  %p1090 = scmp.ge.s32.totalorder %s1089, 1
                  %s1094 = sphi %s1039, %s1039
                  %s1095 = sphi %s1065, %s1065
                $region184: #{custom-call.36} parent=180 // loop_header_branch
                  %1092 = sbr.rel (%p1090) target = $region188
                $region185: #{custom-call.36} parent=180 // loop_body
                  %v1096 = vld [vmem:[%s1094] sm:%s1087]
                  %1097 = vst [vmem:[%s1095] sm:%s1087] %v1096
                $region186: #{custom-call.36} parent=180 // loop_footer
                  %s1093 = sadd.s32 1, %s1089
                $region187: #{custom-call.36} parent=180 // loop_footer_branch
                  %1088 = sbr.rel target = $region183
                $region188: #{custom-call.36} parent=180 // loop_exit
                  _
              $region181: #{custom-call.36} parent=165 // pred_fallthru
                _
            $region166: #{custom-call.36} parent=161 // pred_fallthru
              _
            // Predicated region
            $region167: #{custom-call.36} parent=161 // pred_check
              _
            $region168: #{custom-call.36} parent=161 // pred_check_branch
              %1071 = sbr.rel (0) target = $region170
            $region169: #{custom-call.36} parent=161 // pred_region
              %s1073 = ssub.s32 4, 1
              loop: start=0, step=1, limit=1
              $region171: #{custom-call.36} parent=169 // loop_pre_header
                _
              $region172: #{custom-call.36} parent=169 // loop_header
                %s1075 = sphi 0, %s1079
                %p1076 = scmp.ge.s32.totalorder %s1075, 1
                %s1080 = sphi %s1039, %s1039
                %s1081 = sphi %s1065, %s1065
              $region173: #{custom-call.36} parent=169 // loop_header_branch
                %1078 = sbr.rel (%p1076) target = $region177
              $region174: #{custom-call.36} parent=169 // loop_body
                %v1082 = vld [vmem:[%s1080] sm:%s1073]
                %1083 = vst [vmem:[%s1081] sm:%s1073] %v1082
              $region175: #{custom-call.36} parent=169 // loop_footer
                %s1079 = sadd.s32 1, %s1075
              $region176: #{custom-call.36} parent=169 // loop_footer_branch
                %1074 = sbr.rel target = $region172
              $region177: #{custom-call.36} parent=169 // loop_exit
                _
            $region170: #{custom-call.36} parent=161 // pred_fallthru
              _
          $region162: #{custom-call.36} parent=157 // pred_fallthru
            _
          %1098 = vnop
        $region158: #{custom-call.36} parent=139 // pred_fallthru
          _
        // Predicated region
        $region189: #{custom-call.36} parent=139 // pred_check
          %p1099 = pneg %p65
        $region190: #{custom-call.36} parent=139 // pred_check_branch
          %1101 = sbr.rel (%p1099) target = $region192
        $region191: #{custom-call.36} parent=139 // pred_region
          %s1102 = sshrl.u32 %s17, 3
          %s1103 = smul.addr %s1102, 2
          %s1104 = scalar_lea.vmem %s5, %s1103
          // Predicated region
          $region193: #{custom-call.36} parent=191 // pred_check
            _
          $region194: #{custom-call.36} parent=191 // pred_check_branch
            %1106 = sbr.rel (0) target = $region196
          $region195: #{custom-call.36} parent=191 // pred_region
            // Predicated region
            $region197: #{custom-call.36} parent=195 // pred_check
              _
            $region198: #{custom-call.36} parent=195 // pred_check_branch
              %1108 = sbr.rel target = $region200
            $region199: #{custom-call.36} parent=195 // pred_region
              // Predicated region
              $region212: #{custom-call.36} parent=199 // pred_check
                _
              $region213: #{custom-call.36} parent=199 // pred_check_branch
                %1124 = sbr.rel (0) target = $region215
              $region214: #{custom-call.36} parent=199 // pred_region
                %s1126 = ssub.s32 4, 1
                loop: start=0, step=1, limit=1
                $region216: #{custom-call.36} parent=214 // loop_pre_header
                  _
                $region217: #{custom-call.36} parent=214 // loop_header
                  %s1128 = sphi 0, %s1132
                  %p1129 = scmp.ge.s32.totalorder %s1128, 1
                  %s1133 = sphi %s1043, %s1043
                  %s1134 = sphi %s1104, %s1104
                $region218: #{custom-call.36} parent=214 // loop_header_branch
                  %1131 = sbr.rel (%p1129) target = $region222
                $region219: #{custom-call.36} parent=214 // loop_body
                  %v1135 = vld [vmem:[%s1133] sm:%s1126]
                  %1136 = vst [vmem:[%s1134] sm:%s1126] %v1135
                $region220: #{custom-call.36} parent=214 // loop_footer
                  %s1132 = sadd.s32 1, %s1128
                $region221: #{custom-call.36} parent=214 // loop_footer_branch
                  %1127 = sbr.rel target = $region217
                $region222: #{custom-call.36} parent=214 // loop_exit
                  _
              $region215: #{custom-call.36} parent=199 // pred_fallthru
                _
            $region200: #{custom-call.36} parent=195 // pred_fallthru
              _
            // Predicated region
            $region201: #{custom-call.36} parent=195 // pred_check
              _
            $region202: #{custom-call.36} parent=195 // pred_check_branch
              %1110 = sbr.rel (0) target = $region204
            $region203: #{custom-call.36} parent=195 // pred_region
              %s1112 = ssub.s32 4, 1
              loop: start=0, step=1, limit=1
              $region205: #{custom-call.36} parent=203 // loop_pre_header
                _
              $region206: #{custom-call.36} parent=203 // loop_header
                %s1114 = sphi 0, %s1118
                %p1115 = scmp.ge.s32.totalorder %s1114, 1
                %s1119 = sphi %s1043, %s1043
                %s1120 = sphi %s1104, %s1104
              $region207: #{custom-call.36} parent=203 // loop_header_branch
                %1117 = sbr.rel (%p1115) target = $region211
              $region208: #{custom-call.36} parent=203 // loop_body
                %v1121 = vld [vmem:[%s1119] sm:%s1112]
                %1122 = vst [vmem:[%s1120] sm:%s1112] %v1121
              $region209: #{custom-call.36} parent=203 // loop_footer
                %s1118 = sadd.s32 1, %s1114
              $region210: #{custom-call.36} parent=203 // loop_footer_branch
                %1113 = sbr.rel target = $region206
              $region211: #{custom-call.36} parent=203 // loop_exit
                _
            $region204: #{custom-call.36} parent=195 // pred_fallthru
              _
          $region196: #{custom-call.36} parent=191 // pred_fallthru
            _
          %1137 = vnop
        $region192: #{custom-call.36} parent=139 // pred_fallthru
          _
        %s1138 = smul.addr %s17, 2
        %s1139 = scalar_lea.vmem %s6, %s1138
        // Predicated region
        $region223: #{custom-call.36} parent=139 // pred_check
          _
        $region224: #{custom-call.36} parent=139 // pred_check_branch
          %1141 = sbr.rel (0) target = $region226
        $region225: #{custom-call.36} parent=139 // pred_region
          // Predicated region
          $region227: #{custom-call.36} parent=225 // pred_check
            _
          $region228: #{custom-call.36} parent=225 // pred_check_branch
            %1143 = sbr.rel target = $region230
          $region229: #{custom-call.36} parent=225 // pred_region
            // Predicated region
            $region242: #{custom-call.36} parent=229 // pred_check
              _
            $region243: #{custom-call.36} parent=229 // pred_check_branch
              %1159 = sbr.rel (0) target = $region245
            $region244: #{custom-call.36} parent=229 // pred_region
              %s1161 = ssub.s32 4, 1
              loop: start=0, step=1, limit=1
              $region246: #{custom-call.36} parent=244 // loop_pre_header
                _
              $region247: #{custom-call.36} parent=244 // loop_header
                %s1163 = sphi 0, %s1167
                %p1164 = scmp.ge.s32.totalorder %s1163, 1
                %s1168 = sphi %s1047, %s1047
                %s1169 = sphi %s1139, %s1139
              $region248: #{custom-call.36} parent=244 // loop_header_branch
                %1166 = sbr.rel (%p1164) target = $region252
              $region249: #{custom-call.36} parent=244 // loop_body
                %v1170 = vld [vmem:[%s1168] sm:%s1161]
                %1171 = vst [vmem:[%s1169] sm:%s1161] %v1170
              $region250: #{custom-call.36} parent=244 // loop_footer
                %s1167 = sadd.s32 1, %s1163
              $region251: #{custom-call.36} parent=244 // loop_footer_branch
                %1162 = sbr.rel target = $region247
              $region252: #{custom-call.36} parent=244 // loop_exit
                _
            $region245: #{custom-call.36} parent=229 // pred_fallthru
              _
          $region230: #{custom-call.36} parent=225 // pred_fallthru
            _
          // Predicated region
          $region231: #{custom-call.36} parent=225 // pred_check
            _
          $region232: #{custom-call.36} parent=225 // pred_check_branch
            %1145 = sbr.rel (0) target = $region234
          $region233: #{custom-call.36} parent=225 // pred_region
            %s1147 = ssub.s32 4, 1
            loop: start=0, step=1, limit=1
            $region235: #{custom-call.36} parent=233 // loop_pre_header
              _
            $region236: #{custom-call.36} parent=233 // loop_header
              %s1149 = sphi 0, %s1153
              %p1150 = scmp.ge.s32.totalorder %s1149, 1
              %s1154 = sphi %s1047, %s1047
              %s1155 = sphi %s1139, %s1139
            $region237: #{custom-call.36} parent=233 // loop_header_branch
              %1152 = sbr.rel (%p1150) target = $region241
            $region238: #{custom-call.36} parent=233 // loop_body
              %v1156 = vld [vmem:[%s1154] sm:%s1147]
              %1157 = vst [vmem:[%s1155] sm:%s1147] %v1156
            $region239: #{custom-call.36} parent=233 // loop_footer
              %s1153 = sadd.s32 1, %s1149
            $region240: #{custom-call.36} parent=233 // loop_footer_branch
              %1148 = sbr.rel target = $region236
            $region241: #{custom-call.36} parent=233 // loop_exit
              _
          $region234: #{custom-call.36} parent=225 // pred_fallthru
            _
        $region226: #{custom-call.36} parent=139 // pred_fallthru
          _
        %1172 = vnop
        %s1173 = smul.addr %s17, 2
        %s1174 = scalar_lea.vmem %s7, %s1173
        // Predicated region
        $region253: #{custom-call.36} parent=139 // pred_check
          _
        $region254: #{custom-call.36} parent=139 // pred_check_branch
          %1176 = sbr.rel (0) target = $region256
        $region255: #{custom-call.36} parent=139 // pred_region
          // Predicated region
          $region257: #{custom-call.36} parent=255 // pred_check
            _
          $region258: #{custom-call.36} parent=255 // pred_check_branch
            %1178 = sbr.rel target = $region260
          $region259: #{custom-call.36} parent=255 // pred_region
            // Predicated region
            $region272: #{custom-call.36} parent=259 // pred_check
              _
            $region273: #{custom-call.36} parent=259 // pred_check_branch
              %1194 = sbr.rel (0) target = $region275
            $region274: #{custom-call.36} parent=259 // pred_region
              %s1196 = ssub.s32 4, 1
              loop: start=0, step=1, limit=1
              $region276: #{custom-call.36} parent=274 // loop_pre_header
                _
              $region277: #{custom-call.36} parent=274 // loop_header
                %s1198 = sphi 0, %s1202
                %p1199 = scmp.ge.s32.totalorder %s1198, 1
                %s1203 = sphi %s1051, %s1051
                %s1204 = sphi %s1174, %s1174
              $region278: #{custom-call.36} parent=274 // loop_header_branch
                %1201 = sbr.rel (%p1199) target = $region282
              $region279: #{custom-call.36} parent=274 // loop_body
                %v1205 = vld [vmem:[%s1203] sm:%s1196]
                %1206 = vst [vmem:[%s1204] sm:%s1196] %v1205
              $region280: #{custom-call.36} parent=274 // loop_footer
                %s1202 = sadd.s32 1, %s1198
              $region281: #{custom-call.36} parent=274 // loop_footer_branch
                %1197 = sbr.rel target = $region277
              $region282: #{custom-call.36} parent=274 // loop_exit
                _
            $region275: #{custom-call.36} parent=259 // pred_fallthru
              _
          $region260: #{custom-call.36} parent=255 // pred_fallthru
            _
          // Predicated region
          $region261: #{custom-call.36} parent=255 // pred_check
            _
          $region262: #{custom-call.36} parent=255 // pred_check_branch
            %1180 = sbr.rel (0) target = $region264
          $region263: #{custom-call.36} parent=255 // pred_region
            %s1182 = ssub.s32 4, 1
            loop: start=0, step=1, limit=1
            $region265: #{custom-call.36} parent=263 // loop_pre_header
              _
            $region266: #{custom-call.36} parent=263 // loop_header
              %s1184 = sphi 0, %s1188
              %p1185 = scmp.ge.s32.totalorder %s1184, 1
              %s1189 = sphi %s1051, %s1051
              %s1190 = sphi %s1174, %s1174
            $region267: #{custom-call.36} parent=263 // loop_header_branch
              %1187 = sbr.rel (%p1185) target = $region271
            $region268: #{custom-call.36} parent=263 // loop_body
              %v1191 = vld [vmem:[%s1189] sm:%s1182]
              %1192 = vst [vmem:[%s1190] sm:%s1182] %v1191
            $region269: #{custom-call.36} parent=263 // loop_footer
              %s1188 = sadd.s32 1, %s1184
            $region270: #{custom-call.36} parent=263 // loop_footer_branch
              %1183 = sbr.rel target = $region266
            $region271: #{custom-call.36} parent=263 // loop_exit
              _
          $region264: #{custom-call.36} parent=255 // pred_fallthru
            _
        $region256: #{custom-call.36} parent=139 // pred_fallthru
          _
        %1207 = vnop
        %s1208 = smul.addr %s17, 2
        %s1209 = scalar_lea.vmem %s8, %s1208
        // Predicated region
        $region283: #{custom-call.36} parent=139 // pred_check
          _
        $region284: #{custom-call.36} parent=139 // pred_check_branch
          %1211 = sbr.rel (0) target = $region286
        $region285: #{custom-call.36} parent=139 // pred_region
          // Predicated region
          $region287: #{custom-call.36} parent=285 // pred_check
            _
          $region288: #{custom-call.36} parent=285 // pred_check_branch
            %1213 = sbr.rel target = $region290
          $region289: #{custom-call.36} parent=285 // pred_region
            // Predicated region
            $region302: #{custom-call.36} parent=289 // pred_check
              _
            $region303: #{custom-call.36} parent=289 // pred_check_branch
              %1229 = sbr.rel (0) target = $region305
            $region304: #{custom-call.36} parent=289 // pred_region
              %s1231 = ssub.s32 4, 1
              loop: start=0, step=1, limit=1
              $region306: #{custom-call.36} parent=304 // loop_pre_header
                _
              $region307: #{custom-call.36} parent=304 // loop_header
                %s1233 = sphi 0, %s1237
                %p1234 = scmp.ge.s32.totalorder %s1233, 1
                %s1238 = sphi %s1055, %s1055
                %s1239 = sphi %s1209, %s1209
              $region308: #{custom-call.36} parent=304 // loop_header_branch
                %1236 = sbr.rel (%p1234) target = $region312
              $region309: #{custom-call.36} parent=304 // loop_body
                %v1240 = vld [vmem:[%s1238] sm:%s1231]
                %1241 = vst [vmem:[%s1239] sm:%s1231] %v1240
              $region310: #{custom-call.36} parent=304 // loop_footer
                %s1237 = sadd.s32 1, %s1233
              $region311: #{custom-call.36} parent=304 // loop_footer_branch
                %1232 = sbr.rel target = $region307
              $region312: #{custom-call.36} parent=304 // loop_exit
                _
            $region305: #{custom-call.36} parent=289 // pred_fallthru
              _
          $region290: #{custom-call.36} parent=285 // pred_fallthru
            _
          // Predicated region
          $region291: #{custom-call.36} parent=285 // pred_check
            _
          $region292: #{custom-call.36} parent=285 // pred_check_branch
            %1215 = sbr.rel (0) target = $region294
          $region293: #{custom-call.36} parent=285 // pred_region
            %s1217 = ssub.s32 4, 1
            loop: start=0, step=1, limit=1
            $region295: #{custom-call.36} parent=293 // loop_pre_header
              _
            $region296: #{custom-call.36} parent=293 // loop_header
              %s1219 = sphi 0, %s1223
              %p1220 = scmp.ge.s32.totalorder %s1219, 1
              %s1224 = sphi %s1055, %s1055
              %s1225 = sphi %s1209, %s1209
            $region297: #{custom-call.36} parent=293 // loop_header_branch
              %1222 = sbr.rel (%p1220) target = $region301
            $region298: #{custom-call.36} parent=293 // loop_body
              %v1226 = vld [vmem:[%s1224] sm:%s1217]
              %1227 = vst [vmem:[%s1225] sm:%s1217] %v1226
            $region299: #{custom-call.36} parent=293 // loop_footer
              %s1223 = sadd.s32 1, %s1219
            $region300: #{custom-call.36} parent=293 // loop_footer_branch
              %1218 = sbr.rel target = $region296
            $region301: #{custom-call.36} parent=293 // loop_exit
              _
          $region294: #{custom-call.36} parent=285 // pred_fallthru
            _
        $region286: #{custom-call.36} parent=139 // pred_fallthru
          _
        %1242 = vnop
        %s1243 = smul.addr %s17, 2
        %s1244 = scalar_lea.vmem %s9, %s1243
        // Predicated region
        $region313: #{custom-call.36} parent=139 // pred_check
          _
        $region314: #{custom-call.36} parent=139 // pred_check_branch
          %1246 = sbr.rel (0) target = $region316
        $region315: #{custom-call.36} parent=139 // pred_region
          // Predicated region
          $region317: #{custom-call.36} parent=315 // pred_check
            _
          $region318: #{custom-call.36} parent=315 // pred_check_branch
            %1248 = sbr.rel target = $region320
          $region319: #{custom-call.36} parent=315 // pred_region
            // Predicated region
            $region332: #{custom-call.36} parent=319 // pred_check
              _
            $region333: #{custom-call.36} parent=319 // pred_check_branch
              %1264 = sbr.rel (0) target = $region335
            $region334: #{custom-call.36} parent=319 // pred_region
              %s1266 = ssub.s32 4, 1
              loop: start=0, step=1, limit=1
              $region336: #{custom-call.36} parent=334 // loop_pre_header
                _
              $region337: #{custom-call.36} parent=334 // loop_header
                %s1268 = sphi 0, %s1272
                %p1269 = scmp.ge.s32.totalorder %s1268, 1
                %s1273 = sphi %s1059, %s1059
                %s1274 = sphi %s1244, %s1244
              $region338: #{custom-call.36} parent=334 // loop_header_branch
                %1271 = sbr.rel (%p1269) target = $region342
              $region339: #{custom-call.36} parent=334 // loop_body
                %v1275 = vld [vmem:[%s1273] sm:%s1266]
                %1276 = vst [vmem:[%s1274] sm:%s1266] %v1275
              $region340: #{custom-call.36} parent=334 // loop_footer
                %s1272 = sadd.s32 1, %s1268
              $region341: #{custom-call.36} parent=334 // loop_footer_branch
                %1267 = sbr.rel target = $region337
              $region342: #{custom-call.36} parent=334 // loop_exit
                _
            $region335: #{custom-call.36} parent=319 // pred_fallthru
              _
          $region320: #{custom-call.36} parent=315 // pred_fallthru
            _
          // Predicated region
          $region321: #{custom-call.36} parent=315 // pred_check
            _
          $region322: #{custom-call.36} parent=315 // pred_check_branch
            %1250 = sbr.rel (0) target = $region324
          $region323: #{custom-call.36} parent=315 // pred_region
            %s1252 = ssub.s32 4, 1
            loop: start=0, step=1, limit=1
            $region325: #{custom-call.36} parent=323 // loop_pre_header
              _
            $region326: #{custom-call.36} parent=323 // loop_header
              %s1254 = sphi 0, %s1258
              %p1255 = scmp.ge.s32.totalorder %s1254, 1
              %s1259 = sphi %s1059, %s1059
              %s1260 = sphi %s1244, %s1244
            $region327: #{custom-call.36} parent=323 // loop_header_branch
              %1257 = sbr.rel (%p1255) target = $region331
            $region328: #{custom-call.36} parent=323 // loop_body
              %v1261 = vld [vmem:[%s1259] sm:%s1252]
              %1262 = vst [vmem:[%s1260] sm:%s1252] %v1261
            $region329: #{custom-call.36} parent=323 // loop_footer
              %s1258 = sadd.s32 1, %s1254
            $region330: #{custom-call.36} parent=323 // loop_footer_branch
              %1253 = sbr.rel target = $region326
            $region331: #{custom-call.36} parent=323 // loop_exit
              _
          $region324: #{custom-call.36} parent=315 // pred_fallthru
            _
        $region316: #{custom-call.36} parent=139 // pred_fallthru
          _
        %1277 = vnop
      $region140: #{custom-call.36} parent=5 // pred_fallthru
        _
      %p1278 = scmp.le.s32.totalorder 2, %s12
      // Predicated region
      $region343: #{custom-call.36} parent=5 // pred_check
        %p1279 = pneg %p1278
      $region344: #{custom-call.36} parent=5 // pred_check_branch
        %1281 = sbr.rel (%p1279) target = $region346
      $region345: #{custom-call.36} parent=5 // pred_region
        %s1282 = ssub.s32 %s12, 2
        // Predicated region
        $region347: #{custom-call.36} parent=345 // pred_check
          %p1283 = pneg %p43
        $region348: #{custom-call.36} parent=345 // pred_check_branch
          %1285 = sbr.rel (%p1283) target = $region350
        $region349: #{custom-call.36} parent=345 // pred_region
          %s1286 = sand.u32 %s28, 1
          %s1287 = sand.u32 %s28, 1
          %s1288 = smul.addr %s1287, 2
          %s1289 = scalar_lea.vmem [#allocation9], %s1288
        $region350: #{custom-call.36} parent=345 // pred_fallthru
          _
        // Predicated region
        $region351: #{custom-call.36} parent=345 // pred_check
          %p1290 = pneg %p71
        $region352: #{custom-call.36} parent=345 // pred_check_branch
          %1292 = sbr.rel (%p1290) target = $region354
        $region353: #{custom-call.36} parent=345 // pred_region
          %s1293 = sand.u32 %s56, 1
          %s1294 = sand.u32 %s56, 1
          %s1295 = smul.addr %s1294, 2
          %s1296 = scalar_lea.vmem [#allocation11], %s1295
        $region354: #{custom-call.36} parent=345 // pred_fallthru
          _
        %s1297 = sand.u32 %s18, 1
        %s1298 = sand.u32 %s18, 1
        %s1299 = smul.addr %s1298, 2
        %s1300 = scalar_lea.vmem [#allocation13], %s1299
        %s1301 = sand.u32 %s18, 1
        %s1302 = sand.u32 %s18, 1
        %s1303 = smul.addr %s1302, 2
        %s1304 = scalar_lea.vmem [#allocation15], %s1303
        %s1305 = sand.u32 %s18, 1
        %s1306 = sand.u32 %s18, 1
        %s1307 = smul.addr %s1306, 2
        %s1308 = scalar_lea.vmem [#allocation17], %s1307
        %s1309 = sand.u32 %s18, 1
        %s1310 = sand.u32 %s18, 1
        %s1311 = smul.addr %s1310, 2
        %s1312 = scalar_lea.vmem [#allocation19], %s1311
      $region346: #{custom-call.36} parent=5 // pred_fallthru
        _
    $region6: #{custom-call.36} parent=1 // loop_footer
      %s16 = sadd.s32 1, %s12
    $region7: #{custom-call.36} parent=1 // loop_footer_branch
      %11 = sbr.rel target = $region3
    $region8: #{custom-call.36} parent=1 // loop_exit
      _

// kernel: reverse
$region0: #{reverse}
  %s0 = inlined_call_operand.vmem [shape: f32[2,3], index: 0, kind: input, shape index: {}]
  %s1 = inlined_call_operand.vmem [shape: f32[2,3], index: 1, kind: output, shape index: {}]
  %v2 = vlaneseq
  %v3 = vsub.s32 2, %v2
  %4 = vset.pattern.permute.xlu0 %v3
  $region1: #{reverse} parent=0
    #allocation0 [shape = 'u8[4096]{0}', space=vmem, size = 0x1000, scoped, tag = 'operand span for operand 0']
    #allocation1 [shape = 'u8[1024]{0}', space=vmem, size = 0x400, scoped, tag = 'packed  for operand 0']
    #allocation2 [shape = 'u8[4096]{0}', space=vmem, size = 0x1000, scoped, tag = 'operand span for operand 1']
    #allocation3 [shape = 'u8[1024]{0}', space=vmem, size = 0x400, scoped, tag = 'packed  for operand 1']
    // Predicated region
    $region2: #{reverse} parent=1 // pred_check
      _
    $region3: #{reverse} parent=1 // pred_check_branch
      %6 = sbr.rel (0) target = $region5
    $region4: #{reverse} parent=1 // pred_region
      // Predicated region
      $region6: #{reverse} parent=4 // pred_check
        _
      $region7: #{reverse} parent=4 // pred_check_branch
        %8 = sbr.rel target = $region9
      $region8: #{reverse} parent=4 // pred_region
        // Predicated region
        $region21: #{reverse} parent=8 // pred_check
          _
        $region22: #{reverse} parent=8 // pred_check_branch
          %24 = sbr.rel (0) target = $region24
        $region23: #{reverse} parent=8 // pred_region
          %s26 = ssub.s32 4, 1
          loop: start=0, step=1, limit=1
          $region25: #{reverse} parent=23 // loop_pre_header
            _
          $region26: #{reverse} parent=23 // loop_header
            %s28 = sphi 0, %s32
            %p29 = scmp.ge.s32.totalorder %s28, 1
            %s33 = sphi %s0, %s0
            %s34 = sphi [#allocation1], [#allocation1]
          $region27: #{reverse} parent=23 // loop_header_branch
            %31 = sbr.rel (%p29) target = $region31
          $region28: #{reverse} parent=23 // loop_body
            %v35 = vld [vmem:[%s33] sm:%s26]
            %36 = vst [vmem:[%s34] sm:%s26] %v35
          $region29: #{reverse} parent=23 // loop_footer
            %s32 = sadd.s32 1, %s28
          $region30: #{reverse} parent=23 // loop_footer_branch
            %27 = sbr.rel target = $region26
          $region31: #{reverse} parent=23 // loop_exit
            _
        $region24: #{reverse} parent=8 // pred_fallthru
          _
      $region9: #{reverse} parent=4 // pred_fallthru
        _
      // Predicated region
      $region10: #{reverse} parent=4 // pred_check
        _
      $region11: #{reverse} parent=4 // pred_check_branch
        %10 = sbr.rel (0) target = $region13
      $region12: #{reverse} parent=4 // pred_region
        %s12 = ssub.s32 4, 1
        loop: start=0, step=1, limit=1
        $region14: #{reverse} parent=12 // loop_pre_header
          _
        $region15: #{reverse} parent=12 // loop_header
          %s14 = sphi 0, %s18
          %p15 = scmp.ge.s32.totalorder %s14, 1
          %s19 = sphi %s0, %s0
          %s20 = sphi [#allocation1], [#allocation1]
        $region16: #{reverse} parent=12 // loop_header_branch
          %17 = sbr.rel (%p15) target = $region20
        $region17: #{reverse} parent=12 // loop_body
          %v21 = vld [vmem:[%s19] sm:%s12]
          %22 = vst [vmem:[%s20] sm:%s12] %v21
        $region18: #{reverse} parent=12 // loop_footer
          %s18 = sadd.s32 1, %s14
        $region19: #{reverse} parent=12 // loop_footer_branch
          %13 = sbr.rel target = $region15
        $region20: #{reverse} parent=12 // loop_exit
          _
      $region13: #{reverse} parent=4 // pred_fallthru
        _
    $region5: #{reverse} parent=1 // pred_fallthru
      _
    %37 = vnop
    %s39 = ssub.s32 4, 1
    %v40 = vld [vmem:[#allocation1] sm:%s39]
    %41 = vst [vmem:[#allocation0] sm:%s39] %v40
    %v42 = vld [vmem:[#allocation0] sm:$0xff]
    %43 = vperm.xlu0 %4, %v42
    %v44 = vpop.permute.xlu0 %43
    %45 = vst [vmem:[#allocation2] sm:$0xff] %v44
    %s47 = ssub.s32 4, 1
    %v48 = vld [vmem:[#allocation2] sm:%s47]
    %s50 = ssub.s32 4, 1
    %51 = vst [vmem:[#allocation3] sm:%s50] %v48
    // Predicated region
    $region32: #{reverse} parent=1 // pred_check
      _
    $region33: #{reverse} parent=1 // pred_check_branch
      %53 = sbr.rel (0) target = $region35
    $region34: #{reverse} parent=1 // pred_region
      // Predicated region
      $region36: #{reverse} parent=34 // pred_check
        _
      $region37: #{reverse} parent=34 // pred_check_branch
        %55 = sbr.rel target = $region39
      $region38: #{reverse} parent=34 // pred_region
        // Predicated region
        $region51: #{reverse} parent=38 // pred_check
          _
        $region52: #{reverse} parent=38 // pred_check_branch
          %71 = sbr.rel (0) target = $region54
        $region53: #{reverse} parent=38 // pred_region
          %s73 = ssub.s32 4, 1
          loop: start=0, step=1, limit=1
          $region55: #{reverse} parent=53 // loop_pre_header
            _
          $region56: #{reverse} parent=53 // loop_header
            %s75 = sphi 0, %s79
            %p76 = scmp.ge.s32.totalorder %s75, 1
            %s80 = sphi [#allocation3], [#allocation3]
            %s81 = sphi %s1, %s1
          $region57: #{reverse} parent=53 // loop_header_branch
            %78 = sbr.rel (%p76) target = $region61
          $region58: #{reverse} parent=53 // loop_body
            %v82 = vld [vmem:[%s80] sm:%s73]
            %83 = vst [vmem:[%s81] sm:%s73] %v82
          $region59: #{reverse} parent=53 // loop_footer
            %s79 = sadd.s32 1, %s75
          $region60: #{reverse} parent=53 // loop_footer_branch
            %74 = sbr.rel target = $region56
          $region61: #{reverse} parent=53 // loop_exit
            _
        $region54: #{reverse} parent=38 // pred_fallthru
          _
      $region39: #{reverse} parent=34 // pred_fallthru
        _
      // Predicated region
      $region40: #{reverse} parent=34 // pred_check
        _
      $region41: #{reverse} parent=34 // pred_check_branch
        %57 = sbr.rel (0) target = $region43
      $region42: #{reverse} parent=34 // pred_region
        %s59 = ssub.s32 4, 1
        loop: start=0, step=1, limit=1
        $region44: #{reverse} parent=42 // loop_pre_header
          _
        $region45: #{reverse} parent=42 // loop_header
          %s61 = sphi 0, %s65
          %p62 = scmp.ge.s32.totalorder %s61, 1
          %s66 = sphi [#allocation3], [#allocation3]
          %s67 = sphi %s1, %s1
        $region46: #{reverse} parent=42 // loop_header_branch
          %64 = sbr.rel (%p62) target = $region50
        $region47: #{reverse} parent=42 // loop_body
          %v68 = vld [vmem:[%s66] sm:%s59]
          %69 = vst [vmem:[%s67] sm:%s59] %v68
        $region48: #{reverse} parent=42 // loop_footer
          %s65 = sadd.s32 1, %s61
        $region49: #{reverse} parent=42 // loop_footer_branch
          %60 = sbr.rel target = $region45
        $region50: #{reverse} parent=42 // loop_exit
          _
      $region43: #{reverse} parent=34 // pred_fallthru
        _
    $region35: #{reverse} parent=1 // pred_fallthru
      _
    %84 = vnop

// kernel: custom-call.27
$region0: #{custom-call.27}
  %s0 = inlined_call_operand.vmem [shape: f32[2,3,3], index: 0, kind: input, shape index: {}]
  %s1 = inlined_call_operand.vmem [shape: f32[2,3,3], index: 1, kind: output, shape index: {0}]
  %s2 = inlined_call_operand.vmem [shape: f32[2,3], index: 2, kind: output, shape index: {1}]
  %3 = xla_tuple %s1, %s2
  $region1: #{custom-call.27} parent=0
    #allocation0 [shape = 'u8[4096]{0}', space=vmem, size = 0x1000, scoped, tag = 'operand span for operand 0']
    #allocation1 [shape = 'u8[4096]{0}', space=vmem, size = 0x1000, scoped, tag = 'packed  for operand 0']
    #allocation2 [shape = 'u8[4096]{0}', space=vmem, size = 0x1000, scoped, tag = 'operand span for operand 1']
    #allocation3 [shape = 'u8[4096]{0}', space=vmem, size = 0x1000, scoped, tag = 'packed  for operand 1']
    #allocation4 [shape = 'u8[4096]{0}', space=vmem, size = 0x1000, scoped, tag = 'operand span for operand 2']
    #allocation5 [shape = 'u8[2048]{0}', space=vmem, size = 0x800, scoped, tag = 'packed  for operand 2']
    loop: start=0, step=1, limit=4
    $region2: #{custom-call.27} parent=1 // loop_pre_header
      _
    $region3: #{custom-call.27} parent=1 // loop_header
      %s5 = sphi 0, %s9
      %p6 = scmp.ge.s32.totalorder %s5, 4
      %s12 = sphi 0, %s31
      %s13 = sphi 0, %s27
      %s14 = sphi 0, %s23
      %s15 = sphi 0, %s12
      %s16 = sphi 0, %s13
      %s17 = sphi 0, %s14
      %s18 = sphi 0, %s15
      %s19 = sphi 0, %s16
      %s20 = sphi 0, %s17
      %s46 = sphi 0, %s48
      %s49 = sphi 0, %s46
      %s50 = sphi 0, %s49
      %s66 = sphi 0, %s50
    $region4: #{custom-call.27} parent=1 // loop_header_branch
      %8 = sbr.rel (%p6) target = $region8
    $region5: #{custom-call.27} parent=1 // loop_body
      %s10 = ssub.s32 %s5, 1
      %s11 = ssub.s32 %s5, 2
      %s21 = sadd.s32 1, %s14
      %p22 = scmp.ge.s32.totalorder %s21, 1
      %s23 = scalar_select %p22, 0, %s21
      %s24 = sadd.s32 1, %s13
      %s25 = scalar_select %p22, %s24, %s13
      %p26 = scmp.ge.s32.totalorder %s25, 1
      %s27 = scalar_select %p26, 0, %s25
      %s28 = sadd.s32 1, %s12
      %s29 = scalar_select %p26, %s28, %s12
      %p30 = scmp.ge.s32.totalorder %s29, 2
      %s31 = scalar_select %p30, 0, %s29
      %p32 = scmp.lt.s32.totalorder %s12, 0
      %s33 = ssub.s32 0, %s12
      %s34 = scalar_select %p32, %s33, %s12
      %s35 = sshrl.u32 %s34, 3
      %s36 = ssub.s32 0, %s35
      %s37 = scalar_select %p32, %s36, %s35
      %p38 = scmp.lt.s32.totalorder %s31, 0
      %s39 = ssub.s32 0, %s31
      %s40 = scalar_select %p38, %s39, %s31
      %s41 = sshrl.u32 %s40, 3
      %s42 = ssub.s32 0, %s41
      %s43 = scalar_select %p38, %s42, %s41
      %s44 = ssub.s32 %s37, %s43
      %p45 = scmp.eq.s32.totalorder %s44, 0
      %s47 = sadd.s32 %s46, 1
      %s48 = scalar_select %p45, %s46, %s47
      %p51 = pneg %p45
      %p52 = scmp.eq.s32.totalorder %s5, 1
      %p53 = por %p51, %p52
      %p54 = scmp.ne.s32.totalorder %s46, %s49
      %p55 = scmp.eq.s32.totalorder %s5, 0
      %p56 = por %p54, %p55
      %p57 = scmp.ne.s32.totalorder %s46, %s49
      %p58 = scmp.eq.s32.totalorder %s10, 1
      %p59 = por %p57, %p58
      %p60 = scmp.ne.s32.totalorder %s49, %s50
      %p61 = scmp.eq.s32.totalorder %s10, 0
      %p62 = por %p60, %p61
      %p63 = scmp.ne.s32.totalorder %s49, %s50
      %p64 = scmp.eq.s32.totalorder %s11, 1
      %p65 = por %p63, %p64
      %p67 = scmp.ne.s32.totalorder %s50, %s66
      %p68 = scmp.eq.s32.totalorder %s11, 0
      %p69 = por %p67, %p68
      %p70 = scmp.le.s32.totalorder 1, %s5
      %p71 = scmp.lt.s32.totalorder %s5, 3
      %p72 = pnand %p70, %p71
      %p73 = pneg %p72
      // Predicated region
      $region9: #{custom-call.27} parent=5 // pred_check
        _
      $region10: #{custom-call.27} parent=5 // pred_check_branch
        %75 = sbr.rel (%p72) target = $region12
      $region11: #{custom-call.27} parent=5 // pred_region
        %s76 = ssub.s32 %s5, 1
      $region12: #{custom-call.27} parent=5 // pred_fallthru
        _
      %p77 = scmp.lt.s32.totalorder %s5, 2
      // Predicated region
      $region13: #{custom-call.27} parent=5 // pred_check
        %p78 = pneg %p77
      $region14: #{custom-call.27} parent=5 // pred_check_branch
        %80 = sbr.rel (%p78) target = $region16
      $region15: #{custom-call.27} parent=5 // pred_region
        %s81 = sand.u32 %s5, 1
        %s82 = sand.u32 %s5, 1
        %s83 = smul.addr %s82, 4
        %s84 = scalar_lea.vmem [#allocation1], %s83
        %s85 = sadd.s32 %s14, %s13
        %s86 = sadd.s32 %s85, %s12
        %s87 = smul.addr %s86, 4
        %s88 = scalar_lea.vmem %s0, %s87
        // Predicated region
        $region17: #{custom-call.27} parent=15 // pred_check
          _
        $region18: #{custom-call.27} parent=15 // pred_check_branch
          %90 = sbr.rel (0) target = $region20
        $region19: #{custom-call.27} parent=15 // pred_region
          // Predicated region
          $region21: #{custom-call.27} parent=19 // pred_check
            _
          $region22: #{custom-call.27} parent=19 // pred_check_branch
            %92 = sbr.rel target = $region24
          $region23: #{custom-call.27} parent=19 // pred_region
            // Predicated region
            $region36: #{custom-call.27} parent=23 // pred_check
              _
            $region37: #{custom-call.27} parent=23 // pred_check_branch
              %108 = sbr.rel (0) target = $region39
            $region38: #{custom-call.27} parent=23 // pred_region
              %s110 = ssub.s32 16, 1
              loop: start=0, step=1, limit=1
              $region40: #{custom-call.27} parent=38 // loop_pre_header
                _
              $region41: #{custom-call.27} parent=38 // loop_header
                %s112 = sphi 0, %s116
                %p113 = scmp.ge.s32.totalorder %s112, 1
                %s117 = sphi %s88, %s88
                %s118 = sphi %s84, %s84
              $region42: #{custom-call.27} parent=38 // loop_header_branch
                %115 = sbr.rel (%p113) target = $region46
              $region43: #{custom-call.27} parent=38 // loop_body
                %v119 = vld [vmem:[%s117] sm:%s110]
                %120 = vst [vmem:[%s118] sm:%s110] %v119
              $region44: #{custom-call.27} parent=38 // loop_footer
                %s116 = sadd.s32 1, %s112
              $region45: #{custom-call.27} parent=38 // loop_footer_branch
                %111 = sbr.rel target = $region41
              $region46: #{custom-call.27} parent=38 // loop_exit
                _
            $region39: #{custom-call.27} parent=23 // pred_fallthru
              _
          $region24: #{custom-call.27} parent=19 // pred_fallthru
            _
          // Predicated region
          $region25: #{custom-call.27} parent=19 // pred_check
            _
          $region26: #{custom-call.27} parent=19 // pred_check_branch
            %94 = sbr.rel (0) target = $region28
          $region27: #{custom-call.27} parent=19 // pred_region
            %s96 = ssub.s32 16, 1
            loop: start=0, step=1, limit=1
            $region29: #{custom-call.27} parent=27 // loop_pre_header
              _
            $region30: #{custom-call.27} parent=27 // loop_header
              %s98 = sphi 0, %s102
              %p99 = scmp.ge.s32.totalorder %s98, 1
              %s103 = sphi %s88, %s88
              %s104 = sphi %s84, %s84
            $region31: #{custom-call.27} parent=27 // loop_header_branch
              %101 = sbr.rel (%p99) target = $region35
            $region32: #{custom-call.27} parent=27 // loop_body
              %v105 = vld [vmem:[%s103] sm:%s96]
              %106 = vst [vmem:[%s104] sm:%s96] %v105
            $region33: #{custom-call.27} parent=27 // loop_footer
              %s102 = sadd.s32 1, %s98
            $region34: #{custom-call.27} parent=27 // loop_footer_branch
              %97 = sbr.rel target = $region30
            $region35: #{custom-call.27} parent=27 // loop_exit
              _
          $region28: #{custom-call.27} parent=19 // pred_fallthru
            _
        $region20: #{custom-call.27} parent=15 // pred_fallthru
          _
        %121 = vnop
      $region16: #{custom-call.27} parent=5 // pred_fallthru
        _
      %p122 = scmp.le.s32.totalorder 1, %s5
      %p123 = scmp.lt.s32.totalorder %s5, 3
      %p124 = pnand %p122, %p123
      %p125 = pneg %p124
      // Predicated region
      $region47: #{custom-call.27} parent=5 // pred_check
        _
      $region48: #{custom-call.27} parent=5 // pred_check_branch
        %127 = sbr.rel (%p124) target = $region50
      $region49: #{custom-call.27} parent=5 // pred_region
        #allocation6 [shape = 'f32[3,128]{1,0}', space=vmem, size = 0x1000, scoped, tag = 'scratch for Householder reflectors']
        %s128 = ssub.s32 %s5, 1
        %s129 = sand.u32 %s10, 1
        %s130 = sand.u32 %s10, 1
        %s131 = smul.addr %s130, 4
        %s132 = scalar_lea.vmem [#allocation1], %s131
        %s133 = sand.u32 %s10, 1
        %s134 = sand.u32 %s10, 1
        %s135 = smul.addr %s134, 4
        %s136 = scalar_lea.vmem [#allocation1], %s135
        %s137 = sand.u32 %s10, 1
        %s138 = sand.u32 %s10, 1
        %s139 = smul.addr %s138, 4
        %s140 = scalar_lea.vmem [#allocation3], %s139
        %p141 = pneg %p62
        %p142 = pneg %p59
        %s143 = sand.u32 %s49, 1
        %s144 = sand.u32 %s49, 1
        %s145 = smul.addr %s144, 2
        %s146 = scalar_lea.vmem [#allocation5], %s145
        %s148 = ssub.s32 16, 1
        %v149 = vld [vmem:[%s136] sm:%s148]
        %150 = vst [vmem:[#allocation0] sm:%s148] %v149
        %p151 = scmp.lt.s32.totalorder %s15, 0
        %s152 = ssub.s32 0, %s15
        %s153 = scalar_select %p151, %s152, %s15
        %s154 = sshrl.u32 %s153, 3
        %s155 = ssub.s32 0, %s154
        %s156 = scalar_select %p151, %s155, %s154
        %s157 = sand.u32 %s15, 7
        %s158 = scalar_lea.vmem [#allocation4], %s157
        %v159 = vld [vmem:[#allocation0] sm:$0xff]
        %160 = vst [vmem:[#allocation2] sm:$0xff] %v159
        %161 = vst [vmem:[%s158] sm:$0x1] 0.0
        loop: start=0, step=1, limit=3
        $region51: #{custom-call.27} parent=49 // loop_pre_header
          _
        $region52: #{custom-call.27} parent=49 // loop_header
          %s163 = sphi 0, %s167
          %p164 = scmp.ge.s32.totalorder %s163, 3
        $region53: #{custom-call.27} parent=49 // loop_header_branch
          %166 = sbr.rel (%p164) target = $region57
        $region54: #{custom-call.27} parent=49 // loop_body
          %v168 = vld [vmem:[#allocation2] sm:$0xff]
          %v169 = vlaneseq
          %v170 = vshrl.u32 %v169, 7
          %v172 = vstv %s163
          %vm173 = vcmp.gt.s32.totalorder %v170, %v172
          %vm174 = vcmp.lt.s32.totalorder %v170, 3
          %vm175 = vmand %vm173, %vm174
          %v176 = vsel %vm175, %v168, 0.0
          %v177 = vmul.f32 %v176, %v176
          %v178 = vrot.slane %v177, 4
          %v179 = vadd.f32 %v177, %v178
          %v180 = vrot.slane %v179, 2
          %v181 = vadd.f32 %v179, %v180
          %v182 = vrot.slane %v181, 1
          %v183 = vadd.f32 %v181, %v182
          %v184 = vrsqrt.pop %v183
          %v185 = vmul.f32 %v184, %v183
          %v186 = vmul.f32 %v185, %v184
          %v187 = vmul.f32 0.5, %v186
          %v188 = vsub.f32 1.5, %v187
          %v189 = vmul.f32 %v184, %v188
          %v190 = vmul.f32 %v183, %v189
          %vm191 = vcmp.eq.f32.partialorder %v183, inf
          %v192 = vsel %vm191, %v183, %v190
          %vm193 = vcmp.eq.f32.partialorder %v183, 0.0
          %v194 = vand.u32 %v183, 2147483648
          %v195 = vsel %vm193, %v194, %v192
          %vm196 = vcmp.eq.f32.partialorder %v183, 0.0
          %s197 = sshrl.u32 %s163, 3
          %s198 = sand.u32 %s163, 7
          %s199 = smul.addr %s197, 8
          %s200 = sadd.s32 %s198, %s199
          %s201 = scalar_lea.vmem [#allocation2], %s200
          %v202 = vld [vmem:[%s201] ss:$0 sm:$0xff]
          %v203 = vand.u32 2147483647, %v202
          %v204 = vmax.f32 %v203, 0.0
          %v205 = vand.u32 2147483647, %v195
          %v206 = vmax.f32 %v204, %v205
          %v207 = vrcp.pop %v206
          %v208 = vmul.f32 %v206, %v207
          %v209 = vsub.f32 1.0, %v208
          %v210 = vmul.f32 %v207, %v209
          %v211 = vadd.f32 %v207, %v210
          %vm212 = vweird.f32 %v206
          %vm213 = vweird.f32 %v207
          %vm214 = vmor %vm212, %vm213
          %v215 = vsel %vm214, %v207, %v211
          %v216 = vand.u32 2147483647, %v206
          %vm217 = vcmp.eq.f32.partialorder %v216, 8.507059e+37
          %v218 = vand.u32 %v206, 2147483648
          %v219 = vor.u32 1.1754944e-38, %v218
          %v220 = vsel %vm217, %v219, %v215
          %v221 = vmul.f32 %v203, %v220
          %v222 = vmul.f32 %v221, %v221
          %v223 = vrcp.pop %v206
          %v224 = vmul.f32 %v206, %v223
          %v225 = vsub.f32 1.0, %v224
          %v226 = vmul.f32 %v223, %v225
          %v227 = vadd.f32 %v223, %v226
          %vm228 = vweird.f32 %v206
          %vm229 = vweird.f32 %v223
          %vm230 = vmor %vm228, %vm229
          %v231 = vsel %vm230, %v223, %v227
          %v232 = vand.u32 2147483647, %v206
          %vm233 = vcmp.eq.f32.partialorder %v232, 8.507059e+37
          %v234 = vand.u32 %v206, 2147483648
          %v235 = vor.u32 1.1754944e-38, %v234
          %v236 = vsel %vm233, %v235, %v231
          %v237 = vmul.f32 0.0, %v236
          %v238 = vmul.f32 %v237, %v237
          %v239 = vadd.f32 %v222, %v238
          %v240 = vrcp.pop %v206
          %v241 = vmul.f32 %v206, %v240
          %v242 = vsub.f32 1.0, %v241
          %v243 = vmul.f32 %v240, %v242
          %v244 = vadd.f32 %v240, %v243
          %vm245 = vweird.f32 %v206
          %vm246 = vweird.f32 %v240
          %vm247 = vmor %vm245, %vm246
          %v248 = vsel %vm247, %v240, %v244
          %v249 = vand.u32 2147483647, %v206
          %vm250 = vcmp.eq.f32.partialorder %v249, 8.507059e+37
          %v251 = vand.u32 %v206, 2147483648
          %v252 = vor.u32 1.1754944e-38, %v251
          %v253 = vsel %vm250, %v252, %v248
          %v254 = vmul.f32 %v205, %v253
          %v255 = vmul.f32 %v254, %v254
          %v256 = vadd.f32 %v239, %v255
          %vm257 = vcmp.eq.f32.partialorder %v206, 0.0
          %v258 = vrsqrt.pop %v256
          %v259 = vmul.f32 %v258, %v256
          %v260 = vmul.f32 %v259, %v258
          %v261 = vmul.f32 0.5, %v260
          %v262 = vsub.f32 1.5, %v261
          %v263 = vmul.f32 %v258, %v262
          %v264 = vmul.f32 %v256, %v263
          %vm265 = vcmp.eq.f32.partialorder %v256, inf
          %v266 = vsel %vm265, %v256, %v264
          %vm267 = vcmp.eq.f32.partialorder %v256, 0.0
          %v268 = vand.u32 %v256, 2147483648
          %v269 = vsel %vm267, %v268, %v266
          %v270 = vmul.f32 %v206, %v269
          %v271 = vsel %vm257, 0.0, %v270
          %vm272 = vcmp.lt.f32.partialorder %v202, 0.0
          %v273 = vxor.u32 %v271, 2147483648
          %v274 = vsel %vm272, %v271, %v273
          %v275 = vsub.f32 %v274, %v202
          %v276 = vrcp.pop %v274
          %v277 = vmul.f32 %v274, %v276
          %v278 = vsub.f32 1.0, %v277
          %v279 = vmul.f32 %v276, %v278
          %v280 = vadd.f32 %v276, %v279
          %vm281 = vweird.f32 %v274
          %vm282 = vweird.f32 %v276
          %vm283 = vmor %vm281, %vm282
          %v284 = vsel %vm283, %v276, %v280
          %v285 = vand.u32 2147483647, %v274
          %vm286 = vcmp.eq.f32.partialorder %v285, 8.507059e+37
          %v287 = vand.u32 %v274, 2147483648
          %v288 = vor.u32 1.1754944e-38, %v287
          %v289 = vsel %vm286, %v288, %v284
          %v290 = vmul.f32 %v275, %v289
          %v291 = vsel %vm196, %v202, %v274
          %v292 = vsel %vm196, 0.0, %v290
          %v293 = vsub.f32 %v202, %v291
          %s294 = smov [#allocation2]
          %v295 = vlaneseq
          %v296 = vshrl.u32 %v295, 7
          %v297 = vmov %v296
          %v298 = vld [vmem:[%s294] sm:$0xff]
          %v300 = vstv %s163
          %vm301 = vcmp.gt.s32.totalorder %v297, %v300
          %vm302 = vcmp.lt.s32.totalorder %v297, 3
          %vm303 = vmand %vm301, %vm302
          %v304 = vsel %vm303, %v298, 0.0
          %v305 = vrcp.pop %v293
          %v306 = vmul.f32 %v293, %v305
          %v307 = vsub.f32 1.0, %v306
          %v308 = vmul.f32 %v305, %v307
          %v309 = vadd.f32 %v305, %v308
          %vm310 = vweird.f32 %v293
          %vm311 = vweird.f32 %v305
          %vm312 = vmor %vm310, %vm311
          %v313 = vsel %vm312, %v305, %v309
          %v314 = vand.u32 2147483647, %v293
          %vm315 = vcmp.eq.f32.partialorder %v314, 8.507059e+37
          %v316 = vand.u32 %v293, 2147483648
          %v317 = vor.u32 1.1754944e-38, %v316
          %v318 = vsel %vm315, %v317, %v313
          %v319 = vmul.f32 %v304, %v318
          %v320 = vsel %vm196, 0.0, %v319
          %v321 = vstv %s163
          %v322 = vlaneseq
          %v323 = vand.u32 %v322, 127
          %vm324 = vcmp.eq.s32.totalorder %v323, %v321
          %v325 = vsel %vm324, %v320, 0.0
          %326 = vadd.xlane.f32.xlu0 %v325
          %v327 = vpop.xlane.xlu0 %326
          %328 = vst [vmem:[#allocation6] sm:$0xff] %v327
          %s329 = scalar_lea.vmem [#allocation6], %s163
          %330 = vst [vmem:[%s329] sm:$0x1] 1.0
          %v331 = vstv %s163
          %v332 = vlaneseq
          %v333 = vand.u32 %v332, 127
          %vm334 = vcmp.eq.s32.totalorder %v333, %v331
          %v335 = vsel %vm334, %v292, 0.0
          %336 = vadd.xlane.f32.xlu0 %v335
          %v337 = vpop.xlane.xlu0 %336
          %v338 = vstv %s163
          %v339 = vlaneseq
          %v340 = vand.u32 %v339, 127
          %vm341 = vcmp.eq.s32.totalorder %v340, %v338
          %v342 = vld [vmem:[%s158] ss:$0 sm:$0xff]
          %v343 = vsel %vm341, %v337, %v342
          %344 = vst [vmem:[%s158] sm:$0x1] %v343
          %s345 = smov [#allocation2]
          %s346 = smov [#allocation6]
          %v347 = vlaneseq
          %v348 = vshrl.u32 %v347, 7
          %v349 = vmov %v348
          %v351 = vld [vmem:[%s346] sm:$0xff]
          %v352 = vld [vmem:[%s345] sm:$0xff]
          %v353 = vmul.f32 %v351, %v352
          %vm354 = vcmp.lt.s32.totalorder %v349, 3
          %v355 = vsel %vm354, %v353, 0.0
          %v356 = vrot.slane %v355, 4
          %v357 = vadd.f32 %v355, %v356
          %v358 = vrot.slane %v357, 2
          %v359 = vadd.f32 %v357, %v358
          %v360 = vrot.slane %v359, 1
          %v361 = vadd.f32 %v359, %v360
          %s362 = smov %s345
          %s363 = smov %s346
          %v364 = vlaneseq
          %v365 = vshrl.u32 %v364, 7
          %v366 = vmov %v365
          %v367 = vmul.f32 %v361, %v337
          %v369 = vlaneseq
          %v370 = vand.u32 %v369, 127
          %v371 = vld [vmem:[%s363] sm:$0xff]
          %v372 = vmul.f32 %v371, %v367
          %v373 = vld [vmem:[%s362] sm:$0xff]
          %v374 = vstv %s163
          %vm375 = vcmp.gt.s32.totalorder %v370, %v374
          %v376 = vsub.f32 %v373, %v372
          %v377 = vsel %vm375, %v376, %v373
          %v378 = vstv %s163
          %v379 = vlaneseq
          %v380 = vand.u32 %v379, 127
          %vm381 = vcmp.eq.s32.totalorder %v380, %v378
          %v382 = vstv %s163
          %vm383 = vcmp.ge.s32.totalorder %v366, %v382
          %vm384 = vmand %vm381, %vm383
          %v385 = vsel %vm384, %v371, %v377
          %386 = vst [vmem:[%s362] sm:$0xff] %v385
          %s387 = scalar_lea.vmem %s362, %s163
          %v388 = vld [vmem:[%s387] ss:$0 sm:$0xff]
          %v389 = vstv %s163
          %v390 = vlaneseq
          %v391 = vand.u32 %v390, 127
          %vm392 = vcmp.eq.s32.totalorder %v391, %v389
          %v393 = vsel %vm392, %v291, %v388
          %394 = vst [vmem:[%s387] sm:$0x1] %v393
        $region55: #{custom-call.27} parent=49 // loop_footer
          %s167 = sadd.s32 1, %s163
        $region56: #{custom-call.27} parent=49 // loop_footer_branch
          %162 = sbr.rel target = $region52
        $region57: #{custom-call.27} parent=49 // loop_exit
          _
        %s396 = ssub.s32 16, 1
        %v397 = vld [vmem:[#allocation2] sm:%s396]
        %s399 = ssub.s32 16, 1
        %400 = vst [vmem:[%s140] sm:%s399] %v397
        %s402 = ssub.s32 4, 1
        %v403 = vld [vmem:[#allocation4] sm:%s402]
        %s405 = ssub.s32 4, 1
        %406 = vst [vmem:[%s146] sm:%s405] %v403
        %s407 = sand.u32 %s10, 1
        %s408 = sand.u32 %s10, 1
        %s409 = smul.addr %s408, 4
        %s410 = scalar_lea.vmem [#allocation3], %s409
        %s411 = sand.u32 %s49, 1
        %s412 = sand.u32 %s49, 1
        %s413 = smul.addr %s412, 2
        %s414 = scalar_lea.vmem [#allocation5], %s413
        %s415 = sadd.s32 %s17, %s16
        %s416 = sadd.s32 %s415, %s15
        %s417 = smul.addr %s416, 4
        %s418 = scalar_lea.vmem %s1, %s417
        // Predicated region
        $region58: #{custom-call.27} parent=49 // pred_check
          _
        $region59: #{custom-call.27} parent=49 // pred_check_branch
          %420 = sbr.rel (0) target = $region61
        $region60: #{custom-call.27} parent=49 // pred_region
          // Predicated region
          $region62: #{custom-call.27} parent=60 // pred_check
            _
          $region63: #{custom-call.27} parent=60 // pred_check_branch
            %422 = sbr.rel target = $region65
          $region64: #{custom-call.27} parent=60 // pred_region
            // Predicated region
            $region77: #{custom-call.27} parent=64 // pred_check
              _
            $region78: #{custom-call.27} parent=64 // pred_check_branch
              %438 = sbr.rel (0) target = $region80
            $region79: #{custom-call.27} parent=64 // pred_region
              %s440 = ssub.s32 16, 1
              loop: start=0, step=1, limit=1
              $region81: #{custom-call.27} parent=79 // loop_pre_header
                _
              $region82: #{custom-call.27} parent=79 // loop_header
                %s442 = sphi 0, %s446
                %p443 = scmp.ge.s32.totalorder %s442, 1
                %s447 = sphi %s410, %s410
                %s448 = sphi %s418, %s418
              $region83: #{custom-call.27} parent=79 // loop_header_branch
                %445 = sbr.rel (%p443) target = $region87
              $region84: #{custom-call.27} parent=79 // loop_body
                %v449 = vld [vmem:[%s447] sm:%s440]
                %450 = vst [vmem:[%s448] sm:%s440] %v449
              $region85: #{custom-call.27} parent=79 // loop_footer
                %s446 = sadd.s32 1, %s442
              $region86: #{custom-call.27} parent=79 // loop_footer_branch
                %441 = sbr.rel target = $region82
              $region87: #{custom-call.27} parent=79 // loop_exit
                _
            $region80: #{custom-call.27} parent=64 // pred_fallthru
              _
          $region65: #{custom-call.27} parent=60 // pred_fallthru
            _
          // Predicated region
          $region66: #{custom-call.27} parent=60 // pred_check
            _
          $region67: #{custom-call.27} parent=60 // pred_check_branch
            %424 = sbr.rel (0) target = $region69
          $region68: #{custom-call.27} parent=60 // pred_region
            %s426 = ssub.s32 16, 1
            loop: start=0, step=1, limit=1
            $region70: #{custom-call.27} parent=68 // loop_pre_header
              _
            $region71: #{custom-call.27} parent=68 // loop_header
              %s428 = sphi 0, %s432
              %p429 = scmp.ge.s32.totalorder %s428, 1
              %s433 = sphi %s410, %s410
              %s434 = sphi %s418, %s418
            $region72: #{custom-call.27} parent=68 // loop_header_branch
              %431 = sbr.rel (%p429) target = $region76
            $region73: #{custom-call.27} parent=68 // loop_body
              %v435 = vld [vmem:[%s433] sm:%s426]
              %436 = vst [vmem:[%s434] sm:%s426] %v435
            $region74: #{custom-call.27} parent=68 // loop_footer
              %s432 = sadd.s32 1, %s428
            $region75: #{custom-call.27} parent=68 // loop_footer_branch
              %427 = sbr.rel target = $region71
            $region76: #{custom-call.27} parent=68 // loop_exit
              _
          $region69: #{custom-call.27} parent=60 // pred_fallthru
            _
        $region61: #{custom-call.27} parent=49 // pred_fallthru
          _
        %451 = vnop
        // Predicated region
        $region88: #{custom-call.27} parent=49 // pred_check
          %p452 = pneg %p59
        $region89: #{custom-call.27} parent=49 // pred_check_branch
          %454 = sbr.rel (%p452) target = $region91
        $region90: #{custom-call.27} parent=49 // pred_region
          %p455 = scmp.lt.s32.totalorder %s15, 0
          %s456 = ssub.s32 0, %s15
          %s457 = scalar_select %p455, %s456, %s15
          %s458 = sshrl.u32 %s457, 3
          %s459 = ssub.s32 0, %s458
          %s460 = scalar_select %p455, %s459, %s458
          %s461 = smul.addr %s460, 2
          %s462 = scalar_lea.vmem %s2, %s461
          // Predicated region
          $region92: #{custom-call.27} parent=90 // pred_check
            _
          $region93: #{custom-call.27} parent=90 // pred_check_branch
            %464 = sbr.rel (0) target = $region95
          $region94: #{custom-call.27} parent=90 // pred_region
            // Predicated region
            $region96: #{custom-call.27} parent=94 // pred_check
              _
            $region97: #{custom-call.27} parent=94 // pred_check_branch
              %466 = sbr.rel target = $region99
            $region98: #{custom-call.27} parent=94 // pred_region
              // Predicated region
              $region111: #{custom-call.27} parent=98 // pred_check
                _
              $region112: #{custom-call.27} parent=98 // pred_check_branch
                %482 = sbr.rel (0) target = $region114
              $region113: #{custom-call.27} parent=98 // pred_region
                %s484 = ssub.s32 4, 1
                loop: start=0, step=1, limit=1
                $region115: #{custom-call.27} parent=113 // loop_pre_header
                  _
                $region116: #{custom-call.27} parent=113 // loop_header
                  %s486 = sphi 0, %s490
                  %p487 = scmp.ge.s32.totalorder %s486, 1
                  %s491 = sphi %s414, %s414
                  %s492 = sphi %s462, %s462
                $region117: #{custom-call.27} parent=113 // loop_header_branch
                  %489 = sbr.rel (%p487) target = $region121
                $region118: #{custom-call.27} parent=113 // loop_body
                  %v493 = vld [vmem:[%s491] sm:%s484]
                  %494 = vst [vmem:[%s492] sm:%s484] %v493
                $region119: #{custom-call.27} parent=113 // loop_footer
                  %s490 = sadd.s32 1, %s486
                $region120: #{custom-call.27} parent=113 // loop_footer_branch
                  %485 = sbr.rel target = $region116
                $region121: #{custom-call.27} parent=113 // loop_exit
                  _
              $region114: #{custom-call.27} parent=98 // pred_fallthru
                _
            $region99: #{custom-call.27} parent=94 // pred_fallthru
              _
            // Predicated region
            $region100: #{custom-call.27} parent=94 // pred_check
              _
            $region101: #{custom-call.27} parent=94 // pred_check_branch
              %468 = sbr.rel (0) target = $region103
            $region102: #{custom-call.27} parent=94 // pred_region
              %s470 = ssub.s32 4, 1
              loop: start=0, step=1, limit=1
              $region104: #{custom-call.27} parent=102 // loop_pre_header
                _
              $region105: #{custom-call.27} parent=102 // loop_header
                %s472 = sphi 0, %s476
                %p473 = scmp.ge.s32.totalorder %s472, 1
                %s477 = sphi %s414, %s414
                %s478 = sphi %s462, %s462
              $region106: #{custom-call.27} parent=102 // loop_header_branch
                %475 = sbr.rel (%p473) target = $region110
              $region107: #{custom-call.27} parent=102 // loop_body
                %v479 = vld [vmem:[%s477] sm:%s470]
                %480 = vst [vmem:[%s478] sm:%s470] %v479
              $region108: #{custom-call.27} parent=102 // loop_footer
                %s476 = sadd.s32 1, %s472
              $region109: #{custom-call.27} parent=102 // loop_footer_branch
                %471 = sbr.rel target = $region105
              $region110: #{custom-call.27} parent=102 // loop_exit
                _
            $region103: #{custom-call.27} parent=94 // pred_fallthru
              _
          $region95: #{custom-call.27} parent=90 // pred_fallthru
            _
          %495 = vnop
        $region91: #{custom-call.27} parent=49 // pred_fallthru
          _
      $region50: #{custom-call.27} parent=5 // pred_fallthru
        _
      %p496 = scmp.le.s32.totalorder 2, %s5
      // Predicated region
      $region122: #{custom-call.27} parent=5 // pred_check
        %p497 = pneg %p496
      $region123: #{custom-call.27} parent=5 // pred_check_branch
        %499 = sbr.rel (%p497) target = $region125
      $region124: #{custom-call.27} parent=5 // pred_region
        %s500 = ssub.s32 %s5, 2
        %s501 = sand.u32 %s11, 1
        %s502 = sand.u32 %s11, 1
        %s503 = smul.addr %s502, 4
        %s504 = scalar_lea.vmem [#allocation3], %s503
        // Predicated region
        $region126: #{custom-call.27} parent=124 // pred_check
          %p505 = pneg %p65
        $region127: #{custom-call.27} parent=124 // pred_check_branch
          %507 = sbr.rel (%p505) target = $region129
        $region128: #{custom-call.27} parent=124 // pred_region
          %s508 = sand.u32 %s50, 1
          %s509 = sand.u32 %s50, 1
          %s510 = smul.addr %s509, 2
          %s511 = scalar_lea.vmem [#allocation5], %s510
        $region129: #{custom-call.27} parent=124 // pred_fallthru
          _
      $region125: #{custom-call.27} parent=5 // pred_fallthru
        _
    $region6: #{custom-call.27} parent=1 // loop_footer
      %s9 = sadd.s32 1, %s5
    $region7: #{custom-call.27} parent=1 // loop_footer_branch
      %4 = sbr.rel target = $region3
    $region8: #{custom-call.27} parent=1 // loop_exit
      _

</llo_original>
